<compile_context>
chip_gen: v7x
topology: tpu7x:2x2x1
jax: 0.10.0
libtpu: 0.0.40
codegen_flags: <defaults>
</compile_context>

<pallas_src>
import functools

import jax
import jax.numpy as jnp
from jax.experimental import pallas as pl
from jax.experimental.pallas import tpu as pltpu


# --------------------------------------------------------------------------------------
# Config (lane-aligned mini-BERT)
# --------------------------------------------------------------------------------------
CFG = dict(vocab=128, hidden=256, heads=2, head_dim=128, ffn=512, layers=2,
           classes=2, classes_padded=128, seq=128, batch=2)
LN_EPS = 1e-12


def _layer_norm(x, gamma, beta, eps=LN_EPS):
    mu = jnp.mean(x, axis=-1, keepdims=True)
    var = jnp.mean(jnp.square(x - mu), axis=-1, keepdims=True)
    return (x - mu) * jax.lax.rsqrt(var + eps) * gamma + beta


# --------------------------------------------------------------------------------------
# Kernel 1: embedding sum (word + pos + token_type) + LayerNorm
# --------------------------------------------------------------------------------------
def _embed_ln_kernel(word_ref, pos_ref, tok_ref, g_ref, b_ref, o_ref):
    e = word_ref[...] + pos_ref[...] + tok_ref[...]            # [S,H] f32
    o_ref[...] = _layer_norm(e, g_ref[...], b_ref[...])


def embed_layernorm(word, pos, tok, gamma, beta):
    B, S, H = word.shape
    return pl.pallas_call(
        _embed_ln_kernel,
        out_shape=jax.ShapeDtypeStruct((B, S, H), jnp.float32),
        grid=(B,),
        in_specs=[
            pl.BlockSpec((None, S, H), lambda b: (b, 0, 0)),
            pl.BlockSpec((S, H), lambda b: (0, 0)),
            pl.BlockSpec((1, H), lambda b: (0, 0)),
            pl.BlockSpec((1, H), lambda b: (0, 0)),
            pl.BlockSpec((1, H), lambda b: (0, 0)),
        ],
        out_specs=pl.BlockSpec((None, S, H), lambda b: (b, 0, 0)),
        compiler_params=pltpu.CompilerParams(dimension_semantics=("parallel",)),
    )(word, pos, tok, gamma, beta)


# --------------------------------------------------------------------------------------
# Kernel 2: full transformer encoder stack, fused (grid = (batch, layer))
#   - layer weights streamed per grid step (stacked leading layer axis)
#   - hidden state carried layer-to-layer in the resident output block (no HBM trips)
# --------------------------------------------------------------------------------------
def _encoder_stack_kernel(x_ref, bias_ref, wqkv_ref, bqkv_ref, wo_ref, bo_ref,
                          ln1g_ref, ln1b_ref, w1_ref, b1_ref, w2_ref, b2_ref,
                          ln2g_ref, ln2b_ref, o_ref, *, nh, hd, scale):
    l = pl.program_id(1)

    @pl.when(l == 0)
    def _():                                                   # seed carry with embeddings
        o_ref[...] = x_ref[...]

    x = o_ref[...]                                             # [S,H] f32 (layer input)
    S, H = x.shape
    bias = bias_ref[...]                                       # [1,S] additive mask

    # fused Q/K/V projection: single [H, 3H] bf16 MXU matmul, f32 accumulation
    qkv = jnp.dot(x.astype(jnp.bfloat16), wqkv_ref[...],
                  preferred_element_type=jnp.float32) + bqkv_ref[...]       # [S,3H]

    # per-head attention + per-head slice of the output projection (no concat/transpose)
    attn = None
    for h in range(nh):                                        # static unroll over heads
        q = qkv[:, h * hd:(h + 1) * hd]
        k = qkv[:, H + h * hd:H + (h + 1) * hd]
        v = qkv[:, 2 * H + h * hd:2 * H + (h + 1) * hd]
        s = jax.lax.dot_general(q.astype(jnp.bfloat16), k.astype(jnp.bfloat16),
                                (((1,), (1,)), ((), ())),
                                preferred_element_type=jnp.float32) * scale + bias
        s_max = jnp.max(s, axis=-1, keepdims=True)
        p = jnp.exp(s - s_max)                                 # f32 softmax math
        p = p * pl.reciprocal(jnp.sum(p, axis=-1, keepdims=True), approx=True)
        ctx_h = jnp.dot(p.astype(jnp.bfloat16), v.astype(jnp.bfloat16),
                        preferred_element_type=jnp.float32)                 # [S,hd]
        part = jnp.dot(ctx_h.astype(jnp.bfloat16), wo_ref[h * hd:(h + 1) * hd, :],
                       preferred_element_type=jnp.float32)                  # [S,H]
        attn = part if attn is None else attn + part
    attn = attn + bo_ref[...]

    x1 = _layer_norm(attn + x, ln1g_ref[...], ln1b_ref[...])   # residual + LN (f32)

    # feed-forward: GELU(x1 @ W1 + b1) @ W2 + b2, residual + LN
    ff = jnp.dot(x1.astype(jnp.bfloat16), w1_ref[...],
                 preferred_element_type=jnp.float32) + b1_ref[...]
    # TODO(synk): HF bert-base-cased uses exact erf-GELU; tanh approximation used here.
    ff = jax.nn.gelu(ff, approximate=True)
    ff2 = jnp.dot(ff.astype(jnp.bfloat16), w2_ref[...],
                  preferred_element_type=jnp.float32) + b2_ref[...]

    o_ref[...] = _layer_norm(ff2 + x1, ln2g_ref[...], ln2b_ref[...])


def encoder_stack(x, mask_bias, enc, *, nh, hd):
    B, S, H = x.shape
    L = enc["wqkv"].shape[0]
    F = enc["w1"].shape[2]
    kernel = functools.partial(_encoder_stack_kernel, nh=nh, hd=hd,
                               scale=1.0 / (hd ** 0.5))

    def per_layer(r, c):                                       # streamed layer weights
        return pl.BlockSpec((None, r, c), lambda b, l: (l, 0, 0))

    def per_batch(r, c):                                       # fetched once per batch elem
        return pl.BlockSpec((None, r, c), lambda b, l: (b, 0, 0))

    return pl.pallas_call(
        kernel,
        out_shape=jax.ShapeDtypeStruct((B, S, H), jnp.float32),
        grid=(B, L),
        in_specs=[
            per_batch(S, H),                                   # x (embedding output)
            per_batch(1, S),                                   # additive mask bias
            per_layer(H, 3 * H), per_layer(1, 3 * H),          # wqkv (bf16), bqkv
            per_layer(H, H), per_layer(1, H),                  # wo (bf16), bo
            per_layer(1, H), per_layer(1, H),                  # ln1 gamma, beta
            per_layer(H, F), per_layer(1, F),                  # w1 (bf16), b1
            per_layer(F, H), per_layer(1, H),                  # w2 (bf16), b2
            per_layer(1, H), per_layer(1, H),                  # ln2 gamma, beta
        ],
        out_specs=per_batch(S, H),                             # resident across layer axis
        compiler_params=pltpu.CompilerParams(
            dimension_semantics=("parallel", "arbitrary")),
    )(x, mask_bias, enc["wqkv"], enc["bqkv"], enc["wo"], enc["bo"],
      enc["ln1_g"], enc["ln1_b"], enc["w1"], enc["b1"], enc["w2"], enc["b2"],
      enc["ln2_g"], enc["ln2_b"])


# --------------------------------------------------------------------------------------
# Kernel 3: fused pooler (tanh) + dropout(eval) + classifier Linear + ReLU
# --------------------------------------------------------------------------------------
def _pooler_classifier_kernel(cls_ref, pw_ref, pb_ref, cw_ref, cb_ref, o_ref):
    pooled = jnp.tanh(jnp.dot(cls_ref[...].astype(jnp.bfloat16), pw_ref[...],
                              preferred_element_type=jnp.float32) + pb_ref[...])
    # TODO(synk): nn.Dropout(p=0.5) applied as identity (eval/inference semantics).
    logits = jnp.dot(pooled.astype(jnp.bfloat16), cw_ref[...],
                     preferred_element_type=jnp.float32) + cb_ref[...]
    o_ref[...] = jnp.maximum(logits, 0.0)                      # ReLU


def pooler_classifier(cls_tok, pool_w, pool_b, cls_w_pad, cls_b_pad):
    B, H = cls_tok.shape
    NP = cls_w_pad.shape[1]
    return pl.pallas_call(
        _pooler_classifier_kernel,
        out_shape=jax.ShapeDtypeStruct((B, NP), jnp.float32),
        grid=(1,),
        in_specs=[
            pl.BlockSpec((B, H), lambda i: (0, 0)),
            pl.BlockSpec((H, H), lambda i: (0, 0)),
            pl.BlockSpec((1, H), lambda i: (0, 0)),
            pl.BlockSpec((H, NP), lambda i: (0, 0)),
            pl.BlockSpec((1, NP), lambda i: (0, 0)),
        ],
        out_specs=pl.BlockSpec((B, NP), lambda i: (0, 0)),
    )(cls_tok, pool_w, pool_b, cls_w_pad, cls_b_pad)


# --------------------------------------------------------------------------------------
# Parameters (deterministic synthetic init, mirrors BERT module structure)
# --------------------------------------------------------------------------------------
def init_params(key, cfg=CFG):
    H, F, NP, nc, L = (cfg["hidden"], cfg["ffn"], cfg["classes_padded"],
                       cfg["classes"], cfg["layers"])
    keys = iter(jax.random.split(key, 64))

    def w(shape, dtype=jnp.bfloat16):
        return (jax.random.normal(next(keys), shape, jnp.float32) * 0.02).astype(dtype)

    # classifier Linear(H, 2): zero-pad the output dim to 128 lanes (sliced outside)
    cls_w = jnp.zeros((H, NP), jnp.float32).at[:, :nc].set(
        jax.random.normal(next(keys), (H, nc), jnp.float32) * 0.02)

    return {
        "word_emb": w((cfg["vocab"], H), jnp.float32),
        "pos_emb": w((cfg["seq"], H), jnp.float32),
        "type_emb": w((2, H), jnp.float32),
        "emb_ln_g": jnp.ones((1, H), jnp.float32),
        "emb_ln_b": jnp.zeros((1, H), jnp.float32),
        "pool_w": w((H, H)),                                   # bf16 MXU weight
        "pool_b": jnp.zeros((1, H), jnp.float32),
        "cls_w": cls_w.astype(jnp.bfloat16),
        "cls_b": jnp.zeros((1, NP), jnp.float32),
        # encoder stack: all layer weights stacked with a leading layer axis
        "enc": {
            "wqkv": w((L, H, 3 * H)), "bqkv": jnp.zeros((L, 1, 3 * H), jnp.float32),
            "wo": w((L, H, H)), "bo": jnp.zeros((L, 1, H), jnp.float32),
            "ln1_g": jnp.ones((L, 1, H), jnp.float32),
            "ln1_b": jnp.zeros((L, 1, H), jnp.float32),
            "w1": w((L, H, F)), "b1": jnp.zeros((L, 1, F), jnp.float32),
            "w2": w((L, F, H)), "b2": jnp.zeros((L, 1, H), jnp.float32),
            "ln2_g": jnp.ones((L, 1, H), jnp.float32),
            "ln2_b": jnp.zeros((L, 1, H), jnp.float32),
        },
    }


# --------------------------------------------------------------------------------------
# Forward pass (BertClassifier.forward semantics)
# --------------------------------------------------------------------------------------
def bert_classifier_forward(params, input_ids, mask):
    cfg = CFG
    B, S = input_ids.shape
    nh, hd = cfg["heads"], cfg["head_dim"]

    # embedding gathers are XLA glue; sum + LayerNorm fused in one Pallas kernel
    word = params["word_emb"][input_ids]                        # (B,S,H) f32
    pos = params["pos_emb"][:S]                                 # (S,H)
    tok = params["type_emb"][0:1]                               # (1,H), token_type_id = 0
    x = embed_layernorm(word, pos, tok, params["emb_ln_g"], params["emb_ln_b"])

    # additive attention-mask bias, (B,1,S): 0 where attended, -1e9 where padded
    mask_bias = (1.0 - mask.astype(jnp.float32))[:, None, :] * -1e9

    # full encoder stack in one fused Pallas kernel (grid over batch x layer)
    x = encoder_stack(x, mask_bias, params["enc"], nh=nh, hd=hd)

    # BERT pooler + dropout(eval) + Linear(H,2) + ReLU in one fused head kernel
    cls_tok = x[:, 0, :]                                        # (B,H) CLS token
    head = pooler_classifier(cls_tok, params["pool_w"], params["pool_b"],
                             params["cls_w"], params["cls_b"])  # (B,128) lane-dense
    return head[:, :cfg["classes"]]                             # (B,2) float32


# --------------------------------------------------------------------------------------
if __name__ == "__main__":
    key = jax.random.PRNGKey(0)
    k_param, k_ids = jax.random.split(key)

    B, S = CFG["batch"], CFG["seq"]
    params = init_params(k_param)
    input_id = jax.random.randint(k_ids, (B, S), 0, CFG["vocab"], dtype=jnp.int32)
    # attention mask: batch 0 fully attended, batch 1 has 32 padded positions
    mask = jnp.concatenate(
        [jnp.ones((1, S), jnp.int32),
         jnp.concatenate([jnp.ones((1, S - 32), jnp.int32),
                          jnp.zeros((1, 32), jnp.int32)], axis=1)],
        axis=0)

    forward = jax.jit(bert_classifier_forward)
    out = jax.block_until_ready(forward(params, input_id, mask))

    assert out.shape == (B, CFG["classes"]) and out.dtype == jnp.float32
    assert bool(jnp.all(out >= 0.0))   # ReLU output is non-negative
    assert bool(jnp.all(jnp.isfinite(out)))
    print("KERNEL_OK")
</pallas_src>

<mosaic_0001>
module attributes {stable_mosaic.version = 11 : i64} {
  func.func @_embed_ln_kernel(%arg0: i32, %arg1: memref<1x128x256xf32, #tpu.memory_space<vmem>>, %arg2: memref<128x256xf32, #tpu.memory_space<vmem>>, %arg3: memref<1x256xf32, #tpu.memory_space<vmem>>, %arg4: memref<1x256xf32, #tpu.memory_space<vmem>>, %arg5: memref<1x256xf32, #tpu.memory_space<vmem>>, %arg6: memref<1x128x256xf32, #tpu.memory_space<vmem>>) attributes {dimension_semantics = [#tpu.dimension_semantics<parallel>], iteration_bounds = array<i64: 2>, scalar_prefetch = 0 : i64, scratch_operands = 0 : i64, tpu.core_type = #tpu.core_type<tc>, window_params = [{transform_indices = @transform_0, window_bounds = array<i64: 1, 128, 256>}, {pipeline_mode = #tpu.pipeline_mode<synchronous>, transform_indices = @transform_1, window_bounds = array<i64: 128, 256>}, {pipeline_mode = #tpu.pipeline_mode<synchronous>, transform_indices = @transform_2, window_bounds = array<i64: 1, 256>}, {pipeline_mode = #tpu.pipeline_mode<synchronous>, transform_indices = @transform_3, window_bounds = array<i64: 1, 256>}, {pipeline_mode = #tpu.pipeline_mode<synchronous>, transform_indices = @transform_4, window_bounds = array<i64: 1, 256>}, {transform_indices = @transform_5, window_bounds = array<i64: 1, 128, 256>}]} {
    %c0 = arith.constant 0 : index
    %c0_0 = arith.constant 0 : index
    %c0_1 = arith.constant 0 : index
    %0 = vector.load %arg1[%c0, %c0_0, %c0_1] : memref<1x128x256xf32, #tpu.memory_space<vmem>>, vector<1x128x256xf32>
    %1 = vector.shape_cast %0 : vector<1x128x256xf32> to vector<128x256xf32>
    %c0_2 = arith.constant 0 : index
    %c0_3 = arith.constant 0 : index
    %2 = vector.load %arg2[%c0_2, %c0_3] : memref<128x256xf32, #tpu.memory_space<vmem>>, vector<128x256xf32>
    %3 = arith.addf %1, %2 : vector<128x256xf32>
    %c0_4 = arith.constant 0 : index
    %c0_5 = arith.constant 0 : index
    %4 = vector.load %arg3[%c0_4, %c0_5] : memref<1x256xf32, #tpu.memory_space<vmem>>, vector<1x256xf32>
    %5 = vector.broadcast %4 : vector<1x256xf32> to vector<128x256xf32>
    %6 = arith.addf %3, %5 : vector<128x256xf32>
    %c0_6 = arith.constant 0 : index
    %c0_7 = arith.constant 0 : index
    %7 = vector.load %arg4[%c0_6, %c0_7] : memref<1x256xf32, #tpu.memory_space<vmem>>, vector<1x256xf32>
    %c0_8 = arith.constant 0 : index
    %c0_9 = arith.constant 0 : index
    %8 = vector.load %arg5[%c0_8, %c0_9] : memref<1x256xf32, #tpu.memory_space<vmem>>, vector<1x256xf32>
    %cst = arith.constant dense<0.000000e+00> : vector<128xf32>
    %9 = vector.multi_reduction <add>, %6, %cst [1] : vector<128x256xf32> to vector<128xf32>
    %10 = vector.shape_cast %9 : vector<128xf32> to vector<128x1xf32>
    %cst_10 = arith.constant 2.560000e+02 : f32
    %11 = vector.broadcast %cst_10 : f32 to vector<128x1xf32>
    %12 = arith.divf %10, %11 : vector<128x1xf32>
    %13 = vector.broadcast %12 : vector<128x1xf32> to vector<128x256xf32>
    %14 = arith.subf %6, %13 : vector<128x256xf32>
    %15 = arith.mulf %14, %14 : vector<128x256xf32>
    %cst_11 = arith.constant dense<0.000000e+00> : vector<128xf32>
    %16 = vector.multi_reduction <add>, %15, %cst_11 [1] : vector<128x256xf32> to vector<128xf32>
    %17 = vector.shape_cast %16 : vector<128xf32> to vector<128x1xf32>
    %cst_12 = arith.constant 2.560000e+02 : f32
    %18 = vector.broadcast %cst_12 : f32 to vector<128x1xf32>
    %19 = arith.divf %17, %18 : vector<128x1xf32>
    %20 = vector.broadcast %12 : vector<128x1xf32> to vector<128x256xf32>
    %21 = arith.subf %6, %20 : vector<128x256xf32>
    %cst_13 = arith.constant 9.99999996E-13 : f32
    %22 = vector.broadcast %cst_13 : f32 to vector<128x1xf32>
    %23 = arith.addf %19, %22 : vector<128x1xf32>
    %24 = math.rsqrt %23 : vector<128x1xf32>
    %25 = vector.broadcast %24 : vector<128x1xf32> to vector<128x256xf32>
    %26 = arith.mulf %21, %25 : vector<128x256xf32>
    %27 = vector.broadcast %7 : vector<1x256xf32> to vector<128x256xf32>
    %28 = arith.mulf %26, %27 : vector<128x256xf32>
    %29 = vector.broadcast %8 : vector<1x256xf32> to vector<128x256xf32>
    %30 = arith.addf %28, %29 : vector<128x256xf32>
    %c0_14 = arith.constant 0 : index
    %c0_15 = arith.constant 0 : index
    %c0_16 = arith.constant 0 : index
    %31 = vector.load %arg6[%c0_14, %c0_15, %c0_16] : memref<1x128x256xf32, #tpu.memory_space<vmem>>, vector<1x128x256xf32>
    %32 = vector.shape_cast %31 : vector<1x128x256xf32> to vector<128x256xf32>
    %33 = vector.shape_cast %30 : vector<128x256xf32> to vector<1x128x256xf32>
    tpu.vector_store %arg6[%c0_14, %c0_15, %c0_16], %33 {strides = array<i32>} : memref<1x128x256xf32, #tpu.memory_space<vmem>>, vector<1x128x256xf32>,
    return
  }
  func.func @transform_0(%arg0: i32) -> (i32, i32, i32) {
    %c0_i32 = arith.constant 0 : i32
    %c0_i32_0 = arith.constant 0 : i32
    %c0_i32_1 = arith.constant 0 : i32
    return %arg0, %c0_i32, %c0_i32_0 : i32, i32, i32
  }
  func.func @transform_1(%arg0: i32) -> (i32, i32) {
    %c0_i32 = arith.constant 0 : i32
    %c0_i32_0 = arith.constant 0 : i32
    %c0_i32_1 = arith.constant 0 : i32
    return %c0_i32, %c0_i32_0 : i32, i32
  }
  func.func @transform_2(%arg0: i32) -> (i32, i32) {
    %c0_i32 = arith.constant 0 : i32
    %c0_i32_0 = arith.constant 0 : i32
    %c0_i32_1 = arith.constant 0 : i32
    return %c0_i32, %c0_i32_0 : i32, i32
  }
  func.func @transform_3(%arg0: i32) -> (i32, i32) {
    %c0_i32 = arith.constant 0 : i32
    %c0_i32_0 = arith.constant 0 : i32
    %c0_i32_1 = arith.constant 0 : i32
    return %c0_i32, %c0_i32_0 : i32, i32
  }
  func.func @transform_4(%arg0: i32) -> (i32, i32) {
    %c0_i32 = arith.constant 0 : i32
    %c0_i32_0 = arith.constant 0 : i32
    %c0_i32_1 = arith.constant 0 : i32
    return %c0_i32, %c0_i32_0 : i32, i32
  }
  func.func @transform_5(%arg0: i32) -> (i32, i32, i32) {
    %c0_i32 = arith.constant 0 : i32
    %c0_i32_0 = arith.constant 0 : i32
    %c0_i32_1 = arith.constant 0 : i32
    return %arg0, %c0_i32, %c0_i32_0 : i32, i32, i32
  }
}

module attributes {stable_mosaic.version = 11 : i64} {
  func.func @_pooler_classifier_kernel(%arg0: i32, %arg1: memref<2x256xf32, #tpu.memory_space<vmem>>, %arg2: memref<256x256xbf16, #tpu.memory_space<vmem>>, %arg3: memref<1x256xf32, #tpu.memory_space<vmem>>, %arg4: memref<256x128xbf16, #tpu.memory_space<vmem>>, %arg5: memref<1x128xf32, #tpu.memory_space<vmem>>, %arg6: memref<2x128xf32, #tpu.memory_space<vmem>>) attributes {dimension_semantics = [#tpu.dimension_semantics<arbitrary>], iteration_bounds = array<i64: 1>, scalar_prefetch = 0 : i64, scratch_operands = 0 : i64, tpu.core_type = #tpu.core_type<tc>, window_params = [{pipeline_mode = #tpu.pipeline_mode<synchronous>, transform_indices = @transform_0, window_bounds = array<i64: 2, 256>}, {pipeline_mode = #tpu.pipeline_mode<synchronous>, transform_indices = @transform_1, window_bounds = array<i64: 256, 256>}, {pipeline_mode = #tpu.pipeline_mode<synchronous>, transform_indices = @transform_2, window_bounds = array<i64: 1, 256>}, {pipeline_mode = #tpu.pipeline_mode<synchronous>, transform_indices = @transform_3, window_bounds = array<i64: 256, 128>}, {pipeline_mode = #tpu.pipeline_mode<synchronous>, transform_indices = @transform_4, window_bounds = array<i64: 1, 128>}, {pipeline_mode = #tpu.pipeline_mode<synchronous>, transform_indices = @transform_5, window_bounds = array<i64: 2, 128>}]} {
    %c0 = arith.constant 0 : index
    %c0_0 = arith.constant 0 : index
    %0 = vector.load %arg1[%c0, %c0_0] : memref<2x256xf32, #tpu.memory_space<vmem>>, vector<2x256xf32>
    %1 = arith.truncf %0 : vector<2x256xf32> to vector<2x256xbf16>
    %c0_1 = arith.constant 0 : index
    %c0_2 = arith.constant 0 : index
    %2 = vector.load %arg2[%c0_1, %c0_2] : memref<256x256xbf16, #tpu.memory_space<vmem>>, vector<256x256xbf16>
    %cst = arith.constant dense<0.000000e+00> : vector<2x256xf32>
    %3 = tpu.matmul %1, %2, %cst {dimension_numbers = #tpu.dot_dimension_numbers<[1], [0], [0], [1], [0, 0, 1, 1], [], []>} : vector<2x256xbf16>, vector<256x256xbf16>, vector<2x256xf32> -> vector<2x256xf32>
    %c0_3 = arith.constant 0 : index
    %c0_4 = arith.constant 0 : index
    %4 = vector.load %arg3[%c0_3, %c0_4] : memref<1x256xf32, #tpu.memory_space<vmem>>, vector<1x256xf32>
    %5 = vector.broadcast %4 : vector<1x256xf32> to vector<2x256xf32>
    %6 = arith.addf %3, %5 : vector<2x256xf32>
    %7 = math.tanh %6 : vector<2x256xf32>
    %8 = arith.truncf %7 : vector<2x256xf32> to vector<2x256xbf16>
    %c0_5 = arith.constant 0 : index
    %c0_6 = arith.constant 0 : index
    %9 = vector.load %arg4[%c0_5, %c0_6] : memref<256x128xbf16, #tpu.memory_space<vmem>>, vector<256x128xbf16>
    %cst_7 = arith.constant dense<0.000000e+00> : vector<2x128xf32>
    %10 = tpu.matmul %8, %9, %cst_7 {dimension_numbers = #tpu.dot_dimension_numbers<[1], [0], [0], [1], [0, 0, 1, 1], [], []>} : vector<2x256xbf16>, vector<256x128xbf16>, vector<2x128xf32> -> vector<2x128xf32>
    %c0_8 = arith.constant 0 : index
    %c0_9 = arith.constant 0 : index
    %11 = vector.load %arg5[%c0_8, %c0_9] : memref<1x128xf32, #tpu.memory_space<vmem>>, vector<1x128xf32>
    %12 = vector.broadcast %11 : vector<1x128xf32> to vector<2x128xf32>
    %13 = arith.addf %10, %12 : vector<2x128xf32>
    %cst_10 = arith.constant 0.000000e+00 : f32
    %14 = vector.broadcast %cst_10 : f32 to vector<2x128xf32>
    %15 = arith.maximumf %13, %14 : vector<2x128xf32>
    %c0_11 = arith.constant 0 : index
    %c0_12 = arith.constant 0 : index
    %16 = vector.load %arg6[%c0_11, %c0_12] : memref<2x128xf32, #tpu.memory_space<vmem>>, vector<2x128xf32>
    tpu.vector_store %arg6[%c0_11, %c0_12], %15 {strides = array<i32>} : memref<2x128xf32, #tpu.memory_space<vmem>>, vector<2x128xf32>,
    return
  }
  func.func @transform_0(%arg0: i32) -> (i32, i32) {
    %c0_i32 = arith.constant 0 : i32
    %c0_i32_0 = arith.constant 0 : i32
    %c0_i32_1 = arith.constant 0 : i32
    return %c0_i32, %c0_i32_0 : i32, i32
  }
  func.func @transform_1(%arg0: i32) -> (i32, i32) {
    %c0_i32 = arith.constant 0 : i32
    %c0_i32_0 = arith.constant 0 : i32
    %c0_i32_1 = arith.constant 0 : i32
    return %c0_i32, %c0_i32_0 : i32, i32
  }
  func.func @transform_2(%arg0: i32) -> (i32, i32) {
    %c0_i32 = arith.constant 0 : i32
    %c0_i32_0 = arith.constant 0 : i32
    %c0_i32_1 = arith.constant 0 : i32
    return %c0_i32, %c0_i32_0 : i32, i32
  }
  func.func @transform_3(%arg0: i32) -> (i32, i32) {
    %c0_i32 = arith.constant 0 : i32
    %c0_i32_0 = arith.constant 0 : i32
    %c0_i32_1 = arith.constant 0 : i32
    return %c0_i32, %c0_i32_0 : i32, i32
  }
  func.func @transform_4(%arg0: i32) -> (i32, i32) {
    %c0_i32 = arith.constant 0 : i32
    %c0_i32_0 = arith.constant 0 : i32
    %c0_i32_1 = arith.constant 0 : i32
    return %c0_i32, %c0_i32_0 : i32, i32
  }
  func.func @transform_5(%arg0: i32) -> (i32, i32) {
    %c0_i32 = arith.constant 0 : i32
    %c0_i32_0 = arith.constant 0 : i32
    %c0_i32_1 = arith.constant 0 : i32
    return %c0_i32, %c0_i32_0 : i32, i32
  }
}

module attributes {stable_mosaic.version = 11 : i64} {
  func.func @_encoder_stack_kernel(%arg0: i32, %arg1: i32, %arg2: memref<1x128x256xf32, #tpu.memory_space<vmem>>, %arg3: memref<1x1x128xf32, #tpu.memory_space<vmem>>, %arg4: memref<1x256x768xbf16, #tpu.memory_space<vmem>>, %arg5: memref<1x1x768xf32, #tpu.memory_space<vmem>>, %arg6: memref<1x256x256xbf16, #tpu.memory_space<vmem>>, %arg7: memref<1x1x256xf32, #tpu.memory_space<vmem>>, %arg8: memref<1x1x256xf32, #tpu.memory_space<vmem>>, %arg9: memref<1x1x256xf32, #tpu.memory_space<vmem>>, %arg10: memref<1x256x512xbf16, #tpu.memory_space<vmem>>, %arg11: memref<1x1x512xf32, #tpu.memory_space<vmem>>, %arg12: memref<1x512x256xbf16, #tpu.memory_space<vmem>>, %arg13: memref<1x1x256xf32, #tpu.memory_space<vmem>>, %arg14: memref<1x1x256xf32, #tpu.memory_space<vmem>>, %arg15: memref<1x1x256xf32, #tpu.memory_space<vmem>>, %arg16: memref<1x128x256xf32, #tpu.memory_space<vmem>>) attributes {dimension_semantics = [#tpu.dimension_semantics<parallel>, #tpu.dimension_semantics<arbitrary>], iteration_bounds = array<i64: 2, 2>, scalar_prefetch = 0 : i64, scratch_operands = 0 : i64, tpu.core_type = #tpu.core_type<tc>, window_params = [{transform_indices = @transform_0, window_bounds = array<i64: 1, 128, 256>}, {transform_indices = @transform_1, window_bounds = array<i64: 1, 1, 128>}, {transform_indices = @transform_2, window_bounds = array<i64: 1, 256, 768>}, {transform_indices = @transform_3, window_bounds = array<i64: 1, 1, 768>}, {transform_indices = @transform_4, window_bounds = array<i64: 1, 256, 256>}, {transform_indices = @transform_5, window_bounds = array<i64: 1, 1, 256>}, {transform_indices = @transform_6, window_bounds = array<i64: 1, 1, 256>}, {transform_indices = @transform_7, window_bounds = array<i64: 1, 1, 256>}, {transform_indices = @transform_8, window_bounds = array<i64: 1, 256, 512>}, {transform_indices = @transform_9, window_bounds = array<i64: 1, 1, 512>}, {transform_indices = @transform_10, window_bounds = array<i64: 1, 512, 256>}, {transform_indices = @transform_11, window_bounds = array<i64: 1, 1, 256>}, {transform_indices = @transform_12, window_bounds = array<i64: 1, 1, 256>}, {transform_indices = @transform_13, window_bounds = array<i64: 1, 1, 256>}, {transform_indices = @transform_14, window_bounds = array<i64: 1, 128, 256>}]} {
    %c0_i32 = arith.constant 0 : i32
    %0 = arith.cmpi eq, %arg1, %c0_i32 : i32
    %1 = arith.extui %0 : i1 to i32
    %c0_i32_0 = arith.constant 0 : i32
    %2 = arith.cmpi ne, %1, %c0_i32_0 : i32
    scf.if %2 {
      %c0_75 = arith.constant 0 : index
      %c0_76 = arith.constant 0 : index
      %c0_77 = arith.constant 0 : index
      %160 = vector.load %arg2[%c0_75, %c0_76, %c0_77] : memref<1x128x256xf32, #tpu.memory_space<vmem>>, vector<1x128x256xf32>
      %161 = vector.shape_cast %160 : vector<1x128x256xf32> to vector<128x256xf32>
      %c0_78 = arith.constant 0 : index
      %c0_79 = arith.constant 0 : index
      %c0_80 = arith.constant 0 : index
      %162 = vector.load %arg16[%c0_78, %c0_79, %c0_80] : memref<1x128x256xf32, #tpu.memory_space<vmem>>, vector<1x128x256xf32>
      %163 = vector.shape_cast %162 : vector<1x128x256xf32> to vector<128x256xf32>
      %164 = vector.shape_cast %161 : vector<128x256xf32> to vector<1x128x256xf32>
      tpu.vector_store %arg16[%c0_78, %c0_79, %c0_80], %164 {strides = array<i32>} : memref<1x128x256xf32, #tpu.memory_space<vmem>>, vector<1x128x256xf32>,
    } else {
    }
    %c0 = arith.constant 0 : index
    %c0_1 = arith.constant 0 : index
    %c0_2 = arith.constant 0 : index
    %3 = vector.load %arg16[%c0, %c0_1, %c0_2] : memref<1x128x256xf32, #tpu.memory_space<vmem>>, vector<1x128x256xf32>
    %4 = vector.shape_cast %3 : vector<1x128x256xf32> to vector<128x256xf32>
    %c0_3 = arith.constant 0 : index
    %c0_4 = arith.constant 0 : index
    %c0_5 = arith.constant 0 : index
    %5 = vector.load %arg3[%c0_3, %c0_4, %c0_5] : memref<1x1x128xf32, #tpu.memory_space<vmem>>, vector<1x1x128xf32>
    %6 = vector.shape_cast %5 : vector<1x1x128xf32> to vector<1x128xf32>
    %7 = arith.truncf %4 : vector<128x256xf32> to vector<128x256xbf16>
    %c0_6 = arith.constant 0 : index
    %c0_7 = arith.constant 0 : index
    %c0_8 = arith.constant 0 : index
    %8 = vector.load %arg4[%c0_6, %c0_7, %c0_8] : memref<1x256x768xbf16, #tpu.memory_space<vmem>>, vector<1x256x768xbf16>
    %9 = vector.shape_cast %8 : vector<1x256x768xbf16> to vector<256x768xbf16>
    %cst = arith.constant dense<0.000000e+00> : vector<128x768xf32>
    %10 = tpu.matmul %7, %9, %cst {dimension_numbers = #tpu.dot_dimension_numbers<[1], [0], [0], [1], [0, 0, 1, 1], [], []>} : vector<128x256xbf16>, vector<256x768xbf16>, vector<128x768xf32> -> vector<128x768xf32>
    %c0_9 = arith.constant 0 : index
    %c0_10 = arith.constant 0 : index
    %c0_11 = arith.constant 0 : index
    %11 = vector.load %arg5[%c0_9, %c0_10, %c0_11] : memref<1x1x768xf32, #tpu.memory_space<vmem>>, vector<1x1x768xf32>
    %12 = vector.shape_cast %11 : vector<1x1x768xf32> to vector<1x768xf32>
    %13 = vector.broadcast %12 : vector<1x768xf32> to vector<128x768xf32>
    %14 = arith.addf %10, %13 : vector<128x768xf32>
    %15 = vector.extract_strided_slice %14 {offsets = [0, 0], sizes = [128, 128], strides = [1, 1]} : vector<128x768xf32> to vector<128x128xf32>
    %16 = vector.extract_strided_slice %14 {offsets = [0, 256], sizes = [128, 128], strides = [1, 1]} : vector<128x768xf32> to vector<128x128xf32>
    %17 = vector.extract_strided_slice %14 {offsets = [0, 512], sizes = [128, 128], strides = [1, 1]} : vector<128x768xf32> to vector<128x128xf32>
    %18 = arith.truncf %15 : vector<128x128xf32> to vector<128x128xbf16>
    %19 = arith.truncf %16 : vector<128x128xf32> to vector<128x128xbf16>
    %cst_12 = arith.constant dense<0.000000e+00> : vector<128x128xf32>
    %20 = tpu.matmul %18, %19, %cst_12 {dimension_numbers = #tpu.dot_dimension_numbers<[1], [1], [0], [0], [0, 0, 1, 0], [], []>} : vector<128x128xbf16>, vector<128x128xbf16>, vector<128x128xf32> -> vector<128x128xf32>
    %cst_13 = arith.constant 0.0883883461 : f32
    %21 = vector.broadcast %cst_13 : f32 to vector<128x128xf32>
    %22 = arith.mulf %20, %21 : vector<128x128xf32>
    %23 = vector.broadcast %6 : vector<1x128xf32> to vector<128x128xf32>
    %24 = arith.addf %22, %23 : vector<128x128xf32>
    %cst_14 = arith.constant dense<0xFF800000> : vector<128xf32>
    %25 = vector.multi_reduction <maximumf>, %24, %cst_14 [1] : vector<128x128xf32> to vector<128xf32>
    %26 = vector.shape_cast %25 : vector<128xf32> to vector<128x1xf32>
    %27 = vector.broadcast %26 : vector<128x1xf32> to vector<128x128xf32>
    %28 = arith.subf %24, %27 : vector<128x128xf32>
    %29 = math.exp %28 : vector<128x128xf32>
    %cst_15 = arith.constant dense<0.000000e+00> : vector<128xf32>
    %30 = vector.multi_reduction <add>, %29, %cst_15 [1] : vector<128x128xf32> to vector<128xf32>
    %31 = vector.shape_cast %30 : vector<128xf32> to vector<128x1xf32>
    %32 = tpu.reciprocal %31 {approx = true} : vector<128x1xf32> -> vector<128x1xf32>
    %33 = vector.broadcast %32 : vector<128x1xf32> to vector<128x128xf32>
    %34 = arith.mulf %29, %33 : vector<128x128xf32>
    %35 = arith.truncf %34 : vector<128x128xf32> to vector<128x128xbf16>
    %36 = arith.truncf %17 : vector<128x128xf32> to vector<128x128xbf16>
    %cst_16 = arith.constant dense<0.000000e+00> : vector<128x128xf32>
    %37 = tpu.matmul %35, %36, %cst_16 {dimension_numbers = #tpu.dot_dimension_numbers<[1], [0], [0], [1], [0, 0, 1, 1], [], []>} : vector<128x128xbf16>, vector<128x128xbf16>, vector<128x128xf32> -> vector<128x128xf32>
    %38 = arith.truncf %37 : vector<128x128xf32> to vector<128x128xbf16>
    %c0_17 = arith.constant 0 : index
    %c0_18 = arith.constant 0 : index
    %c0_19 = arith.constant 0 : index
    %39 = vector.load %arg6[%c0_17, %c0_18, %c0_19] : memref<1x256x256xbf16, #tpu.memory_space<vmem>>, vector<1x128x256xbf16>
    %40 = vector.shape_cast %39 : vector<1x128x256xbf16> to vector<128x256xbf16>
    %cst_20 = arith.constant dense<0.000000e+00> : vector<128x256xf32>
    %41 = tpu.matmul %38, %40, %cst_20 {dimension_numbers = #tpu.dot_dimension_numbers<[1], [0], [0], [1], [0, 0, 1, 1], [], []>} : vector<128x128xbf16>, vector<128x256xbf16>, vector<128x256xf32> -> vector<128x256xf32>
    %42 = vector.extract_strided_slice %14 {offsets = [0, 128], sizes = [128, 128], strides = [1, 1]} : vector<128x768xf32> to vector<128x128xf32>
    %43 = vector.extract_strided_slice %14 {offsets = [0, 384], sizes = [128, 128], strides = [1, 1]} : vector<128x768xf32> to vector<128x128xf32>
    %44 = vector.extract_strided_slice %14 {offsets = [0, 640], sizes = [128, 128], strides = [1, 1]} : vector<128x768xf32> to vector<128x128xf32>
    %45 = arith.truncf %42 : vector<128x128xf32> to vector<128x128xbf16>
    %46 = arith.truncf %43 : vector<128x128xf32> to vector<128x128xbf16>
    %cst_21 = arith.constant dense<0.000000e+00> : vector<128x128xf32>
    %47 = tpu.matmul %45, %46, %cst_21 {dimension_numbers = #tpu.dot_dimension_numbers<[1], [1], [0], [0], [0, 0, 1, 0], [], []>} : vector<128x128xbf16>, vector<128x128xbf16>, vector<128x128xf32> -> vector<128x128xf32>
    %cst_22 = arith.constant 0.0883883461 : f32
    %48 = vector.broadcast %cst_22 : f32 to vector<128x128xf32>
    %49 = arith.mulf %47, %48 : vector<128x128xf32>
    %50 = vector.broadcast %6 : vector<1x128xf32> to vector<128x128xf32>
    %51 = arith.addf %49, %50 : vector<128x128xf32>
    %cst_23 = arith.constant dense<0xFF800000> : vector<128xf32>
    %52 = vector.multi_reduction <maximumf>, %51, %cst_23 [1] : vector<128x128xf32> to vector<128xf32>
    %53 = vector.shape_cast %52 : vector<128xf32> to vector<128x1xf32>
    %54 = vector.broadcast %53 : vector<128x1xf32> to vector<128x128xf32>
    %55 = arith.subf %51, %54 : vector<128x128xf32>
    %56 = math.exp %55 : vector<128x128xf32>
    %cst_24 = arith.constant dense<0.000000e+00> : vector<128xf32>
    %57 = vector.multi_reduction <add>, %56, %cst_24 [1] : vector<128x128xf32> to vector<128xf32>
    %58 = vector.shape_cast %57 : vector<128xf32> to vector<128x1xf32>
    %59 = tpu.reciprocal %58 {approx = true} : vector<128x1xf32> -> vector<128x1xf32>
    %60 = vector.broadcast %59 : vector<128x1xf32> to vector<128x128xf32>
    %61 = arith.mulf %56, %60 : vector<128x128xf32>
    %62 = arith.truncf %61 : vector<128x128xf32> to vector<128x128xbf16>
    %63 = arith.truncf %44 : vector<128x128xf32> to vector<128x128xbf16>
    %cst_25 = arith.constant dense<0.000000e+00> : vector<128x128xf32>
    %64 = tpu.matmul %62, %63, %cst_25 {dimension_numbers = #tpu.dot_dimension_numbers<[1], [0], [0], [1], [0, 0, 1, 1], [], []>} : vector<128x128xbf16>, vector<128x128xbf16>, vector<128x128xf32> -> vector<128x128xf32>
    %65 = arith.truncf %64 : vector<128x128xf32> to vector<128x128xbf16>
    %c0_26 = arith.constant 0 : index
    %c128 = arith.constant 128 : index
    %c0_27 = arith.constant 0 : index
    %66 = vector.load %arg6[%c0_26, %c128, %c0_27] : memref<1x256x256xbf16, #tpu.memory_space<vmem>>, vector<1x128x256xbf16>
    %67 = vector.shape_cast %66 : vector<1x128x256xbf16> to vector<128x256xbf16>
    %cst_28 = arith.constant dense<0.000000e+00> : vector<128x256xf32>
    %68 = tpu.matmul %65, %67, %cst_28 {dimension_numbers = #tpu.dot_dimension_numbers<[1], [0], [0], [1], [0, 0, 1, 1], [], []>} : vector<128x128xbf16>, vector<128x256xbf16>, vector<128x256xf32> -> vector<128x256xf32>
    %69 = arith.addf %41, %68 : vector<128x256xf32>
    %c0_29 = arith.constant 0 : index
    %c0_30 = arith.constant 0 : index
    %c0_31 = arith.constant 0 : index
    %70 = vector.load %arg7[%c0_29, %c0_30, %c0_31] : memref<1x1x256xf32, #tpu.memory_space<vmem>>, vector<1x1x256xf32>
    %71 = vector.shape_cast %70 : vector<1x1x256xf32> to vector<1x256xf32>
    %72 = vector.broadcast %71 : vector<1x256xf32> to vector<128x256xf32>
    %73 = arith.addf %69, %72 : vector<128x256xf32>
    %74 = arith.addf %73, %4 : vector<128x256xf32>
    %c0_32 = arith.constant 0 : index
    %c0_33 = arith.constant 0 : index
    %c0_34 = arith.constant 0 : index
    %75 = vector.load %arg8[%c0_32, %c0_33, %c0_34] : memref<1x1x256xf32, #tpu.memory_space<vmem>>, vector<1x1x256xf32>
    %76 = vector.shape_cast %75 : vector<1x1x256xf32> to vector<1x256xf32>
    %c0_35 = arith.constant 0 : index
    %c0_36 = arith.constant 0 : index
    %c0_37 = arith.constant 0 : index
    %77 = vector.load %arg9[%c0_35, %c0_36, %c0_37] : memref<1x1x256xf32, #tpu.memory_space<vmem>>, vector<1x1x256xf32>
    %78 = vector.shape_cast %77 : vector<1x1x256xf32> to vector<1x256xf32>
    %cst_38 = arith.constant dense<0.000000e+00> : vector<128xf32>
    %79 = vector.multi_reduction <add>, %74, %cst_38 [1] : vector<128x256xf32> to vector<128xf32>
    %80 = vector.shape_cast %79 : vector<128xf32> to vector<128x1xf32>
    %cst_39 = arith.constant 2.560000e+02 : f32
    %81 = vector.broadcast %cst_39 : f32 to vector<128x1xf32>
    %82 = arith.divf %80, %81 : vector<128x1xf32>
    %83 = vector.broadcast %82 : vector<128x1xf32> to vector<128x256xf32>
    %84 = arith.subf %74, %83 : vector<128x256xf32>
    %85 = arith.mulf %84, %84 : vector<128x256xf32>
    %cst_40 = arith.constant dense<0.000000e+00> : vector<128xf32>
    %86 = vector.multi_reduction <add>, %85, %cst_40 [1] : vector<128x256xf32> to vector<128xf32>
    %87 = vector.shape_cast %86 : vector<128xf32> to vector<128x1xf32>
    %cst_41 = arith.constant 2.560000e+02 : f32
    %88 = vector.broadcast %cst_41 : f32 to vector<128x1xf32>
    %89 = arith.divf %87, %88 : vector<128x1xf32>
    %90 = vector.broadcast %82 : vector<128x1xf32> to vector<128x256xf32>
    %91 = arith.subf %74, %90 : vector<128x256xf32>
    %cst_42 = arith.constant 9.99999996E-13 : f32
    %92 = vector.broadcast %cst_42 : f32 to vector<128x1xf32>
    %93 = arith.addf %89, %92 : vector<128x1xf32>
    %94 = math.rsqrt %93 : vector<128x1xf32>
    %95 = vector.broadcast %94 : vector<128x1xf32> to vector<128x256xf32>
    %96 = arith.mulf %91, %95 : vector<128x256xf32>
    %97 = vector.broadcast %76 : vector<1x256xf32> to vector<128x256xf32>
    %98 = arith.mulf %96, %97 : vector<128x256xf32>
    %99 = vector.broadcast %78 : vector<1x256xf32> to vector<128x256xf32>
    %100 = arith.addf %98, %99 : vector<128x256xf32>
    %101 = arith.truncf %100 : vector<128x256xf32> to vector<128x256xbf16>
    %c0_43 = arith.constant 0 : index
    %c0_44 = arith.constant 0 : index
    %c0_45 = arith.constant 0 : index
    %102 = vector.load %arg10[%c0_43, %c0_44, %c0_45] : memref<1x256x512xbf16, #tpu.memory_space<vmem>>, vector<1x256x512xbf16>
    %103 = vector.shape_cast %102 : vector<1x256x512xbf16> to vector<256x512xbf16>
    %cst_46 = arith.constant dense<0.000000e+00> : vector<128x512xf32>
    %104 = tpu.matmul %101, %103, %cst_46 {dimension_numbers = #tpu.dot_dimension_numbers<[1], [0], [0], [1], [0, 0, 1, 1], [], []>} : vector<128x256xbf16>, vector<256x512xbf16>, vector<128x512xf32> -> vector<128x512xf32>
    %c0_47 = arith.constant 0 : index
    %c0_48 = arith.constant 0 : index
    %c0_49 = arith.constant 0 : index
    %105 = vector.load %arg11[%c0_47, %c0_48, %c0_49] : memref<1x1x512xf32, #tpu.memory_space<vmem>>, vector<1x1x512xf32>
    %106 = vector.shape_cast %105 : vector<1x1x512xf32> to vector<1x512xf32>
    %107 = vector.broadcast %106 : vector<1x512xf32> to vector<128x512xf32>
    %108 = arith.addf %104, %107 : vector<128x512xf32>
    %109 = arith.mulf %108, %108 : vector<128x512xf32>
    %110 = arith.mulf %108, %109 : vector<128x512xf32>
    %cst_50 = arith.constant 4.471500e-02 : f32
    %111 = vector.broadcast %cst_50 : f32 to vector<128x512xf32>
    %112 = arith.mulf %111, %110 : vector<128x512xf32>
    %113 = arith.addf %108, %112 : vector<128x512xf32>
    %cst_51 = arith.constant 0.797884583 : f32
    %114 = vector.broadcast %cst_51 : f32 to vector<128x512xf32>
    %115 = arith.mulf %114, %113 : vector<128x512xf32>
    %116 = math.tanh %115 : vector<128x512xf32>
    %cst_52 = arith.constant 1.000000e+00 : f32
    %117 = vector.broadcast %cst_52 : f32 to vector<128x512xf32>
    %118 = arith.addf %117, %116 : vector<128x512xf32>
    %cst_53 = arith.constant 5.000000e-01 : f32
    %119 = vector.broadcast %cst_53 : f32 to vector<128x512xf32>
    %120 = arith.mulf %119, %118 : vector<128x512xf32>
    %121 = arith.mulf %108, %120 : vector<128x512xf32>
    %122 = arith.truncf %121 : vector<128x512xf32> to vector<128x512xbf16>
    %c0_54 = arith.constant 0 : index
    %c0_55 = arith.constant 0 : index
    %c0_56 = arith.constant 0 : index
    %123 = vector.load %arg12[%c0_54, %c0_55, %c0_56] : memref<1x512x256xbf16, #tpu.memory_space<vmem>>, vector<1x512x256xbf16>
    %124 = vector.shape_cast %123 : vector<1x512x256xbf16> to vector<512x256xbf16>
    %cst_57 = arith.constant dense<0.000000e+00> : vector<128x256xf32>
    %125 = tpu.matmul %122, %124, %cst_57 {dimension_numbers = #tpu.dot_dimension_numbers<[1], [0], [0], [1], [0, 0, 1, 1], [], []>} : vector<128x512xbf16>, vector<512x256xbf16>, vector<128x256xf32> -> vector<128x256xf32>
    %c0_58 = arith.constant 0 : index
    %c0_59 = arith.constant 0 : index
    %c0_60 = arith.constant 0 : index
    %126 = vector.load %arg13[%c0_58, %c0_59, %c0_60] : memref<1x1x256xf32, #tpu.memory_space<vmem>>, vector<1x1x256xf32>
    %127 = vector.shape_cast %126 : vector<1x1x256xf32> to vector<1x256xf32>
    %128 = vector.broadcast %127 : vector<1x256xf32> to vector<128x256xf32>
    %129 = arith.addf %125, %128 : vector<128x256xf32>
    %130 = arith.addf %129, %100 : vector<128x256xf32>
    %c0_61 = arith.constant 0 : index
    %c0_62 = arith.constant 0 : index
    %c0_63 = arith.constant 0 : index
    %131 = vector.load %arg14[%c0_61, %c0_62, %c0_63] : memref<1x1x256xf32, #tpu.memory_space<vmem>>, vector<1x1x256xf32>
    %132 = vector.shape_cast %131 : vector<1x1x256xf32> to vector<1x256xf32>
    %c0_64 = arith.constant 0 : index
    %c0_65 = arith.constant 0 : index
    %c0_66 = arith.constant 0 : index
    %133 = vector.load %arg15[%c0_64, %c0_65, %c0_66] : memref<1x1x256xf32, #tpu.memory_space<vmem>>, vector<1x1x256xf32>
    %134 = vector.shape_cast %133 : vector<1x1x256xf32> to vector<1x256xf32>
    %cst_67 = arith.constant dense<0.000000e+00> : vector<128xf32>
    %135 = vector.multi_reduction <add>, %130, %cst_67 [1] : vector<128x256xf32> to vector<128xf32>
    %136 = vector.shape_cast %135 : vector<128xf32> to vector<128x1xf32>
    %cst_68 = arith.constant 2.560000e+02 : f32
    %137 = vector.broadcast %cst_68 : f32 to vector<128x1xf32>
    %138 = arith.divf %136, %137 : vector<128x1xf32>
    %139 = vector.broadcast %138 : vector<128x1xf32> to vector<128x256xf32>
    %140 = arith.subf %130, %139 : vector<128x256xf32>
    %141 = arith.mulf %140, %140 : vector<128x256xf32>
    %cst_69 = arith.constant dense<0.000000e+00> : vector<128xf32>
    %142 = vector.multi_reduction <add>, %141, %cst_69 [1] : vector<128x256xf32> to vector<128xf32>
    %143 = vector.shape_cast %142 : vector<128xf32> to vector<128x1xf32>
    %cst_70 = arith.constant 2.560000e+02 : f32
    %144 = vector.broadcast %cst_70 : f32 to vector<128x1xf32>
    %145 = arith.divf %143, %144 : vector<128x1xf32>
    %146 = vector.broadcast %138 : vector<128x1xf32> to vector<128x256xf32>
    %147 = arith.subf %130, %146 : vector<128x256xf32>
    %cst_71 = arith.constant 9.99999996E-13 : f32
    %148 = vector.broadcast %cst_71 : f32 to vector<128x1xf32>
    %149 = arith.addf %145, %148 : vector<128x1xf32>
    %150 = math.rsqrt %149 : vector<128x1xf32>
    %151 = vector.broadcast %150 : vector<128x1xf32> to vector<128x256xf32>
    %152 = arith.mulf %147, %151 : vector<128x256xf32>
    %153 = vector.broadcast %132 : vector<1x256xf32> to vector<128x256xf32>
    %154 = arith.mulf %152, %153 : vector<128x256xf32>
    %155 = vector.broadcast %134 : vector<1x256xf32> to vector<128x256xf32>
    %156 = arith.addf %154, %155 : vector<128x256xf32>
    %c0_72 = arith.constant 0 : index
    %c0_73 = arith.constant 0 : index
    %c0_74 = arith.constant 0 : index
    %157 = vector.load %arg16[%c0_72, %c0_73, %c0_74] : memref<1x128x256xf32, #tpu.memory_space<vmem>>, vector<1x128x256xf32>
    %158 = vector.shape_cast %157 : vector<1x128x256xf32> to vector<128x256xf32>
    %159 = vector.shape_cast %156 : vector<128x256xf32> to vector<1x128x256xf32>
    tpu.vector_store %arg16[%c0_72, %c0_73, %c0_74], %159 {strides = array<i32>} : memref<1x128x256xf32, #tpu.memory_space<vmem>>, vector<1x128x256xf32>,
    return
  }
  func.func @transform_0(%arg0: i32, %arg1: i32) -> (i32, i32, i32) {
    %c0_i32 = arith.constant 0 : i32
    %c0_i32_0 = arith.constant 0 : i32
    %c0_i32_1 = arith.constant 0 : i32
    return %arg0, %c0_i32, %c0_i32_0 : i32, i32, i32
  }
  func.func @transform_1(%arg0: i32, %arg1: i32) -> (i32, i32, i32) {
    %c0_i32 = arith.constant 0 : i32
    %c0_i32_0 = arith.constant 0 : i32
    %c0_i32_1 = arith.constant 0 : i32
    return %arg0, %c0_i32, %c0_i32_0 : i32, i32, i32
  }
  func.func @transform_2(%arg0: i32, %arg1: i32) -> (i32, i32, i32) {
    %c0_i32 = arith.constant 0 : i32
    %c0_i32_0 = arith.constant 0 : i32
    %c0_i32_1 = arith.constant 0 : i32
    return %arg1, %c0_i32, %c0_i32_0 : i32, i32, i32
  }
  func.func @transform_3(%arg0: i32, %arg1: i32) -> (i32, i32, i32) {
    %c0_i32 = arith.constant 0 : i32
    %c0_i32_0 = arith.constant 0 : i32
    %c0_i32_1 = arith.constant 0 : i32
    return %arg1, %c0_i32, %c0_i32_0 : i32, i32, i32
  }
  func.func @transform_4(%arg0: i32, %arg1: i32) -> (i32, i32, i32) {
    %c0_i32 = arith.constant 0 : i32
    %c0_i32_0 = arith.constant 0 : i32
    %c0_i32_1 = arith.constant 0 : i32
    return %arg1, %c0_i32, %c0_i32_0 : i32, i32, i32
  }
  func.func @transform_5(%arg0: i32, %arg1: i32) -> (i32, i32, i32) {
    %c0_i32 = arith.constant 0 : i32
    %c0_i32_0 = arith.constant 0 : i32
    %c0_i32_1 = arith.constant 0 : i32
    return %arg1, %c0_i32, %c0_i32_0 : i32, i32, i32
  }
  func.func @transform_6(%arg0: i32, %arg1: i32) -> (i32, i32, i32) {
    %c0_i32 = arith.constant 0 : i32
    %c0_i32_0 = arith.constant 0 : i32
    %c0_i32_1 = arith.constant 0 : i32
    return %arg1, %c0_i32, %c0_i32_0 : i32, i32, i32
  }
  func.func @transform_7(%arg0: i32, %arg1: i32) -> (i32, i32, i32) {
    %c0_i32 = arith.constant 0 : i32
    %c0_i32_0 = arith.constant 0 : i32
    %c0_i32_1 = arith.constant 0 : i32
    return %arg1, %c0_i32, %c0_i32_0 : i32, i32, i32
  }
  func.func @transform_8(%arg0: i32, %arg1: i32) -> (i32, i32, i32) {
    %c0_i32 = arith.constant 0 : i32
    %c0_i32_0 = arith.constant 0 : i32
    %c0_i32_1 = arith.constant 0 : i32
    return %arg1, %c0_i32, %c0_i32_0 : i32, i32, i32
  }
  func.func @transform_9(%arg0: i32, %arg1: i32) -> (i32, i32, i32) {
    %c0_i32 = arith.constant 0 : i32
    %c0_i32_0 = arith.constant 0 : i32
    %c0_i32_1 = arith.constant 0 : i32
    return %arg1, %c0_i32, %c0_i32_0 : i32, i32, i32
  }
  func.func @transform_10(%arg0: i32, %arg1: i32) -> (i32, i32, i32) {
    %c0_i32 = arith.constant 0 : i32
    %c0_i32_0 = arith.constant 0 : i32
    %c0_i32_1 = arith.constant 0 : i32
    return %arg1, %c0_i32, %c0_i32_0 : i32, i32, i32
  }
  func.func @transform_11(%arg0: i32, %arg1: i32) -> (i32, i32, i32) {
    %c0_i32 = arith.constant 0 : i32
    %c0_i32_0 = arith.constant 0 : i32
    %c0_i32_1 = arith.constant 0 : i32
    return %arg1, %c0_i32, %c0_i32_0 : i32, i32, i32
  }
  func.func @transform_12(%arg0: i32, %arg1: i32) -> (i32, i32, i32) {
    %c0_i32 = arith.constant 0 : i32
    %c0_i32_0 = arith.constant 0 : i32
    %c0_i32_1 = arith.constant 0 : i32
    return %arg1, %c0_i32, %c0_i32_0 : i32, i32, i32
  }
  func.func @transform_13(%arg0: i32, %arg1: i32) -> (i32, i32, i32) {
    %c0_i32 = arith.constant 0 : i32
    %c0_i32_0 = arith.constant 0 : i32
    %c0_i32_1 = arith.constant 0 : i32
    return %arg1, %c0_i32, %c0_i32_0 : i32, i32, i32
  }
  func.func @transform_14(%arg0: i32, %arg1: i32) -> (i32, i32, i32) {
    %c0_i32 = arith.constant 0 : i32
    %c0_i32_0 = arith.constant 0 : i32
    %c0_i32_1 = arith.constant 0 : i32
    return %arg0, %c0_i32, %c0_i32_0 : i32, i32, i32
  }
}

</mosaic_0001>

<llo_original>
// kernel: bert_classifier_forward.5
$region0: #{bert_classifier_forward.5}
  #allocation0 [shape = 'u32[]', space=smem, size = 0x4, offset = 0x4, fixed_abs, tag = 'smem constant byte address 0x4 - core index']
  #allocation1 [shape = 'u32[144,128]{1,0:T(1,128)}', space=vmem, size = 0x12000, scoped, tag = 'internal scratch']
  %s0 = inlined_call_operand.vmem [shape: f32[2,256], index: 0, kind: input, shape index: {}]
  %s1 = inlined_call_operand.vmem [shape: bf16[256,256], index: 1, kind: input, shape index: {}]
  %s2 = inlined_call_operand.vmem [shape: f32[1,256], index: 2, kind: input, shape index: {}]
  %s3 = inlined_call_operand.vmem [shape: bf16[256,128], index: 3, kind: input, shape index: {}]
  %s4 = inlined_call_operand.vmem [shape: f32[1,128], index: 4, kind: input, shape index: {}]
  %s5 = inlined_call_operand.hbm [shape: f32[2,128], index: 5, kind: output, shape index: {}]
  %s6 = sld [smem:[#allocation0]]
  $region30: #{bert_classifier_forward.5} parent=0
    _
  %s8 = ssub.s32 1, %s6
  %s9 = scalar_select 0, %s8, %s6
  $region1: #{bert_classifier_forward.5} parent=0
    #allocation2 [shape = 'u8[1024]{0}', space=vmem, size = 0x400, scoped, tag = 'output window, operand 0, single buffered']
    #allocation3 [shape = 's32[1]{0}', space=sflag, size = 0x4, scoped, tag = 'scoped memory for bert_classifier_forward.5']
    %10 = vsyncpa [#allocation3], 0
    // Predicated region
    $region2: #{bert_classifier_forward.5} parent=1 // pred_check
      _
    $region3: #{bert_classifier_forward.5} parent=1 // pred_check_branch
      %12 = sbr.rel (0) target = $region5
    $region4: #{bert_classifier_forward.5} parent=1 // pred_region
      _
    $region5: #{bert_classifier_forward.5} parent=1 // pred_fallthru
      _
    // Predicated region
    $region6: #{bert_classifier_forward.5} parent=1 // pred_check
      _
    $region7: #{bert_classifier_forward.5} parent=1 // pred_check_branch
      %14 = sbr.rel (0) target = $region9
    $region8: #{bert_classifier_forward.5} parent=1 // pred_region
      _
    $region9: #{bert_classifier_forward.5} parent=1 // pred_fallthru
      _
    // Predicated region
    $region10: #{bert_classifier_forward.5} parent=1 // pred_check
      _
    $region11: #{bert_classifier_forward.5} parent=1 // pred_check_branch
      %16 = sbr.rel (0) target = $region13
    $region12: #{bert_classifier_forward.5} parent=1 // pred_region
      _
    $region13: #{bert_classifier_forward.5} parent=1 // pred_fallthru
      _
    // Predicated region
    $region14: #{bert_classifier_forward.5} parent=1 // pred_check
      _
    $region15: #{bert_classifier_forward.5} parent=1 // pred_check_branch
      %18 = sbr.rel (0) target = $region17
    $region16: #{bert_classifier_forward.5} parent=1 // pred_region
      _
    $region17: #{bert_classifier_forward.5} parent=1 // pred_fallthru
      _
    // Predicated region
    $region18: #{bert_classifier_forward.5} parent=1 // pred_check
      _
    $region19: #{bert_classifier_forward.5} parent=1 // pred_check_branch
      %20 = sbr.rel (0) target = $region21
    $region20: #{bert_classifier_forward.5} parent=1 // pred_region
      _
    $region21: #{bert_classifier_forward.5} parent=1 // pred_fallthru
      _
    %v22 = vld [vmem:[%s0] sm:$0xf]
    %v25 = vunpack.c.l.s4 1983009808
    %v26 = vunpack.c.0.s8 %v25
    %v27 = vlaneseq
    %v28 = vshrl.u32 %v27, 7
    %v29 = vsub.s32 %v26, %v28
    %v30 = vrot.slane %v22, %v29
    %v31 = vcombine.high %v30, %v30
    %v34 = vpack.c.bf16 %v30, %v30
    %v35 = vpack.c.bf16 %v31, %v31
    %v36 = vld [vmem:[%s1] sm:$0xff]
    %v37 = vld [vmem:[%s1 + $0x8] sm:$0xff]
    %v38 = vld [vmem:[%s1 + $0x10] sm:$0xff]
    %v39 = vld [vmem:[%s1 + $0x18] sm:$0xff]
    %v40 = vld [vmem:[%s1 + $0x20] sm:$0xff]
    %v41 = vld [vmem:[%s1 + $0x28] sm:$0xff]
    %v42 = vld [vmem:[%s1 + $0x30] sm:$0xff]
    %v43 = vld [vmem:[%s1 + $0x38] sm:$0xff]
    %v44 = vld [vmem:[%s1 + $0x40] sm:$0xff]
    %v45 = vld [vmem:[%s1 + $0x48] sm:$0xff]
    %v46 = vld [vmem:[%s1 + $0x50] sm:$0xff]
    %v47 = vld [vmem:[%s1 + $0x58] sm:$0xff]
    %v48 = vld [vmem:[%s1 + $0x60] sm:$0xff]
    %v49 = vld [vmem:[%s1 + $0x68] sm:$0xff]
    %v50 = vld [vmem:[%s1 + $0x70] sm:$0xff]
    %v51 = vld [vmem:[%s1 + $0x78] sm:$0xff]
    %v52 = vld [vmem:[%s1 + $0x80] sm:$0xff]
    %v53 = vld [vmem:[%s1 + $0x88] sm:$0xff]
    %v54 = vld [vmem:[%s1 + $0x90] sm:$0xff]
    %v55 = vld [vmem:[%s1 + $0x98] sm:$0xff]
    %v56 = vld [vmem:[%s1 + $0xa0] sm:$0xff]
    %v57 = vld [vmem:[%s1 + $0xa8] sm:$0xff]
    %v58 = vld [vmem:[%s1 + $0xb0] sm:$0xff]
    %v59 = vld [vmem:[%s1 + $0xb8] sm:$0xff]
    %v60 = vld [vmem:[%s1 + $0xc0] sm:$0xff]
    %v61 = vld [vmem:[%s1 + $0xc8] sm:$0xff]
    %v62 = vld [vmem:[%s1 + $0xd0] sm:$0xff]
    %v63 = vld [vmem:[%s1 + $0xd8] sm:$0xff]
    %v64 = vld [vmem:[%s1 + $0xe0] sm:$0xff]
    %v65 = vld [vmem:[%s1 + $0xe8] sm:$0xff]
    %v66 = vld [vmem:[%s1 + $0xf0] sm:$0xff]
    %v67 = vld [vmem:[%s1 + $0xf8] sm:$0xff]
    %v68 = vld [vmem:[%s2] sm:$0x3]
    %v70 = vlaneseq
    %v71 = vshrl.u32 %v70, 7
    %v72 = vsub.s32 0, %v71
    %v73 = vrot.slane %v68, %v72
    %v74 = vlaneseq
    %v75 = vshrl.u32 %v74, 7
    %v76 = vsub.s32 1, %v75
    %v77 = vrot.slane %v68, %v76
    %v112 = vunpack.c.l.b16 %v36
    %v113 = vunpack.c.h.b16 %v36
    %v114 = vunpack.c.l.b16 %v37
    %v115 = vunpack.c.h.b16 %v37
    %v116 = vunpack.c.l.b16 %v38
    %v117 = vunpack.c.h.b16 %v38
    %v118 = vunpack.c.l.b16 %v39
    %v119 = vunpack.c.h.b16 %v39
    %v120 = vunpack.c.l.b16 %v40
    %v121 = vunpack.c.h.b16 %v40
    %v122 = vunpack.c.l.b16 %v41
    %v123 = vunpack.c.h.b16 %v41
    %v124 = vunpack.c.l.b16 %v42
    %v125 = vunpack.c.h.b16 %v42
    %v126 = vunpack.c.l.b16 %v43
    %v127 = vunpack.c.h.b16 %v43
    %v128 = vunpack.c.l.b16 %v44
    %v129 = vunpack.c.h.b16 %v44
    %v130 = vunpack.c.l.b16 %v45
    %v131 = vunpack.c.h.b16 %v45
    %v132 = vunpack.c.l.b16 %v46
    %v133 = vunpack.c.h.b16 %v46
    %v134 = vunpack.c.l.b16 %v47
    %v135 = vunpack.c.h.b16 %v47
    %v136 = vunpack.c.l.b16 %v48
    %v137 = vunpack.c.h.b16 %v48
    %v138 = vunpack.c.l.b16 %v49
    %v139 = vunpack.c.h.b16 %v49
    %v140 = vunpack.c.l.b16 %v50
    %v141 = vunpack.c.h.b16 %v50
    %v142 = vunpack.c.l.b16 %v51
    %v143 = vunpack.c.h.b16 %v51
    %v144 = vunpack.c.l.b16 %v52
    %v145 = vunpack.c.h.b16 %v52
    %v146 = vunpack.c.l.b16 %v53
    %v147 = vunpack.c.h.b16 %v53
    %v148 = vunpack.c.l.b16 %v54
    %v149 = vunpack.c.h.b16 %v54
    %v150 = vunpack.c.l.b16 %v55
    %v151 = vunpack.c.h.b16 %v55
    %v152 = vunpack.c.l.b16 %v56
    %v153 = vunpack.c.h.b16 %v56
    %v154 = vunpack.c.l.b16 %v57
    %v155 = vunpack.c.h.b16 %v57
    %v156 = vunpack.c.l.b16 %v58
    %v157 = vunpack.c.h.b16 %v58
    %v158 = vunpack.c.l.b16 %v59
    %v159 = vunpack.c.h.b16 %v59
    %v160 = vunpack.c.l.b16 %v60
    %v161 = vunpack.c.h.b16 %v60
    %v162 = vunpack.c.l.b16 %v61
    %v163 = vunpack.c.h.b16 %v61
    %v164 = vunpack.c.l.b16 %v62
    %v165 = vunpack.c.h.b16 %v62
    %v166 = vunpack.c.l.b16 %v63
    %v167 = vunpack.c.h.b16 %v63
    %v168 = vunpack.c.l.b16 %v64
    %v169 = vunpack.c.h.b16 %v64
    %v170 = vunpack.c.l.b16 %v65
    %v171 = vunpack.c.h.b16 %v65
    %v172 = vunpack.c.l.b16 %v66
    %v173 = vunpack.c.h.b16 %v66
    %v174 = vunpack.c.l.b16 %v67
    %v175 = vunpack.c.h.b16 %v67
    %v176 = vpack.c.b16 %v114, %v112
    %v177 = vpack.c.b16 %v115, %v113
    %v178 = vpack.c.b16 %v118, %v116
    %v179 = vpack.c.b16 %v119, %v117
    %v180 = vpack.c.b16 %v122, %v120
    %v181 = vpack.c.b16 %v123, %v121
    %v182 = vpack.c.b16 %v126, %v124
    %v183 = vpack.c.b16 %v127, %v125
    %v184 = vpack.c.b16 %v130, %v128
    %v185 = vpack.c.b16 %v131, %v129
    %v186 = vpack.c.b16 %v134, %v132
    %v187 = vpack.c.b16 %v135, %v133
    %v188 = vpack.c.b16 %v138, %v136
    %v189 = vpack.c.b16 %v139, %v137
    %v190 = vpack.c.b16 %v142, %v140
    %v191 = vpack.c.b16 %v143, %v141
    %v192 = vpack.c.b16 %v146, %v144
    %v193 = vpack.c.b16 %v147, %v145
    %v194 = vpack.c.b16 %v150, %v148
    %v195 = vpack.c.b16 %v151, %v149
    %v196 = vpack.c.b16 %v154, %v152
    %v197 = vpack.c.b16 %v155, %v153
    %v198 = vpack.c.b16 %v158, %v156
    %v199 = vpack.c.b16 %v159, %v157
    %v200 = vpack.c.b16 %v162, %v160
    %v201 = vpack.c.b16 %v163, %v161
    %v202 = vpack.c.b16 %v166, %v164
    %v203 = vpack.c.b16 %v167, %v165
    %v204 = vpack.c.b16 %v170, %v168
    %v205 = vpack.c.b16 %v171, %v169
    %v206 = vpack.c.b16 %v174, %v172
    %v207 = vpack.c.b16 %v175, %v173
    %240 = vmatprep.subr.bf16.mxu0 %v177
    %241 = vmatpush1.bf16.msra.mxu0 %v176
    %242 = vmatprep.subr.bf16.mxu0 %v179
    %243 = vmatpush1.bf16.msra.mxu0 %v178
    %244 = vmatprep.subr.bf16.mxu0 %v181
    %245 = vmatpush1.bf16.msra.mxu0 %v180
    %246 = vmatprep.subr.bf16.mxu0 %v183
    %247 = vmatpush1.bf16.msra.mxu0 %v182
    %248 = vmatprep.subr.bf16.mxu0 %v185
    %249 = vmatpush1.bf16.msra.mxu0 %v184
    %250 = vmatprep.subr.bf16.mxu0 %v187
    %251 = vmatpush1.bf16.msra.mxu0 %v186
    %252 = vmatprep.subr.bf16.mxu0 %v189
    %253 = vmatpush1.bf16.msra.mxu0 %v188
    %254 = vmatprep.subr.bf16.mxu0 %v191
    %255 = vmatpush1.bf16.msra.mxu0 %v190
    %256 = vmatprep.subr.bf16.mxu0 %v193
    %257 = vmatpush1.bf16.msra.mxu0 %v192
    %258 = vmatprep.subr.bf16.mxu0 %v195
    %259 = vmatpush1.bf16.msra.mxu0 %v194
    %260 = vmatprep.subr.bf16.mxu0 %v197
    %261 = vmatpush1.bf16.msra.mxu0 %v196
    %262 = vmatprep.subr.bf16.mxu0 %v199
    %263 = vmatpush1.bf16.msra.mxu0 %v198
    %264 = vmatprep.subr.bf16.mxu0 %v201
    %265 = vmatpush1.bf16.msra.mxu0 %v200
    %266 = vmatprep.subr.bf16.mxu0 %v203
    %267 = vmatpush1.bf16.msra.mxu0 %v202
    %268 = vmatprep.subr.bf16.mxu0 %v205
    %269 = vmatpush1.bf16.msra.mxu0 %v204
    %270 = vmatprep.subr.bf16.mxu0 %v207
    %271 = vmatpush1.bf16.msra.mxu0 %v206
    %272 = vmatprep.mubr.bf16.mxu0 %v35
    %273 = vmatmul.mubr.bf16.gmra.mrb[0].mxu0 %v34
    %v274 = vpop.f32.mrb[0].mxu0
    %v275 = vadd.f32 %v73, %v274
    %v276 = vpop.f32.mrb[0].mxu0
    %v277 = vadd.f32 %v77, %v276
    %v278 = vpop.f32.mrb[0].mxu0
    %v279 = vpop.f32.mrb[0].mxu0
    %280 = vdwg.mxu0
    %v281 = vtanh.pop %v275
    %v282 = vtanh.pop %v277
    %v283 = vpack.c.bf16 %v281, %v281
    %v284 = vpack.c.bf16 %v282, %v282
    %v285 = vld [vmem:[%s3] sm:$0xf]
    %v286 = vld [vmem:[%s3 + $0x4] sm:$0xf]
    %v287 = vld [vmem:[%s3 + $0x8] sm:$0xf]
    %v288 = vld [vmem:[%s3 + $0xc] sm:$0xf]
    %v289 = vld [vmem:[%s3 + $0x10] sm:$0xf]
    %v290 = vld [vmem:[%s3 + $0x14] sm:$0xf]
    %v291 = vld [vmem:[%s3 + $0x18] sm:$0xf]
    %v292 = vld [vmem:[%s3 + $0x1c] sm:$0xf]
    %v293 = vld [vmem:[%s3 + $0x20] sm:$0xf]
    %v294 = vld [vmem:[%s3 + $0x24] sm:$0xf]
    %v295 = vld [vmem:[%s3 + $0x28] sm:$0xf]
    %v296 = vld [vmem:[%s3 + $0x2c] sm:$0xf]
    %v297 = vld [vmem:[%s3 + $0x30] sm:$0xf]
    %v298 = vld [vmem:[%s3 + $0x34] sm:$0xf]
    %v299 = vld [vmem:[%s3 + $0x38] sm:$0xf]
    %v300 = vld [vmem:[%s3 + $0x3c] sm:$0xf]
    %v301 = vld [vmem:[%s3 + $0x40] sm:$0xf]
    %v302 = vld [vmem:[%s3 + $0x44] sm:$0xf]
    %v303 = vld [vmem:[%s3 + $0x48] sm:$0xf]
    %v304 = vld [vmem:[%s3 + $0x4c] sm:$0xf]
    %v305 = vld [vmem:[%s3 + $0x50] sm:$0xf]
    %v306 = vld [vmem:[%s3 + $0x54] sm:$0xf]
    %v307 = vld [vmem:[%s3 + $0x58] sm:$0xf]
    %v308 = vld [vmem:[%s3 + $0x5c] sm:$0xf]
    %v309 = vld [vmem:[%s3 + $0x60] sm:$0xf]
    %v310 = vld [vmem:[%s3 + $0x64] sm:$0xf]
    %v311 = vld [vmem:[%s3 + $0x68] sm:$0xf]
    %v312 = vld [vmem:[%s3 + $0x6c] sm:$0xf]
    %v313 = vld [vmem:[%s3 + $0x70] sm:$0xf]
    %v314 = vld [vmem:[%s3 + $0x74] sm:$0xf]
    %v315 = vld [vmem:[%s3 + $0x78] sm:$0xf]
    %v316 = vld [vmem:[%s3 + $0x7c] sm:$0xf]
    %v317 = vld [vmem:[%s4] sm:$0x1]
    %v319 = vlaneseq
    %v320 = vshrl.u32 %v319, 7
    %v321 = vsub.s32 0, %v320
    %v322 = vrot.slane %v317, %v321
    %v356 = vunpack.c.l.b16 %v285
    %v357 = vunpack.c.l.b16 %v286
    %v358 = vunpack.c.l.b16 %v287
    %v359 = vunpack.c.l.b16 %v288
    %v360 = vunpack.c.l.b16 %v289
    %v361 = vunpack.c.l.b16 %v290
    %v362 = vunpack.c.l.b16 %v291
    %v363 = vunpack.c.l.b16 %v292
    %v364 = vunpack.c.l.b16 %v293
    %v365 = vunpack.c.l.b16 %v294
    %v366 = vunpack.c.l.b16 %v295
    %v367 = vunpack.c.l.b16 %v296
    %v368 = vunpack.c.l.b16 %v297
    %v369 = vunpack.c.l.b16 %v298
    %v370 = vunpack.c.l.b16 %v299
    %v371 = vunpack.c.l.b16 %v300
    %v372 = vunpack.c.l.b16 %v301
    %v373 = vunpack.c.l.b16 %v302
    %v374 = vunpack.c.l.b16 %v303
    %v375 = vunpack.c.l.b16 %v304
    %v376 = vunpack.c.l.b16 %v305
    %v377 = vunpack.c.l.b16 %v306
    %v378 = vunpack.c.l.b16 %v307
    %v379 = vunpack.c.l.b16 %v308
    %v380 = vunpack.c.l.b16 %v309
    %v381 = vunpack.c.l.b16 %v310
    %v382 = vunpack.c.l.b16 %v311
    %v383 = vunpack.c.l.b16 %v312
    %v384 = vunpack.c.l.b16 %v313
    %v385 = vunpack.c.l.b16 %v314
    %v386 = vunpack.c.l.b16 %v315
    %v387 = vunpack.c.l.b16 %v316
    %v388 = vpack.c.b16 %v357, %v356
    %v389 = vpack.c.b16 %v359, %v358
    %v390 = vpack.c.b16 %v361, %v360
    %v391 = vpack.c.b16 %v363, %v362
    %v392 = vpack.c.b16 %v365, %v364
    %v393 = vpack.c.b16 %v367, %v366
    %v394 = vpack.c.b16 %v369, %v368
    %v395 = vpack.c.b16 %v371, %v370
    %v396 = vpack.c.b16 %v373, %v372
    %v397 = vpack.c.b16 %v375, %v374
    %v398 = vpack.c.b16 %v377, %v376
    %v399 = vpack.c.b16 %v379, %v378
    %v400 = vpack.c.b16 %v381, %v380
    %v401 = vpack.c.b16 %v383, %v382
    %v402 = vpack.c.b16 %v385, %v384
    %v403 = vpack.c.b16 %v387, %v386
    %420 = vmatprep.subr.bf16.mxu0 0
    %421 = vmatpush1.bf16.msra.mxu0 %v388
    %422 = vmatprep.subr.bf16.mxu0 0
    %423 = vmatpush1.bf16.msra.mxu0 %v389
    %424 = vmatprep.subr.bf16.mxu0 0
    %425 = vmatpush1.bf16.msra.mxu0 %v390
    %426 = vmatprep.subr.bf16.mxu0 0
    %427 = vmatpush1.bf16.msra.mxu0 %v391
    %428 = vmatprep.subr.bf16.mxu0 0
    %429 = vmatpush1.bf16.msra.mxu0 %v392
    %430 = vmatprep.subr.bf16.mxu0 0
    %431 = vmatpush1.bf16.msra.mxu0 %v393
    %432 = vmatprep.subr.bf16.mxu0 0
    %433 = vmatpush1.bf16.msra.mxu0 %v394
    %434 = vmatprep.subr.bf16.mxu0 0
    %435 = vmatpush1.bf16.msra.mxu0 %v395
    %436 = vmatprep.subr.bf16.mxu0 0
    %437 = vmatpush1.bf16.msra.mxu0 %v396
    %438 = vmatprep.subr.bf16.mxu0 0
    %439 = vmatpush1.bf16.msra.mxu0 %v397
    %440 = vmatprep.subr.bf16.mxu0 0
    %441 = vmatpush1.bf16.msra.mxu0 %v398
    %442 = vmatprep.subr.bf16.mxu0 0
    %443 = vmatpush1.bf16.msra.mxu0 %v399
    %444 = vmatprep.subr.bf16.mxu0 0
    %445 = vmatpush1.bf16.msra.mxu0 %v400
    %446 = vmatprep.subr.bf16.mxu0 0
    %447 = vmatpush1.bf16.msra.mxu0 %v401
    %448 = vmatprep.subr.bf16.mxu0 0
    %449 = vmatpush1.bf16.msra.mxu0 %v402
    %450 = vmatprep.subr.bf16.mxu0 0
    %451 = vmatpush1.bf16.msra.mxu0 %v403
    %452 = vmatprep.mubr.bf16.mxu0 %v284
    %453 = vmatmul.mubr.bf16.gmra.mrb[0].mxu0 %v283
    %v454 = vpop.f32.mrb[0].mxu0
    %v455 = vadd.f32 %v322, %v454
    %v456 = vpop.f32.mrb[0].mxu0
    %v457 = vpop.f32.mrb[0].mxu0
    %v458 = vpop.f32.mrb[0].mxu0
    %459 = vdwg.mxu0
    %v460 = vmax.f32 %v455, 0.0
    %461 = vst [vmem:[#allocation2] sm:$0x3] %v460
    // Predicated region
    $region22: #{bert_classifier_forward.5} parent=1 // pred_check
      _
    $region23: #{bert_classifier_forward.5} parent=1 // pred_check_branch
      %463 = sbr.rel (0) target = $region25
    $region24: #{bert_classifier_forward.5} parent=1 // pred_region
      %s465 = ssub.s32 32, 32
      %466 = vsyncadd [#allocation3], %s465
      %s468 = sshll.u32 [#allocation2], 4
      %s469 = int_to_ptr.vmem [resolvable:$true] %s468
      %471 = dma.vmem_to_hbm [thread:$0]  %s469, 32, %s5, [#allocation3]
    $region25: #{bert_classifier_forward.5} parent=1 // pred_fallthru
      _
    // Predicated region
    $region26: #{bert_classifier_forward.5} parent=1 // pred_check
      _
    $region27: #{bert_classifier_forward.5} parent=1 // pred_check_branch
      %473 = sbr.rel (0) target = $region29
    $region28: #{bert_classifier_forward.5} parent=1 // pred_region
      %474 = dma.done [#allocation3], 32
    $region29: #{bert_classifier_forward.5} parent=1 // pred_fallthru
      _
    %475 = vsyncpa [#allocation3], 1

// kernel: bert_classifier_forward.3
$region0: #{bert_classifier_forward.3}
  #allocation0 [shape = 'u32[]', space=smem, size = 0x4, offset = 0x4, fixed_abs, tag = 'smem constant byte address 0x4 - core index']
  #allocation1 [shape = 'u32[144,128]{1,0:T(1,128)}', space=vmem, size = 0x12000, scoped, tag = 'internal scratch']
  %s0 = inlined_call_operand.vmem [shape: f32[2,128,256], index: 0, kind: input, shape index: {}]
  %s1 = inlined_call_operand.vmem [shape: f32[128,256], index: 1, kind: input, shape index: {}]
  %s2 = inlined_call_operand.vmem [shape: f32[1,256], index: 2, kind: input, shape index: {}]
  %s3 = inlined_call_operand.vmem [shape: f32[1,256], index: 3, kind: input, shape index: {}]
  %s4 = inlined_call_operand.vmem [shape: f32[1,256], index: 4, kind: input, shape index: {}]
  %s5 = inlined_call_operand.vmem [shape: f32[2,128,256], index: 5, kind: output, shape index: {}]
  %s6 = sld [smem:[#allocation0]]
  $region53: #{bert_classifier_forward.3} parent=0
    _
  %s8 = ssub.s32 1, %s6
  %s9 = scalar_select 0, %s8, %s6
  loop: start=0, step=1, limit=4
  $region2: #{bert_classifier_forward.3} parent=0 // loop_pre_header
    _
  $region3: #{bert_classifier_forward.3} parent=0 // loop_header
    %s11 = sphi 0, %s15
    %p12 = scmp.ge.s32.totalorder %s11, 4
    %s21 = sphi 0, %s23
    %s24 = sphi 0, %s21
    %s25 = sphi 0, %s24
    %s41 = sphi 0, %s25
    %s45 = sphi 0, %s45
    %s47 = sphi 0, %s45
    %s48 = sphi 0, %s47
    %s62 = sphi 0, %s48
    %s66 = sphi 0, %s66
    %s68 = sphi 0, %s66
    %s69 = sphi 0, %s68
    %s83 = sphi 0, %s69
    %s87 = sphi 0, %s87
    %s89 = sphi 0, %s87
    %s90 = sphi 0, %s89
    %s104 = sphi 0, %s90
    %s108 = sphi 0, %s108
    %s110 = sphi 0, %s108
    %s111 = sphi 0, %s110
    %s125 = sphi 0, %s111
    %s131 = sphi 0, %s133
    %s134 = sphi 0, %s131
    %s135 = sphi 0, %s134
    %s151 = sphi 0, %s135
  $region4: #{bert_classifier_forward.3} parent=0 // loop_header_branch
    %14 = sbr.rel (%p12) target = $region8
  $region5: #{bert_classifier_forward.3} parent=0 // loop_body
    %s16 = ssub.s32 %s11, 1
    %s17 = ssub.s32 %s11, 2
    %s18 = sadd.s32 %s11, 1
    %s19 = ssub.s32 %s11, %s18
    %p20 = scmp.eq.s32.totalorder %s19, 0
    %s22 = sadd.s32 %s21, 1
    %s23 = scalar_select %p20, %s21, %s22
    %p26 = pneg %p20
    %p27 = scmp.eq.s32.totalorder %s11, 1
    %p28 = por %p26, %p27
    %p29 = scmp.ne.s32.totalorder %s21, %s24
    %p30 = scmp.eq.s32.totalorder %s11, 0
    %p31 = por %p29, %p30
    %p32 = scmp.ne.s32.totalorder %s21, %s24
    %p33 = scmp.eq.s32.totalorder %s16, 1
    %p34 = por %p32, %p33
    %p35 = scmp.ne.s32.totalorder %s24, %s25
    %p36 = scmp.eq.s32.totalorder %s16, 0
    %p37 = por %p35, %p36
    %p38 = scmp.ne.s32.totalorder %s24, %s25
    %p39 = scmp.eq.s32.totalorder %s17, 1
    %p40 = por %p38, %p39
    %p42 = scmp.ne.s32.totalorder %s25, %s41
    %p43 = scmp.eq.s32.totalorder %s17, 0
    %p44 = por %p42, %p43
    %s46 = sadd.s32 %s45, 1
    %p49 = scmp.eq.s32.totalorder %s11, 1
    %p50 = scmp.ne.s32.totalorder %s45, %s47
    %p51 = scmp.eq.s32.totalorder %s11, 0
    %p52 = por %p50, %p51
    %p53 = scmp.ne.s32.totalorder %s45, %s47
    %p54 = scmp.eq.s32.totalorder %s16, 1
    %p55 = por %p53, %p54
    %p56 = scmp.ne.s32.totalorder %s47, %s48
    %p57 = scmp.eq.s32.totalorder %s16, 0
    %p58 = por %p56, %p57
    %p59 = scmp.ne.s32.totalorder %s47, %s48
    %p60 = scmp.eq.s32.totalorder %s17, 1
    %p61 = por %p59, %p60
    %p63 = scmp.ne.s32.totalorder %s48, %s62
    %p64 = scmp.eq.s32.totalorder %s17, 0
    %p65 = por %p63, %p64
    %s67 = sadd.s32 %s66, 1
    %p70 = scmp.eq.s32.totalorder %s11, 1
    %p71 = scmp.ne.s32.totalorder %s66, %s68
    %p72 = scmp.eq.s32.totalorder %s11, 0
    %p73 = por %p71, %p72
    %p74 = scmp.ne.s32.totalorder %s66, %s68
    %p75 = scmp.eq.s32.totalorder %s16, 1
    %p76 = por %p74, %p75
    %p77 = scmp.ne.s32.totalorder %s68, %s69
    %p78 = scmp.eq.s32.totalorder %s16, 0
    %p79 = por %p77, %p78
    %p80 = scmp.ne.s32.totalorder %s68, %s69
    %p81 = scmp.eq.s32.totalorder %s17, 1
    %p82 = por %p80, %p81
    %p84 = scmp.ne.s32.totalorder %s69, %s83
    %p85 = scmp.eq.s32.totalorder %s17, 0
    %p86 = por %p84, %p85
    %s88 = sadd.s32 %s87, 1
    %p91 = scmp.eq.s32.totalorder %s11, 1
    %p92 = scmp.ne.s32.totalorder %s87, %s89
    %p93 = scmp.eq.s32.totalorder %s11, 0
    %p94 = por %p92, %p93
    %p95 = scmp.ne.s32.totalorder %s87, %s89
    %p96 = scmp.eq.s32.totalorder %s16, 1
    %p97 = por %p95, %p96
    %p98 = scmp.ne.s32.totalorder %s89, %s90
    %p99 = scmp.eq.s32.totalorder %s16, 0
    %p100 = por %p98, %p99
    %p101 = scmp.ne.s32.totalorder %s89, %s90
    %p102 = scmp.eq.s32.totalorder %s17, 1
    %p103 = por %p101, %p102
    %p105 = scmp.ne.s32.totalorder %s90, %s104
    %p106 = scmp.eq.s32.totalorder %s17, 0
    %p107 = por %p105, %p106
    %s109 = sadd.s32 %s108, 1
    %p112 = scmp.eq.s32.totalorder %s11, 1
    %p113 = scmp.ne.s32.totalorder %s108, %s110
    %p114 = scmp.eq.s32.totalorder %s11, 0
    %p115 = por %p113, %p114
    %p116 = scmp.ne.s32.totalorder %s108, %s110
    %p117 = scmp.eq.s32.totalorder %s16, 1
    %p118 = por %p116, %p117
    %p119 = scmp.ne.s32.totalorder %s110, %s111
    %p120 = scmp.eq.s32.totalorder %s16, 0
    %p121 = por %p119, %p120
    %p122 = scmp.ne.s32.totalorder %s110, %s111
    %p123 = scmp.eq.s32.totalorder %s17, 1
    %p124 = por %p122, %p123
    %p126 = scmp.ne.s32.totalorder %s111, %s125
    %p127 = scmp.eq.s32.totalorder %s17, 0
    %p128 = por %p126, %p127
    %s129 = ssub.s32 %s11, %s18
    %p130 = scmp.eq.s32.totalorder %s129, 0
    %s132 = sadd.s32 %s131, 1
    %s133 = scalar_select %p130, %s131, %s132
    %p136 = pneg %p130
    %p137 = scmp.eq.s32.totalorder %s11, 1
    %p138 = por %p136, %p137
    %p139 = scmp.ne.s32.totalorder %s131, %s134
    %p140 = scmp.eq.s32.totalorder %s11, 0
    %p141 = por %p139, %p140
    %p142 = scmp.ne.s32.totalorder %s131, %s134
    %p143 = scmp.eq.s32.totalorder %s16, 1
    %p144 = por %p142, %p143
    %p145 = scmp.ne.s32.totalorder %s134, %s135
    %p146 = scmp.eq.s32.totalorder %s16, 0
    %p147 = por %p145, %p146
    %p148 = scmp.ne.s32.totalorder %s134, %s135
    %p149 = scmp.eq.s32.totalorder %s17, 1
    %p150 = por %p148, %p149
    %p152 = scmp.ne.s32.totalorder %s135, %s151
    %p153 = scmp.eq.s32.totalorder %s17, 0
    %p154 = por %p152, %p153
    %p155 = scmp.le.s32.totalorder 1, %s11
    %p156 = scmp.lt.s32.totalorder %s11, 3
    %p157 = pnand %p155, %p156
    %p158 = pneg %p157
    // Predicated region
    $region9: #{bert_classifier_forward.3} parent=5 // pred_check
      _
    $region10: #{bert_classifier_forward.3} parent=5 // pred_check_branch
      %160 = sbr.rel (%p157) target = $region12
    $region11: #{bert_classifier_forward.3} parent=5 // pred_region
      %s161 = ssub.s32 %s11, 1
      // Predicated region
      $region13: #{bert_classifier_forward.3} parent=11 // pred_check
        %p162 = pneg %p58
      $region14: #{bert_classifier_forward.3} parent=11 // pred_check_branch
        %164 = sbr.rel (%p162) target = $region16
      $region15: #{bert_classifier_forward.3} parent=11 // pred_region
        _
      $region16: #{bert_classifier_forward.3} parent=11 // pred_fallthru
        _
      // Predicated region
      $region17: #{bert_classifier_forward.3} parent=11 // pred_check
        %p165 = pneg %p79
      $region18: #{bert_classifier_forward.3} parent=11 // pred_check_branch
        %167 = sbr.rel (%p165) target = $region20
      $region19: #{bert_classifier_forward.3} parent=11 // pred_region
        _
      $region20: #{bert_classifier_forward.3} parent=11 // pred_fallthru
        _
      // Predicated region
      $region21: #{bert_classifier_forward.3} parent=11 // pred_check
        %p168 = pneg %p100
      $region22: #{bert_classifier_forward.3} parent=11 // pred_check_branch
        %170 = sbr.rel (%p168) target = $region24
      $region23: #{bert_classifier_forward.3} parent=11 // pred_region
        _
      $region24: #{bert_classifier_forward.3} parent=11 // pred_fallthru
        _
      // Predicated region
      $region25: #{bert_classifier_forward.3} parent=11 // pred_check
        %p171 = pneg %p121
      $region26: #{bert_classifier_forward.3} parent=11 // pred_check_branch
        %173 = sbr.rel (%p171) target = $region28
      $region27: #{bert_classifier_forward.3} parent=11 // pred_region
        _
      $region28: #{bert_classifier_forward.3} parent=11 // pred_fallthru
        _
    $region12: #{bert_classifier_forward.3} parent=5 // pred_fallthru
      _
    %p174 = scmp.lt.s32.totalorder %s11, 2
    // Predicated region
    $region29: #{bert_classifier_forward.3} parent=5 // pred_check
      %p175 = pneg %p174
    $region30: #{bert_classifier_forward.3} parent=5 // pred_check_branch
      %177 = sbr.rel (%p175) target = $region32
    $region31: #{bert_classifier_forward.3} parent=5 // pred_region
      // Predicated region
      $region33: #{bert_classifier_forward.3} parent=31 // pred_check
        %p178 = pneg %p31
      $region34: #{bert_classifier_forward.3} parent=31 // pred_check_branch
        %180 = sbr.rel (%p178) target = $region36
      $region35: #{bert_classifier_forward.3} parent=31 // pred_region
        %p181 = scmp.lt.s32.totalorder %s11, 1
        %s182 = scalar_select %p181, %s11, 1
        %s183 = smul.addr %s182, 32
        %s184 = smul.addr %s183, 8
        %s185 = scalar_lea.vmem %s0, %s184
      $region36: #{bert_classifier_forward.3} parent=31 // pred_fallthru
        _
    $region32: #{bert_classifier_forward.3} parent=5 // pred_fallthru
      _
    %p186 = scmp.le.s32.totalorder 1, %s11
    %p187 = scmp.lt.s32.totalorder %s11, 3
    %p188 = pnand %p186, %p187
    %p189 = pneg %p188
    // Predicated region
    $region37: #{bert_classifier_forward.3} parent=5 // pred_check
      _
    $region38: #{bert_classifier_forward.3} parent=5 // pred_check_branch
      %191 = sbr.rel (%p188) target = $region40
    $region39: #{bert_classifier_forward.3} parent=5 // pred_region
      %s192 = ssub.s32 %s11, 1
      %p193 = scmp.lt.s32.totalorder %s16, 1
      %s194 = scalar_select %p193, %s16, 1
      %s195 = smul.addr %s194, 32
      %s196 = smul.addr %s195, 8
      %s197 = scalar_lea.vmem %s0, %s196
      %p198 = pneg %p37
      %p199 = pneg %p34
      %p200 = pneg %p58
      %p201 = pneg %p55
      %p202 = pneg %p79
      %p203 = pneg %p76
      %p204 = pneg %p100
      %p205 = pneg %p97
      %p206 = pneg %p121
      %p207 = pneg %p118
      %p208 = pneg %p147
      %p209 = pneg %p144
      %p210 = scmp.lt.s32.totalorder %s16, 1
      %s211 = scalar_select %p210, %s16, 1
      %s212 = smul.addr %s211, 32
      %s213 = smul.addr %s212, 8
      %s214 = scalar_lea.vmem %s5, %s213
      %p215 = scmp.lt.s32.totalorder %s16, 1
      %s216 = scalar_select %p215, %s16, 1
      %s217 = smul.addr %s216, 32
      %s218 = smul.addr %s217, 8
      %s219 = scalar_lea.vmem %s0, %s218
      %p220 = scmp.lt.s32.totalorder %s16, 1
      %s221 = scalar_select %p220, %s16, 1
      %s222 = smul.addr %s221, 32
      %s223 = smul.addr %s222, 8
      %s224 = scalar_lea.vmem %s5, %s223
      %v225 = vld [vmem:[%s219] sm:$0xff]
      %v226 = vld [vmem:[%s219 + $0x8] sm:$0xff]
      %v227 = vld [vmem:[%s219 + $0x10] sm:$0xff]
      %v228 = vld [vmem:[%s219 + $0x18] sm:$0xff]
      %v229 = vld [vmem:[%s219 + $0x20] sm:$0xff]
      %v230 = vld [vmem:[%s219 + $0x28] sm:$0xff]
      %v231 = vld [vmem:[%s219 + $0x30] sm:$0xff]
      %v232 = vld [vmem:[%s219 + $0x38] sm:$0xff]
      %v233 = vld [vmem:[%s219 + $0x40] sm:$0xff]
      %v234 = vld [vmem:[%s219 + $0x48] sm:$0xff]
      %v235 = vld [vmem:[%s219 + $0x50] sm:$0xff]
      %v236 = vld [vmem:[%s219 + $0x58] sm:$0xff]
      %v237 = vld [vmem:[%s219 + $0x60] sm:$0xff]
      %v238 = vld [vmem:[%s219 + $0x68] sm:$0xff]
      %v239 = vld [vmem:[%s219 + $0x70] sm:$0xff]
      %v240 = vld [vmem:[%s219 + $0x78] sm:$0xff]
      %v241 = vld [vmem:[%s219 + $0x80] sm:$0xff]
      %v242 = vld [vmem:[%s219 + $0x88] sm:$0xff]
      %v243 = vld [vmem:[%s219 + $0x90] sm:$0xff]
      %v244 = vld [vmem:[%s219 + $0x98] sm:$0xff]
      %v245 = vld [vmem:[%s219 + $0xa0] sm:$0xff]
      %v246 = vld [vmem:[%s219 + $0xa8] sm:$0xff]
      %v247 = vld [vmem:[%s219 + $0xb0] sm:$0xff]
      %v248 = vld [vmem:[%s219 + $0xb8] sm:$0xff]
      %v249 = vld [vmem:[%s219 + $0xc0] sm:$0xff]
      %v250 = vld [vmem:[%s219 + $0xc8] sm:$0xff]
      %v251 = vld [vmem:[%s219 + $0xd0] sm:$0xff]
      %v252 = vld [vmem:[%s219 + $0xd8] sm:$0xff]
      %v253 = vld [vmem:[%s219 + $0xe0] sm:$0xff]
      %v254 = vld [vmem:[%s219 + $0xe8] sm:$0xff]
      %v255 = vld [vmem:[%s219 + $0xf0] sm:$0xff]
      %v256 = vld [vmem:[%s219 + $0xf8] sm:$0xff]
      %v257 = vld [vmem:[%s1] sm:$0xff]
      %v258 = vld [vmem:[%s1 + $0x8] sm:$0xff]
      %v259 = vld [vmem:[%s1 + $0x10] sm:$0xff]
      %v260 = vld [vmem:[%s1 + $0x18] sm:$0xff]
      %v261 = vld [vmem:[%s1 + $0x20] sm:$0xff]
      %v262 = vld [vmem:[%s1 + $0x28] sm:$0xff]
      %v263 = vld [vmem:[%s1 + $0x30] sm:$0xff]
      %v264 = vld [vmem:[%s1 + $0x38] sm:$0xff]
      %v265 = vld [vmem:[%s1 + $0x40] sm:$0xff]
      %v266 = vld [vmem:[%s1 + $0x48] sm:$0xff]
      %v267 = vld [vmem:[%s1 + $0x50] sm:$0xff]
      %v268 = vld [vmem:[%s1 + $0x58] sm:$0xff]
      %v269 = vld [vmem:[%s1 + $0x60] sm:$0xff]
      %v270 = vld [vmem:[%s1 + $0x68] sm:$0xff]
      %v271 = vld [vmem:[%s1 + $0x70] sm:$0xff]
      %v272 = vld [vmem:[%s1 + $0x78] sm:$0xff]
      %v273 = vld [vmem:[%s1 + $0x80] sm:$0xff]
      %v274 = vld [vmem:[%s1 + $0x88] sm:$0xff]
      %v275 = vld [vmem:[%s1 + $0x90] sm:$0xff]
      %v276 = vld [vmem:[%s1 + $0x98] sm:$0xff]
      %v277 = vld [vmem:[%s1 + $0xa0] sm:$0xff]
      %v278 = vld [vmem:[%s1 + $0xa8] sm:$0xff]
      %v279 = vld [vmem:[%s1 + $0xb0] sm:$0xff]
      %v280 = vld [vmem:[%s1 + $0xb8] sm:$0xff]
      %v281 = vld [vmem:[%s1 + $0xc0] sm:$0xff]
      %v282 = vld [vmem:[%s1 + $0xc8] sm:$0xff]
      %v283 = vld [vmem:[%s1 + $0xd0] sm:$0xff]
      %v284 = vld [vmem:[%s1 + $0xd8] sm:$0xff]
      %v285 = vld [vmem:[%s1 + $0xe0] sm:$0xff]
      %v286 = vld [vmem:[%s1 + $0xe8] sm:$0xff]
      %v287 = vld [vmem:[%s1 + $0xf0] sm:$0xff]
      %v288 = vld [vmem:[%s1 + $0xf8] sm:$0xff]
      %v289 = vadd.f32 %v225, %v257
      %v290 = vadd.f32 %v226, %v258
      %v291 = vadd.f32 %v227, %v259
      %v292 = vadd.f32 %v228, %v260
      %v293 = vadd.f32 %v229, %v261
      %v294 = vadd.f32 %v230, %v262
      %v295 = vadd.f32 %v231, %v263
      %v296 = vadd.f32 %v232, %v264
      %v297 = vadd.f32 %v233, %v265
      %v298 = vadd.f32 %v234, %v266
      %v299 = vadd.f32 %v235, %v267
      %v300 = vadd.f32 %v236, %v268
      %v301 = vadd.f32 %v237, %v269
      %v302 = vadd.f32 %v238, %v270
      %v303 = vadd.f32 %v239, %v271
      %v304 = vadd.f32 %v240, %v272
      %v305 = vadd.f32 %v241, %v273
      %v306 = vadd.f32 %v242, %v274
      %v307 = vadd.f32 %v243, %v275
      %v308 = vadd.f32 %v244, %v276
      %v309 = vadd.f32 %v245, %v277
      %v310 = vadd.f32 %v246, %v278
      %v311 = vadd.f32 %v247, %v279
      %v312 = vadd.f32 %v248, %v280
      %v313 = vadd.f32 %v249, %v281
      %v314 = vadd.f32 %v250, %v282
      %v315 = vadd.f32 %v251, %v283
      %v316 = vadd.f32 %v252, %v284
      %v317 = vadd.f32 %v253, %v285
      %v318 = vadd.f32 %v254, %v286
      %v319 = vadd.f32 %v255, %v287
      %v320 = vadd.f32 %v256, %v288
      %v321 = vld [vmem:[%s2] sm:$0x3]
      %v323 = vlaneseq
      %v324 = vshrl.u32 %v323, 7
      %v325 = vsub.s32 0, %v324
      %v326 = vrot.slane %v321, %v325
      %v327 = vlaneseq
      %v328 = vshrl.u32 %v327, 7
      %v329 = vsub.s32 1, %v328
      %v330 = vrot.slane %v321, %v329
      %v333 = vadd.f32 %v289, %v326
      %v334 = vadd.f32 %v290, %v330
      %v335 = vadd.f32 %v291, %v326
      %v336 = vadd.f32 %v292, %v330
      %v337 = vadd.f32 %v293, %v326
      %v338 = vadd.f32 %v294, %v330
      %v339 = vadd.f32 %v295, %v326
      %v340 = vadd.f32 %v296, %v330
      %v341 = vadd.f32 %v297, %v326
      %v342 = vadd.f32 %v298, %v330
      %v343 = vadd.f32 %v299, %v326
      %v344 = vadd.f32 %v300, %v330
      %v345 = vadd.f32 %v301, %v326
      %v346 = vadd.f32 %v302, %v330
      %v347 = vadd.f32 %v303, %v326
      %v348 = vadd.f32 %v304, %v330
      %v349 = vadd.f32 %v305, %v326
      %v350 = vadd.f32 %v306, %v330
      %v351 = vadd.f32 %v307, %v326
      %v352 = vadd.f32 %v308, %v330
      %v353 = vadd.f32 %v309, %v326
      %v354 = vadd.f32 %v310, %v330
      %v355 = vadd.f32 %v311, %v326
      %v356 = vadd.f32 %v312, %v330
      %v357 = vadd.f32 %v313, %v326
      %v358 = vadd.f32 %v314, %v330
      %v359 = vadd.f32 %v315, %v326
      %v360 = vadd.f32 %v316, %v330
      %v361 = vadd.f32 %v317, %v326
      %v362 = vadd.f32 %v318, %v330
      %v363 = vadd.f32 %v319, %v326
      %v364 = vadd.f32 %v320, %v330
      %v365 = vld [vmem:[%s3] sm:$0x3]
      %v366 = vld [vmem:[%s4] sm:$0x3]
      %v367 = vadd.f32 %v333, %v334
      %368 = vadd.xlane.f32.xlu0 %v367
      %v369 = vpop.xlane.xlu0 %368
      %v370 = vadd.f32 %v335, %v336
      %371 = vadd.xlane.f32.xlu0 %v370
      %v372 = vpop.xlane.xlu0 %371
      %v373 = vadd.f32 %v337, %v338
      %374 = vadd.xlane.f32.xlu0 %v373
      %v375 = vpop.xlane.xlu0 %374
      %v376 = vadd.f32 %v339, %v340
      %377 = vadd.xlane.f32.xlu0 %v376
      %v378 = vpop.xlane.xlu0 %377
      %v379 = vadd.f32 %v341, %v342
      %380 = vadd.xlane.f32.xlu0 %v379
      %v381 = vpop.xlane.xlu0 %380
      %v382 = vadd.f32 %v343, %v344
      %383 = vadd.xlane.f32.xlu0 %v382
      %v384 = vpop.xlane.xlu0 %383
      %v385 = vadd.f32 %v345, %v346
      %386 = vadd.xlane.f32.xlu0 %v385
      %v387 = vpop.xlane.xlu0 %386
      %v388 = vadd.f32 %v347, %v348
      %389 = vadd.xlane.f32.xlu0 %v388
      %v390 = vpop.xlane.xlu0 %389
      %v391 = vadd.f32 %v349, %v350
      %392 = vadd.xlane.f32.xlu0 %v391
      %v393 = vpop.xlane.xlu0 %392
      %v394 = vadd.f32 %v351, %v352
      %395 = vadd.xlane.f32.xlu0 %v394
      %v396 = vpop.xlane.xlu0 %395
      %v397 = vadd.f32 %v353, %v354
      %398 = vadd.xlane.f32.xlu0 %v397
      %v399 = vpop.xlane.xlu0 %398
      %v400 = vadd.f32 %v355, %v356
      %401 = vadd.xlane.f32.xlu0 %v400
      %v402 = vpop.xlane.xlu0 %401
      %v403 = vadd.f32 %v357, %v358
      %404 = vadd.xlane.f32.xlu0 %v403
      %v405 = vpop.xlane.xlu0 %404
      %v406 = vadd.f32 %v359, %v360
      %407 = vadd.xlane.f32.xlu0 %v406
      %v408 = vpop.xlane.xlu0 %407
      %v409 = vadd.f32 %v361, %v362
      %410 = vadd.xlane.f32.xlu0 %v409
      %v411 = vpop.xlane.xlu0 %410
      %v412 = vadd.f32 %v363, %v364
      %413 = vadd.xlane.f32.xlu0 %v412
      %v414 = vpop.xlane.xlu0 %413
      %v415 = vrcp.pop 256.0
      %v416 = vmul.f32 %v369, %v415
      %v417 = vmul.f32 %v372, %v415
      %v418 = vmul.f32 %v375, %v415
      %v419 = vmul.f32 %v378, %v415
      %v420 = vmul.f32 %v381, %v415
      %v421 = vmul.f32 %v384, %v415
      %v422 = vmul.f32 %v387, %v415
      %v423 = vmul.f32 %v390, %v415
      %v424 = vmul.f32 %v393, %v415
      %v425 = vmul.f32 %v396, %v415
      %v426 = vmul.f32 %v399, %v415
      %v427 = vmul.f32 %v402, %v415
      %v428 = vmul.f32 %v405, %v415
      %v429 = vmul.f32 %v408, %v415
      %v430 = vmul.f32 %v411, %v415
      %v431 = vmul.f32 %v414, %v415
      %v432 = vsub.f32 %v333, %v416
      %v433 = vsub.f32 %v334, %v416
      %v434 = vsub.f32 %v335, %v417
      %v435 = vsub.f32 %v336, %v417
      %v436 = vsub.f32 %v337, %v418
      %v437 = vsub.f32 %v338, %v418
      %v438 = vsub.f32 %v339, %v419
      %v439 = vsub.f32 %v340, %v419
      %v440 = vsub.f32 %v341, %v420
      %v441 = vsub.f32 %v342, %v420
      %v442 = vsub.f32 %v343, %v421
      %v443 = vsub.f32 %v344, %v421
      %v444 = vsub.f32 %v345, %v422
      %v445 = vsub.f32 %v346, %v422
      %v446 = vsub.f32 %v347, %v423
      %v447 = vsub.f32 %v348, %v423
      %v448 = vsub.f32 %v349, %v424
      %v449 = vsub.f32 %v350, %v424
      %v450 = vsub.f32 %v351, %v425
      %v451 = vsub.f32 %v352, %v425
      %v452 = vsub.f32 %v353, %v426
      %v453 = vsub.f32 %v354, %v426
      %v454 = vsub.f32 %v355, %v427
      %v455 = vsub.f32 %v356, %v427
      %v456 = vsub.f32 %v357, %v428
      %v457 = vsub.f32 %v358, %v428
      %v458 = vsub.f32 %v359, %v429
      %v459 = vsub.f32 %v360, %v429
      %v460 = vsub.f32 %v361, %v430
      %v461 = vsub.f32 %v362, %v430
      %v462 = vsub.f32 %v363, %v431
      %v463 = vsub.f32 %v364, %v431
      %v464 = vmul.f32 %v432, %v432
      %v465 = vmul.f32 %v433, %v433
      %v466 = vmul.f32 %v434, %v434
      %v467 = vmul.f32 %v435, %v435
      %v468 = vmul.f32 %v436, %v436
      %v469 = vmul.f32 %v437, %v437
      %v470 = vmul.f32 %v438, %v438
      %v471 = vmul.f32 %v439, %v439
      %v472 = vmul.f32 %v440, %v440
      %v473 = vmul.f32 %v441, %v441
      %v474 = vmul.f32 %v442, %v442
      %v475 = vmul.f32 %v443, %v443
      %v476 = vmul.f32 %v444, %v444
      %v477 = vmul.f32 %v445, %v445
      %v478 = vmul.f32 %v446, %v446
      %v479 = vmul.f32 %v447, %v447
      %v480 = vmul.f32 %v448, %v448
      %v481 = vmul.f32 %v449, %v449
      %v482 = vmul.f32 %v450, %v450
      %v483 = vmul.f32 %v451, %v451
      %v484 = vmul.f32 %v452, %v452
      %v485 = vmul.f32 %v453, %v453
      %v486 = vmul.f32 %v454, %v454
      %v487 = vmul.f32 %v455, %v455
      %v488 = vmul.f32 %v456, %v456
      %v489 = vmul.f32 %v457, %v457
      %v490 = vmul.f32 %v458, %v458
      %v491 = vmul.f32 %v459, %v459
      %v492 = vmul.f32 %v460, %v460
      %v493 = vmul.f32 %v461, %v461
      %v494 = vmul.f32 %v462, %v462
      %v495 = vmul.f32 %v463, %v463
      %v496 = vadd.f32 %v464, %v465
      %497 = vadd.xlane.f32.xlu0 %v496
      %v498 = vpop.xlane.xlu0 %497
      %v499 = vadd.f32 %v466, %v467
      %500 = vadd.xlane.f32.xlu0 %v499
      %v501 = vpop.xlane.xlu0 %500
      %v502 = vadd.f32 %v468, %v469
      %503 = vadd.xlane.f32.xlu0 %v502
      %v504 = vpop.xlane.xlu0 %503
      %v505 = vadd.f32 %v470, %v471
      %506 = vadd.xlane.f32.xlu0 %v505
      %v507 = vpop.xlane.xlu0 %506
      %v508 = vadd.f32 %v472, %v473
      %509 = vadd.xlane.f32.xlu0 %v508
      %v510 = vpop.xlane.xlu0 %509
      %v511 = vadd.f32 %v474, %v475
      %512 = vadd.xlane.f32.xlu0 %v511
      %v513 = vpop.xlane.xlu0 %512
      %v514 = vadd.f32 %v476, %v477
      %515 = vadd.xlane.f32.xlu0 %v514
      %v516 = vpop.xlane.xlu0 %515
      %v517 = vadd.f32 %v478, %v479
      %518 = vadd.xlane.f32.xlu0 %v517
      %v519 = vpop.xlane.xlu0 %518
      %v520 = vadd.f32 %v480, %v481
      %521 = vadd.xlane.f32.xlu0 %v520
      %v522 = vpop.xlane.xlu0 %521
      %v523 = vadd.f32 %v482, %v483
      %524 = vadd.xlane.f32.xlu0 %v523
      %v525 = vpop.xlane.xlu0 %524
      %v526 = vadd.f32 %v484, %v485
      %527 = vadd.xlane.f32.xlu0 %v526
      %v528 = vpop.xlane.xlu0 %527
      %v529 = vadd.f32 %v486, %v487
      %530 = vadd.xlane.f32.xlu0 %v529
      %v531 = vpop.xlane.xlu0 %530
      %v532 = vadd.f32 %v488, %v489
      %533 = vadd.xlane.f32.xlu0 %v532
      %v534 = vpop.xlane.xlu0 %533
      %v535 = vadd.f32 %v490, %v491
      %536 = vadd.xlane.f32.xlu0 %v535
      %v537 = vpop.xlane.xlu0 %536
      %v538 = vadd.f32 %v492, %v493
      %539 = vadd.xlane.f32.xlu0 %v538
      %v540 = vpop.xlane.xlu0 %539
      %v541 = vadd.f32 %v494, %v495
      %542 = vadd.xlane.f32.xlu0 %v541
      %v543 = vpop.xlane.xlu0 %542
      %v544 = vmul.f32 %v498, %v415
      %v545 = vmul.f32 %v501, %v415
      %v546 = vmul.f32 %v504, %v415
      %v547 = vmul.f32 %v507, %v415
      %v548 = vmul.f32 %v510, %v415
      %v549 = vmul.f32 %v513, %v415
      %v550 = vmul.f32 %v516, %v415
      %v551 = vmul.f32 %v519, %v415
      %v552 = vmul.f32 %v522, %v415
      %v553 = vmul.f32 %v525, %v415
      %v554 = vmul.f32 %v528, %v415
      %v555 = vmul.f32 %v531, %v415
      %v556 = vmul.f32 %v534, %v415
      %v557 = vmul.f32 %v537, %v415
      %v558 = vmul.f32 %v540, %v415
      %v559 = vmul.f32 %v543, %v415
      %v560 = vadd.f32 %v544, 1e-12
      %v561 = vadd.f32 %v545, 1e-12
      %v562 = vadd.f32 %v546, 1e-12
      %v563 = vadd.f32 %v547, 1e-12
      %v564 = vadd.f32 %v548, 1e-12
      %v565 = vadd.f32 %v549, 1e-12
      %v566 = vadd.f32 %v550, 1e-12
      %v567 = vadd.f32 %v551, 1e-12
      %v568 = vadd.f32 %v552, 1e-12
      %v569 = vadd.f32 %v553, 1e-12
      %v570 = vadd.f32 %v554, 1e-12
      %v571 = vadd.f32 %v555, 1e-12
      %v572 = vadd.f32 %v556, 1e-12
      %v573 = vadd.f32 %v557, 1e-12
      %v574 = vadd.f32 %v558, 1e-12
      %v575 = vadd.f32 %v559, 1e-12
      %v576 = vrsqrt.pop %v560
      %v577 = vrsqrt.pop %v561
      %v578 = vrsqrt.pop %v562
      %v579 = vrsqrt.pop %v563
      %v580 = vrsqrt.pop %v564
      %v581 = vrsqrt.pop %v565
      %v582 = vrsqrt.pop %v566
      %v583 = vrsqrt.pop %v567
      %v584 = vrsqrt.pop %v568
      %v585 = vrsqrt.pop %v569
      %v586 = vrsqrt.pop %v570
      %v587 = vrsqrt.pop %v571
      %v588 = vrsqrt.pop %v572
      %v589 = vrsqrt.pop %v573
      %v590 = vrsqrt.pop %v574
      %v591 = vrsqrt.pop %v575
      %v592 = vmul.f32 %v432, %v576
      %v593 = vmul.f32 %v433, %v576
      %v594 = vmul.f32 %v434, %v577
      %v595 = vmul.f32 %v435, %v577
      %v596 = vmul.f32 %v436, %v578
      %v597 = vmul.f32 %v437, %v578
      %v598 = vmul.f32 %v438, %v579
      %v599 = vmul.f32 %v439, %v579
      %v600 = vmul.f32 %v440, %v580
      %v601 = vmul.f32 %v441, %v580
      %v602 = vmul.f32 %v442, %v581
      %v603 = vmul.f32 %v443, %v581
      %v604 = vmul.f32 %v444, %v582
      %v605 = vmul.f32 %v445, %v582
      %v606 = vmul.f32 %v446, %v583
      %v607 = vmul.f32 %v447, %v583
      %v608 = vmul.f32 %v448, %v584
      %v609 = vmul.f32 %v449, %v584
      %v610 = vmul.f32 %v450, %v585
      %v611 = vmul.f32 %v451, %v585
      %v612 = vmul.f32 %v452, %v586
      %v613 = vmul.f32 %v453, %v586
      %v614 = vmul.f32 %v454, %v587
      %v615 = vmul.f32 %v455, %v587
      %v616 = vmul.f32 %v456, %v588
      %v617 = vmul.f32 %v457, %v588
      %v618 = vmul.f32 %v458, %v589
      %v619 = vmul.f32 %v459, %v589
      %v620 = vmul.f32 %v460, %v590
      %v621 = vmul.f32 %v461, %v590
      %v622 = vmul.f32 %v462, %v591
      %v623 = vmul.f32 %v463, %v591
      %v625 = vlaneseq
      %v626 = vshrl.u32 %v625, 7
      %v627 = vsub.s32 0, %v626
      %v628 = vrot.slane %v365, %v627
      %v629 = vlaneseq
      %v630 = vshrl.u32 %v629, 7
      %v631 = vsub.s32 1, %v630
      %v632 = vrot.slane %v365, %v631
      %v635 = vmul.f32 %v592, %v628
      %v636 = vmul.f32 %v593, %v632
      %v637 = vmul.f32 %v594, %v628
      %v638 = vmul.f32 %v595, %v632
      %v639 = vmul.f32 %v596, %v628
      %v640 = vmul.f32 %v597, %v632
      %v641 = vmul.f32 %v598, %v628
      %v642 = vmul.f32 %v599, %v632
      %v643 = vmul.f32 %v600, %v628
      %v644 = vmul.f32 %v601, %v632
      %v645 = vmul.f32 %v602, %v628
      %v646 = vmul.f32 %v603, %v632
      %v647 = vmul.f32 %v604, %v628
      %v648 = vmul.f32 %v605, %v632
      %v649 = vmul.f32 %v606, %v628
      %v650 = vmul.f32 %v607, %v632
      %v651 = vmul.f32 %v608, %v628
      %v652 = vmul.f32 %v609, %v632
      %v653 = vmul.f32 %v610, %v628
      %v654 = vmul.f32 %v611, %v632
      %v655 = vmul.f32 %v612, %v628
      %v656 = vmul.f32 %v613, %v632
      %v657 = vmul.f32 %v614, %v628
      %v658 = vmul.f32 %v615, %v632
      %v659 = vmul.f32 %v616, %v628
      %v660 = vmul.f32 %v617, %v632
      %v661 = vmul.f32 %v618, %v628
      %v662 = vmul.f32 %v619, %v632
      %v663 = vmul.f32 %v620, %v628
      %v664 = vmul.f32 %v621, %v632
      %v665 = vmul.f32 %v622, %v628
      %v666 = vmul.f32 %v623, %v632
      %v668 = vlaneseq
      %v669 = vshrl.u32 %v668, 7
      %v670 = vsub.s32 0, %v669
      %v671 = vrot.slane %v366, %v670
      %v672 = vlaneseq
      %v673 = vshrl.u32 %v672, 7
      %v674 = vsub.s32 1, %v673
      %v675 = vrot.slane %v366, %v674
      %v678 = vadd.f32 %v635, %v671
      %v679 = vadd.f32 %v636, %v675
      %v680 = vadd.f32 %v637, %v671
      %v681 = vadd.f32 %v638, %v675
      %v682 = vadd.f32 %v639, %v671
      %v683 = vadd.f32 %v640, %v675
      %v684 = vadd.f32 %v641, %v671
      %v685 = vadd.f32 %v642, %v675
      %v686 = vadd.f32 %v643, %v671
      %v687 = vadd.f32 %v644, %v675
      %v688 = vadd.f32 %v645, %v671
      %v689 = vadd.f32 %v646, %v675
      %v690 = vadd.f32 %v647, %v671
      %v691 = vadd.f32 %v648, %v675
      %v692 = vadd.f32 %v649, %v671
      %v693 = vadd.f32 %v650, %v675
      %v694 = vadd.f32 %v651, %v671
      %v695 = vadd.f32 %v652, %v675
      %v696 = vadd.f32 %v653, %v671
      %v697 = vadd.f32 %v654, %v675
      %v698 = vadd.f32 %v655, %v671
      %v699 = vadd.f32 %v656, %v675
      %v700 = vadd.f32 %v657, %v671
      %v701 = vadd.f32 %v658, %v675
      %v702 = vadd.f32 %v659, %v671
      %v703 = vadd.f32 %v660, %v675
      %v704 = vadd.f32 %v661, %v671
      %v705 = vadd.f32 %v662, %v675
      %v706 = vadd.f32 %v663, %v671
      %v707 = vadd.f32 %v664, %v675
      %v708 = vadd.f32 %v665, %v671
      %v709 = vadd.f32 %v666, %v675
      %710 = vst [vmem:[%s224] sm:$0xff] %v678
      %711 = vst [vmem:[%s224 + $0x8] sm:$0xff] %v679
      %712 = vst [vmem:[%s224 + $0x10] sm:$0xff] %v680
      %713 = vst [vmem:[%s224 + $0x18] sm:$0xff] %v681
      %714 = vst [vmem:[%s224 + $0x20] sm:$0xff] %v682
      %715 = vst [vmem:[%s224 + $0x28] sm:$0xff] %v683
      %716 = vst [vmem:[%s224 + $0x30] sm:$0xff] %v684
      %717 = vst [vmem:[%s224 + $0x38] sm:$0xff] %v685
      %718 = vst [vmem:[%s224 + $0x40] sm:$0xff] %v686
      %719 = vst [vmem:[%s224 + $0x48] sm:$0xff] %v687
      %720 = vst [vmem:[%s224 + $0x50] sm:$0xff] %v688
      %721 = vst [vmem:[%s224 + $0x58] sm:$0xff] %v689
      %722 = vst [vmem:[%s224 + $0x60] sm:$0xff] %v690
      %723 = vst [vmem:[%s224 + $0x68] sm:$0xff] %v691
      %724 = vst [vmem:[%s224 + $0x70] sm:$0xff] %v692
      %725 = vst [vmem:[%s224 + $0x78] sm:$0xff] %v693
      %726 = vst [vmem:[%s224 + $0x80] sm:$0xff] %v694
      %727 = vst [vmem:[%s224 + $0x88] sm:$0xff] %v695
      %728 = vst [vmem:[%s224 + $0x90] sm:$0xff] %v696
      %729 = vst [vmem:[%s224 + $0x98] sm:$0xff] %v697
      %730 = vst [vmem:[%s224 + $0xa0] sm:$0xff] %v698
      %731 = vst [vmem:[%s224 + $0xa8] sm:$0xff] %v699
      %732 = vst [vmem:[%s224 + $0xb0] sm:$0xff] %v700
      %733 = vst [vmem:[%s224 + $0xb8] sm:$0xff] %v701
      %734 = vst [vmem:[%s224 + $0xc0] sm:$0xff] %v702
      %735 = vst [vmem:[%s224 + $0xc8] sm:$0xff] %v703
      %736 = vst [vmem:[%s224 + $0xd0] sm:$0xff] %v704
      %737 = vst [vmem:[%s224 + $0xd8] sm:$0xff] %v705
      %738 = vst [vmem:[%s224 + $0xe0] sm:$0xff] %v706
      %739 = vst [vmem:[%s224 + $0xe8] sm:$0xff] %v707
      %740 = vst [vmem:[%s224 + $0xf0] sm:$0xff] %v708
      %741 = vst [vmem:[%s224 + $0xf8] sm:$0xff] %v709
      %p742 = scmp.lt.s32.totalorder %s16, 1
      %s743 = scalar_select %p742, %s16, 1
      %s744 = smul.addr %s743, 32
      %s745 = smul.addr %s744, 8
      %s746 = scalar_lea.vmem %s5, %s745
      // Predicated region
      $region41: #{bert_classifier_forward.3} parent=39 // pred_check
        %p747 = pneg %p144
      $region42: #{bert_classifier_forward.3} parent=39 // pred_check_branch
        %749 = sbr.rel (%p747) target = $region44
      $region43: #{bert_classifier_forward.3} parent=39 // pred_region
        _
      $region44: #{bert_classifier_forward.3} parent=39 // pred_fallthru
        _
    $region40: #{bert_classifier_forward.3} parent=5 // pred_fallthru
      _
    %p750 = scmp.le.s32.totalorder 2, %s11
    // Predicated region
    $region45: #{bert_classifier_forward.3} parent=5 // pred_check
      %p751 = pneg %p750
    $region46: #{bert_classifier_forward.3} parent=5 // pred_check_branch
      %753 = sbr.rel (%p751) target = $region48
    $region47: #{bert_classifier_forward.3} parent=5 // pred_region
      %s754 = ssub.s32 %s11, 2
      // Predicated region
      $region49: #{bert_classifier_forward.3} parent=47 // pred_check
        %p755 = pneg %p150
      $region50: #{bert_classifier_forward.3} parent=47 // pred_check_branch
        %757 = sbr.rel (%p755) target = $region52
      $region51: #{bert_classifier_forward.3} parent=47 // pred_region
        %p758 = scmp.lt.s32.totalorder %s17, 1
        %s759 = scalar_select %p758, %s17, 1
        %s760 = smul.addr %s759, 32
        %s761 = smul.addr %s760, 8
        %s762 = scalar_lea.vmem %s5, %s761
      $region52: #{bert_classifier_forward.3} parent=47 // pred_fallthru
        _
    $region48: #{bert_classifier_forward.3} parent=5 // pred_fallthru
      _
  $region6: #{bert_classifier_forward.3} parent=0 // loop_footer
    %s15 = sadd.s32 1, %s11
  $region7: #{bert_classifier_forward.3} parent=0 // loop_footer_branch
    %10 = sbr.rel target = $region3
  $region8: #{bert_classifier_forward.3} parent=0 // loop_exit
    _

// kernel: bert_classifier_forward.4
$region0: #{bert_classifier_forward.4}
  #allocation0 [shape = 'u32[]', space=smem, size = 0x4, offset = 0x4, fixed_abs, tag = 'smem constant byte address 0x4 - core index']
  #allocation1 [shape = 'u32[144,128]{1,0:T(1,128)}', space=vmem, size = 0x12000, scoped, tag = 'internal scratch']
  %s0 = inlined_call_operand.vmem [shape: f32[2,128,256], index: 0, kind: input, shape index: {}]
  %s1 = inlined_call_operand.vmem [shape: f32[2,1,128], index: 1, kind: input, shape index: {}]
  %s2 = inlined_call_operand.vmem [shape: bf16[2,256,768], index: 2, kind: input, shape index: {}]
  %s3 = inlined_call_operand.vmem [shape: f32[2,1,768], index: 3, kind: input, shape index: {}]
  %s4 = inlined_call_operand.vmem [shape: bf16[2,256,256], index: 4, kind: input, shape index: {}]
  %s5 = inlined_call_operand.vmem [shape: f32[2,1,256], index: 5, kind: input, shape index: {}]
  %s6 = inlined_call_operand.vmem [shape: f32[2,1,256], index: 6, kind: input, shape index: {}]
  %s7 = inlined_call_operand.vmem [shape: f32[2,1,256], index: 7, kind: input, shape index: {}]
  %s8 = inlined_call_operand.vmem [shape: bf16[2,256,512], index: 8, kind: input, shape index: {}]
  %s9 = inlined_call_operand.vmem [shape: f32[2,1,512], index: 9, kind: input, shape index: {}]
  %s10 = inlined_call_operand.vmem [shape: bf16[2,512,256], index: 10, kind: input, shape index: {}]
  %s11 = inlined_call_operand.vmem [shape: f32[2,1,256], index: 11, kind: input, shape index: {}]
  %s12 = inlined_call_operand.vmem [shape: f32[2,1,256], index: 12, kind: input, shape index: {}]
  %s13 = inlined_call_operand.vmem [shape: f32[2,1,256], index: 13, kind: input, shape index: {}]
  %s14 = inlined_call_operand.vmem [shape: f32[2,128,256], index: 14, kind: output, shape index: {}]
  %s15 = sld [smem:[#allocation0]]
  $region93: #{bert_classifier_forward.4} parent=0
    _
  %s17 = ssub.s32 1, %s15
  %s18 = scalar_select 0, %s17, %s15
  loop: start=0, step=1, limit=6
  $region2: #{bert_classifier_forward.4} parent=0 // loop_pre_header
    _
  $region3: #{bert_classifier_forward.4} parent=0 // loop_header
    %s20 = sphi 0, %s24
    %p21 = scmp.ge.s32.totalorder %s20, 6
    %s27 = sphi 0, %s39
    %s28 = sphi 0, %s35
    %s29 = sphi 0, %s27
    %s30 = sphi 0, %s28
    %s31 = sphi 0, %s29
    %s32 = sphi 0, %s30
    %s42 = sphi 0, %s44
    %s45 = sphi 0, %s42
    %s46 = sphi 0, %s45
    %s62 = sphi 0, %s46
    %s68 = sphi 0, %s70
    %s71 = sphi 0, %s68
    %s72 = sphi 0, %s71
    %s88 = sphi 0, %s72
    %s94 = sphi 0, %s96
    %s97 = sphi 0, %s94
    %s98 = sphi 0, %s97
    %s114 = sphi 0, %s98
    %s120 = sphi 0, %s122
    %s123 = sphi 0, %s120
    %s124 = sphi 0, %s123
    %s140 = sphi 0, %s124
    %s146 = sphi 0, %s148
    %s149 = sphi 0, %s146
    %s150 = sphi 0, %s149
    %s166 = sphi 0, %s150
    %s172 = sphi 0, %s174
    %s175 = sphi 0, %s172
    %s176 = sphi 0, %s175
    %s192 = sphi 0, %s176
    %s198 = sphi 0, %s200
    %s201 = sphi 0, %s198
    %s202 = sphi 0, %s201
    %s218 = sphi 0, %s202
    %s224 = sphi 0, %s226
    %s227 = sphi 0, %s224
    %s228 = sphi 0, %s227
    %s244 = sphi 0, %s228
    %s250 = sphi 0, %s252
    %s253 = sphi 0, %s250
    %s254 = sphi 0, %s253
    %s270 = sphi 0, %s254
    %s276 = sphi 0, %s278
    %s279 = sphi 0, %s276
    %s280 = sphi 0, %s279
    %s296 = sphi 0, %s280
    %s302 = sphi 0, %s304
    %s305 = sphi 0, %s302
    %s306 = sphi 0, %s305
    %s322 = sphi 0, %s306
    %s328 = sphi 0, %s330
    %s331 = sphi 0, %s328
    %s332 = sphi 0, %s331
    %s348 = sphi 0, %s332
    %s354 = sphi 0, %s356
    %s357 = sphi 0, %s354
    %s358 = sphi 0, %s357
    %s374 = sphi 0, %s358
    %s380 = sphi 0, %s382
    %s383 = sphi 0, %s380
    %s384 = sphi 0, %s383
    %s400 = sphi 0, %s384
    %s406 = sphi 0, %s408
    %s409 = sphi 0, %s406
    %s410 = sphi 0, %s409
    %s426 = sphi 0, %s410
  $region4: #{bert_classifier_forward.4} parent=0 // loop_header_branch
    %23 = sbr.rel (%p21) target = $region8
  $region5: #{bert_classifier_forward.4} parent=0 // loop_body
    %s25 = ssub.s32 %s20, 1
    %s26 = ssub.s32 %s20, 2
    %s33 = sadd.s32 1, %s28
    %p34 = scmp.ge.s32.totalorder %s33, 2
    %s35 = scalar_select %p34, 0, %s33
    %s36 = sadd.s32 1, %s27
    %s37 = scalar_select %p34, %s36, %s27
    %p38 = scmp.ge.s32.totalorder %s37, 2
    %s39 = scalar_select %p38, 0, %s37
    %s40 = ssub.s32 %s27, %s39
    %p41 = scmp.eq.s32.totalorder %s40, 0
    %s43 = sadd.s32 %s42, 1
    %s44 = scalar_select %p41, %s42, %s43
    %p47 = pneg %p41
    %p48 = scmp.eq.s32.totalorder %s20, 3
    %p49 = por %p47, %p48
    %p50 = scmp.ne.s32.totalorder %s42, %s45
    %p51 = scmp.eq.s32.totalorder %s20, 0
    %p52 = por %p50, %p51
    %p53 = scmp.ne.s32.totalorder %s42, %s45
    %p54 = scmp.eq.s32.totalorder %s25, 3
    %p55 = por %p53, %p54
    %p56 = scmp.ne.s32.totalorder %s45, %s46
    %p57 = scmp.eq.s32.totalorder %s25, 0
    %p58 = por %p56, %p57
    %p59 = scmp.ne.s32.totalorder %s45, %s46
    %p60 = scmp.eq.s32.totalorder %s26, 3
    %p61 = por %p59, %p60
    %p63 = scmp.ne.s32.totalorder %s46, %s62
    %p64 = scmp.eq.s32.totalorder %s26, 0
    %p65 = por %p63, %p64
    %s66 = ssub.s32 %s27, %s39
    %p67 = scmp.eq.s32.totalorder %s66, 0
    %s69 = sadd.s32 %s68, 1
    %s70 = scalar_select %p67, %s68, %s69
    %p73 = pneg %p67
    %p74 = scmp.eq.s32.totalorder %s20, 3
    %p75 = por %p73, %p74
    %p76 = scmp.ne.s32.totalorder %s68, %s71
    %p77 = scmp.eq.s32.totalorder %s20, 0
    %p78 = por %p76, %p77
    %p79 = scmp.ne.s32.totalorder %s68, %s71
    %p80 = scmp.eq.s32.totalorder %s25, 3
    %p81 = por %p79, %p80
    %p82 = scmp.ne.s32.totalorder %s71, %s72
    %p83 = scmp.eq.s32.totalorder %s25, 0
    %p84 = por %p82, %p83
    %p85 = scmp.ne.s32.totalorder %s71, %s72
    %p86 = scmp.eq.s32.totalorder %s26, 3
    %p87 = por %p85, %p86
    %p89 = scmp.ne.s32.totalorder %s72, %s88
    %p90 = scmp.eq.s32.totalorder %s26, 0
    %p91 = por %p89, %p90
    %s92 = ssub.s32 %s28, %s35
    %p93 = scmp.eq.s32.totalorder %s92, 0
    %s95 = sadd.s32 %s94, 1
    %s96 = scalar_select %p93, %s94, %s95
    %p99 = pneg %p93
    %p100 = scmp.eq.s32.totalorder %s20, 3
    %p101 = por %p99, %p100
    %p102 = scmp.ne.s32.totalorder %s94, %s97
    %p103 = scmp.eq.s32.totalorder %s20, 0
    %p104 = por %p102, %p103
    %p105 = scmp.ne.s32.totalorder %s94, %s97
    %p106 = scmp.eq.s32.totalorder %s25, 3
    %p107 = por %p105, %p106
    %p108 = scmp.ne.s32.totalorder %s97, %s98
    %p109 = scmp.eq.s32.totalorder %s25, 0
    %p110 = por %p108, %p109
    %p111 = scmp.ne.s32.totalorder %s97, %s98
    %p112 = scmp.eq.s32.totalorder %s26, 3
    %p113 = por %p111, %p112
    %p115 = scmp.ne.s32.totalorder %s98, %s114
    %p116 = scmp.eq.s32.totalorder %s26, 0
    %p117 = por %p115, %p116
    %s118 = ssub.s32 %s28, %s35
    %p119 = scmp.eq.s32.totalorder %s118, 0
    %s121 = sadd.s32 %s120, 1
    %s122 = scalar_select %p119, %s120, %s121
    %p125 = pneg %p119
    %p126 = scmp.eq.s32.totalorder %s20, 3
    %p127 = por %p125, %p126
    %p128 = scmp.ne.s32.totalorder %s120, %s123
    %p129 = scmp.eq.s32.totalorder %s20, 0
    %p130 = por %p128, %p129
    %p131 = scmp.ne.s32.totalorder %s120, %s123
    %p132 = scmp.eq.s32.totalorder %s25, 3
    %p133 = por %p131, %p132
    %p134 = scmp.ne.s32.totalorder %s123, %s124
    %p135 = scmp.eq.s32.totalorder %s25, 0
    %p136 = por %p134, %p135
    %p137 = scmp.ne.s32.totalorder %s123, %s124
    %p138 = scmp.eq.s32.totalorder %s26, 3
    %p139 = por %p137, %p138
    %p141 = scmp.ne.s32.totalorder %s124, %s140
    %p142 = scmp.eq.s32.totalorder %s26, 0
    %p143 = por %p141, %p142
    %s144 = ssub.s32 %s28, %s35
    %p145 = scmp.eq.s32.totalorder %s144, 0
    %s147 = sadd.s32 %s146, 1
    %s148 = scalar_select %p145, %s146, %s147
    %p151 = pneg %p145
    %p152 = scmp.eq.s32.totalorder %s20, 3
    %p153 = por %p151, %p152
    %p154 = scmp.ne.s32.totalorder %s146, %s149
    %p155 = scmp.eq.s32.totalorder %s20, 0
    %p156 = por %p154, %p155
    %p157 = scmp.ne.s32.totalorder %s146, %s149
    %p158 = scmp.eq.s32.totalorder %s25, 3
    %p159 = por %p157, %p158
    %p160 = scmp.ne.s32.totalorder %s149, %s150
    %p161 = scmp.eq.s32.totalorder %s25, 0
    %p162 = por %p160, %p161
    %p163 = scmp.ne.s32.totalorder %s149, %s150
    %p164 = scmp.eq.s32.totalorder %s26, 3
    %p165 = por %p163, %p164
    %p167 = scmp.ne.s32.totalorder %s150, %s166
    %p168 = scmp.eq.s32.totalorder %s26, 0
    %p169 = por %p167, %p168
    %s170 = ssub.s32 %s28, %s35
    %p171 = scmp.eq.s32.totalorder %s170, 0
    %s173 = sadd.s32 %s172, 1
    %s174 = scalar_select %p171, %s172, %s173
    %p177 = pneg %p171
    %p178 = scmp.eq.s32.totalorder %s20, 3
    %p179 = por %p177, %p178
    %p180 = scmp.ne.s32.totalorder %s172, %s175
    %p181 = scmp.eq.s32.totalorder %s20, 0
    %p182 = por %p180, %p181
    %p183 = scmp.ne.s32.totalorder %s172, %s175
    %p184 = scmp.eq.s32.totalorder %s25, 3
    %p185 = por %p183, %p184
    %p186 = scmp.ne.s32.totalorder %s175, %s176
    %p187 = scmp.eq.s32.totalorder %s25, 0
    %p188 = por %p186, %p187
    %p189 = scmp.ne.s32.totalorder %s175, %s176
    %p190 = scmp.eq.s32.totalorder %s26, 3
    %p191 = por %p189, %p190
    %p193 = scmp.ne.s32.totalorder %s176, %s192
    %p194 = scmp.eq.s32.totalorder %s26, 0
    %p195 = por %p193, %p194
    %s196 = ssub.s32 %s28, %s35
    %p197 = scmp.eq.s32.totalorder %s196, 0
    %s199 = sadd.s32 %s198, 1
    %s200 = scalar_select %p197, %s198, %s199
    %p203 = pneg %p197
    %p204 = scmp.eq.s32.totalorder %s20, 3
    %p205 = por %p203, %p204
    %p206 = scmp.ne.s32.totalorder %s198, %s201
    %p207 = scmp.eq.s32.totalorder %s20, 0
    %p208 = por %p206, %p207
    %p209 = scmp.ne.s32.totalorder %s198, %s201
    %p210 = scmp.eq.s32.totalorder %s25, 3
    %p211 = por %p209, %p210
    %p212 = scmp.ne.s32.totalorder %s201, %s202
    %p213 = scmp.eq.s32.totalorder %s25, 0
    %p214 = por %p212, %p213
    %p215 = scmp.ne.s32.totalorder %s201, %s202
    %p216 = scmp.eq.s32.totalorder %s26, 3
    %p217 = por %p215, %p216
    %p219 = scmp.ne.s32.totalorder %s202, %s218
    %p220 = scmp.eq.s32.totalorder %s26, 0
    %p221 = por %p219, %p220
    %s222 = ssub.s32 %s28, %s35
    %p223 = scmp.eq.s32.totalorder %s222, 0
    %s225 = sadd.s32 %s224, 1
    %s226 = scalar_select %p223, %s224, %s225
    %p229 = pneg %p223
    %p230 = scmp.eq.s32.totalorder %s20, 3
    %p231 = por %p229, %p230
    %p232 = scmp.ne.s32.totalorder %s224, %s227
    %p233 = scmp.eq.s32.totalorder %s20, 0
    %p234 = por %p232, %p233
    %p235 = scmp.ne.s32.totalorder %s224, %s227
    %p236 = scmp.eq.s32.totalorder %s25, 3
    %p237 = por %p235, %p236
    %p238 = scmp.ne.s32.totalorder %s227, %s228
    %p239 = scmp.eq.s32.totalorder %s25, 0
    %p240 = por %p238, %p239
    %p241 = scmp.ne.s32.totalorder %s227, %s228
    %p242 = scmp.eq.s32.totalorder %s26, 3
    %p243 = por %p241, %p242
    %p245 = scmp.ne.s32.totalorder %s228, %s244
    %p246 = scmp.eq.s32.totalorder %s26, 0
    %p247 = por %p245, %p246
    %s248 = ssub.s32 %s28, %s35
    %p249 = scmp.eq.s32.totalorder %s248, 0
    %s251 = sadd.s32 %s250, 1
    %s252 = scalar_select %p249, %s250, %s251
    %p255 = pneg %p249
    %p256 = scmp.eq.s32.totalorder %s20, 3
    %p257 = por %p255, %p256
    %p258 = scmp.ne.s32.totalorder %s250, %s253
    %p259 = scmp.eq.s32.totalorder %s20, 0
    %p260 = por %p258, %p259
    %p261 = scmp.ne.s32.totalorder %s250, %s253
    %p262 = scmp.eq.s32.totalorder %s25, 3
    %p263 = por %p261, %p262
    %p264 = scmp.ne.s32.totalorder %s253, %s254
    %p265 = scmp.eq.s32.totalorder %s25, 0
    %p266 = por %p264, %p265
    %p267 = scmp.ne.s32.totalorder %s253, %s254
    %p268 = scmp.eq.s32.totalorder %s26, 3
    %p269 = por %p267, %p268
    %p271 = scmp.ne.s32.totalorder %s254, %s270
    %p272 = scmp.eq.s32.totalorder %s26, 0
    %p273 = por %p271, %p272
    %s274 = ssub.s32 %s28, %s35
    %p275 = scmp.eq.s32.totalorder %s274, 0
    %s277 = sadd.s32 %s276, 1
    %s278 = scalar_select %p275, %s276, %s277
    %p281 = pneg %p275
    %p282 = scmp.eq.s32.totalorder %s20, 3
    %p283 = por %p281, %p282
    %p284 = scmp.ne.s32.totalorder %s276, %s279
    %p285 = scmp.eq.s32.totalorder %s20, 0
    %p286 = por %p284, %p285
    %p287 = scmp.ne.s32.totalorder %s276, %s279
    %p288 = scmp.eq.s32.totalorder %s25, 3
    %p289 = por %p287, %p288
    %p290 = scmp.ne.s32.totalorder %s279, %s280
    %p291 = scmp.eq.s32.totalorder %s25, 0
    %p292 = por %p290, %p291
    %p293 = scmp.ne.s32.totalorder %s279, %s280
    %p294 = scmp.eq.s32.totalorder %s26, 3
    %p295 = por %p293, %p294
    %p297 = scmp.ne.s32.totalorder %s280, %s296
    %p298 = scmp.eq.s32.totalorder %s26, 0
    %p299 = por %p297, %p298
    %s300 = ssub.s32 %s28, %s35
    %p301 = scmp.eq.s32.totalorder %s300, 0
    %s303 = sadd.s32 %s302, 1
    %s304 = scalar_select %p301, %s302, %s303
    %p307 = pneg %p301
    %p308 = scmp.eq.s32.totalorder %s20, 3
    %p309 = por %p307, %p308
    %p310 = scmp.ne.s32.totalorder %s302, %s305
    %p311 = scmp.eq.s32.totalorder %s20, 0
    %p312 = por %p310, %p311
    %p313 = scmp.ne.s32.totalorder %s302, %s305
    %p314 = scmp.eq.s32.totalorder %s25, 3
    %p315 = por %p313, %p314
    %p316 = scmp.ne.s32.totalorder %s305, %s306
    %p317 = scmp.eq.s32.totalorder %s25, 0
    %p318 = por %p316, %p317
    %p319 = scmp.ne.s32.totalorder %s305, %s306
    %p320 = scmp.eq.s32.totalorder %s26, 3
    %p321 = por %p319, %p320
    %p323 = scmp.ne.s32.totalorder %s306, %s322
    %p324 = scmp.eq.s32.totalorder %s26, 0
    %p325 = por %p323, %p324
    %s326 = ssub.s32 %s28, %s35
    %p327 = scmp.eq.s32.totalorder %s326, 0
    %s329 = sadd.s32 %s328, 1
    %s330 = scalar_select %p327, %s328, %s329
    %p333 = pneg %p327
    %p334 = scmp.eq.s32.totalorder %s20, 3
    %p335 = por %p333, %p334
    %p336 = scmp.ne.s32.totalorder %s328, %s331
    %p337 = scmp.eq.s32.totalorder %s20, 0
    %p338 = por %p336, %p337
    %p339 = scmp.ne.s32.totalorder %s328, %s331
    %p340 = scmp.eq.s32.totalorder %s25, 3
    %p341 = por %p339, %p340
    %p342 = scmp.ne.s32.totalorder %s331, %s332
    %p343 = scmp.eq.s32.totalorder %s25, 0
    %p344 = por %p342, %p343
    %p345 = scmp.ne.s32.totalorder %s331, %s332
    %p346 = scmp.eq.s32.totalorder %s26, 3
    %p347 = por %p345, %p346
    %p349 = scmp.ne.s32.totalorder %s332, %s348
    %p350 = scmp.eq.s32.totalorder %s26, 0
    %p351 = por %p349, %p350
    %s352 = ssub.s32 %s28, %s35
    %p353 = scmp.eq.s32.totalorder %s352, 0
    %s355 = sadd.s32 %s354, 1
    %s356 = scalar_select %p353, %s354, %s355
    %p359 = pneg %p353
    %p360 = scmp.eq.s32.totalorder %s20, 3
    %p361 = por %p359, %p360
    %p362 = scmp.ne.s32.totalorder %s354, %s357
    %p363 = scmp.eq.s32.totalorder %s20, 0
    %p364 = por %p362, %p363
    %p365 = scmp.ne.s32.totalorder %s354, %s357
    %p366 = scmp.eq.s32.totalorder %s25, 3
    %p367 = por %p365, %p366
    %p368 = scmp.ne.s32.totalorder %s357, %s358
    %p369 = scmp.eq.s32.totalorder %s25, 0
    %p370 = por %p368, %p369
    %p371 = scmp.ne.s32.totalorder %s357, %s358
    %p372 = scmp.eq.s32.totalorder %s26, 3
    %p373 = por %p371, %p372
    %p375 = scmp.ne.s32.totalorder %s358, %s374
    %p376 = scmp.eq.s32.totalorder %s26, 0
    %p377 = por %p375, %p376
    %s378 = ssub.s32 %s28, %s35
    %p379 = scmp.eq.s32.totalorder %s378, 0
    %s381 = sadd.s32 %s380, 1
    %s382 = scalar_select %p379, %s380, %s381
    %p385 = pneg %p379
    %p386 = scmp.eq.s32.totalorder %s20, 3
    %p387 = por %p385, %p386
    %p388 = scmp.ne.s32.totalorder %s380, %s383
    %p389 = scmp.eq.s32.totalorder %s20, 0
    %p390 = por %p388, %p389
    %p391 = scmp.ne.s32.totalorder %s380, %s383
    %p392 = scmp.eq.s32.totalorder %s25, 3
    %p393 = por %p391, %p392
    %p394 = scmp.ne.s32.totalorder %s383, %s384
    %p395 = scmp.eq.s32.totalorder %s25, 0
    %p396 = por %p394, %p395
    %p397 = scmp.ne.s32.totalorder %s383, %s384
    %p398 = scmp.eq.s32.totalorder %s26, 3
    %p399 = por %p397, %p398
    %p401 = scmp.ne.s32.totalorder %s384, %s400
    %p402 = scmp.eq.s32.totalorder %s26, 0
    %p403 = por %p401, %p402
    %s404 = ssub.s32 %s27, %s39
    %p405 = scmp.eq.s32.totalorder %s404, 0
    %s407 = sadd.s32 %s406, 1
    %s408 = scalar_select %p405, %s406, %s407
    %p411 = pneg %p405
    %p412 = scmp.eq.s32.totalorder %s20, 3
    %p413 = por %p411, %p412
    %p414 = scmp.ne.s32.totalorder %s406, %s409
    %p415 = scmp.eq.s32.totalorder %s20, 0
    %p416 = por %p414, %p415
    %p417 = scmp.ne.s32.totalorder %s406, %s409
    %p418 = scmp.eq.s32.totalorder %s25, 3
    %p419 = por %p417, %p418
    %p420 = scmp.ne.s32.totalorder %s409, %s410
    %p421 = scmp.eq.s32.totalorder %s25, 0
    %p422 = por %p420, %p421
    %p423 = scmp.ne.s32.totalorder %s409, %s410
    %p424 = scmp.eq.s32.totalorder %s26, 3
    %p425 = por %p423, %p424
    %p427 = scmp.ne.s32.totalorder %s410, %s426
    %p428 = scmp.eq.s32.totalorder %s26, 0
    %p429 = por %p427, %p428
    %p430 = scmp.le.s32.totalorder 1, %s20
    %p431 = scmp.lt.s32.totalorder %s20, 5
    %p432 = pnand %p430, %p431
    %p433 = pneg %p432
    // Predicated region
    $region9: #{bert_classifier_forward.4} parent=5 // pred_check
      _
    $region10: #{bert_classifier_forward.4} parent=5 // pred_check_branch
      %435 = sbr.rel (%p432) target = $region12
    $region11: #{bert_classifier_forward.4} parent=5 // pred_region
      %s436 = ssub.s32 %s20, 1
    $region12: #{bert_classifier_forward.4} parent=5 // pred_fallthru
      _
    %p437 = scmp.lt.s32.totalorder %s20, 4
    // Predicated region
    $region13: #{bert_classifier_forward.4} parent=5 // pred_check
      %p438 = pneg %p437
    $region14: #{bert_classifier_forward.4} parent=5 // pred_check_branch
      %440 = sbr.rel (%p438) target = $region16
    $region15: #{bert_classifier_forward.4} parent=5 // pred_region
      // Predicated region
      $region17: #{bert_classifier_forward.4} parent=15 // pred_check
        %p441 = pneg %p52
      $region18: #{bert_classifier_forward.4} parent=15 // pred_check_branch
        %443 = sbr.rel (%p441) target = $region20
      $region19: #{bert_classifier_forward.4} parent=15 // pred_region
        %p444 = scmp.lt.s32.totalorder %s27, 1
        %s445 = scalar_select %p444, %s27, 1
        %s446 = smul.addr %s445, 32
        %s447 = smul.addr %s446, 8
        %s448 = scalar_lea.vmem %s0, %s447
      $region20: #{bert_classifier_forward.4} parent=15 // pred_fallthru
        _
      // Predicated region
      $region21: #{bert_classifier_forward.4} parent=15 // pred_check
        %p449 = pneg %p78
      $region22: #{bert_classifier_forward.4} parent=15 // pred_check_branch
        %451 = sbr.rel (%p449) target = $region24
      $region23: #{bert_classifier_forward.4} parent=15 // pred_region
        %p452 = scmp.lt.s32.totalorder %s27, 1
        %s453 = scalar_select %p452, %s27, 1
        %s454 = scalar_lea.vmem %s1, %s453
      $region24: #{bert_classifier_forward.4} parent=15 // pred_fallthru
        _
      // Predicated region
      $region25: #{bert_classifier_forward.4} parent=15 // pred_check
        %p455 = pneg %p104
      $region26: #{bert_classifier_forward.4} parent=15 // pred_check_branch
        %457 = sbr.rel (%p455) target = $region28
      $region27: #{bert_classifier_forward.4} parent=15 // pred_region
        %p458 = scmp.lt.s32.totalorder %s28, 1
        %s459 = scalar_select %p458, %s28, 1
        %s460 = smul.addr %s459, 192
        %s461 = smul.addr %s460, 4
        %s462 = scalar_lea.vmem %s2, %s461
      $region28: #{bert_classifier_forward.4} parent=15 // pred_fallthru
        _
      // Predicated region
      $region29: #{bert_classifier_forward.4} parent=15 // pred_check
        %p463 = pneg %p130
      $region30: #{bert_classifier_forward.4} parent=15 // pred_check_branch
        %465 = sbr.rel (%p463) target = $region32
      $region31: #{bert_classifier_forward.4} parent=15 // pred_region
        %p466 = scmp.lt.s32.totalorder %s28, 1
        %s467 = scalar_select %p466, %s28, 1
        %s468 = smul.addr %s467, 6
        %s469 = scalar_lea.vmem %s3, %s468
      $region32: #{bert_classifier_forward.4} parent=15 // pred_fallthru
        _
      // Predicated region
      $region33: #{bert_classifier_forward.4} parent=15 // pred_check
        %p470 = pneg %p156
      $region34: #{bert_classifier_forward.4} parent=15 // pred_check_branch
        %472 = sbr.rel (%p470) target = $region36
      $region35: #{bert_classifier_forward.4} parent=15 // pred_region
        %p473 = scmp.lt.s32.totalorder %s28, 1
        %s474 = scalar_select %p473, %s28, 1
        %s475 = smul.addr %s474, 64
        %s476 = smul.addr %s475, 4
        %s477 = scalar_lea.vmem %s4, %s476
      $region36: #{bert_classifier_forward.4} parent=15 // pred_fallthru
        _
      // Predicated region
      $region37: #{bert_classifier_forward.4} parent=15 // pred_check
        %p478 = pneg %p182
      $region38: #{bert_classifier_forward.4} parent=15 // pred_check_branch
        %480 = sbr.rel (%p478) target = $region40
      $region39: #{bert_classifier_forward.4} parent=15 // pred_region
        %p481 = scmp.lt.s32.totalorder %s28, 1
        %s482 = scalar_select %p481, %s28, 1
        %s483 = smul.addr %s482, 2
        %s484 = scalar_lea.vmem %s5, %s483
      $region40: #{bert_classifier_forward.4} parent=15 // pred_fallthru
        _
      // Predicated region
      $region41: #{bert_classifier_forward.4} parent=15 // pred_check
        %p485 = pneg %p208
      $region42: #{bert_classifier_forward.4} parent=15 // pred_check_branch
        %487 = sbr.rel (%p485) target = $region44
      $region43: #{bert_classifier_forward.4} parent=15 // pred_region
        %p488 = scmp.lt.s32.totalorder %s28, 1
        %s489 = scalar_select %p488, %s28, 1
        %s490 = smul.addr %s489, 2
        %s491 = scalar_lea.vmem %s6, %s490
      $region44: #{bert_classifier_forward.4} parent=15 // pred_fallthru
        _
      // Predicated region
      $region45: #{bert_classifier_forward.4} parent=15 // pred_check
        %p492 = pneg %p234
      $region46: #{bert_classifier_forward.4} parent=15 // pred_check_branch
        %494 = sbr.rel (%p492) target = $region48
      $region47: #{bert_classifier_forward.4} parent=15 // pred_region
        %p495 = scmp.lt.s32.totalorder %s28, 1
        %s496 = scalar_select %p495, %s28, 1
        %s497 = smul.addr %s496, 2
        %s498 = scalar_lea.vmem %s7, %s497
      $region48: #{bert_classifier_forward.4} parent=15 // pred_fallthru
        _
      // Predicated region
      $region49: #{bert_classifier_forward.4} parent=15 // pred_check
        %p499 = pneg %p260
      $region50: #{bert_classifier_forward.4} parent=15 // pred_check_branch
        %501 = sbr.rel (%p499) target = $region52
      $region51: #{bert_classifier_forward.4} parent=15 // pred_region
        %p502 = scmp.lt.s32.totalorder %s28, 1
        %s503 = scalar_select %p502, %s28, 1
        %s504 = smul.addr %s503, 128
        %s505 = smul.addr %s504, 4
        %s506 = scalar_lea.vmem %s8, %s505
      $region52: #{bert_classifier_forward.4} parent=15 // pred_fallthru
        _
      // Predicated region
      $region53: #{bert_classifier_forward.4} parent=15 // pred_check
        %p507 = pneg %p286
      $region54: #{bert_classifier_forward.4} parent=15 // pred_check_branch
        %509 = sbr.rel (%p507) target = $region56
      $region55: #{bert_classifier_forward.4} parent=15 // pred_region
        %p510 = scmp.lt.s32.totalorder %s28, 1
        %s511 = scalar_select %p510, %s28, 1
        %s512 = smul.addr %s511, 4
        %s513 = scalar_lea.vmem %s9, %s512
      $region56: #{bert_classifier_forward.4} parent=15 // pred_fallthru
        _
      // Predicated region
      $region57: #{bert_classifier_forward.4} parent=15 // pred_check
        %p514 = pneg %p312
      $region58: #{bert_classifier_forward.4} parent=15 // pred_check_branch
        %516 = sbr.rel (%p514) target = $region60
      $region59: #{bert_classifier_forward.4} parent=15 // pred_region
        %p517 = scmp.lt.s32.totalorder %s28, 1
        %s518 = scalar_select %p517, %s28, 1
        %s519 = smul.addr %s518, 128
        %s520 = smul.addr %s519, 4
        %s521 = scalar_lea.vmem %s10, %s520
      $region60: #{bert_classifier_forward.4} parent=15 // pred_fallthru
        _
      // Predicated region
      $region61: #{bert_classifier_forward.4} parent=15 // pred_check
        %p522 = pneg %p338
      $region62: #{bert_classifier_forward.4} parent=15 // pred_check_branch
        %524 = sbr.rel (%p522) target = $region64
      $region63: #{bert_classifier_forward.4} parent=15 // pred_region
        %p525 = scmp.lt.s32.totalorder %s28, 1
        %s526 = scalar_select %p525, %s28, 1
        %s527 = smul.addr %s526, 2
        %s528 = scalar_lea.vmem %s11, %s527
      $region64: #{bert_classifier_forward.4} parent=15 // pred_fallthru
        _
      // Predicated region
      $region65: #{bert_classifier_forward.4} parent=15 // pred_check
        %p529 = pneg %p364
      $region66: #{bert_classifier_forward.4} parent=15 // pred_check_branch
        %531 = sbr.rel (%p529) target = $region68
      $region67: #{bert_classifier_forward.4} parent=15 // pred_region
        %p532 = scmp.lt.s32.totalorder %s28, 1
        %s533 = scalar_select %p532, %s28, 1
        %s534 = smul.addr %s533, 2
        %s535 = scalar_lea.vmem %s12, %s534
      $region68: #{bert_classifier_forward.4} parent=15 // pred_fallthru
        _
      // Predicated region
      $region69: #{bert_classifier_forward.4} parent=15 // pred_check
        %p536 = pneg %p390
      $region70: #{bert_classifier_forward.4} parent=15 // pred_check_branch
        %538 = sbr.rel (%p536) target = $region72
      $region71: #{bert_classifier_forward.4} parent=15 // pred_region
        %p539 = scmp.lt.s32.totalorder %s28, 1
        %s540 = scalar_select %p539, %s28, 1
        %s541 = smul.addr %s540, 2
        %s542 = scalar_lea.vmem %s13, %s541
      $region72: #{bert_classifier_forward.4} parent=15 // pred_fallthru
        _
    $region16: #{bert_classifier_forward.4} parent=5 // pred_fallthru
      _
    %p543 = scmp.le.s32.totalorder 1, %s20
    %p544 = scmp.lt.s32.totalorder %s20, 5
    %p545 = pnand %p543, %p544
    %p546 = pneg %p545
    // Predicated region
    $region73: #{bert_classifier_forward.4} parent=5 // pred_check
      _
    $region74: #{bert_classifier_forward.4} parent=5 // pred_check_branch
      %548 = sbr.rel (%p545) target = $region76
    $region75: #{bert_classifier_forward.4} parent=5 // pred_region
      %s549 = ssub.s32 %s20, 1
      %p550 = scmp.lt.s32.totalorder %s29, 1
      %s551 = scalar_select %p550, %s29, 1
      %s552 = smul.addr %s551, 32
      %s553 = smul.addr %s552, 8
      %s554 = scalar_lea.vmem %s0, %s553
      %p555 = pneg %p58
      %p556 = pneg %p55
      %p557 = scmp.lt.s32.totalorder %s29, 1
      %s558 = scalar_select %p557, %s29, 1
      %s559 = scalar_lea.vmem %s1, %s558
      %p560 = pneg %p84
      %p561 = pneg %p81
      %p562 = scmp.lt.s32.totalorder %s30, 1
      %s563 = scalar_select %p562, %s30, 1
      %s564 = smul.addr %s563, 192
      %s565 = smul.addr %s564, 4
      %s566 = scalar_lea.vmem %s2, %s565
      %p567 = pneg %p110
      %p568 = pneg %p107
      %p569 = scmp.lt.s32.totalorder %s30, 1
      %s570 = scalar_select %p569, %s30, 1
      %s571 = smul.addr %s570, 6
      %s572 = scalar_lea.vmem %s3, %s571
      %p573 = pneg %p136
      %p574 = pneg %p133
      %p575 = scmp.lt.s32.totalorder %s30, 1
      %s576 = scalar_select %p575, %s30, 1
      %s577 = smul.addr %s576, 64
      %s578 = smul.addr %s577, 4
      %s579 = scalar_lea.vmem %s4, %s578
      %p580 = pneg %p162
      %p581 = pneg %p159
      %p582 = scmp.lt.s32.totalorder %s30, 1
      %s583 = scalar_select %p582, %s30, 1
      %s584 = smul.addr %s583, 2
      %s585 = scalar_lea.vmem %s5, %s584
      %p586 = pneg %p188
      %p587 = pneg %p185
      %p588 = scmp.lt.s32.totalorder %s30, 1
      %s589 = scalar_select %p588, %s30, 1
      %s590 = smul.addr %s589, 2
      %s591 = scalar_lea.vmem %s6, %s590
      %p592 = pneg %p214
      %p593 = pneg %p211
      %p594 = scmp.lt.s32.totalorder %s30, 1
      %s595 = scalar_select %p594, %s30, 1
      %s596 = smul.addr %s595, 2
      %s597 = scalar_lea.vmem %s7, %s596
      %p598 = pneg %p240
      %p599 = pneg %p237
      %p600 = scmp.lt.s32.totalorder %s30, 1
      %s601 = scalar_select %p600, %s30, 1
      %s602 = smul.addr %s601, 128
      %s603 = smul.addr %s602, 4
      %s604 = scalar_lea.vmem %s8, %s603
      %p605 = pneg %p266
      %p606 = pneg %p263
      %p607 = scmp.lt.s32.totalorder %s30, 1
      %s608 = scalar_select %p607, %s30, 1
      %s609 = smul.addr %s608, 4
      %s610 = scalar_lea.vmem %s9, %s609
      %p611 = pneg %p292
      %p612 = pneg %p289
      %p613 = scmp.lt.s32.totalorder %s30, 1
      %s614 = scalar_select %p613, %s30, 1
      %s615 = smul.addr %s614, 128
      %s616 = smul.addr %s615, 4
      %s617 = scalar_lea.vmem %s10, %s616
      %p618 = pneg %p318
      %p619 = pneg %p315
      %p620 = scmp.lt.s32.totalorder %s30, 1
      %s621 = scalar_select %p620, %s30, 1
      %s622 = smul.addr %s621, 2
      %s623 = scalar_lea.vmem %s11, %s622
      %p624 = pneg %p344
      %p625 = pneg %p341
      %p626 = scmp.lt.s32.totalorder %s30, 1
      %s627 = scalar_select %p626, %s30, 1
      %s628 = smul.addr %s627, 2
      %s629 = scalar_lea.vmem %s12, %s628
      %p630 = pneg %p370
      %p631 = pneg %p367
      %p632 = scmp.lt.s32.totalorder %s30, 1
      %s633 = scalar_select %p632, %s30, 1
      %s634 = smul.addr %s633, 2
      %s635 = scalar_lea.vmem %s13, %s634
      %p636 = pneg %p396
      %p637 = pneg %p393
      %p638 = pneg %p422
      %p639 = pneg %p419
      %p640 = scmp.lt.s32.totalorder %s29, 1
      %s641 = scalar_select %p640, %s29, 1
      %s642 = smul.addr %s641, 32
      %s643 = smul.addr %s642, 8
      %s644 = scalar_lea.vmem %s14, %s643
      %p645 = scmp.lt.s32.totalorder %s29, 1
      %s646 = scalar_select %p645, %s29, 1
      %s647 = smul.addr %s646, 32
      %s648 = smul.addr %s647, 8
      %s649 = scalar_lea.vmem %s0, %s648
      %p650 = scmp.lt.s32.totalorder %s29, 1
      %s651 = scalar_select %p650, %s29, 1
      %s652 = scalar_lea.vmem %s1, %s651
      %p653 = scmp.lt.s32.totalorder %s30, 1
      %s654 = scalar_select %p653, %s30, 1
      %s655 = smul.addr %s654, 192
      %s656 = smul.addr %s655, 4
      %s657 = scalar_lea.vmem %s2, %s656
      %p658 = scmp.lt.s32.totalorder %s30, 1
      %s659 = scalar_select %p658, %s30, 1
      %s660 = smul.addr %s659, 6
      %s661 = scalar_lea.vmem %s3, %s660
      %p662 = scmp.lt.s32.totalorder %s30, 1
      %s663 = scalar_select %p662, %s30, 1
      %s664 = smul.addr %s663, 64
      %s665 = smul.addr %s664, 4
      %s666 = scalar_lea.vmem %s4, %s665
      %p667 = scmp.lt.s32.totalorder %s30, 1
      %s668 = scalar_select %p667, %s30, 1
      %s669 = smul.addr %s668, 2
      %s670 = scalar_lea.vmem %s5, %s669
      %p671 = scmp.lt.s32.totalorder %s30, 1
      %s672 = scalar_select %p671, %s30, 1
      %s673 = smul.addr %s672, 2
      %s674 = scalar_lea.vmem %s6, %s673
      %p675 = scmp.lt.s32.totalorder %s30, 1
      %s676 = scalar_select %p675, %s30, 1
      %s677 = smul.addr %s676, 2
      %s678 = scalar_lea.vmem %s7, %s677
      %p679 = scmp.lt.s32.totalorder %s30, 1
      %s680 = scalar_select %p679, %s30, 1
      %s681 = smul.addr %s680, 128
      %s682 = smul.addr %s681, 4
      %s683 = scalar_lea.vmem %s8, %s682
      %p684 = scmp.lt.s32.totalorder %s30, 1
      %s685 = scalar_select %p684, %s30, 1
      %s686 = smul.addr %s685, 4
      %s687 = scalar_lea.vmem %s9, %s686
      %p688 = scmp.lt.s32.totalorder %s30, 1
      %s689 = scalar_select %p688, %s30, 1
      %s690 = smul.addr %s689, 128
      %s691 = smul.addr %s690, 4
      %s692 = scalar_lea.vmem %s10, %s691
      %p693 = scmp.lt.s32.totalorder %s30, 1
      %s694 = scalar_select %p693, %s30, 1
      %s695 = smul.addr %s694, 2
      %s696 = scalar_lea.vmem %s11, %s695
      %p697 = scmp.lt.s32.totalorder %s30, 1
      %s698 = scalar_select %p697, %s30, 1
      %s699 = smul.addr %s698, 2
      %s700 = scalar_lea.vmem %s12, %s699
      %p701 = scmp.lt.s32.totalorder %s30, 1
      %s702 = scalar_select %p701, %s30, 1
      %s703 = smul.addr %s702, 2
      %s704 = scalar_lea.vmem %s13, %s703
      %p705 = scmp.lt.s32.totalorder %s29, 1
      %s706 = scalar_select %p705, %s29, 1
      %s707 = smul.addr %s706, 32
      %s708 = smul.addr %s707, 8
      %s709 = scalar_lea.vmem %s14, %s708
      %p711 = scmp.eq.s32.totalorder %s30, 0
      // Predicated region
      $region77: #{bert_classifier_forward.4} parent=75 // pred_check
        %p712 = pneg %p711
      $region78: #{bert_classifier_forward.4} parent=75 // pred_check_branch
        %714 = sbr.rel (%p712) target = $region80
      $region79: #{bert_classifier_forward.4} parent=75 // pred_region
        %v715 = vld [vmem:[%s649] sm:$0xff]
        %v716 = vld [vmem:[%s649 + $0x8] sm:$0xff]
        %v717 = vld [vmem:[%s649 + $0x10] sm:$0xff]
        %v718 = vld [vmem:[%s649 + $0x18] sm:$0xff]
        %v719 = vld [vmem:[%s649 + $0x20] sm:$0xff]
        %v720 = vld [vmem:[%s649 + $0x28] sm:$0xff]
        %v721 = vld [vmem:[%s649 + $0x30] sm:$0xff]
        %v722 = vld [vmem:[%s649 + $0x38] sm:$0xff]
        %v723 = vld [vmem:[%s649 + $0x40] sm:$0xff]
        %v724 = vld [vmem:[%s649 + $0x48] sm:$0xff]
        %v725 = vld [vmem:[%s649 + $0x50] sm:$0xff]
        %v726 = vld [vmem:[%s649 + $0x58] sm:$0xff]
        %v727 = vld [vmem:[%s649 + $0x60] sm:$0xff]
        %v728 = vld [vmem:[%s649 + $0x68] sm:$0xff]
        %v729 = vld [vmem:[%s649 + $0x70] sm:$0xff]
        %v730 = vld [vmem:[%s649 + $0x78] sm:$0xff]
        %v731 = vld [vmem:[%s649 + $0x80] sm:$0xff]
        %v732 = vld [vmem:[%s649 + $0x88] sm:$0xff]
        %v733 = vld [vmem:[%s649 + $0x90] sm:$0xff]
        %v734 = vld [vmem:[%s649 + $0x98] sm:$0xff]
        %v735 = vld [vmem:[%s649 + $0xa0] sm:$0xff]
        %v736 = vld [vmem:[%s649 + $0xa8] sm:$0xff]
        %v737 = vld [vmem:[%s649 + $0xb0] sm:$0xff]
        %v738 = vld [vmem:[%s649 + $0xb8] sm:$0xff]
        %v739 = vld [vmem:[%s649 + $0xc0] sm:$0xff]
        %v740 = vld [vmem:[%s649 + $0xc8] sm:$0xff]
        %v741 = vld [vmem:[%s649 + $0xd0] sm:$0xff]
        %v742 = vld [vmem:[%s649 + $0xd8] sm:$0xff]
        %v743 = vld [vmem:[%s649 + $0xe0] sm:$0xff]
        %v744 = vld [vmem:[%s649 + $0xe8] sm:$0xff]
        %v745 = vld [vmem:[%s649 + $0xf0] sm:$0xff]
        %v746 = vld [vmem:[%s649 + $0xf8] sm:$0xff]
        %747 = vst [vmem:[%s709] sm:$0xff] %v715
        %748 = vst [vmem:[%s709 + $0x8] sm:$0xff] %v716
        %749 = vst [vmem:[%s709 + $0x10] sm:$0xff] %v717
        %750 = vst [vmem:[%s709 + $0x18] sm:$0xff] %v718
        %751 = vst [vmem:[%s709 + $0x20] sm:$0xff] %v719
        %752 = vst [vmem:[%s709 + $0x28] sm:$0xff] %v720
        %753 = vst [vmem:[%s709 + $0x30] sm:$0xff] %v721
        %754 = vst [vmem:[%s709 + $0x38] sm:$0xff] %v722
        %755 = vst [vmem:[%s709 + $0x40] sm:$0xff] %v723
        %756 = vst [vmem:[%s709 + $0x48] sm:$0xff] %v724
        %757 = vst [vmem:[%s709 + $0x50] sm:$0xff] %v725
        %758 = vst [vmem:[%s709 + $0x58] sm:$0xff] %v726
        %759 = vst [vmem:[%s709 + $0x60] sm:$0xff] %v727
        %760 = vst [vmem:[%s709 + $0x68] sm:$0xff] %v728
        %761 = vst [vmem:[%s709 + $0x70] sm:$0xff] %v729
        %762 = vst [vmem:[%s709 + $0x78] sm:$0xff] %v730
        %763 = vst [vmem:[%s709 + $0x80] sm:$0xff] %v731
        %764 = vst [vmem:[%s709 + $0x88] sm:$0xff] %v732
        %765 = vst [vmem:[%s709 + $0x90] sm:$0xff] %v733
        %766 = vst [vmem:[%s709 + $0x98] sm:$0xff] %v734
        %767 = vst [vmem:[%s709 + $0xa0] sm:$0xff] %v735
        %768 = vst [vmem:[%s709 + $0xa8] sm:$0xff] %v736
        %769 = vst [vmem:[%s709 + $0xb0] sm:$0xff] %v737
        %770 = vst [vmem:[%s709 + $0xb8] sm:$0xff] %v738
        %771 = vst [vmem:[%s709 + $0xc0] sm:$0xff] %v739
        %772 = vst [vmem:[%s709 + $0xc8] sm:$0xff] %v740
        %773 = vst [vmem:[%s709 + $0xd0] sm:$0xff] %v741
        %774 = vst [vmem:[%s709 + $0xd8] sm:$0xff] %v742
        %775 = vst [vmem:[%s709 + $0xe0] sm:$0xff] %v743
        %776 = vst [vmem:[%s709 + $0xe8] sm:$0xff] %v744
        %777 = vst [vmem:[%s709 + $0xf0] sm:$0xff] %v745
        %778 = vst [vmem:[%s709 + $0xf8] sm:$0xff] %v746
      $region80: #{bert_classifier_forward.4} parent=75 // pred_fallthru
        _
      %v779 = vld [vmem:[%s709] sm:$0xff]
      %v780 = vld [vmem:[%s709 + $0x8] sm:$0xff]
      %v781 = vld [vmem:[%s709 + $0x10] sm:$0xff]
      %v782 = vld [vmem:[%s709 + $0x18] sm:$0xff]
      %v783 = vld [vmem:[%s709 + $0x20] sm:$0xff]
      %v784 = vld [vmem:[%s709 + $0x28] sm:$0xff]
      %v785 = vld [vmem:[%s709 + $0x30] sm:$0xff]
      %v786 = vld [vmem:[%s709 + $0x38] sm:$0xff]
      %v787 = vld [vmem:[%s709 + $0x40] sm:$0xff]
      %v788 = vld [vmem:[%s709 + $0x48] sm:$0xff]
      %v789 = vld [vmem:[%s709 + $0x50] sm:$0xff]
      %v790 = vld [vmem:[%s709 + $0x58] sm:$0xff]
      %v791 = vld [vmem:[%s709 + $0x60] sm:$0xff]
      %v792 = vld [vmem:[%s709 + $0x68] sm:$0xff]
      %v793 = vld [vmem:[%s709 + $0x70] sm:$0xff]
      %v794 = vld [vmem:[%s709 + $0x78] sm:$0xff]
      %v795 = vld [vmem:[%s709 + $0x80] sm:$0xff]
      %v796 = vld [vmem:[%s709 + $0x88] sm:$0xff]
      %v797 = vld [vmem:[%s709 + $0x90] sm:$0xff]
      %v798 = vld [vmem:[%s709 + $0x98] sm:$0xff]
      %v799 = vld [vmem:[%s709 + $0xa0] sm:$0xff]
      %v800 = vld [vmem:[%s709 + $0xa8] sm:$0xff]
      %v801 = vld [vmem:[%s709 + $0xb0] sm:$0xff]
      %v802 = vld [vmem:[%s709 + $0xb8] sm:$0xff]
      %v803 = vld [vmem:[%s709 + $0xc0] sm:$0xff]
      %v804 = vld [vmem:[%s709 + $0xc8] sm:$0xff]
      %v805 = vld [vmem:[%s709 + $0xd0] sm:$0xff]
      %v806 = vld [vmem:[%s709 + $0xd8] sm:$0xff]
      %v807 = vld [vmem:[%s709 + $0xe0] sm:$0xff]
      %v808 = vld [vmem:[%s709 + $0xe8] sm:$0xff]
      %v809 = vld [vmem:[%s709 + $0xf0] sm:$0xff]
      %v810 = vld [vmem:[%s709 + $0xf8] sm:$0xff]
      %v811 = vld [vmem:[%s652] sm:$0x1]
      %v812 = vpack.c.bf16 %v781, %v779
      %v813 = vpack.c.bf16 %v782, %v780
      %v814 = vpack.c.bf16 %v785, %v783
      %v815 = vpack.c.bf16 %v786, %v784
      %v816 = vpack.c.bf16 %v789, %v787
      %v817 = vpack.c.bf16 %v790, %v788
      %v818 = vpack.c.bf16 %v793, %v791
      %v819 = vpack.c.bf16 %v794, %v792
      %v820 = vpack.c.bf16 %v797, %v795
      %v821 = vpack.c.bf16 %v798, %v796
      %v822 = vpack.c.bf16 %v801, %v799
      %v823 = vpack.c.bf16 %v802, %v800
      %v824 = vpack.c.bf16 %v805, %v803
      %v825 = vpack.c.bf16 %v806, %v804
      %v826 = vpack.c.bf16 %v809, %v807
      %v827 = vpack.c.bf16 %v810, %v808
      %v828 = vld [vmem:[%s657] sm:$0xff]
      %v829 = vld [vmem:[%s657 + $0x8] sm:$0xff]
      %v830 = vld [vmem:[%s657 + $0x10] sm:$0xff]
      %v831 = vld [vmem:[%s657 + $0x18] sm:$0xff]
      %v832 = vld [vmem:[%s657 + $0x20] sm:$0xff]
      %v833 = vld [vmem:[%s657 + $0x28] sm:$0xff]
      %v834 = vld [vmem:[%s657 + $0x30] sm:$0xff]
      %v835 = vld [vmem:[%s657 + $0x38] sm:$0xff]
      %v836 = vld [vmem:[%s657 + $0x40] sm:$0xff]
      %v837 = vld [vmem:[%s657 + $0x48] sm:$0xff]
      %v838 = vld [vmem:[%s657 + $0x50] sm:$0xff]
      %v839 = vld [vmem:[%s657 + $0x58] sm:$0xff]
      %v840 = vld [vmem:[%s657 + $0x60] sm:$0xff]
      %v841 = vld [vmem:[%s657 + $0x68] sm:$0xff]
      %v842 = vld [vmem:[%s657 + $0x70] sm:$0xff]
      %v843 = vld [vmem:[%s657 + $0x78] sm:$0xff]
      %v844 = vld [vmem:[%s657 + $0x80] sm:$0xff]
      %v845 = vld [vmem:[%s657 + $0x88] sm:$0xff]
      %v846 = vld [vmem:[%s657 + $0x90] sm:$0xff]
      %v847 = vld [vmem:[%s657 + $0x98] sm:$0xff]
      %v848 = vld [vmem:[%s657 + $0xa0] sm:$0xff]
      %v849 = vld [vmem:[%s657 + $0xa8] sm:$0xff]
      %v850 = vld [vmem:[%s657 + $0xb0] sm:$0xff]
      %v851 = vld [vmem:[%s657 + $0xb8] sm:$0xff]
      %v852 = vld [vmem:[%s657 + $0xc0] sm:$0xff]
      %v853 = vld [vmem:[%s657 + $0xc8] sm:$0xff]
      %v854 = vld [vmem:[%s657 + $0xd0] sm:$0xff]
      %v855 = vld [vmem:[%s657 + $0xd8] sm:$0xff]
      %v856 = vld [vmem:[%s657 + $0xe0] sm:$0xff]
      %v857 = vld [vmem:[%s657 + $0xe8] sm:$0xff]
      %v858 = vld [vmem:[%s657 + $0xf0] sm:$0xff]
      %v859 = vld [vmem:[%s657 + $0xf8] sm:$0xff]
      %v860 = vld [vmem:[%s657 + $0x100] sm:$0xff]
      %v861 = vld [vmem:[%s657 + $0x108] sm:$0xff]
      %v862 = vld [vmem:[%s657 + $0x110] sm:$0xff]
      %v863 = vld [vmem:[%s657 + $0x118] sm:$0xff]
      %v864 = vld [vmem:[%s657 + $0x120] sm:$0xff]
      %v865 = vld [vmem:[%s657 + $0x128] sm:$0xff]
      %v866 = vld [vmem:[%s657 + $0x130] sm:$0xff]
      %v867 = vld [vmem:[%s657 + $0x138] sm:$0xff]
      %v868 = vld [vmem:[%s657 + $0x140] sm:$0xff]
      %v869 = vld [vmem:[%s657 + $0x148] sm:$0xff]
      %v870 = vld [vmem:[%s657 + $0x150] sm:$0xff]
      %v871 = vld [vmem:[%s657 + $0x158] sm:$0xff]
      %v872 = vld [vmem:[%s657 + $0x160] sm:$0xff]
      %v873 = vld [vmem:[%s657 + $0x168] sm:$0xff]
      %v874 = vld [vmem:[%s657 + $0x170] sm:$0xff]
      %v875 = vld [vmem:[%s657 + $0x178] sm:$0xff]
      %v876 = vld [vmem:[%s657 + $0x180] sm:$0xff]
      %v877 = vld [vmem:[%s657 + $0x188] sm:$0xff]
      %v878 = vld [vmem:[%s657 + $0x190] sm:$0xff]
      %v879 = vld [vmem:[%s657 + $0x198] sm:$0xff]
      %v880 = vld [vmem:[%s657 + $0x1a0] sm:$0xff]
      %v881 = vld [vmem:[%s657 + $0x1a8] sm:$0xff]
      %v882 = vld [vmem:[%s657 + $0x1b0] sm:$0xff]
      %v883 = vld [vmem:[%s657 + $0x1b8] sm:$0xff]
      %v884 = vld [vmem:[%s657 + $0x1c0] sm:$0xff]
      %v885 = vld [vmem:[%s657 + $0x1c8] sm:$0xff]
      %v886 = vld [vmem:[%s657 + $0x1d0] sm:$0xff]
      %v887 = vld [vmem:[%s657 + $0x1d8] sm:$0xff]
      %v888 = vld [vmem:[%s657 + $0x1e0] sm:$0xff]
      %v889 = vld [vmem:[%s657 + $0x1e8] sm:$0xff]
      %v890 = vld [vmem:[%s657 + $0x1f0] sm:$0xff]
      %v891 = vld [vmem:[%s657 + $0x1f8] sm:$0xff]
      %v892 = vld [vmem:[%s657 + $0x200] sm:$0xff]
      %v893 = vld [vmem:[%s657 + $0x208] sm:$0xff]
      %v894 = vld [vmem:[%s657 + $0x210] sm:$0xff]
      %v895 = vld [vmem:[%s657 + $0x218] sm:$0xff]
      %v896 = vld [vmem:[%s657 + $0x220] sm:$0xff]
      %v897 = vld [vmem:[%s657 + $0x228] sm:$0xff]
      %v898 = vld [vmem:[%s657 + $0x230] sm:$0xff]
      %v899 = vld [vmem:[%s657 + $0x238] sm:$0xff]
      %v900 = vld [vmem:[%s657 + $0x240] sm:$0xff]
      %v901 = vld [vmem:[%s657 + $0x248] sm:$0xff]
      %v902 = vld [vmem:[%s657 + $0x250] sm:$0xff]
      %v903 = vld [vmem:[%s657 + $0x258] sm:$0xff]
      %v904 = vld [vmem:[%s657 + $0x260] sm:$0xff]
      %v905 = vld [vmem:[%s657 + $0x268] sm:$0xff]
      %v906 = vld [vmem:[%s657 + $0x270] sm:$0xff]
      %v907 = vld [vmem:[%s657 + $0x278] sm:$0xff]
      %v908 = vld [vmem:[%s657 + $0x280] sm:$0xff]
      %v909 = vld [vmem:[%s657 + $0x288] sm:$0xff]
      %v910 = vld [vmem:[%s657 + $0x290] sm:$0xff]
      %v911 = vld [vmem:[%s657 + $0x298] sm:$0xff]
      %v912 = vld [vmem:[%s657 + $0x2a0] sm:$0xff]
      %v913 = vld [vmem:[%s657 + $0x2a8] sm:$0xff]
      %v914 = vld [vmem:[%s657 + $0x2b0] sm:$0xff]
      %v915 = vld [vmem:[%s657 + $0x2b8] sm:$0xff]
      %v916 = vld [vmem:[%s657 + $0x2c0] sm:$0xff]
      %v917 = vld [vmem:[%s657 + $0x2c8] sm:$0xff]
      %v918 = vld [vmem:[%s657 + $0x2d0] sm:$0xff]
      %v919 = vld [vmem:[%s657 + $0x2d8] sm:$0xff]
      %v920 = vld [vmem:[%s657 + $0x2e0] sm:$0xff]
      %v921 = vld [vmem:[%s657 + $0x2e8] sm:$0xff]
      %v922 = vld [vmem:[%s657 + $0x2f0] sm:$0xff]
      %v923 = vld [vmem:[%s657 + $0x2f8] sm:$0xff]
      %v924 = vld [vmem:[%s661] sm:$0x3f]
      %v926 = vlaneseq
      %v927 = vshrl.u32 %v926, 7
      %v928 = vsub.s32 0, %v927
      %v929 = vrot.slane %v924, %v928
      %v930 = vlaneseq
      %v931 = vshrl.u32 %v930, 7
      %v932 = vsub.s32 1, %v931
      %v933 = vrot.slane %v924, %v932
      %v934 = vlaneseq
      %v935 = vshrl.u32 %v934, 7
      %v936 = vsub.s32 2, %v935
      %v937 = vrot.slane %v924, %v936
      %v938 = vlaneseq
      %v939 = vshrl.u32 %v938, 7
      %v940 = vsub.s32 3, %v939
      %v941 = vrot.slane %v924, %v940
      %v942 = vlaneseq
      %v943 = vshrl.u32 %v942, 7
      %v944 = vsub.s32 4, %v943
      %v945 = vrot.slane %v924, %v944
      %v946 = vlaneseq
      %v947 = vshrl.u32 %v946, 7
      %v948 = vsub.s32 5, %v947
      %v949 = vrot.slane %v924, %v948
      %v1052 = vunpack.c.l.b16 %v828
      %v1053 = vunpack.c.h.b16 %v828
      %v1054 = vunpack.c.l.b16 %v829
      %v1055 = vunpack.c.h.b16 %v829
      %v1056 = vunpack.c.l.b16 %v830
      %v1057 = vunpack.c.h.b16 %v830
      %v1058 = vunpack.c.l.b16 %v831
      %v1059 = vunpack.c.h.b16 %v831
      %v1060 = vunpack.c.l.b16 %v832
      %v1061 = vunpack.c.h.b16 %v832
      %v1062 = vunpack.c.l.b16 %v833
      %v1063 = vunpack.c.h.b16 %v833
      %v1064 = vunpack.c.l.b16 %v834
      %v1065 = vunpack.c.h.b16 %v834
      %v1066 = vunpack.c.l.b16 %v835
      %v1067 = vunpack.c.h.b16 %v835
      %v1068 = vunpack.c.l.b16 %v836
      %v1069 = vunpack.c.h.b16 %v836
      %v1070 = vunpack.c.l.b16 %v837
      %v1071 = vunpack.c.h.b16 %v837
      %v1072 = vunpack.c.l.b16 %v838
      %v1073 = vunpack.c.h.b16 %v838
      %v1074 = vunpack.c.l.b16 %v839
      %v1075 = vunpack.c.h.b16 %v839
      %v1076 = vunpack.c.l.b16 %v840
      %v1077 = vunpack.c.h.b16 %v840
      %v1078 = vunpack.c.l.b16 %v841
      %v1079 = vunpack.c.h.b16 %v841
      %v1080 = vunpack.c.l.b16 %v842
      %v1081 = vunpack.c.h.b16 %v842
      %v1082 = vunpack.c.l.b16 %v843
      %v1083 = vunpack.c.h.b16 %v843
      %v1084 = vunpack.c.l.b16 %v844
      %v1085 = vunpack.c.h.b16 %v844
      %v1086 = vunpack.c.l.b16 %v845
      %v1087 = vunpack.c.h.b16 %v845
      %v1088 = vunpack.c.l.b16 %v846
      %v1089 = vunpack.c.h.b16 %v846
      %v1090 = vunpack.c.l.b16 %v847
      %v1091 = vunpack.c.h.b16 %v847
      %v1092 = vunpack.c.l.b16 %v848
      %v1093 = vunpack.c.h.b16 %v848
      %v1094 = vunpack.c.l.b16 %v849
      %v1095 = vunpack.c.h.b16 %v849
      %v1096 = vunpack.c.l.b16 %v850
      %v1097 = vunpack.c.h.b16 %v850
      %v1098 = vunpack.c.l.b16 %v851
      %v1099 = vunpack.c.h.b16 %v851
      %v1100 = vunpack.c.l.b16 %v852
      %v1101 = vunpack.c.h.b16 %v852
      %v1102 = vunpack.c.l.b16 %v853
      %v1103 = vunpack.c.h.b16 %v853
      %v1104 = vunpack.c.l.b16 %v854
      %v1105 = vunpack.c.h.b16 %v854
      %v1106 = vunpack.c.l.b16 %v855
      %v1107 = vunpack.c.h.b16 %v855
      %v1108 = vunpack.c.l.b16 %v856
      %v1109 = vunpack.c.h.b16 %v856
      %v1110 = vunpack.c.l.b16 %v857
      %v1111 = vunpack.c.h.b16 %v857
      %v1112 = vunpack.c.l.b16 %v858
      %v1113 = vunpack.c.h.b16 %v858
      %v1114 = vunpack.c.l.b16 %v859
      %v1115 = vunpack.c.h.b16 %v859
      %v1116 = vunpack.c.l.b16 %v860
      %v1117 = vunpack.c.h.b16 %v860
      %v1118 = vunpack.c.l.b16 %v861
      %v1119 = vunpack.c.h.b16 %v861
      %v1120 = vunpack.c.l.b16 %v862
      %v1121 = vunpack.c.h.b16 %v862
      %v1122 = vunpack.c.l.b16 %v863
      %v1123 = vunpack.c.h.b16 %v863
      %v1124 = vunpack.c.l.b16 %v864
      %v1125 = vunpack.c.h.b16 %v864
      %v1126 = vunpack.c.l.b16 %v865
      %v1127 = vunpack.c.h.b16 %v865
      %v1128 = vunpack.c.l.b16 %v866
      %v1129 = vunpack.c.h.b16 %v866
      %v1130 = vunpack.c.l.b16 %v867
      %v1131 = vunpack.c.h.b16 %v867
      %v1132 = vunpack.c.l.b16 %v868
      %v1133 = vunpack.c.h.b16 %v868
      %v1134 = vunpack.c.l.b16 %v869
      %v1135 = vunpack.c.h.b16 %v869
      %v1136 = vunpack.c.l.b16 %v870
      %v1137 = vunpack.c.h.b16 %v870
      %v1138 = vunpack.c.l.b16 %v871
      %v1139 = vunpack.c.h.b16 %v871
      %v1140 = vunpack.c.l.b16 %v872
      %v1141 = vunpack.c.h.b16 %v872
      %v1142 = vunpack.c.l.b16 %v873
      %v1143 = vunpack.c.h.b16 %v873
      %v1144 = vunpack.c.l.b16 %v874
      %v1145 = vunpack.c.h.b16 %v874
      %v1146 = vunpack.c.l.b16 %v875
      %v1147 = vunpack.c.h.b16 %v875
      %v1148 = vunpack.c.l.b16 %v876
      %v1149 = vunpack.c.h.b16 %v876
      %v1150 = vunpack.c.l.b16 %v877
      %v1151 = vunpack.c.h.b16 %v877
      %v1152 = vunpack.c.l.b16 %v878
      %v1153 = vunpack.c.h.b16 %v878
      %v1154 = vunpack.c.l.b16 %v879
      %v1155 = vunpack.c.h.b16 %v879
      %v1156 = vunpack.c.l.b16 %v880
      %v1157 = vunpack.c.h.b16 %v880
      %v1158 = vunpack.c.l.b16 %v881
      %v1159 = vunpack.c.h.b16 %v881
      %v1160 = vunpack.c.l.b16 %v882
      %v1161 = vunpack.c.h.b16 %v882
      %v1162 = vunpack.c.l.b16 %v883
      %v1163 = vunpack.c.h.b16 %v883
      %v1164 = vunpack.c.l.b16 %v884
      %v1165 = vunpack.c.h.b16 %v884
      %v1166 = vunpack.c.l.b16 %v885
      %v1167 = vunpack.c.h.b16 %v885
      %v1168 = vunpack.c.l.b16 %v886
      %v1169 = vunpack.c.h.b16 %v886
      %v1170 = vunpack.c.l.b16 %v887
      %v1171 = vunpack.c.h.b16 %v887
      %v1172 = vunpack.c.l.b16 %v888
      %v1173 = vunpack.c.h.b16 %v888
      %v1174 = vunpack.c.l.b16 %v889
      %v1175 = vunpack.c.h.b16 %v889
      %v1176 = vunpack.c.l.b16 %v890
      %v1177 = vunpack.c.h.b16 %v890
      %v1178 = vunpack.c.l.b16 %v891
      %v1179 = vunpack.c.h.b16 %v891
      %v1180 = vunpack.c.l.b16 %v892
      %v1181 = vunpack.c.h.b16 %v892
      %v1182 = vunpack.c.l.b16 %v893
      %v1183 = vunpack.c.h.b16 %v893
      %v1184 = vunpack.c.l.b16 %v894
      %v1185 = vunpack.c.h.b16 %v894
      %v1186 = vunpack.c.l.b16 %v895
      %v1187 = vunpack.c.h.b16 %v895
      %v1188 = vunpack.c.l.b16 %v896
      %v1189 = vunpack.c.h.b16 %v896
      %v1190 = vunpack.c.l.b16 %v897
      %v1191 = vunpack.c.h.b16 %v897
      %v1192 = vunpack.c.l.b16 %v898
      %v1193 = vunpack.c.h.b16 %v898
      %v1194 = vunpack.c.l.b16 %v899
      %v1195 = vunpack.c.h.b16 %v899
      %v1196 = vunpack.c.l.b16 %v900
      %v1197 = vunpack.c.h.b16 %v900
      %v1198 = vunpack.c.l.b16 %v901
      %v1199 = vunpack.c.h.b16 %v901
      %v1200 = vunpack.c.l.b16 %v902
      %v1201 = vunpack.c.h.b16 %v902
      %v1202 = vunpack.c.l.b16 %v903
      %v1203 = vunpack.c.h.b16 %v903
      %v1204 = vunpack.c.l.b16 %v904
      %v1205 = vunpack.c.h.b16 %v904
      %v1206 = vunpack.c.l.b16 %v905
      %v1207 = vunpack.c.h.b16 %v905
      %v1208 = vunpack.c.l.b16 %v906
      %v1209 = vunpack.c.h.b16 %v906
      %v1210 = vunpack.c.l.b16 %v907
      %v1211 = vunpack.c.h.b16 %v907
      %v1212 = vunpack.c.l.b16 %v908
      %v1213 = vunpack.c.h.b16 %v908
      %v1214 = vunpack.c.l.b16 %v909
      %v1215 = vunpack.c.h.b16 %v909
      %v1216 = vunpack.c.l.b16 %v910
      %v1217 = vunpack.c.h.b16 %v910
      %v1218 = vunpack.c.l.b16 %v911
      %v1219 = vunpack.c.h.b16 %v911
      %v1220 = vunpack.c.l.b16 %v912
      %v1221 = vunpack.c.h.b16 %v912
      %v1222 = vunpack.c.l.b16 %v913
      %v1223 = vunpack.c.h.b16 %v913
      %v1224 = vunpack.c.l.b16 %v914
      %v1225 = vunpack.c.h.b16 %v914
      %v1226 = vunpack.c.l.b16 %v915
      %v1227 = vunpack.c.h.b16 %v915
      %v1228 = vunpack.c.l.b16 %v916
      %v1229 = vunpack.c.h.b16 %v916
      %v1230 = vunpack.c.l.b16 %v917
      %v1231 = vunpack.c.h.b16 %v917
      %v1232 = vunpack.c.l.b16 %v918
      %v1233 = vunpack.c.h.b16 %v918
      %v1234 = vunpack.c.l.b16 %v919
      %v1235 = vunpack.c.h.b16 %v919
      %v1236 = vunpack.c.l.b16 %v920
      %v1237 = vunpack.c.h.b16 %v920
      %v1238 = vunpack.c.l.b16 %v921
      %v1239 = vunpack.c.h.b16 %v921
      %v1240 = vunpack.c.l.b16 %v922
      %v1241 = vunpack.c.h.b16 %v922
      %v1242 = vunpack.c.l.b16 %v923
      %v1243 = vunpack.c.h.b16 %v923
      %v1244 = vpack.c.b16 %v1058, %v1052
      %v1245 = vpack.c.b16 %v1059, %v1053
      %v1246 = vpack.c.b16 %v1060, %v1054
      %v1247 = vpack.c.b16 %v1061, %v1055
      %v1248 = vpack.c.b16 %v1062, %v1056
      %v1249 = vpack.c.b16 %v1063, %v1057
      %v1250 = vpack.c.b16 %v1070, %v1064
      %v1251 = vpack.c.b16 %v1071, %v1065
      %v1252 = vpack.c.b16 %v1072, %v1066
      %v1253 = vpack.c.b16 %v1073, %v1067
      %v1254 = vpack.c.b16 %v1074, %v1068
      %v1255 = vpack.c.b16 %v1075, %v1069
      %v1256 = vpack.c.b16 %v1082, %v1076
      %v1257 = vpack.c.b16 %v1083, %v1077
      %v1258 = vpack.c.b16 %v1084, %v1078
      %v1259 = vpack.c.b16 %v1085, %v1079
      %v1260 = vpack.c.b16 %v1086, %v1080
      %v1261 = vpack.c.b16 %v1087, %v1081
      %v1262 = vpack.c.b16 %v1094, %v1088
      %v1263 = vpack.c.b16 %v1095, %v1089
      %v1264 = vpack.c.b16 %v1096, %v1090
      %v1265 = vpack.c.b16 %v1097, %v1091
      %v1266 = vpack.c.b16 %v1098, %v1092
      %v1267 = vpack.c.b16 %v1099, %v1093
      %v1268 = vpack.c.b16 %v1106, %v1100
      %v1269 = vpack.c.b16 %v1107, %v1101
      %v1270 = vpack.c.b16 %v1108, %v1102
      %v1271 = vpack.c.b16 %v1109, %v1103
      %v1272 = vpack.c.b16 %v1110, %v1104
      %v1273 = vpack.c.b16 %v1111, %v1105
      %v1274 = vpack.c.b16 %v1118, %v1112
      %v1275 = vpack.c.b16 %v1119, %v1113
      %v1276 = vpack.c.b16 %v1120, %v1114
      %v1277 = vpack.c.b16 %v1121, %v1115
      %v1278 = vpack.c.b16 %v1122, %v1116
      %v1279 = vpack.c.b16 %v1123, %v1117
      %v1280 = vpack.c.b16 %v1130, %v1124
      %v1281 = vpack.c.b16 %v1131, %v1125
      %v1282 = vpack.c.b16 %v1132, %v1126
      %v1283 = vpack.c.b16 %v1133, %v1127
      %v1284 = vpack.c.b16 %v1134, %v1128
      %v1285 = vpack.c.b16 %v1135, %v1129
      %v1286 = vpack.c.b16 %v1142, %v1136
      %v1287 = vpack.c.b16 %v1143, %v1137
      %v1288 = vpack.c.b16 %v1144, %v1138
      %v1289 = vpack.c.b16 %v1145, %v1139
      %v1290 = vpack.c.b16 %v1146, %v1140
      %v1291 = vpack.c.b16 %v1147, %v1141
      %v1292 = vpack.c.b16 %v1154, %v1148
      %v1293 = vpack.c.b16 %v1155, %v1149
      %v1294 = vpack.c.b16 %v1156, %v1150
      %v1295 = vpack.c.b16 %v1157, %v1151
      %v1296 = vpack.c.b16 %v1158, %v1152
      %v1297 = vpack.c.b16 %v1159, %v1153
      %v1298 = vpack.c.b16 %v1166, %v1160
      %v1299 = vpack.c.b16 %v1167, %v1161
      %v1300 = vpack.c.b16 %v1168, %v1162
      %v1301 = vpack.c.b16 %v1169, %v1163
      %v1302 = vpack.c.b16 %v1170, %v1164
      %v1303 = vpack.c.b16 %v1171, %v1165
      %v1304 = vpack.c.b16 %v1178, %v1172
      %v1305 = vpack.c.b16 %v1179, %v1173
      %v1306 = vpack.c.b16 %v1180, %v1174
      %v1307 = vpack.c.b16 %v1181, %v1175
      %v1308 = vpack.c.b16 %v1182, %v1176
      %v1309 = vpack.c.b16 %v1183, %v1177
      %v1310 = vpack.c.b16 %v1190, %v1184
      %v1311 = vpack.c.b16 %v1191, %v1185
      %v1312 = vpack.c.b16 %v1192, %v1186
      %v1313 = vpack.c.b16 %v1193, %v1187
      %v1314 = vpack.c.b16 %v1194, %v1188
      %v1315 = vpack.c.b16 %v1195, %v1189
      %v1316 = vpack.c.b16 %v1202, %v1196
      %v1317 = vpack.c.b16 %v1203, %v1197
      %v1318 = vpack.c.b16 %v1204, %v1198
      %v1319 = vpack.c.b16 %v1205, %v1199
      %v1320 = vpack.c.b16 %v1206, %v1200
      %v1321 = vpack.c.b16 %v1207, %v1201
      %v1322 = vpack.c.b16 %v1214, %v1208
      %v1323 = vpack.c.b16 %v1215, %v1209
      %v1324 = vpack.c.b16 %v1216, %v1210
      %v1325 = vpack.c.b16 %v1217, %v1211
      %v1326 = vpack.c.b16 %v1218, %v1212
      %v1327 = vpack.c.b16 %v1219, %v1213
      %v1328 = vpack.c.b16 %v1226, %v1220
      %v1329 = vpack.c.b16 %v1227, %v1221
      %v1330 = vpack.c.b16 %v1228, %v1222
      %v1331 = vpack.c.b16 %v1229, %v1223
      %v1332 = vpack.c.b16 %v1230, %v1224
      %v1333 = vpack.c.b16 %v1231, %v1225
      %v1334 = vpack.c.b16 %v1238, %v1232
      %v1335 = vpack.c.b16 %v1239, %v1233
      %v1336 = vpack.c.b16 %v1240, %v1234
      %v1337 = vpack.c.b16 %v1241, %v1235
      %v1338 = vpack.c.b16 %v1242, %v1236
      %v1339 = vpack.c.b16 %v1243, %v1237
      %1436 = vmatprep.subr.bf16.mxu0 %v1245
      %1437 = vmatpush1.bf16.msra.mxu0 %v1244
      %1438 = vmatprep.subr.bf16.mxu0 %v1251
      %1439 = vmatpush1.bf16.msra.mxu0 %v1250
      %1440 = vmatprep.subr.bf16.mxu0 %v1257
      %1441 = vmatpush1.bf16.msra.mxu0 %v1256
      %1442 = vmatprep.subr.bf16.mxu0 %v1263
      %1443 = vmatpush1.bf16.msra.mxu0 %v1262
      %1444 = vmatprep.subr.bf16.mxu0 %v1269
      %1445 = vmatpush1.bf16.msra.mxu0 %v1268
      %1446 = vmatprep.subr.bf16.mxu0 %v1275
      %1447 = vmatpush1.bf16.msra.mxu0 %v1274
      %1448 = vmatprep.subr.bf16.mxu0 %v1281
      %1449 = vmatpush1.bf16.msra.mxu0 %v1280
      %1450 = vmatprep.subr.bf16.mxu0 %v1287
      %1451 = vmatpush1.bf16.msra.mxu0 %v1286
      %1452 = vmatprep.subr.bf16.mxu0 %v1293
      %1453 = vmatpush1.bf16.msra.mxu0 %v1292
      %1454 = vmatprep.subr.bf16.mxu0 %v1299
      %1455 = vmatpush1.bf16.msra.mxu0 %v1298
      %1456 = vmatprep.subr.bf16.mxu0 %v1305
      %1457 = vmatpush1.bf16.msra.mxu0 %v1304
      %1458 = vmatprep.subr.bf16.mxu0 %v1311
      %1459 = vmatpush1.bf16.msra.mxu0 %v1310
      %1460 = vmatprep.subr.bf16.mxu0 %v1317
      %1461 = vmatpush1.bf16.msra.mxu0 %v1316
      %1462 = vmatprep.subr.bf16.mxu0 %v1323
      %1463 = vmatpush1.bf16.msra.mxu0 %v1322
      %1464 = vmatprep.subr.bf16.mxu0 %v1329
      %1465 = vmatpush1.bf16.msra.mxu0 %v1328
      %1466 = vmatprep.subr.bf16.mxu0 %v1335
      %1467 = vmatpush1.bf16.msra.mxu0 %v1334
      %1468 = vmatprep.mubr.bf16.mxu0 %v813
      %1469 = vmatmul.mubr.bf16.gmra.mrb[0].mxu0 %v812
      %v1470 = vpop.f32.mrb[0].mxu0
      %v1471 = vadd.f32 %v929, %v1470
      %v1472 = vpop.f32.mrb[0].mxu0
      %v1473 = vadd.f32 %v933, %v1472
      %v1474 = vpop.f32.mrb[0].mxu0
      %v1475 = vadd.f32 %v929, %v1474
      %v1476 = vpop.f32.mrb[0].mxu0
      %v1477 = vadd.f32 %v933, %v1476
      %1478 = vmatprep.mubr.bf16.mxu0 %v815
      %1479 = vmatmul.mubr.bf16.gmra.mrb[0].mxu0 %v814
      %v1480 = vpop.f32.mrb[0].mxu0
      %v1481 = vadd.f32 %v929, %v1480
      %v1482 = vpop.f32.mrb[0].mxu0
      %v1483 = vadd.f32 %v933, %v1482
      %v1484 = vpop.f32.mrb[0].mxu0
      %v1485 = vadd.f32 %v929, %v1484
      %v1486 = vpop.f32.mrb[0].mxu0
      %v1487 = vadd.f32 %v933, %v1486
      %1488 = vmatprep.mubr.bf16.mxu0 %v817
      %1489 = vmatmul.mubr.bf16.gmra.mrb[0].mxu0 %v816
      %v1490 = vpop.f32.mrb[0].mxu0
      %v1491 = vadd.f32 %v929, %v1490
      %v1492 = vpop.f32.mrb[0].mxu0
      %v1493 = vadd.f32 %v933, %v1492
      %v1494 = vpop.f32.mrb[0].mxu0
      %v1495 = vadd.f32 %v929, %v1494
      %v1496 = vpop.f32.mrb[0].mxu0
      %v1497 = vadd.f32 %v933, %v1496
      %1498 = vmatprep.mubr.bf16.mxu0 %v819
      %1499 = vmatmul.mubr.bf16.gmra.mrb[0].mxu0 %v818
      %v1500 = vpop.f32.mrb[0].mxu0
      %v1501 = vadd.f32 %v929, %v1500
      %v1502 = vpop.f32.mrb[0].mxu0
      %v1503 = vadd.f32 %v933, %v1502
      %v1504 = vpop.f32.mrb[0].mxu0
      %v1505 = vadd.f32 %v929, %v1504
      %v1506 = vpop.f32.mrb[0].mxu0
      %v1507 = vadd.f32 %v933, %v1506
      %1508 = vmatprep.mubr.bf16.mxu0 %v821
      %1509 = vmatmul.mubr.bf16.gmra.mrb[0].mxu0 %v820
      %v1510 = vpop.f32.mrb[0].mxu0
      %v1511 = vadd.f32 %v929, %v1510
      %v1512 = vpop.f32.mrb[0].mxu0
      %v1513 = vadd.f32 %v933, %v1512
      %v1514 = vpop.f32.mrb[0].mxu0
      %v1515 = vadd.f32 %v929, %v1514
      %v1516 = vpop.f32.mrb[0].mxu0
      %v1517 = vadd.f32 %v933, %v1516
      %1518 = vmatprep.mubr.bf16.mxu0 %v823
      %1519 = vmatmul.mubr.bf16.gmra.mrb[0].mxu0 %v822
      %v1520 = vpop.f32.mrb[0].mxu0
      %v1521 = vadd.f32 %v929, %v1520
      %v1522 = vpop.f32.mrb[0].mxu0
      %v1523 = vadd.f32 %v933, %v1522
      %v1524 = vpop.f32.mrb[0].mxu0
      %v1525 = vadd.f32 %v929, %v1524
      %v1526 = vpop.f32.mrb[0].mxu0
      %v1527 = vadd.f32 %v933, %v1526
      %1528 = vmatprep.mubr.bf16.mxu0 %v825
      %1529 = vmatmul.mubr.bf16.gmra.mrb[0].mxu0 %v824
      %v1530 = vpop.f32.mrb[0].mxu0
      %v1531 = vadd.f32 %v929, %v1530
      %v1532 = vpop.f32.mrb[0].mxu0
      %v1533 = vadd.f32 %v933, %v1532
      %v1534 = vpop.f32.mrb[0].mxu0
      %v1535 = vadd.f32 %v929, %v1534
      %v1536 = vpop.f32.mrb[0].mxu0
      %v1537 = vadd.f32 %v933, %v1536
      %1538 = vmatprep.mubr.bf16.mxu0 %v827
      %1539 = vmatmul.mubr.bf16.gmra.mrb[0].mxu0 %v826
      %v1540 = vpop.f32.mrb[0].mxu0
      %v1541 = vadd.f32 %v929, %v1540
      %v1542 = vpop.f32.mrb[0].mxu0
      %v1543 = vadd.f32 %v933, %v1542
      %v1544 = vpop.f32.mrb[0].mxu0
      %v1545 = vadd.f32 %v929, %v1544
      %v1546 = vpop.f32.mrb[0].mxu0
      %v1547 = vadd.f32 %v933, %v1546
      %1548 = vdwg.mxu0
      %1549 = vmatprep.subr.bf16.mxu0 %v1247
      %1550 = vmatpush1.bf16.msra.mxu0 %v1246
      %1551 = vmatprep.subr.bf16.mxu0 %v1253
      %1552 = vmatpush1.bf16.msra.mxu0 %v1252
      %1553 = vmatprep.subr.bf16.mxu0 %v1259
      %1554 = vmatpush1.bf16.msra.mxu0 %v1258
      %1555 = vmatprep.subr.bf16.mxu0 %v1265
      %1556 = vmatpush1.bf16.msra.mxu0 %v1264
      %1557 = vmatprep.subr.bf16.mxu0 %v1271
      %1558 = vmatpush1.bf16.msra.mxu0 %v1270
      %1559 = vmatprep.subr.bf16.mxu0 %v1277
      %1560 = vmatpush1.bf16.msra.mxu0 %v1276
      %1561 = vmatprep.subr.bf16.mxu0 %v1283
      %1562 = vmatpush1.bf16.msra.mxu0 %v1282
      %1563 = vmatprep.subr.bf16.mxu0 %v1289
      %1564 = vmatpush1.bf16.msra.mxu0 %v1288
      %1565 = vmatprep.subr.bf16.mxu0 %v1295
      %1566 = vmatpush1.bf16.msra.mxu0 %v1294
      %1567 = vmatprep.subr.bf16.mxu0 %v1301
      %1568 = vmatpush1.bf16.msra.mxu0 %v1300
      %1569 = vmatprep.subr.bf16.mxu0 %v1307
      %1570 = vmatpush1.bf16.msra.mxu0 %v1306
      %1571 = vmatprep.subr.bf16.mxu0 %v1313
      %1572 = vmatpush1.bf16.msra.mxu0 %v1312
      %1573 = vmatprep.subr.bf16.mxu0 %v1319
      %1574 = vmatpush1.bf16.msra.mxu0 %v1318
      %1575 = vmatprep.subr.bf16.mxu0 %v1325
      %1576 = vmatpush1.bf16.msra.mxu0 %v1324
      %1577 = vmatprep.subr.bf16.mxu0 %v1331
      %1578 = vmatpush1.bf16.msra.mxu0 %v1330
      %1579 = vmatprep.subr.bf16.mxu0 %v1337
      %1580 = vmatpush1.bf16.msra.mxu0 %v1336
      %1581 = vmatprep.mubr.bf16.mxu0 %v813
      %1582 = vmatmul.mubr.bf16.gmra.mrb[0].mxu0 %v812
      %v1583 = vpop.f32.mrb[0].mxu0
      %v1584 = vadd.f32 %v937, %v1583
      %v1585 = vpop.f32.mrb[0].mxu0
      %v1586 = vadd.f32 %v941, %v1585
      %v1587 = vpop.f32.mrb[0].mxu0
      %v1588 = vadd.f32 %v937, %v1587
      %v1589 = vpop.f32.mrb[0].mxu0
      %v1590 = vadd.f32 %v941, %v1589
      %1591 = vmatprep.mubr.bf16.mxu0 %v815
      %1592 = vmatmul.mubr.bf16.gmra.mrb[0].mxu0 %v814
      %v1593 = vpop.f32.mrb[0].mxu0
      %v1594 = vadd.f32 %v937, %v1593
      %v1595 = vpop.f32.mrb[0].mxu0
      %v1596 = vadd.f32 %v941, %v1595
      %v1597 = vpop.f32.mrb[0].mxu0
      %v1598 = vadd.f32 %v937, %v1597
      %v1599 = vpop.f32.mrb[0].mxu0
      %v1600 = vadd.f32 %v941, %v1599
      %1601 = vmatprep.mubr.bf16.mxu0 %v817
      %1602 = vmatmul.mubr.bf16.gmra.mrb[0].mxu0 %v816
      %v1603 = vpop.f32.mrb[0].mxu0
      %v1604 = vadd.f32 %v937, %v1603
      %v1605 = vpop.f32.mrb[0].mxu0
      %v1606 = vadd.f32 %v941, %v1605
      %v1607 = vpop.f32.mrb[0].mxu0
      %v1608 = vadd.f32 %v937, %v1607
      %v1609 = vpop.f32.mrb[0].mxu0
      %v1610 = vadd.f32 %v941, %v1609
      %1611 = vmatprep.mubr.bf16.mxu0 %v819
      %1612 = vmatmul.mubr.bf16.gmra.mrb[0].mxu0 %v818
      %v1613 = vpop.f32.mrb[0].mxu0
      %v1614 = vadd.f32 %v937, %v1613
      %v1615 = vpop.f32.mrb[0].mxu0
      %v1616 = vadd.f32 %v941, %v1615
      %v1617 = vpop.f32.mrb[0].mxu0
      %v1618 = vadd.f32 %v937, %v1617
      %v1619 = vpop.f32.mrb[0].mxu0
      %v1620 = vadd.f32 %v941, %v1619
      %1621 = vmatprep.mubr.bf16.mxu0 %v821
      %1622 = vmatmul.mubr.bf16.gmra.mrb[0].mxu0 %v820
      %v1623 = vpop.f32.mrb[0].mxu0
      %v1624 = vadd.f32 %v937, %v1623
      %v1625 = vpop.f32.mrb[0].mxu0
      %v1626 = vadd.f32 %v941, %v1625
      %v1627 = vpop.f32.mrb[0].mxu0
      %v1628 = vadd.f32 %v937, %v1627
      %v1629 = vpop.f32.mrb[0].mxu0
      %v1630 = vadd.f32 %v941, %v1629
      %1631 = vmatprep.mubr.bf16.mxu0 %v823
      %1632 = vmatmul.mubr.bf16.gmra.mrb[0].mxu0 %v822
      %v1633 = vpop.f32.mrb[0].mxu0
      %v1634 = vadd.f32 %v937, %v1633
      %v1635 = vpop.f32.mrb[0].mxu0
      %v1636 = vadd.f32 %v941, %v1635
      %v1637 = vpop.f32.mrb[0].mxu0
      %v1638 = vadd.f32 %v937, %v1637
      %v1639 = vpop.f32.mrb[0].mxu0
      %v1640 = vadd.f32 %v941, %v1639
      %1641 = vmatprep.mubr.bf16.mxu0 %v825
      %1642 = vmatmul.mubr.bf16.gmra.mrb[0].mxu0 %v824
      %v1643 = vpop.f32.mrb[0].mxu0
      %v1644 = vadd.f32 %v937, %v1643
      %v1645 = vpop.f32.mrb[0].mxu0
      %v1646 = vadd.f32 %v941, %v1645
      %v1647 = vpop.f32.mrb[0].mxu0
      %v1648 = vadd.f32 %v937, %v1647
      %v1649 = vpop.f32.mrb[0].mxu0
      %v1650 = vadd.f32 %v941, %v1649
      %1651 = vmatprep.mubr.bf16.mxu0 %v827
      %1652 = vmatmul.mubr.bf16.gmra.mrb[0].mxu0 %v826
      %v1653 = vpop.f32.mrb[0].mxu0
      %v1654 = vadd.f32 %v937, %v1653
      %v1655 = vpop.f32.mrb[0].mxu0
      %v1656 = vadd.f32 %v941, %v1655
      %v1657 = vpop.f32.mrb[0].mxu0
      %v1658 = vadd.f32 %v937, %v1657
      %v1659 = vpop.f32.mrb[0].mxu0
      %v1660 = vadd.f32 %v941, %v1659
      %1661 = vdwg.mxu0
      %1662 = vmatprep.subr.bf16.mxu0 %v1249
      %1663 = vmatpush1.bf16.msra.mxu0 %v1248
      %1664 = vmatprep.subr.bf16.mxu0 %v1255
      %1665 = vmatpush1.bf16.msra.mxu0 %v1254
      %1666 = vmatprep.subr.bf16.mxu0 %v1261
      %1667 = vmatpush1.bf16.msra.mxu0 %v1260
      %1668 = vmatprep.subr.bf16.mxu0 %v1267
      %1669 = vmatpush1.bf16.msra.mxu0 %v1266
      %1670 = vmatprep.subr.bf16.mxu0 %v1273
      %1671 = vmatpush1.bf16.msra.mxu0 %v1272
      %1672 = vmatprep.subr.bf16.mxu0 %v1279
      %1673 = vmatpush1.bf16.msra.mxu0 %v1278
      %1674 = vmatprep.subr.bf16.mxu0 %v1285
      %1675 = vmatpush1.bf16.msra.mxu0 %v1284
      %1676 = vmatprep.subr.bf16.mxu0 %v1291
      %1677 = vmatpush1.bf16.msra.mxu0 %v1290
      %1678 = vmatprep.subr.bf16.mxu0 %v1297
      %1679 = vmatpush1.bf16.msra.mxu0 %v1296
      %1680 = vmatprep.subr.bf16.mxu0 %v1303
      %1681 = vmatpush1.bf16.msra.mxu0 %v1302
      %1682 = vmatprep.subr.bf16.mxu0 %v1309
      %1683 = vmatpush1.bf16.msra.mxu0 %v1308
      %1684 = vmatprep.subr.bf16.mxu0 %v1315
      %1685 = vmatpush1.bf16.msra.mxu0 %v1314
      %1686 = vmatprep.subr.bf16.mxu0 %v1321
      %1687 = vmatpush1.bf16.msra.mxu0 %v1320
      %1688 = vmatprep.subr.bf16.mxu0 %v1327
      %1689 = vmatpush1.bf16.msra.mxu0 %v1326
      %1690 = vmatprep.subr.bf16.mxu0 %v1333
      %1691 = vmatpush1.bf16.msra.mxu0 %v1332
      %1692 = vmatprep.subr.bf16.mxu0 %v1339
      %1693 = vmatpush1.bf16.msra.mxu0 %v1338
      %1694 = vmatprep.mubr.bf16.mxu0 %v813
      %1695 = vmatmul.mubr.bf16.gmra.mrb[0].mxu0 %v812
      %v1696 = vpop.f32.mrb[0].mxu0
      %v1697 = vadd.f32 %v945, %v1696
      %v1698 = vpop.f32.mrb[0].mxu0
      %v1699 = vadd.f32 %v949, %v1698
      %v1700 = vpop.f32.mrb[0].mxu0
      %v1701 = vadd.f32 %v945, %v1700
      %v1702 = vpop.f32.mrb[0].mxu0
      %v1703 = vadd.f32 %v949, %v1702
      %1704 = vmatprep.mubr.bf16.mxu0 %v815
      %1705 = vmatmul.mubr.bf16.gmra.mrb[0].mxu0 %v814
      %v1706 = vpop.f32.mrb[0].mxu0
      %v1707 = vadd.f32 %v945, %v1706
      %v1708 = vpop.f32.mrb[0].mxu0
      %v1709 = vadd.f32 %v949, %v1708
      %v1710 = vpop.f32.mrb[0].mxu0
      %v1711 = vadd.f32 %v945, %v1710
      %v1712 = vpop.f32.mrb[0].mxu0
      %v1713 = vadd.f32 %v949, %v1712
      %1714 = vmatprep.mubr.bf16.mxu0 %v817
      %1715 = vmatmul.mubr.bf16.gmra.mrb[0].mxu0 %v816
      %v1716 = vpop.f32.mrb[0].mxu0
      %v1717 = vadd.f32 %v945, %v1716
      %v1718 = vpop.f32.mrb[0].mxu0
      %v1719 = vadd.f32 %v949, %v1718
      %v1720 = vpop.f32.mrb[0].mxu0
      %v1721 = vadd.f32 %v945, %v1720
      %v1722 = vpop.f32.mrb[0].mxu0
      %v1723 = vadd.f32 %v949, %v1722
      %1724 = vmatprep.mubr.bf16.mxu0 %v819
      %1725 = vmatmul.mubr.bf16.gmra.mrb[0].mxu0 %v818
      %v1726 = vpop.f32.mrb[0].mxu0
      %v1727 = vadd.f32 %v945, %v1726
      %v1728 = vpop.f32.mrb[0].mxu0
      %v1729 = vadd.f32 %v949, %v1728
      %v1730 = vpop.f32.mrb[0].mxu0
      %v1731 = vadd.f32 %v945, %v1730
      %v1732 = vpop.f32.mrb[0].mxu0
      %v1733 = vadd.f32 %v949, %v1732
      %1734 = vmatprep.mubr.bf16.mxu0 %v821
      %1735 = vmatmul.mubr.bf16.gmra.mrb[0].mxu0 %v820
      %v1736 = vpop.f32.mrb[0].mxu0
      %v1737 = vadd.f32 %v945, %v1736
      %v1738 = vpop.f32.mrb[0].mxu0
      %v1739 = vadd.f32 %v949, %v1738
      %v1740 = vpop.f32.mrb[0].mxu0
      %v1741 = vadd.f32 %v945, %v1740
      %v1742 = vpop.f32.mrb[0].mxu0
      %v1743 = vadd.f32 %v949, %v1742
      %1744 = vmatprep.mubr.bf16.mxu0 %v823
      %1745 = vmatmul.mubr.bf16.gmra.mrb[0].mxu0 %v822
      %v1746 = vpop.f32.mrb[0].mxu0
      %v1747 = vadd.f32 %v945, %v1746
      %v1748 = vpop.f32.mrb[0].mxu0
      %v1749 = vadd.f32 %v949, %v1748
      %v1750 = vpop.f32.mrb[0].mxu0
      %v1751 = vadd.f32 %v945, %v1750
      %v1752 = vpop.f32.mrb[0].mxu0
      %v1753 = vadd.f32 %v949, %v1752
      %1754 = vmatprep.mubr.bf16.mxu0 %v825
      %1755 = vmatmul.mubr.bf16.gmra.mrb[0].mxu0 %v824
      %v1756 = vpop.f32.mrb[0].mxu0
      %v1757 = vadd.f32 %v945, %v1756
      %v1758 = vpop.f32.mrb[0].mxu0
      %v1759 = vadd.f32 %v949, %v1758
      %v1760 = vpop.f32.mrb[0].mxu0
      %v1761 = vadd.f32 %v945, %v1760
      %v1762 = vpop.f32.mrb[0].mxu0
      %v1763 = vadd.f32 %v949, %v1762
      %1764 = vmatprep.mubr.bf16.mxu0 %v827
      %1765 = vmatmul.mubr.bf16.gmra.mrb[0].mxu0 %v826
      %v1766 = vpop.f32.mrb[0].mxu0
      %v1767 = vadd.f32 %v945, %v1766
      %v1768 = vpop.f32.mrb[0].mxu0
      %v1769 = vadd.f32 %v949, %v1768
      %v1770 = vpop.f32.mrb[0].mxu0
      %v1771 = vadd.f32 %v945, %v1770
      %v1772 = vpop.f32.mrb[0].mxu0
      %v1773 = vadd.f32 %v949, %v1772
      %1774 = vdwg.mxu0
      %v1775 = vpack.c.bf16 %v1475, %v1471
      %v1776 = vpack.c.bf16 %v1485, %v1481
      %v1777 = vpack.c.bf16 %v1495, %v1491
      %v1778 = vpack.c.bf16 %v1505, %v1501
      %v1779 = vpack.c.bf16 %v1515, %v1511
      %v1780 = vpack.c.bf16 %v1525, %v1521
      %v1781 = vpack.c.bf16 %v1535, %v1531
      %v1782 = vpack.c.bf16 %v1545, %v1541
      %v1783 = vpack.c.bf16 %v1588, %v1584
      %v1784 = vpack.c.bf16 %v1598, %v1594
      %v1785 = vpack.c.bf16 %v1608, %v1604
      %v1786 = vpack.c.bf16 %v1618, %v1614
      %v1787 = vpack.c.bf16 %v1628, %v1624
      %v1788 = vpack.c.bf16 %v1638, %v1634
      %v1789 = vpack.c.bf16 %v1648, %v1644
      %v1790 = vpack.c.bf16 %v1658, %v1654
      %1791 = vmatprep.subr.bf16.mxu0 0
      %1792 = vmatpush1.bf16.xpose.msra.mxu0 %v1783
      %1793 = vmatprep.subr.bf16.mxu0 0
      %1794 = vmatpush1.bf16.xpose.msra.mxu0 %v1784
      %1795 = vmatprep.subr.bf16.mxu0 0
      %1796 = vmatpush1.bf16.xpose.msra.mxu0 %v1785
      %1797 = vmatprep.subr.bf16.mxu0 0
      %1798 = vmatpush1.bf16.xpose.msra.mxu0 %v1786
      %1799 = vmatprep.subr.bf16.mxu0 0
      %1800 = vmatpush1.bf16.xpose.msra.mxu0 %v1787
      %1801 = vmatprep.subr.bf16.mxu0 0
      %1802 = vmatpush1.bf16.xpose.msra.mxu0 %v1788
      %1803 = vmatprep.subr.bf16.mxu0 0
      %1804 = vmatpush1.bf16.xpose.msra.mxu0 %v1789
      %1805 = vmatprep.subr.bf16.mxu0 0
      %1806 = vmatpush1.bf16.xpose.msra.mxu0 %v1790
      %1807 = vmatprep.subr.bf16.mxu0 0
      %1808 = vmatpush1.bf16.xpose.msra.mxu0 0
      %1809 = vmatprep.subr.bf16.mxu0 0
      %1810 = vmatpush1.bf16.xpose.msra.mxu0 0
      %1811 = vmatprep.subr.bf16.mxu0 0
      %1812 = vmatpush1.bf16.xpose.msra.mxu0 0
      %1813 = vmatprep.subr.bf16.mxu0 0
      %1814 = vmatpush1.bf16.xpose.msra.mxu0 0
      %1815 = vmatprep.subr.bf16.mxu0 0
      %1816 = vmatpush1.bf16.xpose.msra.mxu0 0
      %1817 = vmatprep.subr.bf16.mxu0 0
      %1818 = vmatpush1.bf16.xpose.msra.mxu0 0
      %1819 = vmatprep.subr.bf16.mxu0 0
      %1820 = vmatpush1.bf16.xpose.msra.mxu0 0
      %1821 = vmatprep.subr.bf16.mxu0 0
      %1822 = vmatpush1.bf16.xpose.msra.mxu0 0
      %1823 = vmatprep.mubr.bf16.mxu0 0
      %1824 = vmatmul.mubr.bf16.gmra.mrb[0].mxu0 %v1775
      %v1825 = vpop.f32.mrb[0].mxu0
      %v1826 = vadd.f32 0.0, %v1825
      %v1827 = vpop.f32.mrb[0].mxu0
      %v1828 = vpop.f32.mrb[0].mxu0
      %v1829 = vadd.f32 0.0, %v1828
      %v1830 = vpop.f32.mrb[0].mxu0
      %1831 = vmatprep.mubr.bf16.mxu0 0
      %1832 = vmatmul.mubr.bf16.gmra.mrb[0].mxu0 %v1776
      %v1833 = vpop.f32.mrb[0].mxu0
      %v1834 = vadd.f32 0.0, %v1833
      %v1835 = vpop.f32.mrb[0].mxu0
      %v1836 = vpop.f32.mrb[0].mxu0
      %v1837 = vadd.f32 0.0, %v1836
      %v1838 = vpop.f32.mrb[0].mxu0
      %1839 = vmatprep.mubr.bf16.mxu0 0
      %1840 = vmatmul.mubr.bf16.gmra.mrb[0].mxu0 %v1777
      %v1841 = vpop.f32.mrb[0].mxu0
      %v1842 = vadd.f32 0.0, %v1841
      %v1843 = vpop.f32.mrb[0].mxu0
      %v1844 = vpop.f32.mrb[0].mxu0
      %v1845 = vadd.f32 0.0, %v1844
      %v1846 = vpop.f32.mrb[0].mxu0
      %1847 = vmatprep.mubr.bf16.mxu0 0
      %1848 = vmatmul.mubr.bf16.gmra.mrb[0].mxu0 %v1778
      %v1849 = vpop.f32.mrb[0].mxu0
      %v1850 = vadd.f32 0.0, %v1849
      %v1851 = vpop.f32.mrb[0].mxu0
      %v1852 = vpop.f32.mrb[0].mxu0
      %v1853 = vadd.f32 0.0, %v1852
      %v1854 = vpop.f32.mrb[0].mxu0
      %1855 = vmatprep.mubr.bf16.mxu0 0
      %1856 = vmatmul.mubr.bf16.gmra.mrb[0].mxu0 %v1779
      %v1857 = vpop.f32.mrb[0].mxu0
      %v1858 = vadd.f32 0.0, %v1857
      %v1859 = vpop.f32.mrb[0].mxu0
      %v1860 = vpop.f32.mrb[0].mxu0
      %v1861 = vadd.f32 0.0, %v1860
      %v1862 = vpop.f32.mrb[0].mxu0
      %1863 = vmatprep.mubr.bf16.mxu0 0
      %1864 = vmatmul.mubr.bf16.gmra.mrb[0].mxu0 %v1780
      %v1865 = vpop.f32.mrb[0].mxu0
      %v1866 = vadd.f32 0.0, %v1865
      %v1867 = vpop.f32.mrb[0].mxu0
      %v1868 = vpop.f32.mrb[0].mxu0
      %v1869 = vadd.f32 0.0, %v1868
      %v1870 = vpop.f32.mrb[0].mxu0
      %1871 = vmatprep.mubr.bf16.mxu0 0
      %1872 = vmatmul.mubr.bf16.gmra.mrb[0].mxu0 %v1781
      %v1873 = vpop.f32.mrb[0].mxu0
      %v1874 = vadd.f32 0.0, %v1873
      %v1875 = vpop.f32.mrb[0].mxu0
      %v1876 = vpop.f32.mrb[0].mxu0
      %v1877 = vadd.f32 0.0, %v1876
      %v1878 = vpop.f32.mrb[0].mxu0
      %1879 = vmatprep.mubr.bf16.mxu0 0
      %1880 = vmatmul.mubr.bf16.gmra.mrb[0].mxu0 %v1782
      %v1881 = vpop.f32.mrb[0].mxu0
      %v1882 = vadd.f32 0.0, %v1881
      %v1883 = vpop.f32.mrb[0].mxu0
      %v1884 = vpop.f32.mrb[0].mxu0
      %v1885 = vadd.f32 0.0, %v1884
      %v1886 = vpop.f32.mrb[0].mxu0
      %1887 = vdwg.mxu0
      %v1888 = vmul.f32 %v1826, 0.088388346
      %v1889 = vmul.f32 %v1829, 0.088388346
      %v1890 = vmul.f32 %v1834, 0.088388346
      %v1891 = vmul.f32 %v1837, 0.088388346
      %v1892 = vmul.f32 %v1842, 0.088388346
      %v1893 = vmul.f32 %v1845, 0.088388346
      %v1894 = vmul.f32 %v1850, 0.088388346
      %v1895 = vmul.f32 %v1853, 0.088388346
      %v1896 = vmul.f32 %v1858, 0.088388346
      %v1897 = vmul.f32 %v1861, 0.088388346
      %v1898 = vmul.f32 %v1866, 0.088388346
      %v1899 = vmul.f32 %v1869, 0.088388346
      %v1900 = vmul.f32 %v1874, 0.088388346
      %v1901 = vmul.f32 %v1877, 0.088388346
      %v1902 = vmul.f32 %v1882, 0.088388346
      %v1903 = vmul.f32 %v1885, 0.088388346
      %v1905 = vlaneseq
      %v1906 = vshrl.u32 %v1905, 7
      %v1907 = vsub.s32 0, %v1906
      %v1908 = vrot.slane %v811, %v1907
      %v1910 = vadd.f32 %v1888, %v1908
      %v1911 = vadd.f32 %v1889, %v1908
      %v1912 = vadd.f32 %v1890, %v1908
      %v1913 = vadd.f32 %v1891, %v1908
      %v1914 = vadd.f32 %v1892, %v1908
      %v1915 = vadd.f32 %v1893, %v1908
      %v1916 = vadd.f32 %v1894, %v1908
      %v1917 = vadd.f32 %v1895, %v1908
      %v1918 = vadd.f32 %v1896, %v1908
      %v1919 = vadd.f32 %v1897, %v1908
      %v1920 = vadd.f32 %v1898, %v1908
      %v1921 = vadd.f32 %v1899, %v1908
      %v1922 = vadd.f32 %v1900, %v1908
      %v1923 = vadd.f32 %v1901, %v1908
      %v1924 = vadd.f32 %v1902, %v1908
      %v1925 = vadd.f32 %v1903, %v1908
      %1926 = vmax.xlane.f32.xlu0 %v1910
      %v1927 = vpop.xlane.xlu0 %1926
      %1928 = vmax.xlane.f32.xlu0 %v1911
      %v1929 = vpop.xlane.xlu0 %1928
      %1930 = vmax.xlane.f32.xlu0 %v1912
      %v1931 = vpop.xlane.xlu0 %1930
      %1932 = vmax.xlane.f32.xlu0 %v1913
      %v1933 = vpop.xlane.xlu0 %1932
      %1934 = vmax.xlane.f32.xlu0 %v1914
      %v1935 = vpop.xlane.xlu0 %1934
      %1936 = vmax.xlane.f32.xlu0 %v1915
      %v1937 = vpop.xlane.xlu0 %1936
      %1938 = vmax.xlane.f32.xlu0 %v1916
      %v1939 = vpop.xlane.xlu0 %1938
      %1940 = vmax.xlane.f32.xlu0 %v1917
      %v1941 = vpop.xlane.xlu0 %1940
      %1942 = vmax.xlane.f32.xlu0 %v1918
      %v1943 = vpop.xlane.xlu0 %1942
      %1944 = vmax.xlane.f32.xlu0 %v1919
      %v1945 = vpop.xlane.xlu0 %1944
      %1946 = vmax.xlane.f32.xlu0 %v1920
      %v1947 = vpop.xlane.xlu0 %1946
      %1948 = vmax.xlane.f32.xlu0 %v1921
      %v1949 = vpop.xlane.xlu0 %1948
      %1950 = vmax.xlane.f32.xlu0 %v1922
      %v1951 = vpop.xlane.xlu0 %1950
      %1952 = vmax.xlane.f32.xlu0 %v1923
      %v1953 = vpop.xlane.xlu0 %1952
      %1954 = vmax.xlane.f32.xlu0 %v1924
      %v1955 = vpop.xlane.xlu0 %1954
      %1956 = vmax.xlane.f32.xlu0 %v1925
      %v1957 = vpop.xlane.xlu0 %1956
      %v1958 = vsub.f32 %v1910, %v1927
      %v1959 = vsub.f32 %v1911, %v1929
      %v1960 = vsub.f32 %v1912, %v1931
      %v1961 = vsub.f32 %v1913, %v1933
      %v1962 = vsub.f32 %v1914, %v1935
      %v1963 = vsub.f32 %v1915, %v1937
      %v1964 = vsub.f32 %v1916, %v1939
      %v1965 = vsub.f32 %v1917, %v1941
      %v1966 = vsub.f32 %v1918, %v1943
      %v1967 = vsub.f32 %v1919, %v1945
      %v1968 = vsub.f32 %v1920, %v1947
      %v1969 = vsub.f32 %v1921, %v1949
      %v1970 = vsub.f32 %v1922, %v1951
      %v1971 = vsub.f32 %v1923, %v1953
      %v1972 = vsub.f32 %v1924, %v1955
      %v1973 = vsub.f32 %v1925, %v1957
      %v1974 = vmul.f32 %v1958, 1.442695
      %v1975 = vpow.pop %v1974
      %v1976 = vmul.f32 %v1959, 1.442695
      %v1977 = vpow.pop %v1976
      %v1978 = vmul.f32 %v1960, 1.442695
      %v1979 = vpow.pop %v1978
      %v1980 = vmul.f32 %v1961, 1.442695
      %v1981 = vpow.pop %v1980
      %v1982 = vmul.f32 %v1962, 1.442695
      %v1983 = vpow.pop %v1982
      %v1984 = vmul.f32 %v1963, 1.442695
      %v1985 = vpow.pop %v1984
      %v1986 = vmul.f32 %v1964, 1.442695
      %v1987 = vpow.pop %v1986
      %v1988 = vmul.f32 %v1965, 1.442695
      %v1989 = vpow.pop %v1988
      %v1990 = vmul.f32 %v1966, 1.442695
      %v1991 = vpow.pop %v1990
      %v1992 = vmul.f32 %v1967, 1.442695
      %v1993 = vpow.pop %v1992
      %v1994 = vmul.f32 %v1968, 1.442695
      %v1995 = vpow.pop %v1994
      %v1996 = vmul.f32 %v1969, 1.442695
      %v1997 = vpow.pop %v1996
      %v1998 = vmul.f32 %v1970, 1.442695
      %v1999 = vpow.pop %v1998
      %v2000 = vmul.f32 %v1971, 1.442695
      %v2001 = vpow.pop %v2000
      %v2002 = vmul.f32 %v1972, 1.442695
      %v2003 = vpow.pop %v2002
      %v2004 = vmul.f32 %v1973, 1.442695
      %v2005 = vpow.pop %v2004
      %2006 = vadd.xlane.f32.xlu0 %v1975
      %v2007 = vpop.xlane.xlu0 %2006
      %2008 = vadd.xlane.f32.xlu0 %v1977
      %v2009 = vpop.xlane.xlu0 %2008
      %2010 = vadd.xlane.f32.xlu0 %v1979
      %v2011 = vpop.xlane.xlu0 %2010
      %2012 = vadd.xlane.f32.xlu0 %v1981
      %v2013 = vpop.xlane.xlu0 %2012
      %2014 = vadd.xlane.f32.xlu0 %v1983
      %v2015 = vpop.xlane.xlu0 %2014
      %2016 = vadd.xlane.f32.xlu0 %v1985
      %v2017 = vpop.xlane.xlu0 %2016
      %2018 = vadd.xlane.f32.xlu0 %v1987
      %v2019 = vpop.xlane.xlu0 %2018
      %2020 = vadd.xlane.f32.xlu0 %v1989
      %v2021 = vpop.xlane.xlu0 %2020
      %2022 = vadd.xlane.f32.xlu0 %v1991
      %v2023 = vpop.xlane.xlu0 %2022
      %2024 = vadd.xlane.f32.xlu0 %v1993
      %v2025 = vpop.xlane.xlu0 %2024
      %2026 = vadd.xlane.f32.xlu0 %v1995
      %v2027 = vpop.xlane.xlu0 %2026
      %2028 = vadd.xlane.f32.xlu0 %v1997
      %v2029 = vpop.xlane.xlu0 %2028
      %2030 = vadd.xlane.f32.xlu0 %v1999
      %v2031 = vpop.xlane.xlu0 %2030
      %2032 = vadd.xlane.f32.xlu0 %v2001
      %v2033 = vpop.xlane.xlu0 %2032
      %2034 = vadd.xlane.f32.xlu0 %v2003
      %v2035 = vpop.xlane.xlu0 %2034
      %2036 = vadd.xlane.f32.xlu0 %v2005
      %v2037 = vpop.xlane.xlu0 %2036
      %v2038 = vrcp.pop %v2007
      %v2039 = vrcp.pop %v2009
      %v2040 = vrcp.pop %v2011
      %v2041 = vrcp.pop %v2013
      %v2042 = vrcp.pop %v2015
      %v2043 = vrcp.pop %v2017
      %v2044 = vrcp.pop %v2019
      %v2045 = vrcp.pop %v2021
      %v2046 = vrcp.pop %v2023
      %v2047 = vrcp.pop %v2025
      %v2048 = vrcp.pop %v2027
      %v2049 = vrcp.pop %v2029
      %v2050 = vrcp.pop %v2031
      %v2051 = vrcp.pop %v2033
      %v2052 = vrcp.pop %v2035
      %v2053 = vrcp.pop %v2037
      %v2054 = vmul.f32 %v1975, %v2038
      %v2055 = vmul.f32 %v1977, %v2039
      %v2056 = vmul.f32 %v1979, %v2040
      %v2057 = vmul.f32 %v1981, %v2041
      %v2058 = vmul.f32 %v1983, %v2042
      %v2059 = vmul.f32 %v1985, %v2043
      %v2060 = vmul.f32 %v1987, %v2044
      %v2061 = vmul.f32 %v1989, %v2045
      %v2062 = vmul.f32 %v1991, %v2046
      %v2063 = vmul.f32 %v1993, %v2047
      %v2064 = vmul.f32 %v1995, %v2048
      %v2065 = vmul.f32 %v1997, %v2049
      %v2066 = vmul.f32 %v1999, %v2050
      %v2067 = vmul.f32 %v2001, %v2051
      %v2068 = vmul.f32 %v2003, %v2052
      %v2069 = vmul.f32 %v2005, %v2053
      %v2070 = vpack.c.bf16 %v2055, %v2054
      %v2071 = vpack.c.bf16 %v2057, %v2056
      %v2072 = vpack.c.bf16 %v2059, %v2058
      %v2073 = vpack.c.bf16 %v2061, %v2060
      %v2074 = vpack.c.bf16 %v2063, %v2062
      %v2075 = vpack.c.bf16 %v2065, %v2064
      %v2076 = vpack.c.bf16 %v2067, %v2066
      %v2077 = vpack.c.bf16 %v2069, %v2068
      %v2078 = vpack.c.bf16 %v1701, %v1697
      %v2079 = vpack.c.bf16 %v1711, %v1707
      %v2080 = vpack.c.bf16 %v1721, %v1717
      %v2081 = vpack.c.bf16 %v1731, %v1727
      %v2082 = vpack.c.bf16 %v1741, %v1737
      %v2083 = vpack.c.bf16 %v1751, %v1747
      %v2084 = vpack.c.bf16 %v1761, %v1757
      %v2085 = vpack.c.bf16 %v1771, %v1767
      %2086 = vmatprep.subr.bf16.mxu0 0
      %2087 = vmatpush1.bf16.msra.mxu0 %v2078
      %2088 = vmatprep.subr.bf16.mxu0 0
      %2089 = vmatpush1.bf16.msra.mxu0 %v2079
      %2090 = vmatprep.subr.bf16.mxu0 0
      %2091 = vmatpush1.bf16.msra.mxu0 %v2080
      %2092 = vmatprep.subr.bf16.mxu0 0
      %2093 = vmatpush1.bf16.msra.mxu0 %v2081
      %2094 = vmatprep.subr.bf16.mxu0 0
      %2095 = vmatpush1.bf16.msra.mxu0 %v2082
      %2096 = vmatprep.subr.bf16.mxu0 0
      %2097 = vmatpush1.bf16.msra.mxu0 %v2083
      %2098 = vmatprep.subr.bf16.mxu0 0
      %2099 = vmatpush1.bf16.msra.mxu0 %v2084
      %2100 = vmatprep.subr.bf16.mxu0 0
      %2101 = vmatpush1.bf16.msra.mxu0 %v2085
      %2102 = vmatprep.subr.bf16.mxu0 0
      %2103 = vmatpush1.bf16.msra.mxu0 0
      %2104 = vmatprep.subr.bf16.mxu0 0
      %2105 = vmatpush1.bf16.msra.mxu0 0
      %2106 = vmatprep.subr.bf16.mxu0 0
      %2107 = vmatpush1.bf16.msra.mxu0 0
      %2108 = vmatprep.subr.bf16.mxu0 0
      %2109 = vmatpush1.bf16.msra.mxu0 0
      %2110 = vmatprep.subr.bf16.mxu0 0
      %2111 = vmatpush1.bf16.msra.mxu0 0
      %2112 = vmatprep.subr.bf16.mxu0 0
      %2113 = vmatpush1.bf16.msra.mxu0 0
      %2114 = vmatprep.subr.bf16.mxu0 0
      %2115 = vmatpush1.bf16.msra.mxu0 0
      %2116 = vmatprep.subr.bf16.mxu0 0
      %2117 = vmatpush1.bf16.msra.mxu0 0
      %2118 = vmatprep.mubr.bf16.mxu0 0
      %2119 = vmatmul.mubr.bf16.gmra.mrb[0].mxu0 %v2070
      %v2120 = vpop.f32.mrb[0].mxu0
      %v2121 = vadd.f32 0.0, %v2120
      %v2122 = vpop.f32.mrb[0].mxu0
      %v2123 = vpop.f32.mrb[0].mxu0
      %v2124 = vadd.f32 0.0, %v2123
      %v2125 = vpop.f32.mrb[0].mxu0
      %2126 = vmatprep.mubr.bf16.mxu0 0
      %2127 = vmatmul.mubr.bf16.gmra.mrb[0].mxu0 %v2071
      %v2128 = vpop.f32.mrb[0].mxu0
      %v2129 = vadd.f32 0.0, %v2128
      %v2130 = vpop.f32.mrb[0].mxu0
      %v2131 = vpop.f32.mrb[0].mxu0
      %v2132 = vadd.f32 0.0, %v2131
      %v2133 = vpop.f32.mrb[0].mxu0
      %2134 = vmatprep.mubr.bf16.mxu0 0
      %2135 = vmatmul.mubr.bf16.gmra.mrb[0].mxu0 %v2072
      %v2136 = vpop.f32.mrb[0].mxu0
      %v2137 = vadd.f32 0.0, %v2136
      %v2138 = vpop.f32.mrb[0].mxu0
      %v2139 = vpop.f32.mrb[0].mxu0
      %v2140 = vadd.f32 0.0, %v2139
      %v2141 = vpop.f32.mrb[0].mxu0
      %2142 = vmatprep.mubr.bf16.mxu0 0
      %2143 = vmatmul.mubr.bf16.gmra.mrb[0].mxu0 %v2073
      %v2144 = vpop.f32.mrb[0].mxu0
      %v2145 = vadd.f32 0.0, %v2144
      %v2146 = vpop.f32.mrb[0].mxu0
      %v2147 = vpop.f32.mrb[0].mxu0
      %v2148 = vadd.f32 0.0, %v2147
      %v2149 = vpop.f32.mrb[0].mxu0
      %2150 = vmatprep.mubr.bf16.mxu0 0
      %2151 = vmatmul.mubr.bf16.gmra.mrb[0].mxu0 %v2074
      %v2152 = vpop.f32.mrb[0].mxu0
      %v2153 = vadd.f32 0.0, %v2152
      %v2154 = vpop.f32.mrb[0].mxu0
      %v2155 = vpop.f32.mrb[0].mxu0
      %v2156 = vadd.f32 0.0, %v2155
      %v2157 = vpop.f32.mrb[0].mxu0
      %2158 = vmatprep.mubr.bf16.mxu0 0
      %2159 = vmatmul.mubr.bf16.gmra.mrb[0].mxu0 %v2075
      %v2160 = vpop.f32.mrb[0].mxu0
      %v2161 = vadd.f32 0.0, %v2160
      %v2162 = vpop.f32.mrb[0].mxu0
      %v2163 = vpop.f32.mrb[0].mxu0
      %v2164 = vadd.f32 0.0, %v2163
      %v2165 = vpop.f32.mrb[0].mxu0
      %2166 = vmatprep.mubr.bf16.mxu0 0
      %2167 = vmatmul.mubr.bf16.gmra.mrb[0].mxu0 %v2076
      %v2168 = vpop.f32.mrb[0].mxu0
      %v2169 = vadd.f32 0.0, %v2168
      %v2170 = vpop.f32.mrb[0].mxu0
      %v2171 = vpop.f32.mrb[0].mxu0
      %v2172 = vadd.f32 0.0, %v2171
      %v2173 = vpop.f32.mrb[0].mxu0
      %2174 = vmatprep.mubr.bf16.mxu0 0
      %2175 = vmatmul.mubr.bf16.gmra.mrb[0].mxu0 %v2077
      %v2176 = vpop.f32.mrb[0].mxu0
      %v2177 = vadd.f32 0.0, %v2176
      %v2178 = vpop.f32.mrb[0].mxu0
      %v2179 = vpop.f32.mrb[0].mxu0
      %v2180 = vadd.f32 0.0, %v2179
      %v2181 = vpop.f32.mrb[0].mxu0
      %2182 = vdwg.mxu0
      %v2183 = vpack.c.bf16 %v2124, %v2121
      %v2184 = vpack.c.bf16 %v2132, %v2129
      %v2185 = vpack.c.bf16 %v2140, %v2137
      %v2186 = vpack.c.bf16 %v2148, %v2145
      %v2187 = vpack.c.bf16 %v2156, %v2153
      %v2188 = vpack.c.bf16 %v2164, %v2161
      %v2189 = vpack.c.bf16 %v2172, %v2169
      %v2190 = vpack.c.bf16 %v2180, %v2177
      %v2191 = vld [vmem:[%s666] sm:$0xff]
      %v2192 = vld [vmem:[%s666 + $0x8] sm:$0xff]
      %v2193 = vld [vmem:[%s666 + $0x10] sm:$0xff]
      %v2194 = vld [vmem:[%s666 + $0x18] sm:$0xff]
      %v2195 = vld [vmem:[%s666 + $0x20] sm:$0xff]
      %v2196 = vld [vmem:[%s666 + $0x28] sm:$0xff]
      %v2197 = vld [vmem:[%s666 + $0x30] sm:$0xff]
      %v2198 = vld [vmem:[%s666 + $0x38] sm:$0xff]
      %v2199 = vld [vmem:[%s666 + $0x40] sm:$0xff]
      %v2200 = vld [vmem:[%s666 + $0x48] sm:$0xff]
      %v2201 = vld [vmem:[%s666 + $0x50] sm:$0xff]
      %v2202 = vld [vmem:[%s666 + $0x58] sm:$0xff]
      %v2203 = vld [vmem:[%s666 + $0x60] sm:$0xff]
      %v2204 = vld [vmem:[%s666 + $0x68] sm:$0xff]
      %v2205 = vld [vmem:[%s666 + $0x70] sm:$0xff]
      %v2206 = vld [vmem:[%s666 + $0x78] sm:$0xff]
      %v2207 = vpack.c.bf16 %v1477, %v1473
      %v2208 = vpack.c.bf16 %v1487, %v1483
      %v2209 = vpack.c.bf16 %v1497, %v1493
      %v2210 = vpack.c.bf16 %v1507, %v1503
      %v2211 = vpack.c.bf16 %v1517, %v1513
      %v2212 = vpack.c.bf16 %v1527, %v1523
      %v2213 = vpack.c.bf16 %v1537, %v1533
      %v2214 = vpack.c.bf16 %v1547, %v1543
      %v2215 = vpack.c.bf16 %v1590, %v1586
      %v2216 = vpack.c.bf16 %v1600, %v1596
      %v2217 = vpack.c.bf16 %v1610, %v1606
      %v2218 = vpack.c.bf16 %v1620, %v1616
      %v2219 = vpack.c.bf16 %v1630, %v1626
      %v2220 = vpack.c.bf16 %v1640, %v1636
      %v2221 = vpack.c.bf16 %v1650, %v1646
      %v2222 = vpack.c.bf16 %v1660, %v1656
      %2223 = vmatprep.subr.bf16.mxu0 0
      %2224 = vmatpush1.bf16.xpose.msra.mxu0 %v2215
      %2225 = vmatprep.subr.bf16.mxu0 0
      %2226 = vmatpush1.bf16.xpose.msra.mxu0 %v2216
      %2227 = vmatprep.subr.bf16.mxu0 0
      %2228 = vmatpush1.bf16.xpose.msra.mxu0 %v2217
      %2229 = vmatprep.subr.bf16.mxu0 0
      %2230 = vmatpush1.bf16.xpose.msra.mxu0 %v2218
      %2231 = vmatprep.subr.bf16.mxu0 0
      %2232 = vmatpush1.bf16.xpose.msra.mxu0 %v2219
      %2233 = vmatprep.subr.bf16.mxu0 0
      %2234 = vmatpush1.bf16.xpose.msra.mxu0 %v2220
      %2235 = vmatprep.subr.bf16.mxu0 0
      %2236 = vmatpush1.bf16.xpose.msra.mxu0 %v2221
      %2237 = vmatprep.subr.bf16.mxu0 0
      %2238 = vmatpush1.bf16.xpose.msra.mxu0 %v2222
      %2239 = vmatprep.subr.bf16.mxu0 0
      %2240 = vmatpush1.bf16.xpose.msra.mxu0 0
      %2241 = vmatprep.subr.bf16.mxu0 0
      %2242 = vmatpush1.bf16.xpose.msra.mxu0 0
      %2243 = vmatprep.subr.bf16.mxu0 0
      %2244 = vmatpush1.bf16.xpose.msra.mxu0 0
      %2245 = vmatprep.subr.bf16.mxu0 0
      %2246 = vmatpush1.bf16.xpose.msra.mxu0 0
      %2247 = vmatprep.subr.bf16.mxu0 0
      %2248 = vmatpush1.bf16.xpose.msra.mxu0 0
      %2249 = vmatprep.subr.bf16.mxu0 0
      %2250 = vmatpush1.bf16.xpose.msra.mxu0 0
      %2251 = vmatprep.subr.bf16.mxu0 0
      %2252 = vmatpush1.bf16.xpose.msra.mxu0 0
      %2253 = vmatprep.subr.bf16.mxu0 0
      %2254 = vmatpush1.bf16.xpose.msra.mxu0 0
      %2255 = vmatprep.mubr.bf16.mxu0 0
      %2256 = vmatmul.mubr.bf16.gmra.mrb[0].mxu0 %v2207
      %v2257 = vpop.f32.mrb[0].mxu0
      %v2258 = vadd.f32 0.0, %v2257
      %v2259 = vpop.f32.mrb[0].mxu0
      %v2260 = vpop.f32.mrb[0].mxu0
      %v2261 = vadd.f32 0.0, %v2260
      %v2262 = vpop.f32.mrb[0].mxu0
      %2263 = vmatprep.mubr.bf16.mxu0 0
      %2264 = vmatmul.mubr.bf16.gmra.mrb[0].mxu0 %v2208
      %v2265 = vpop.f32.mrb[0].mxu0
      %v2266 = vadd.f32 0.0, %v2265
      %v2267 = vpop.f32.mrb[0].mxu0
      %v2268 = vpop.f32.mrb[0].mxu0
      %v2269 = vadd.f32 0.0, %v2268
      %v2270 = vpop.f32.mrb[0].mxu0
      %2271 = vmatprep.mubr.bf16.mxu0 0
      %2272 = vmatmul.mubr.bf16.gmra.mrb[0].mxu0 %v2209
      %v2273 = vpop.f32.mrb[0].mxu0
      %v2274 = vadd.f32 0.0, %v2273
      %v2275 = vpop.f32.mrb[0].mxu0
      %v2276 = vpop.f32.mrb[0].mxu0
      %v2277 = vadd.f32 0.0, %v2276
      %v2278 = vpop.f32.mrb[0].mxu0
      %2279 = vmatprep.mubr.bf16.mxu0 0
      %2280 = vmatmul.mubr.bf16.gmra.mrb[0].mxu0 %v2210
      %v2281 = vpop.f32.mrb[0].mxu0
      %v2282 = vadd.f32 0.0, %v2281
      %v2283 = vpop.f32.mrb[0].mxu0
      %v2284 = vpop.f32.mrb[0].mxu0
      %v2285 = vadd.f32 0.0, %v2284
      %v2286 = vpop.f32.mrb[0].mxu0
      %2287 = vmatprep.mubr.bf16.mxu0 0
      %2288 = vmatmul.mubr.bf16.gmra.mrb[0].mxu0 %v2211
      %v2289 = vpop.f32.mrb[0].mxu0
      %v2290 = vadd.f32 0.0, %v2289
      %v2291 = vpop.f32.mrb[0].mxu0
      %v2292 = vpop.f32.mrb[0].mxu0
      %v2293 = vadd.f32 0.0, %v2292
      %v2294 = vpop.f32.mrb[0].mxu0
      %2295 = vmatprep.mubr.bf16.mxu0 0
      %2296 = vmatmul.mubr.bf16.gmra.mrb[0].mxu0 %v2212
      %v2297 = vpop.f32.mrb[0].mxu0
      %v2298 = vadd.f32 0.0, %v2297
      %v2299 = vpop.f32.mrb[0].mxu0
      %v2300 = vpop.f32.mrb[0].mxu0
      %v2301 = vadd.f32 0.0, %v2300
      %v2302 = vpop.f32.mrb[0].mxu0
      %2303 = vmatprep.mubr.bf16.mxu0 0
      %2304 = vmatmul.mubr.bf16.gmra.mrb[0].mxu0 %v2213
      %v2305 = vpop.f32.mrb[0].mxu0
      %v2306 = vadd.f32 0.0, %v2305
      %v2307 = vpop.f32.mrb[0].mxu0
      %v2308 = vpop.f32.mrb[0].mxu0
      %v2309 = vadd.f32 0.0, %v2308
      %v2310 = vpop.f32.mrb[0].mxu0
      %2311 = vmatprep.mubr.bf16.mxu0 0
      %2312 = vmatmul.mubr.bf16.gmra.mrb[0].mxu0 %v2214
      %v2313 = vpop.f32.mrb[0].mxu0
      %v2314 = vadd.f32 0.0, %v2313
      %v2315 = vpop.f32.mrb[0].mxu0
      %v2316 = vpop.f32.mrb[0].mxu0
      %v2317 = vadd.f32 0.0, %v2316
      %v2318 = vpop.f32.mrb[0].mxu0
      %2319 = vdwg.mxu0
      %v2320 = vmul.f32 %v2258, 0.088388346
      %v2321 = vmul.f32 %v2261, 0.088388346
      %v2322 = vmul.f32 %v2266, 0.088388346
      %v2323 = vmul.f32 %v2269, 0.088388346
      %v2324 = vmul.f32 %v2274, 0.088388346
      %v2325 = vmul.f32 %v2277, 0.088388346
      %v2326 = vmul.f32 %v2282, 0.088388346
      %v2327 = vmul.f32 %v2285, 0.088388346
      %v2328 = vmul.f32 %v2290, 0.088388346
      %v2329 = vmul.f32 %v2293, 0.088388346
      %v2330 = vmul.f32 %v2298, 0.088388346
      %v2331 = vmul.f32 %v2301, 0.088388346
      %v2332 = vmul.f32 %v2306, 0.088388346
      %v2333 = vmul.f32 %v2309, 0.088388346
      %v2334 = vmul.f32 %v2314, 0.088388346
      %v2335 = vmul.f32 %v2317, 0.088388346
      %v2336 = vadd.f32 %v2320, %v1908
      %v2337 = vadd.f32 %v2321, %v1908
      %v2338 = vadd.f32 %v2322, %v1908
      %v2339 = vadd.f32 %v2323, %v1908
      %v2340 = vadd.f32 %v2324, %v1908
      %v2341 = vadd.f32 %v2325, %v1908
      %v2342 = vadd.f32 %v2326, %v1908
      %v2343 = vadd.f32 %v2327, %v1908
      %v2344 = vadd.f32 %v2328, %v1908
      %v2345 = vadd.f32 %v2329, %v1908
      %v2346 = vadd.f32 %v2330, %v1908
      %v2347 = vadd.f32 %v2331, %v1908
      %v2348 = vadd.f32 %v2332, %v1908
      %v2349 = vadd.f32 %v2333, %v1908
      %v2350 = vadd.f32 %v2334, %v1908
      %v2351 = vadd.f32 %v2335, %v1908
      %2352 = vmax.xlane.f32.xlu0 %v2336
      %v2353 = vpop.xlane.xlu0 %2352
      %2354 = vmax.xlane.f32.xlu0 %v2337
      %v2355 = vpop.xlane.xlu0 %2354
      %2356 = vmax.xlane.f32.xlu0 %v2338
      %v2357 = vpop.xlane.xlu0 %2356
      %2358 = vmax.xlane.f32.xlu0 %v2339
      %v2359 = vpop.xlane.xlu0 %2358
      %2360 = vmax.xlane.f32.xlu0 %v2340
      %v2361 = vpop.xlane.xlu0 %2360
      %2362 = vmax.xlane.f32.xlu0 %v2341
      %v2363 = vpop.xlane.xlu0 %2362
      %2364 = vmax.xlane.f32.xlu0 %v2342
      %v2365 = vpop.xlane.xlu0 %2364
      %2366 = vmax.xlane.f32.xlu0 %v2343
      %v2367 = vpop.xlane.xlu0 %2366
      %2368 = vmax.xlane.f32.xlu0 %v2344
      %v2369 = vpop.xlane.xlu0 %2368
      %2370 = vmax.xlane.f32.xlu0 %v2345
      %v2371 = vpop.xlane.xlu0 %2370
      %2372 = vmax.xlane.f32.xlu0 %v2346
      %v2373 = vpop.xlane.xlu0 %2372
      %2374 = vmax.xlane.f32.xlu0 %v2347
      %v2375 = vpop.xlane.xlu0 %2374
      %2376 = vmax.xlane.f32.xlu0 %v2348
      %v2377 = vpop.xlane.xlu0 %2376
      %2378 = vmax.xlane.f32.xlu0 %v2349
      %v2379 = vpop.xlane.xlu0 %2378
      %2380 = vmax.xlane.f32.xlu0 %v2350
      %v2381 = vpop.xlane.xlu0 %2380
      %2382 = vmax.xlane.f32.xlu0 %v2351
      %v2383 = vpop.xlane.xlu0 %2382
      %v2384 = vsub.f32 %v2336, %v2353
      %v2385 = vsub.f32 %v2337, %v2355
      %v2386 = vsub.f32 %v2338, %v2357
      %v2387 = vsub.f32 %v2339, %v2359
      %v2388 = vsub.f32 %v2340, %v2361
      %v2389 = vsub.f32 %v2341, %v2363
      %v2390 = vsub.f32 %v2342, %v2365
      %v2391 = vsub.f32 %v2343, %v2367
      %v2392 = vsub.f32 %v2344, %v2369
      %v2393 = vsub.f32 %v2345, %v2371
      %v2394 = vsub.f32 %v2346, %v2373
      %v2395 = vsub.f32 %v2347, %v2375
      %v2396 = vsub.f32 %v2348, %v2377
      %v2397 = vsub.f32 %v2349, %v2379
      %v2398 = vsub.f32 %v2350, %v2381
      %v2399 = vsub.f32 %v2351, %v2383
      %v2400 = vmul.f32 %v2384, 1.442695
      %v2401 = vpow.pop %v2400
      %v2402 = vmul.f32 %v2385, 1.442695
      %v2403 = vpow.pop %v2402
      %v2404 = vmul.f32 %v2386, 1.442695
      %v2405 = vpow.pop %v2404
      %v2406 = vmul.f32 %v2387, 1.442695
      %v2407 = vpow.pop %v2406
      %v2408 = vmul.f32 %v2388, 1.442695
      %v2409 = vpow.pop %v2408
      %v2410 = vmul.f32 %v2389, 1.442695
      %v2411 = vpow.pop %v2410
      %v2412 = vmul.f32 %v2390, 1.442695
      %v2413 = vpow.pop %v2412
      %v2414 = vmul.f32 %v2391, 1.442695
      %v2415 = vpow.pop %v2414
      %v2416 = vmul.f32 %v2392, 1.442695
      %v2417 = vpow.pop %v2416
      %v2418 = vmul.f32 %v2393, 1.442695
      %v2419 = vpow.pop %v2418
      %v2420 = vmul.f32 %v2394, 1.442695
      %v2421 = vpow.pop %v2420
      %v2422 = vmul.f32 %v2395, 1.442695
      %v2423 = vpow.pop %v2422
      %v2424 = vmul.f32 %v2396, 1.442695
      %v2425 = vpow.pop %v2424
      %v2426 = vmul.f32 %v2397, 1.442695
      %v2427 = vpow.pop %v2426
      %v2428 = vmul.f32 %v2398, 1.442695
      %v2429 = vpow.pop %v2428
      %v2430 = vmul.f32 %v2399, 1.442695
      %v2431 = vpow.pop %v2430
      %2432 = vadd.xlane.f32.xlu0 %v2401
      %v2433 = vpop.xlane.xlu0 %2432
      %2434 = vadd.xlane.f32.xlu0 %v2403
      %v2435 = vpop.xlane.xlu0 %2434
      %2436 = vadd.xlane.f32.xlu0 %v2405
      %v2437 = vpop.xlane.xlu0 %2436
      %2438 = vadd.xlane.f32.xlu0 %v2407
      %v2439 = vpop.xlane.xlu0 %2438
      %2440 = vadd.xlane.f32.xlu0 %v2409
      %v2441 = vpop.xlane.xlu0 %2440
      %2442 = vadd.xlane.f32.xlu0 %v2411
      %v2443 = vpop.xlane.xlu0 %2442
      %2444 = vadd.xlane.f32.xlu0 %v2413
      %v2445 = vpop.xlane.xlu0 %2444
      %2446 = vadd.xlane.f32.xlu0 %v2415
      %v2447 = vpop.xlane.xlu0 %2446
      %2448 = vadd.xlane.f32.xlu0 %v2417
      %v2449 = vpop.xlane.xlu0 %2448
      %2450 = vadd.xlane.f32.xlu0 %v2419
      %v2451 = vpop.xlane.xlu0 %2450
      %2452 = vadd.xlane.f32.xlu0 %v2421
      %v2453 = vpop.xlane.xlu0 %2452
      %2454 = vadd.xlane.f32.xlu0 %v2423
      %v2455 = vpop.xlane.xlu0 %2454
      %2456 = vadd.xlane.f32.xlu0 %v2425
      %v2457 = vpop.xlane.xlu0 %2456
      %2458 = vadd.xlane.f32.xlu0 %v2427
      %v2459 = vpop.xlane.xlu0 %2458
      %2460 = vadd.xlane.f32.xlu0 %v2429
      %v2461 = vpop.xlane.xlu0 %2460
      %2462 = vadd.xlane.f32.xlu0 %v2431
      %v2463 = vpop.xlane.xlu0 %2462
      %v2464 = vrcp.pop %v2433
      %v2465 = vrcp.pop %v2435
      %v2466 = vrcp.pop %v2437
      %v2467 = vrcp.pop %v2439
      %v2468 = vrcp.pop %v2441
      %v2469 = vrcp.pop %v2443
      %v2470 = vrcp.pop %v2445
      %v2471 = vrcp.pop %v2447
      %v2472 = vrcp.pop %v2449
      %v2473 = vrcp.pop %v2451
      %v2474 = vrcp.pop %v2453
      %v2475 = vrcp.pop %v2455
      %v2476 = vrcp.pop %v2457
      %v2477 = vrcp.pop %v2459
      %v2478 = vrcp.pop %v2461
      %v2479 = vrcp.pop %v2463
      %v2480 = vmul.f32 %v2401, %v2464
      %v2481 = vmul.f32 %v2403, %v2465
      %v2482 = vmul.f32 %v2405, %v2466
      %v2483 = vmul.f32 %v2407, %v2467
      %v2484 = vmul.f32 %v2409, %v2468
      %v2485 = vmul.f32 %v2411, %v2469
      %v2486 = vmul.f32 %v2413, %v2470
      %v2487 = vmul.f32 %v2415, %v2471
      %v2488 = vmul.f32 %v2417, %v2472
      %v2489 = vmul.f32 %v2419, %v2473
      %v2490 = vmul.f32 %v2421, %v2474
      %v2491 = vmul.f32 %v2423, %v2475
      %v2492 = vmul.f32 %v2425, %v2476
      %v2493 = vmul.f32 %v2427, %v2477
      %v2494 = vmul.f32 %v2429, %v2478
      %v2495 = vmul.f32 %v2431, %v2479
      %v2496 = vpack.c.bf16 %v2481, %v2480
      %v2497 = vpack.c.bf16 %v2483, %v2482
      %v2498 = vpack.c.bf16 %v2485, %v2484
      %v2499 = vpack.c.bf16 %v2487, %v2486
      %v2500 = vpack.c.bf16 %v2489, %v2488
      %v2501 = vpack.c.bf16 %v2491, %v2490
      %v2502 = vpack.c.bf16 %v2493, %v2492
      %v2503 = vpack.c.bf16 %v2495, %v2494
      %v2504 = vpack.c.bf16 %v1703, %v1699
      %v2505 = vpack.c.bf16 %v1713, %v1709
      %v2506 = vpack.c.bf16 %v1723, %v1719
      %v2507 = vpack.c.bf16 %v1733, %v1729
      %v2508 = vpack.c.bf16 %v1743, %v1739
      %v2509 = vpack.c.bf16 %v1753, %v1749
      %v2510 = vpack.c.bf16 %v1763, %v1759
      %v2511 = vpack.c.bf16 %v1773, %v1769
      %2512 = vmatprep.subr.bf16.mxu0 0
      %2513 = vmatpush1.bf16.msra.mxu0 %v2504
      %2514 = vmatprep.subr.bf16.mxu0 0
      %2515 = vmatpush1.bf16.msra.mxu0 %v2505
      %2516 = vmatprep.subr.bf16.mxu0 0
      %2517 = vmatpush1.bf16.msra.mxu0 %v2506
      %2518 = vmatprep.subr.bf16.mxu0 0
      %2519 = vmatpush1.bf16.msra.mxu0 %v2507
      %2520 = vmatprep.subr.bf16.mxu0 0
      %2521 = vmatpush1.bf16.msra.mxu0 %v2508
      %2522 = vmatprep.subr.bf16.mxu0 0
      %2523 = vmatpush1.bf16.msra.mxu0 %v2509
      %2524 = vmatprep.subr.bf16.mxu0 0
      %2525 = vmatpush1.bf16.msra.mxu0 %v2510
      %2526 = vmatprep.subr.bf16.mxu0 0
      %2527 = vmatpush1.bf16.msra.mxu0 %v2511
      %2528 = vmatprep.subr.bf16.mxu0 0
      %2529 = vmatpush1.bf16.msra.mxu0 0
      %2530 = vmatprep.subr.bf16.mxu0 0
      %2531 = vmatpush1.bf16.msra.mxu0 0
      %2532 = vmatprep.subr.bf16.mxu0 0
      %2533 = vmatpush1.bf16.msra.mxu0 0
      %2534 = vmatprep.subr.bf16.mxu0 0
      %2535 = vmatpush1.bf16.msra.mxu0 0
      %2536 = vmatprep.subr.bf16.mxu0 0
      %2537 = vmatpush1.bf16.msra.mxu0 0
      %2538 = vmatprep.subr.bf16.mxu0 0
      %2539 = vmatpush1.bf16.msra.mxu0 0
      %2540 = vmatprep.subr.bf16.mxu0 0
      %2541 = vmatpush1.bf16.msra.mxu0 0
      %2542 = vmatprep.subr.bf16.mxu0 0
      %2543 = vmatpush1.bf16.msra.mxu0 0
      %2544 = vmatprep.mubr.bf16.mxu0 0
      %2545 = vmatmul.mubr.bf16.gmra.mrb[0].mxu0 %v2496
      %v2546 = vpop.f32.mrb[0].mxu0
      %v2547 = vadd.f32 0.0, %v2546
      %v2548 = vpop.f32.mrb[0].mxu0
      %v2549 = vpop.f32.mrb[0].mxu0
      %v2550 = vadd.f32 0.0, %v2549
      %v2551 = vpop.f32.mrb[0].mxu0
      %2552 = vmatprep.mubr.bf16.mxu0 0
      %2553 = vmatmul.mubr.bf16.gmra.mrb[0].mxu0 %v2497
      %v2554 = vpop.f32.mrb[0].mxu0
      %v2555 = vadd.f32 0.0, %v2554
      %v2556 = vpop.f32.mrb[0].mxu0
      %v2557 = vpop.f32.mrb[0].mxu0
      %v2558 = vadd.f32 0.0, %v2557
      %v2559 = vpop.f32.mrb[0].mxu0
      %2560 = vmatprep.mubr.bf16.mxu0 0
      %2561 = vmatmul.mubr.bf16.gmra.mrb[0].mxu0 %v2498
      %v2562 = vpop.f32.mrb[0].mxu0
      %v2563 = vadd.f32 0.0, %v2562
      %v2564 = vpop.f32.mrb[0].mxu0
      %v2565 = vpop.f32.mrb[0].mxu0
      %v2566 = vadd.f32 0.0, %v2565
      %v2567 = vpop.f32.mrb[0].mxu0
      %2568 = vmatprep.mubr.bf16.mxu0 0
      %2569 = vmatmul.mubr.bf16.gmra.mrb[0].mxu0 %v2499
      %v2570 = vpop.f32.mrb[0].mxu0
      %v2571 = vadd.f32 0.0, %v2570
      %v2572 = vpop.f32.mrb[0].mxu0
      %v2573 = vpop.f32.mrb[0].mxu0
      %v2574 = vadd.f32 0.0, %v2573
      %v2575 = vpop.f32.mrb[0].mxu0
      %2576 = vmatprep.mubr.bf16.mxu0 0
      %2577 = vmatmul.mubr.bf16.gmra.mrb[0].mxu0 %v2500
      %v2578 = vpop.f32.mrb[0].mxu0
      %v2579 = vadd.f32 0.0, %v2578
      %v2580 = vpop.f32.mrb[0].mxu0
      %v2581 = vpop.f32.mrb[0].mxu0
      %v2582 = vadd.f32 0.0, %v2581
      %v2583 = vpop.f32.mrb[0].mxu0
      %2584 = vmatprep.mubr.bf16.mxu0 0
      %2585 = vmatmul.mubr.bf16.gmra.mrb[0].mxu0 %v2501
      %v2586 = vpop.f32.mrb[0].mxu0
      %v2587 = vadd.f32 0.0, %v2586
      %v2588 = vpop.f32.mrb[0].mxu0
      %v2589 = vpop.f32.mrb[0].mxu0
      %v2590 = vadd.f32 0.0, %v2589
      %v2591 = vpop.f32.mrb[0].mxu0
      %2592 = vmatprep.mubr.bf16.mxu0 0
      %2593 = vmatmul.mubr.bf16.gmra.mrb[0].mxu0 %v2502
      %v2594 = vpop.f32.mrb[0].mxu0
      %v2595 = vadd.f32 0.0, %v2594
      %v2596 = vpop.f32.mrb[0].mxu0
      %v2597 = vpop.f32.mrb[0].mxu0
      %v2598 = vadd.f32 0.0, %v2597
      %v2599 = vpop.f32.mrb[0].mxu0
      %2600 = vmatprep.mubr.bf16.mxu0 0
      %2601 = vmatmul.mubr.bf16.gmra.mrb[0].mxu0 %v2503
      %v2602 = vpop.f32.mrb[0].mxu0
      %v2603 = vadd.f32 0.0, %v2602
      %v2604 = vpop.f32.mrb[0].mxu0
      %v2605 = vpop.f32.mrb[0].mxu0
      %v2606 = vadd.f32 0.0, %v2605
      %v2607 = vpop.f32.mrb[0].mxu0
      %2608 = vdwg.mxu0
      %v2609 = vpack.c.bf16 %v2550, %v2547
      %v2610 = vpack.c.bf16 %v2558, %v2555
      %v2611 = vpack.c.bf16 %v2566, %v2563
      %v2612 = vpack.c.bf16 %v2574, %v2571
      %v2613 = vpack.c.bf16 %v2582, %v2579
      %v2614 = vpack.c.bf16 %v2590, %v2587
      %v2615 = vpack.c.bf16 %v2598, %v2595
      %v2616 = vpack.c.bf16 %v2606, %v2603
      %v2617 = vld [vmem:[%s666 + $0x80] sm:$0xff]
      %v2618 = vld [vmem:[%s666 + $0x88] sm:$0xff]
      %v2619 = vld [vmem:[%s666 + $0x90] sm:$0xff]
      %v2620 = vld [vmem:[%s666 + $0x98] sm:$0xff]
      %v2621 = vld [vmem:[%s666 + $0xa0] sm:$0xff]
      %v2622 = vld [vmem:[%s666 + $0xa8] sm:$0xff]
      %v2623 = vld [vmem:[%s666 + $0xb0] sm:$0xff]
      %v2624 = vld [vmem:[%s666 + $0xb8] sm:$0xff]
      %v2625 = vld [vmem:[%s666 + $0xc0] sm:$0xff]
      %v2626 = vld [vmem:[%s666 + $0xc8] sm:$0xff]
      %v2627 = vld [vmem:[%s666 + $0xd0] sm:$0xff]
      %v2628 = vld [vmem:[%s666 + $0xd8] sm:$0xff]
      %v2629 = vld [vmem:[%s666 + $0xe0] sm:$0xff]
      %v2630 = vld [vmem:[%s666 + $0xe8] sm:$0xff]
      %v2631 = vld [vmem:[%s666 + $0xf0] sm:$0xff]
      %v2632 = vld [vmem:[%s666 + $0xf8] sm:$0xff]
      %v2649 = vunpack.c.l.b16 %v2617
      %v2650 = vunpack.c.h.b16 %v2617
      %v2651 = vunpack.c.l.b16 %v2618
      %v2652 = vunpack.c.h.b16 %v2618
      %v2653 = vunpack.c.l.b16 %v2619
      %v2654 = vunpack.c.h.b16 %v2619
      %v2655 = vunpack.c.l.b16 %v2620
      %v2656 = vunpack.c.h.b16 %v2620
      %v2657 = vunpack.c.l.b16 %v2621
      %v2658 = vunpack.c.h.b16 %v2621
      %v2659 = vunpack.c.l.b16 %v2622
      %v2660 = vunpack.c.h.b16 %v2622
      %v2661 = vunpack.c.l.b16 %v2623
      %v2662 = vunpack.c.h.b16 %v2623
      %v2663 = vunpack.c.l.b16 %v2624
      %v2664 = vunpack.c.h.b16 %v2624
      %v2665 = vunpack.c.l.b16 %v2625
      %v2666 = vunpack.c.h.b16 %v2625
      %v2667 = vunpack.c.l.b16 %v2626
      %v2668 = vunpack.c.h.b16 %v2626
      %v2669 = vunpack.c.l.b16 %v2627
      %v2670 = vunpack.c.h.b16 %v2627
      %v2671 = vunpack.c.l.b16 %v2628
      %v2672 = vunpack.c.h.b16 %v2628
      %v2673 = vunpack.c.l.b16 %v2629
      %v2674 = vunpack.c.h.b16 %v2629
      %v2675 = vunpack.c.l.b16 %v2630
      %v2676 = vunpack.c.h.b16 %v2630
      %v2677 = vunpack.c.l.b16 %v2631
      %v2678 = vunpack.c.h.b16 %v2631
      %v2679 = vunpack.c.l.b16 %v2632
      %v2680 = vunpack.c.h.b16 %v2632
      %v2681 = vpack.c.b16 %v2651, %v2649
      %v2682 = vpack.c.b16 %v2652, %v2650
      %v2683 = vpack.c.b16 %v2655, %v2653
      %v2684 = vpack.c.b16 %v2656, %v2654
      %v2685 = vpack.c.b16 %v2659, %v2657
      %v2686 = vpack.c.b16 %v2660, %v2658
      %v2687 = vpack.c.b16 %v2663, %v2661
      %v2688 = vpack.c.b16 %v2664, %v2662
      %v2689 = vpack.c.b16 %v2667, %v2665
      %v2690 = vpack.c.b16 %v2668, %v2666
      %v2691 = vpack.c.b16 %v2671, %v2669
      %v2692 = vpack.c.b16 %v2672, %v2670
      %v2693 = vpack.c.b16 %v2675, %v2673
      %v2694 = vpack.c.b16 %v2676, %v2674
      %v2695 = vpack.c.b16 %v2679, %v2677
      %v2696 = vpack.c.b16 %v2680, %v2678
      %2713 = vmatprep.subr.bf16.mxu0 %v2682
      %2714 = vmatpush1.bf16.msra.mxu0 %v2681
      %2715 = vmatprep.subr.bf16.mxu0 %v2684
      %2716 = vmatpush1.bf16.msra.mxu0 %v2683
      %2717 = vmatprep.subr.bf16.mxu0 %v2686
      %2718 = vmatpush1.bf16.msra.mxu0 %v2685
      %2719 = vmatprep.subr.bf16.mxu0 %v2688
      %2720 = vmatpush1.bf16.msra.mxu0 %v2687
      %2721 = vmatprep.subr.bf16.mxu0 %v2690
      %2722 = vmatpush1.bf16.msra.mxu0 %v2689
      %2723 = vmatprep.subr.bf16.mxu0 %v2692
      %2724 = vmatpush1.bf16.msra.mxu0 %v2691
      %2725 = vmatprep.subr.bf16.mxu0 %v2694
      %2726 = vmatpush1.bf16.msra.mxu0 %v2693
      %2727 = vmatprep.subr.bf16.mxu0 %v2696
      %2728 = vmatpush1.bf16.msra.mxu0 %v2695
      %2729 = vmatprep.subr.bf16.mxu0 0
      %2730 = vmatpush1.bf16.msra.mxu0 0
      %2731 = vmatprep.subr.bf16.mxu0 0
      %2732 = vmatpush1.bf16.msra.mxu0 0
      %2733 = vmatprep.subr.bf16.mxu0 0
      %2734 = vmatpush1.bf16.msra.mxu0 0
      %2735 = vmatprep.subr.bf16.mxu0 0
      %2736 = vmatpush1.bf16.msra.mxu0 0
      %2737 = vmatprep.subr.bf16.mxu0 0
      %2738 = vmatpush1.bf16.msra.mxu0 0
      %2739 = vmatprep.subr.bf16.mxu0 0
      %2740 = vmatpush1.bf16.msra.mxu0 0
      %2741 = vmatprep.subr.bf16.mxu0 0
      %2742 = vmatpush1.bf16.msra.mxu0 0
      %2743 = vmatprep.subr.bf16.mxu0 0
      %2744 = vmatpush1.bf16.msra.mxu0 0
      %2745 = vmatprep.mubr.bf16.mxu0 0
      %2746 = vmatmul.mubr.bf16.gmra.mrb[0].mxu0 %v2609
      %v2747 = vpop.f32.mrb[0].mxu0
      %v2748 = vadd.f32 0.0, %v2747
      %v2749 = vpop.f32.mrb[0].mxu0
      %v2750 = vadd.f32 0.0, %v2749
      %v2751 = vpop.f32.mrb[0].mxu0
      %v2752 = vadd.f32 0.0, %v2751
      %v2753 = vpop.f32.mrb[0].mxu0
      %v2754 = vadd.f32 0.0, %v2753
      %2755 = vmatprep.mubr.bf16.mxu0 0
      %2756 = vmatmul.mubr.bf16.gmra.mrb[0].mxu0 %v2610
      %v2757 = vpop.f32.mrb[0].mxu0
      %v2758 = vadd.f32 0.0, %v2757
      %v2759 = vpop.f32.mrb[0].mxu0
      %v2760 = vadd.f32 0.0, %v2759
      %v2761 = vpop.f32.mrb[0].mxu0
      %v2762 = vadd.f32 0.0, %v2761
      %v2763 = vpop.f32.mrb[0].mxu0
      %v2764 = vadd.f32 0.0, %v2763
      %2765 = vmatprep.mubr.bf16.mxu0 0
      %2766 = vmatmul.mubr.bf16.gmra.mrb[0].mxu0 %v2611
      %v2767 = vpop.f32.mrb[0].mxu0
      %v2768 = vadd.f32 0.0, %v2767
      %v2769 = vpop.f32.mrb[0].mxu0
      %v2770 = vadd.f32 0.0, %v2769
      %v2771 = vpop.f32.mrb[0].mxu0
      %v2772 = vadd.f32 0.0, %v2771
      %v2773 = vpop.f32.mrb[0].mxu0
      %v2774 = vadd.f32 0.0, %v2773
      %2775 = vmatprep.mubr.bf16.mxu0 0
      %2776 = vmatmul.mubr.bf16.gmra.mrb[0].mxu0 %v2612
      %v2777 = vpop.f32.mrb[0].mxu0
      %v2778 = vadd.f32 0.0, %v2777
      %v2779 = vpop.f32.mrb[0].mxu0
      %v2780 = vadd.f32 0.0, %v2779
      %v2781 = vpop.f32.mrb[0].mxu0
      %v2782 = vadd.f32 0.0, %v2781
      %v2783 = vpop.f32.mrb[0].mxu0
      %v2784 = vadd.f32 0.0, %v2783
      %2785 = vmatprep.mubr.bf16.mxu0 0
      %2786 = vmatmul.mubr.bf16.gmra.mrb[0].mxu0 %v2613
      %v2787 = vpop.f32.mrb[0].mxu0
      %v2788 = vadd.f32 0.0, %v2787
      %v2789 = vpop.f32.mrb[0].mxu0
      %v2790 = vadd.f32 0.0, %v2789
      %v2791 = vpop.f32.mrb[0].mxu0
      %v2792 = vadd.f32 0.0, %v2791
      %v2793 = vpop.f32.mrb[0].mxu0
      %v2794 = vadd.f32 0.0, %v2793
      %2795 = vmatprep.mubr.bf16.mxu0 0
      %2796 = vmatmul.mubr.bf16.gmra.mrb[0].mxu0 %v2614
      %v2797 = vpop.f32.mrb[0].mxu0
      %v2798 = vadd.f32 0.0, %v2797
      %v2799 = vpop.f32.mrb[0].mxu0
      %v2800 = vadd.f32 0.0, %v2799
      %v2801 = vpop.f32.mrb[0].mxu0
      %v2802 = vadd.f32 0.0, %v2801
      %v2803 = vpop.f32.mrb[0].mxu0
      %v2804 = vadd.f32 0.0, %v2803
      %2805 = vmatprep.mubr.bf16.mxu0 0
      %2806 = vmatmul.mubr.bf16.gmra.mrb[0].mxu0 %v2615
      %v2807 = vpop.f32.mrb[0].mxu0
      %v2808 = vadd.f32 0.0, %v2807
      %v2809 = vpop.f32.mrb[0].mxu0
      %v2810 = vadd.f32 0.0, %v2809
      %v2811 = vpop.f32.mrb[0].mxu0
      %v2812 = vadd.f32 0.0, %v2811
      %v2813 = vpop.f32.mrb[0].mxu0
      %v2814 = vadd.f32 0.0, %v2813
      %2815 = vmatprep.mubr.bf16.mxu0 0
      %2816 = vmatmul.mubr.bf16.gmra.mrb[0].mxu0 %v2616
      %v2817 = vpop.f32.mrb[0].mxu0
      %v2818 = vadd.f32 0.0, %v2817
      %v2819 = vpop.f32.mrb[0].mxu0
      %v2820 = vadd.f32 0.0, %v2819
      %v2821 = vpop.f32.mrb[0].mxu0
      %v2822 = vadd.f32 0.0, %v2821
      %v2823 = vpop.f32.mrb[0].mxu0
      %v2824 = vadd.f32 0.0, %v2823
      %2825 = vdwg.mxu0
      %v2842 = vunpack.c.l.b16 %v2191
      %v2843 = vunpack.c.h.b16 %v2191
      %v2844 = vunpack.c.l.b16 %v2192
      %v2845 = vunpack.c.h.b16 %v2192
      %v2846 = vunpack.c.l.b16 %v2193
      %v2847 = vunpack.c.h.b16 %v2193
      %v2848 = vunpack.c.l.b16 %v2194
      %v2849 = vunpack.c.h.b16 %v2194
      %v2850 = vunpack.c.l.b16 %v2195
      %v2851 = vunpack.c.h.b16 %v2195
      %v2852 = vunpack.c.l.b16 %v2196
      %v2853 = vunpack.c.h.b16 %v2196
      %v2854 = vunpack.c.l.b16 %v2197
      %v2855 = vunpack.c.h.b16 %v2197
      %v2856 = vunpack.c.l.b16 %v2198
      %v2857 = vunpack.c.h.b16 %v2198
      %v2858 = vunpack.c.l.b16 %v2199
      %v2859 = vunpack.c.h.b16 %v2199
      %v2860 = vunpack.c.l.b16 %v2200
      %v2861 = vunpack.c.h.b16 %v2200
      %v2862 = vunpack.c.l.b16 %v2201
      %v2863 = vunpack.c.h.b16 %v2201
      %v2864 = vunpack.c.l.b16 %v2202
      %v2865 = vunpack.c.h.b16 %v2202
      %v2866 = vunpack.c.l.b16 %v2203
      %v2867 = vunpack.c.h.b16 %v2203
      %v2868 = vunpack.c.l.b16 %v2204
      %v2869 = vunpack.c.h.b16 %v2204
      %v2870 = vunpack.c.l.b16 %v2205
      %v2871 = vunpack.c.h.b16 %v2205
      %v2872 = vunpack.c.l.b16 %v2206
      %v2873 = vunpack.c.h.b16 %v2206
      %v2874 = vpack.c.b16 %v2844, %v2842
      %v2875 = vpack.c.b16 %v2845, %v2843
      %v2876 = vpack.c.b16 %v2848, %v2846
      %v2877 = vpack.c.b16 %v2849, %v2847
      %v2878 = vpack.c.b16 %v2852, %v2850
      %v2879 = vpack.c.b16 %v2853, %v2851
      %v2880 = vpack.c.b16 %v2856, %v2854
      %v2881 = vpack.c.b16 %v2857, %v2855
      %v2882 = vpack.c.b16 %v2860, %v2858
      %v2883 = vpack.c.b16 %v2861, %v2859
      %v2884 = vpack.c.b16 %v2864, %v2862
      %v2885 = vpack.c.b16 %v2865, %v2863
      %v2886 = vpack.c.b16 %v2868, %v2866
      %v2887 = vpack.c.b16 %v2869, %v2867
      %v2888 = vpack.c.b16 %v2872, %v2870
      %v2889 = vpack.c.b16 %v2873, %v2871
      %2906 = vmatprep.subr.bf16.mxu0 %v2875
      %2907 = vmatpush1.bf16.msra.mxu0 %v2874
      %2908 = vmatprep.subr.bf16.mxu0 %v2877
      %2909 = vmatpush1.bf16.msra.mxu0 %v2876
      %2910 = vmatprep.subr.bf16.mxu0 %v2879
      %2911 = vmatpush1.bf16.msra.mxu0 %v2878
      %2912 = vmatprep.subr.bf16.mxu0 %v2881
      %2913 = vmatpush1.bf16.msra.mxu0 %v2880
      %2914 = vmatprep.subr.bf16.mxu0 %v2883
      %2915 = vmatpush1.bf16.msra.mxu0 %v2882
      %2916 = vmatprep.subr.bf16.mxu0 %v2885
      %2917 = vmatpush1.bf16.msra.mxu0 %v2884
      %2918 = vmatprep.subr.bf16.mxu0 %v2887
      %2919 = vmatpush1.bf16.msra.mxu0 %v2886
      %2920 = vmatprep.subr.bf16.mxu0 %v2889
      %2921 = vmatpush1.bf16.msra.mxu0 %v2888
      %2922 = vmatprep.subr.bf16.mxu0 0
      %2923 = vmatpush1.bf16.msra.mxu0 0
      %2924 = vmatprep.subr.bf16.mxu0 0
      %2925 = vmatpush1.bf16.msra.mxu0 0
      %2926 = vmatprep.subr.bf16.mxu0 0
      %2927 = vmatpush1.bf16.msra.mxu0 0
      %2928 = vmatprep.subr.bf16.mxu0 0
      %2929 = vmatpush1.bf16.msra.mxu0 0
      %2930 = vmatprep.subr.bf16.mxu0 0
      %2931 = vmatpush1.bf16.msra.mxu0 0
      %2932 = vmatprep.subr.bf16.mxu0 0
      %2933 = vmatpush1.bf16.msra.mxu0 0
      %2934 = vmatprep.subr.bf16.mxu0 0
      %2935 = vmatpush1.bf16.msra.mxu0 0
      %2936 = vmatprep.subr.bf16.mxu0 0
      %2937 = vmatpush1.bf16.msra.mxu0 0
      %2938 = vmatprep.mubr.bf16.mxu0 0
      %2939 = vmatmul.mubr.bf16.gmra.mrb[0].mxu0 %v2183
      %v2940 = vpop.f32.mrb[0].mxu0
      %v2941 = vadd.f32 %v2748, %v2940
      %v2942 = vpop.f32.mrb[0].mxu0
      %v2943 = vadd.f32 %v2750, %v2942
      %v2944 = vpop.f32.mrb[0].mxu0
      %v2945 = vadd.f32 %v2752, %v2944
      %v2946 = vpop.f32.mrb[0].mxu0
      %v2947 = vadd.f32 %v2754, %v2946
      %2948 = vmatprep.mubr.bf16.mxu0 0
      %2949 = vmatmul.mubr.bf16.gmra.mrb[0].mxu0 %v2184
      %v2950 = vpop.f32.mrb[0].mxu0
      %v2951 = vadd.f32 %v2758, %v2950
      %v2952 = vpop.f32.mrb[0].mxu0
      %v2953 = vadd.f32 %v2760, %v2952
      %v2954 = vpop.f32.mrb[0].mxu0
      %v2955 = vadd.f32 %v2762, %v2954
      %v2956 = vpop.f32.mrb[0].mxu0
      %v2957 = vadd.f32 %v2764, %v2956
      %2958 = vmatprep.mubr.bf16.mxu0 0
      %2959 = vmatmul.mubr.bf16.gmra.mrb[0].mxu0 %v2185
      %v2960 = vpop.f32.mrb[0].mxu0
      %v2961 = vadd.f32 %v2768, %v2960
      %v2962 = vpop.f32.mrb[0].mxu0
      %v2963 = vadd.f32 %v2770, %v2962
      %v2964 = vpop.f32.mrb[0].mxu0
      %v2965 = vadd.f32 %v2772, %v2964
      %v2966 = vpop.f32.mrb[0].mxu0
      %v2967 = vadd.f32 %v2774, %v2966
      %2968 = vmatprep.mubr.bf16.mxu0 0
      %2969 = vmatmul.mubr.bf16.gmra.mrb[0].mxu0 %v2186
      %v2970 = vpop.f32.mrb[0].mxu0
      %v2971 = vadd.f32 %v2778, %v2970
      %v2972 = vpop.f32.mrb[0].mxu0
      %v2973 = vadd.f32 %v2780, %v2972
      %v2974 = vpop.f32.mrb[0].mxu0
      %v2975 = vadd.f32 %v2782, %v2974
      %v2976 = vpop.f32.mrb[0].mxu0
      %v2977 = vadd.f32 %v2784, %v2976
      %2978 = vmatprep.mubr.bf16.mxu0 0
      %2979 = vmatmul.mubr.bf16.gmra.mrb[0].mxu0 %v2187
      %v2980 = vpop.f32.mrb[0].mxu0
      %v2981 = vadd.f32 %v2788, %v2980
      %v2982 = vpop.f32.mrb[0].mxu0
      %v2983 = vadd.f32 %v2790, %v2982
      %v2984 = vpop.f32.mrb[0].mxu0
      %v2985 = vadd.f32 %v2792, %v2984
      %v2986 = vpop.f32.mrb[0].mxu0
      %v2987 = vadd.f32 %v2794, %v2986
      %2988 = vmatprep.mubr.bf16.mxu0 0
      %2989 = vmatmul.mubr.bf16.gmra.mrb[0].mxu0 %v2188
      %v2990 = vpop.f32.mrb[0].mxu0
      %v2991 = vadd.f32 %v2798, %v2990
      %v2992 = vpop.f32.mrb[0].mxu0
      %v2993 = vadd.f32 %v2800, %v2992
      %v2994 = vpop.f32.mrb[0].mxu0
      %v2995 = vadd.f32 %v2802, %v2994
      %v2996 = vpop.f32.mrb[0].mxu0
      %v2997 = vadd.f32 %v2804, %v2996
      %2998 = vmatprep.mubr.bf16.mxu0 0
      %2999 = vmatmul.mubr.bf16.gmra.mrb[0].mxu0 %v2189
      %v3000 = vpop.f32.mrb[0].mxu0
      %v3001 = vadd.f32 %v2808, %v3000
      %v3002 = vpop.f32.mrb[0].mxu0
      %v3003 = vadd.f32 %v2810, %v3002
      %v3004 = vpop.f32.mrb[0].mxu0
      %v3005 = vadd.f32 %v2812, %v3004
      %v3006 = vpop.f32.mrb[0].mxu0
      %v3007 = vadd.f32 %v2814, %v3006
      %3008 = vmatprep.mubr.bf16.mxu0 0
      %3009 = vmatmul.mubr.bf16.gmra.mrb[0].mxu0 %v2190
      %v3010 = vpop.f32.mrb[0].mxu0
      %v3011 = vadd.f32 %v2818, %v3010
      %v3012 = vpop.f32.mrb[0].mxu0
      %v3013 = vadd.f32 %v2820, %v3012
      %v3014 = vpop.f32.mrb[0].mxu0
      %v3015 = vadd.f32 %v2822, %v3014
      %v3016 = vpop.f32.mrb[0].mxu0
      %v3017 = vadd.f32 %v2824, %v3016
      %3018 = vdwg.mxu0
      %v3019 = vld [vmem:[%s670] sm:$0x3]
      %v3021 = vlaneseq
      %v3022 = vshrl.u32 %v3021, 7
      %v3023 = vsub.s32 0, %v3022
      %v3024 = vrot.slane %v3019, %v3023
      %v3025 = vlaneseq
      %v3026 = vshrl.u32 %v3025, 7
      %v3027 = vsub.s32 1, %v3026
      %v3028 = vrot.slane %v3019, %v3027
      %v3031 = vadd.f32 %v2941, %v3024
      %v3032 = vadd.f32 %v2943, %v3028
      %v3033 = vadd.f32 %v2945, %v3024
      %v3034 = vadd.f32 %v2947, %v3028
      %v3035 = vadd.f32 %v2951, %v3024
      %v3036 = vadd.f32 %v2953, %v3028
      %v3037 = vadd.f32 %v2955, %v3024
      %v3038 = vadd.f32 %v2957, %v3028
      %v3039 = vadd.f32 %v2961, %v3024
      %v3040 = vadd.f32 %v2963, %v3028
      %v3041 = vadd.f32 %v2965, %v3024
      %v3042 = vadd.f32 %v2967, %v3028
      %v3043 = vadd.f32 %v2971, %v3024
      %v3044 = vadd.f32 %v2973, %v3028
      %v3045 = vadd.f32 %v2975, %v3024
      %v3046 = vadd.f32 %v2977, %v3028
      %v3047 = vadd.f32 %v2981, %v3024
      %v3048 = vadd.f32 %v2983, %v3028
      %v3049 = vadd.f32 %v2985, %v3024
      %v3050 = vadd.f32 %v2987, %v3028
      %v3051 = vadd.f32 %v2991, %v3024
      %v3052 = vadd.f32 %v2993, %v3028
      %v3053 = vadd.f32 %v2995, %v3024
      %v3054 = vadd.f32 %v2997, %v3028
      %v3055 = vadd.f32 %v3001, %v3024
      %v3056 = vadd.f32 %v3003, %v3028
      %v3057 = vadd.f32 %v3005, %v3024
      %v3058 = vadd.f32 %v3007, %v3028
      %v3059 = vadd.f32 %v3011, %v3024
      %v3060 = vadd.f32 %v3013, %v3028
      %v3061 = vadd.f32 %v3015, %v3024
      %v3062 = vadd.f32 %v3017, %v3028
      %v3063 = vadd.f32 %v3031, %v779
      %v3064 = vadd.f32 %v3032, %v780
      %v3065 = vadd.f32 %v3033, %v781
      %v3066 = vadd.f32 %v3034, %v782
      %v3067 = vadd.f32 %v3035, %v783
      %v3068 = vadd.f32 %v3036, %v784
      %v3069 = vadd.f32 %v3037, %v785
      %v3070 = vadd.f32 %v3038, %v786
      %v3071 = vadd.f32 %v3039, %v787
      %v3072 = vadd.f32 %v3040, %v788
      %v3073 = vadd.f32 %v3041, %v789
      %v3074 = vadd.f32 %v3042, %v790
      %v3075 = vadd.f32 %v3043, %v791
      %v3076 = vadd.f32 %v3044, %v792
      %v3077 = vadd.f32 %v3045, %v793
      %v3078 = vadd.f32 %v3046, %v794
      %v3079 = vadd.f32 %v3047, %v795
      %v3080 = vadd.f32 %v3048, %v796
      %v3081 = vadd.f32 %v3049, %v797
      %v3082 = vadd.f32 %v3050, %v798
      %v3083 = vadd.f32 %v3051, %v799
      %v3084 = vadd.f32 %v3052, %v800
      %v3085 = vadd.f32 %v3053, %v801
      %v3086 = vadd.f32 %v3054, %v802
      %v3087 = vadd.f32 %v3055, %v803
      %v3088 = vadd.f32 %v3056, %v804
      %v3089 = vadd.f32 %v3057, %v805
      %v3090 = vadd.f32 %v3058, %v806
      %v3091 = vadd.f32 %v3059, %v807
      %v3092 = vadd.f32 %v3060, %v808
      %v3093 = vadd.f32 %v3061, %v809
      %v3094 = vadd.f32 %v3062, %v810
      %v3095 = vld [vmem:[%s674] sm:$0x3]
      %v3096 = vld [vmem:[%s678] sm:$0x3]
      %v3097 = vadd.f32 %v3063, %v3064
      %3098 = vadd.xlane.f32.xlu0 %v3097
      %v3099 = vpop.xlane.xlu0 %3098
      %v3100 = vadd.f32 %v3065, %v3066
      %3101 = vadd.xlane.f32.xlu0 %v3100
      %v3102 = vpop.xlane.xlu0 %3101
      %v3103 = vadd.f32 %v3067, %v3068
      %3104 = vadd.xlane.f32.xlu0 %v3103
      %v3105 = vpop.xlane.xlu0 %3104
      %v3106 = vadd.f32 %v3069, %v3070
      %3107 = vadd.xlane.f32.xlu0 %v3106
      %v3108 = vpop.xlane.xlu0 %3107
      %v3109 = vadd.f32 %v3071, %v3072
      %3110 = vadd.xlane.f32.xlu0 %v3109
      %v3111 = vpop.xlane.xlu0 %3110
      %v3112 = vadd.f32 %v3073, %v3074
      %3113 = vadd.xlane.f32.xlu0 %v3112
      %v3114 = vpop.xlane.xlu0 %3113
      %v3115 = vadd.f32 %v3075, %v3076
      %3116 = vadd.xlane.f32.xlu0 %v3115
      %v3117 = vpop.xlane.xlu0 %3116
      %v3118 = vadd.f32 %v3077, %v3078
      %3119 = vadd.xlane.f32.xlu0 %v3118
      %v3120 = vpop.xlane.xlu0 %3119
      %v3121 = vadd.f32 %v3079, %v3080
      %3122 = vadd.xlane.f32.xlu0 %v3121
      %v3123 = vpop.xlane.xlu0 %3122
      %v3124 = vadd.f32 %v3081, %v3082
      %3125 = vadd.xlane.f32.xlu0 %v3124
      %v3126 = vpop.xlane.xlu0 %3125
      %v3127 = vadd.f32 %v3083, %v3084
      %3128 = vadd.xlane.f32.xlu0 %v3127
      %v3129 = vpop.xlane.xlu0 %3128
      %v3130 = vadd.f32 %v3085, %v3086
      %3131 = vadd.xlane.f32.xlu0 %v3130
      %v3132 = vpop.xlane.xlu0 %3131
      %v3133 = vadd.f32 %v3087, %v3088
      %3134 = vadd.xlane.f32.xlu0 %v3133
      %v3135 = vpop.xlane.xlu0 %3134
      %v3136 = vadd.f32 %v3089, %v3090
      %3137 = vadd.xlane.f32.xlu0 %v3136
      %v3138 = vpop.xlane.xlu0 %3137
      %v3139 = vadd.f32 %v3091, %v3092
      %3140 = vadd.xlane.f32.xlu0 %v3139
      %v3141 = vpop.xlane.xlu0 %3140
      %v3142 = vadd.f32 %v3093, %v3094
      %3143 = vadd.xlane.f32.xlu0 %v3142
      %v3144 = vpop.xlane.xlu0 %3143
      %v3145 = vrcp.pop 256.0
      %v3146 = vmul.f32 %v3099, %v3145
      %v3147 = vmul.f32 %v3102, %v3145
      %v3148 = vmul.f32 %v3105, %v3145
      %v3149 = vmul.f32 %v3108, %v3145
      %v3150 = vmul.f32 %v3111, %v3145
      %v3151 = vmul.f32 %v3114, %v3145
      %v3152 = vmul.f32 %v3117, %v3145
      %v3153 = vmul.f32 %v3120, %v3145
      %v3154 = vmul.f32 %v3123, %v3145
      %v3155 = vmul.f32 %v3126, %v3145
      %v3156 = vmul.f32 %v3129, %v3145
      %v3157 = vmul.f32 %v3132, %v3145
      %v3158 = vmul.f32 %v3135, %v3145
      %v3159 = vmul.f32 %v3138, %v3145
      %v3160 = vmul.f32 %v3141, %v3145
      %v3161 = vmul.f32 %v3144, %v3145
      %v3162 = vsub.f32 %v3063, %v3146
      %v3163 = vsub.f32 %v3064, %v3146
      %v3164 = vsub.f32 %v3065, %v3147
      %v3165 = vsub.f32 %v3066, %v3147
      %v3166 = vsub.f32 %v3067, %v3148
      %v3167 = vsub.f32 %v3068, %v3148
      %v3168 = vsub.f32 %v3069, %v3149
      %v3169 = vsub.f32 %v3070, %v3149
      %v3170 = vsub.f32 %v3071, %v3150
      %v3171 = vsub.f32 %v3072, %v3150
      %v3172 = vsub.f32 %v3073, %v3151
      %v3173 = vsub.f32 %v3074, %v3151
      %v3174 = vsub.f32 %v3075, %v3152
      %v3175 = vsub.f32 %v3076, %v3152
      %v3176 = vsub.f32 %v3077, %v3153
      %v3177 = vsub.f32 %v3078, %v3153
      %v3178 = vsub.f32 %v3079, %v3154
      %v3179 = vsub.f32 %v3080, %v3154
      %v3180 = vsub.f32 %v3081, %v3155
      %v3181 = vsub.f32 %v3082, %v3155
      %v3182 = vsub.f32 %v3083, %v3156
      %v3183 = vsub.f32 %v3084, %v3156
      %v3184 = vsub.f32 %v3085, %v3157
      %v3185 = vsub.f32 %v3086, %v3157
      %v3186 = vsub.f32 %v3087, %v3158
      %v3187 = vsub.f32 %v3088, %v3158
      %v3188 = vsub.f32 %v3089, %v3159
      %v3189 = vsub.f32 %v3090, %v3159
      %v3190 = vsub.f32 %v3091, %v3160
      %v3191 = vsub.f32 %v3092, %v3160
      %v3192 = vsub.f32 %v3093, %v3161
      %v3193 = vsub.f32 %v3094, %v3161
      %v3194 = vmul.f32 %v3162, %v3162
      %v3195 = vmul.f32 %v3163, %v3163
      %v3196 = vmul.f32 %v3164, %v3164
      %v3197 = vmul.f32 %v3165, %v3165
      %v3198 = vmul.f32 %v3166, %v3166
      %v3199 = vmul.f32 %v3167, %v3167
      %v3200 = vmul.f32 %v3168, %v3168
      %v3201 = vmul.f32 %v3169, %v3169
      %v3202 = vmul.f32 %v3170, %v3170
      %v3203 = vmul.f32 %v3171, %v3171
      %v3204 = vmul.f32 %v3172, %v3172
      %v3205 = vmul.f32 %v3173, %v3173
      %v3206 = vmul.f32 %v3174, %v3174
      %v3207 = vmul.f32 %v3175, %v3175
      %v3208 = vmul.f32 %v3176, %v3176
      %v3209 = vmul.f32 %v3177, %v3177
      %v3210 = vmul.f32 %v3178, %v3178
      %v3211 = vmul.f32 %v3179, %v3179
      %v3212 = vmul.f32 %v3180, %v3180
      %v3213 = vmul.f32 %v3181, %v3181
      %v3214 = vmul.f32 %v3182, %v3182
      %v3215 = vmul.f32 %v3183, %v3183
      %v3216 = vmul.f32 %v3184, %v3184
      %v3217 = vmul.f32 %v3185, %v3185
      %v3218 = vmul.f32 %v3186, %v3186
      %v3219 = vmul.f32 %v3187, %v3187
      %v3220 = vmul.f32 %v3188, %v3188
      %v3221 = vmul.f32 %v3189, %v3189
      %v3222 = vmul.f32 %v3190, %v3190
      %v3223 = vmul.f32 %v3191, %v3191
      %v3224 = vmul.f32 %v3192, %v3192
      %v3225 = vmul.f32 %v3193, %v3193
      %v3226 = vadd.f32 %v3194, %v3195
      %3227 = vadd.xlane.f32.xlu0 %v3226
      %v3228 = vpop.xlane.xlu0 %3227
      %v3229 = vadd.f32 %v3196, %v3197
      %3230 = vadd.xlane.f32.xlu0 %v3229
      %v3231 = vpop.xlane.xlu0 %3230
      %v3232 = vadd.f32 %v3198, %v3199
      %3233 = vadd.xlane.f32.xlu0 %v3232
      %v3234 = vpop.xlane.xlu0 %3233
      %v3235 = vadd.f32 %v3200, %v3201
      %3236 = vadd.xlane.f32.xlu0 %v3235
      %v3237 = vpop.xlane.xlu0 %3236
      %v3238 = vadd.f32 %v3202, %v3203
      %3239 = vadd.xlane.f32.xlu0 %v3238
      %v3240 = vpop.xlane.xlu0 %3239
      %v3241 = vadd.f32 %v3204, %v3205
      %3242 = vadd.xlane.f32.xlu0 %v3241
      %v3243 = vpop.xlane.xlu0 %3242
      %v3244 = vadd.f32 %v3206, %v3207
      %3245 = vadd.xlane.f32.xlu0 %v3244
      %v3246 = vpop.xlane.xlu0 %3245
      %v3247 = vadd.f32 %v3208, %v3209
      %3248 = vadd.xlane.f32.xlu0 %v3247
      %v3249 = vpop.xlane.xlu0 %3248
      %v3250 = vadd.f32 %v3210, %v3211
      %3251 = vadd.xlane.f32.xlu0 %v3250
      %v3252 = vpop.xlane.xlu0 %3251
      %v3253 = vadd.f32 %v3212, %v3213
      %3254 = vadd.xlane.f32.xlu0 %v3253
      %v3255 = vpop.xlane.xlu0 %3254
      %v3256 = vadd.f32 %v3214, %v3215
      %3257 = vadd.xlane.f32.xlu0 %v3256
      %v3258 = vpop.xlane.xlu0 %3257
      %v3259 = vadd.f32 %v3216, %v3217
      %3260 = vadd.xlane.f32.xlu0 %v3259
      %v3261 = vpop.xlane.xlu0 %3260
      %v3262 = vadd.f32 %v3218, %v3219
      %3263 = vadd.xlane.f32.xlu0 %v3262
      %v3264 = vpop.xlane.xlu0 %3263
      %v3265 = vadd.f32 %v3220, %v3221
      %3266 = vadd.xlane.f32.xlu0 %v3265
      %v3267 = vpop.xlane.xlu0 %3266
      %v3268 = vadd.f32 %v3222, %v3223
      %3269 = vadd.xlane.f32.xlu0 %v3268
      %v3270 = vpop.xlane.xlu0 %3269
      %v3271 = vadd.f32 %v3224, %v3225
      %3272 = vadd.xlane.f32.xlu0 %v3271
      %v3273 = vpop.xlane.xlu0 %3272
      %v3274 = vmul.f32 %v3228, %v3145
      %v3275 = vmul.f32 %v3231, %v3145
      %v3276 = vmul.f32 %v3234, %v3145
      %v3277 = vmul.f32 %v3237, %v3145
      %v3278 = vmul.f32 %v3240, %v3145
      %v3279 = vmul.f32 %v3243, %v3145
      %v3280 = vmul.f32 %v3246, %v3145
      %v3281 = vmul.f32 %v3249, %v3145
      %v3282 = vmul.f32 %v3252, %v3145
      %v3283 = vmul.f32 %v3255, %v3145
      %v3284 = vmul.f32 %v3258, %v3145
      %v3285 = vmul.f32 %v3261, %v3145
      %v3286 = vmul.f32 %v3264, %v3145
      %v3287 = vmul.f32 %v3267, %v3145
      %v3288 = vmul.f32 %v3270, %v3145
      %v3289 = vmul.f32 %v3273, %v3145
      %v3290 = vadd.f32 %v3274, 1e-12
      %v3291 = vadd.f32 %v3275, 1e-12
      %v3292 = vadd.f32 %v3276, 1e-12
      %v3293 = vadd.f32 %v3277, 1e-12
      %v3294 = vadd.f32 %v3278, 1e-12
      %v3295 = vadd.f32 %v3279, 1e-12
      %v3296 = vadd.f32 %v3280, 1e-12
      %v3297 = vadd.f32 %v3281, 1e-12
      %v3298 = vadd.f32 %v3282, 1e-12
      %v3299 = vadd.f32 %v3283, 1e-12
      %v3300 = vadd.f32 %v3284, 1e-12
      %v3301 = vadd.f32 %v3285, 1e-12
      %v3302 = vadd.f32 %v3286, 1e-12
      %v3303 = vadd.f32 %v3287, 1e-12
      %v3304 = vadd.f32 %v3288, 1e-12
      %v3305 = vadd.f32 %v3289, 1e-12
      %v3306 = vrsqrt.pop %v3290
      %v3307 = vrsqrt.pop %v3291
      %v3308 = vrsqrt.pop %v3292
      %v3309 = vrsqrt.pop %v3293
      %v3310 = vrsqrt.pop %v3294
      %v3311 = vrsqrt.pop %v3295
      %v3312 = vrsqrt.pop %v3296
      %v3313 = vrsqrt.pop %v3297
      %v3314 = vrsqrt.pop %v3298
      %v3315 = vrsqrt.pop %v3299
      %v3316 = vrsqrt.pop %v3300
      %v3317 = vrsqrt.pop %v3301
      %v3318 = vrsqrt.pop %v3302
      %v3319 = vrsqrt.pop %v3303
      %v3320 = vrsqrt.pop %v3304
      %v3321 = vrsqrt.pop %v3305
      %v3322 = vmul.f32 %v3162, %v3306
      %v3323 = vmul.f32 %v3163, %v3306
      %v3324 = vmul.f32 %v3164, %v3307
      %v3325 = vmul.f32 %v3165, %v3307
      %v3326 = vmul.f32 %v3166, %v3308
      %v3327 = vmul.f32 %v3167, %v3308
      %v3328 = vmul.f32 %v3168, %v3309
      %v3329 = vmul.f32 %v3169, %v3309
      %v3330 = vmul.f32 %v3170, %v3310
      %v3331 = vmul.f32 %v3171, %v3310
      %v3332 = vmul.f32 %v3172, %v3311
      %v3333 = vmul.f32 %v3173, %v3311
      %v3334 = vmul.f32 %v3174, %v3312
      %v3335 = vmul.f32 %v3175, %v3312
      %v3336 = vmul.f32 %v3176, %v3313
      %v3337 = vmul.f32 %v3177, %v3313
      %v3338 = vmul.f32 %v3178, %v3314
      %v3339 = vmul.f32 %v3179, %v3314
      %v3340 = vmul.f32 %v3180, %v3315
      %v3341 = vmul.f32 %v3181, %v3315
      %v3342 = vmul.f32 %v3182, %v3316
      %v3343 = vmul.f32 %v3183, %v3316
      %v3344 = vmul.f32 %v3184, %v3317
      %v3345 = vmul.f32 %v3185, %v3317
      %v3346 = vmul.f32 %v3186, %v3318
      %v3347 = vmul.f32 %v3187, %v3318
      %v3348 = vmul.f32 %v3188, %v3319
      %v3349 = vmul.f32 %v3189, %v3319
      %v3350 = vmul.f32 %v3190, %v3320
      %v3351 = vmul.f32 %v3191, %v3320
      %v3352 = vmul.f32 %v3192, %v3321
      %v3353 = vmul.f32 %v3193, %v3321
      %v3355 = vlaneseq
      %v3356 = vshrl.u32 %v3355, 7
      %v3357 = vsub.s32 0, %v3356
      %v3358 = vrot.slane %v3095, %v3357
      %v3359 = vlaneseq
      %v3360 = vshrl.u32 %v3359, 7
      %v3361 = vsub.s32 1, %v3360
      %v3362 = vrot.slane %v3095, %v3361
      %v3365 = vmul.f32 %v3322, %v3358
      %v3366 = vmul.f32 %v3323, %v3362
      %v3367 = vmul.f32 %v3324, %v3358
      %v3368 = vmul.f32 %v3325, %v3362
      %v3369 = vmul.f32 %v3326, %v3358
      %v3370 = vmul.f32 %v3327, %v3362
      %v3371 = vmul.f32 %v3328, %v3358
      %v3372 = vmul.f32 %v3329, %v3362
      %v3373 = vmul.f32 %v3330, %v3358
      %v3374 = vmul.f32 %v3331, %v3362
      %v3375 = vmul.f32 %v3332, %v3358
      %v3376 = vmul.f32 %v3333, %v3362
      %v3377 = vmul.f32 %v3334, %v3358
      %v3378 = vmul.f32 %v3335, %v3362
      %v3379 = vmul.f32 %v3336, %v3358
      %v3380 = vmul.f32 %v3337, %v3362
      %v3381 = vmul.f32 %v3338, %v3358
      %v3382 = vmul.f32 %v3339, %v3362
      %v3383 = vmul.f32 %v3340, %v3358
      %v3384 = vmul.f32 %v3341, %v3362
      %v3385 = vmul.f32 %v3342, %v3358
      %v3386 = vmul.f32 %v3343, %v3362
      %v3387 = vmul.f32 %v3344, %v3358
      %v3388 = vmul.f32 %v3345, %v3362
      %v3389 = vmul.f32 %v3346, %v3358
      %v3390 = vmul.f32 %v3347, %v3362
      %v3391 = vmul.f32 %v3348, %v3358
      %v3392 = vmul.f32 %v3349, %v3362
      %v3393 = vmul.f32 %v3350, %v3358
      %v3394 = vmul.f32 %v3351, %v3362
      %v3395 = vmul.f32 %v3352, %v3358
      %v3396 = vmul.f32 %v3353, %v3362
      %v3398 = vlaneseq
      %v3399 = vshrl.u32 %v3398, 7
      %v3400 = vsub.s32 0, %v3399
      %v3401 = vrot.slane %v3096, %v3400
      %v3402 = vlaneseq
      %v3403 = vshrl.u32 %v3402, 7
      %v3404 = vsub.s32 1, %v3403
      %v3405 = vrot.slane %v3096, %v3404
      %v3408 = vadd.f32 %v3365, %v3401
      %v3409 = vadd.f32 %v3366, %v3405
      %v3410 = vadd.f32 %v3367, %v3401
      %v3411 = vadd.f32 %v3368, %v3405
      %v3412 = vadd.f32 %v3369, %v3401
      %v3413 = vadd.f32 %v3370, %v3405
      %v3414 = vadd.f32 %v3371, %v3401
      %v3415 = vadd.f32 %v3372, %v3405
      %v3416 = vadd.f32 %v3373, %v3401
      %v3417 = vadd.f32 %v3374, %v3405
      %v3418 = vadd.f32 %v3375, %v3401
      %v3419 = vadd.f32 %v3376, %v3405
      %v3420 = vadd.f32 %v3377, %v3401
      %v3421 = vadd.f32 %v3378, %v3405
      %v3422 = vadd.f32 %v3379, %v3401
      %v3423 = vadd.f32 %v3380, %v3405
      %v3424 = vadd.f32 %v3381, %v3401
      %v3425 = vadd.f32 %v3382, %v3405
      %v3426 = vadd.f32 %v3383, %v3401
      %v3427 = vadd.f32 %v3384, %v3405
      %v3428 = vadd.f32 %v3385, %v3401
      %v3429 = vadd.f32 %v3386, %v3405
      %v3430 = vadd.f32 %v3387, %v3401
      %v3431 = vadd.f32 %v3388, %v3405
      %v3432 = vadd.f32 %v3389, %v3401
      %v3433 = vadd.f32 %v3390, %v3405
      %v3434 = vadd.f32 %v3391, %v3401
      %v3435 = vadd.f32 %v3392, %v3405
      %v3436 = vadd.f32 %v3393, %v3401
      %v3437 = vadd.f32 %v3394, %v3405
      %v3438 = vadd.f32 %v3395, %v3401
      %v3439 = vadd.f32 %v3396, %v3405
      %v3440 = vpack.c.bf16 %v3410, %v3408
      %v3441 = vpack.c.bf16 %v3411, %v3409
      %v3442 = vpack.c.bf16 %v3414, %v3412
      %v3443 = vpack.c.bf16 %v3415, %v3413
      %v3444 = vpack.c.bf16 %v3418, %v3416
      %v3445 = vpack.c.bf16 %v3419, %v3417
      %v3446 = vpack.c.bf16 %v3422, %v3420
      %v3447 = vpack.c.bf16 %v3423, %v3421
      %v3448 = vpack.c.bf16 %v3426, %v3424
      %v3449 = vpack.c.bf16 %v3427, %v3425
      %v3450 = vpack.c.bf16 %v3430, %v3428
      %v3451 = vpack.c.bf16 %v3431, %v3429
      %v3452 = vpack.c.bf16 %v3434, %v3432
      %v3453 = vpack.c.bf16 %v3435, %v3433
      %v3454 = vpack.c.bf16 %v3438, %v3436
      %v3455 = vpack.c.bf16 %v3439, %v3437
      %v3456 = vld [vmem:[%s683] sm:$0xff]
      %v3457 = vld [vmem:[%s683 + $0x8] sm:$0xff]
      %v3458 = vld [vmem:[%s683 + $0x10] sm:$0xff]
      %v3459 = vld [vmem:[%s683 + $0x18] sm:$0xff]
      %v3460 = vld [vmem:[%s683 + $0x20] sm:$0xff]
      %v3461 = vld [vmem:[%s683 + $0x28] sm:$0xff]
      %v3462 = vld [vmem:[%s683 + $0x30] sm:$0xff]
      %v3463 = vld [vmem:[%s683 + $0x38] sm:$0xff]
      %v3464 = vld [vmem:[%s683 + $0x40] sm:$0xff]
      %v3465 = vld [vmem:[%s683 + $0x48] sm:$0xff]
      %v3466 = vld [vmem:[%s683 + $0x50] sm:$0xff]
      %v3467 = vld [vmem:[%s683 + $0x58] sm:$0xff]
      %v3468 = vld [vmem:[%s683 + $0x60] sm:$0xff]
      %v3469 = vld [vmem:[%s683 + $0x68] sm:$0xff]
      %v3470 = vld [vmem:[%s683 + $0x70] sm:$0xff]
      %v3471 = vld [vmem:[%s683 + $0x78] sm:$0xff]
      %v3472 = vld [vmem:[%s683 + $0x80] sm:$0xff]
      %v3473 = vld [vmem:[%s683 + $0x88] sm:$0xff]
      %v3474 = vld [vmem:[%s683 + $0x90] sm:$0xff]
      %v3475 = vld [vmem:[%s683 + $0x98] sm:$0xff]
      %v3476 = vld [vmem:[%s683 + $0xa0] sm:$0xff]
      %v3477 = vld [vmem:[%s683 + $0xa8] sm:$0xff]
      %v3478 = vld [vmem:[%s683 + $0xb0] sm:$0xff]
      %v3479 = vld [vmem:[%s683 + $0xb8] sm:$0xff]
      %v3480 = vld [vmem:[%s683 + $0xc0] sm:$0xff]
      %v3481 = vld [vmem:[%s683 + $0xc8] sm:$0xff]
      %v3482 = vld [vmem:[%s683 + $0xd0] sm:$0xff]
      %v3483 = vld [vmem:[%s683 + $0xd8] sm:$0xff]
      %v3484 = vld [vmem:[%s683 + $0xe0] sm:$0xff]
      %v3485 = vld [vmem:[%s683 + $0xe8] sm:$0xff]
      %v3486 = vld [vmem:[%s683 + $0xf0] sm:$0xff]
      %v3487 = vld [vmem:[%s683 + $0xf8] sm:$0xff]
      %v3488 = vld [vmem:[%s683 + $0x100] sm:$0xff]
      %v3489 = vld [vmem:[%s683 + $0x108] sm:$0xff]
      %v3490 = vld [vmem:[%s683 + $0x110] sm:$0xff]
      %v3491 = vld [vmem:[%s683 + $0x118] sm:$0xff]
      %v3492 = vld [vmem:[%s683 + $0x120] sm:$0xff]
      %v3493 = vld [vmem:[%s683 + $0x128] sm:$0xff]
      %v3494 = vld [vmem:[%s683 + $0x130] sm:$0xff]
      %v3495 = vld [vmem:[%s683 + $0x138] sm:$0xff]
      %v3496 = vld [vmem:[%s683 + $0x140] sm:$0xff]
      %v3497 = vld [vmem:[%s683 + $0x148] sm:$0xff]
      %v3498 = vld [vmem:[%s683 + $0x150] sm:$0xff]
      %v3499 = vld [vmem:[%s683 + $0x158] sm:$0xff]
      %v3500 = vld [vmem:[%s683 + $0x160] sm:$0xff]
      %v3501 = vld [vmem:[%s683 + $0x168] sm:$0xff]
      %v3502 = vld [vmem:[%s683 + $0x170] sm:$0xff]
      %v3503 = vld [vmem:[%s683 + $0x178] sm:$0xff]
      %v3504 = vld [vmem:[%s683 + $0x180] sm:$0xff]
      %v3505 = vld [vmem:[%s683 + $0x188] sm:$0xff]
      %v3506 = vld [vmem:[%s683 + $0x190] sm:$0xff]
      %v3507 = vld [vmem:[%s683 + $0x198] sm:$0xff]
      %v3508 = vld [vmem:[%s683 + $0x1a0] sm:$0xff]
      %v3509 = vld [vmem:[%s683 + $0x1a8] sm:$0xff]
      %v3510 = vld [vmem:[%s683 + $0x1b0] sm:$0xff]
      %v3511 = vld [vmem:[%s683 + $0x1b8] sm:$0xff]
      %v3512 = vld [vmem:[%s683 + $0x1c0] sm:$0xff]
      %v3513 = vld [vmem:[%s683 + $0x1c8] sm:$0xff]
      %v3514 = vld [vmem:[%s683 + $0x1d0] sm:$0xff]
      %v3515 = vld [vmem:[%s683 + $0x1d8] sm:$0xff]
      %v3516 = vld [vmem:[%s683 + $0x1e0] sm:$0xff]
      %v3517 = vld [vmem:[%s683 + $0x1e8] sm:$0xff]
      %v3518 = vld [vmem:[%s683 + $0x1f0] sm:$0xff]
      %v3519 = vld [vmem:[%s683 + $0x1f8] sm:$0xff]
      %v3520 = vld [vmem:[%s687] sm:$0xf]
      %v3522 = vlaneseq
      %v3523 = vshrl.u32 %v3522, 7
      %v3524 = vsub.s32 0, %v3523
      %v3525 = vrot.slane %v3520, %v3524
      %v3526 = vlaneseq
      %v3527 = vshrl.u32 %v3526, 7
      %v3528 = vsub.s32 1, %v3527
      %v3529 = vrot.slane %v3520, %v3528
      %v3530 = vlaneseq
      %v3531 = vshrl.u32 %v3530, 7
      %v3532 = vsub.s32 2, %v3531
      %v3533 = vrot.slane %v3520, %v3532
      %v3534 = vlaneseq
      %v3535 = vshrl.u32 %v3534, 7
      %v3536 = vsub.s32 3, %v3535
      %v3537 = vrot.slane %v3520, %v3536
      %v3606 = vunpack.c.l.b16 %v3456
      %v3607 = vunpack.c.h.b16 %v3456
      %v3608 = vunpack.c.l.b16 %v3457
      %v3609 = vunpack.c.h.b16 %v3457
      %v3610 = vunpack.c.l.b16 %v3458
      %v3611 = vunpack.c.h.b16 %v3458
      %v3612 = vunpack.c.l.b16 %v3459
      %v3613 = vunpack.c.h.b16 %v3459
      %v3614 = vunpack.c.l.b16 %v3460
      %v3615 = vunpack.c.h.b16 %v3460
      %v3616 = vunpack.c.l.b16 %v3461
      %v3617 = vunpack.c.h.b16 %v3461
      %v3618 = vunpack.c.l.b16 %v3462
      %v3619 = vunpack.c.h.b16 %v3462
      %v3620 = vunpack.c.l.b16 %v3463
      %v3621 = vunpack.c.h.b16 %v3463
      %v3622 = vunpack.c.l.b16 %v3464
      %v3623 = vunpack.c.h.b16 %v3464
      %v3624 = vunpack.c.l.b16 %v3465
      %v3625 = vunpack.c.h.b16 %v3465
      %v3626 = vunpack.c.l.b16 %v3466
      %v3627 = vunpack.c.h.b16 %v3466
      %v3628 = vunpack.c.l.b16 %v3467
      %v3629 = vunpack.c.h.b16 %v3467
      %v3630 = vunpack.c.l.b16 %v3468
      %v3631 = vunpack.c.h.b16 %v3468
      %v3632 = vunpack.c.l.b16 %v3469
      %v3633 = vunpack.c.h.b16 %v3469
      %v3634 = vunpack.c.l.b16 %v3470
      %v3635 = vunpack.c.h.b16 %v3470
      %v3636 = vunpack.c.l.b16 %v3471
      %v3637 = vunpack.c.h.b16 %v3471
      %v3638 = vunpack.c.l.b16 %v3472
      %v3639 = vunpack.c.h.b16 %v3472
      %v3640 = vunpack.c.l.b16 %v3473
      %v3641 = vunpack.c.h.b16 %v3473
      %v3642 = vunpack.c.l.b16 %v3474
      %v3643 = vunpack.c.h.b16 %v3474
      %v3644 = vunpack.c.l.b16 %v3475
      %v3645 = vunpack.c.h.b16 %v3475
      %v3646 = vunpack.c.l.b16 %v3476
      %v3647 = vunpack.c.h.b16 %v3476
      %v3648 = vunpack.c.l.b16 %v3477
      %v3649 = vunpack.c.h.b16 %v3477
      %v3650 = vunpack.c.l.b16 %v3478
      %v3651 = vunpack.c.h.b16 %v3478
      %v3652 = vunpack.c.l.b16 %v3479
      %v3653 = vunpack.c.h.b16 %v3479
      %v3654 = vunpack.c.l.b16 %v3480
      %v3655 = vunpack.c.h.b16 %v3480
      %v3656 = vunpack.c.l.b16 %v3481
      %v3657 = vunpack.c.h.b16 %v3481
      %v3658 = vunpack.c.l.b16 %v3482
      %v3659 = vunpack.c.h.b16 %v3482
      %v3660 = vunpack.c.l.b16 %v3483
      %v3661 = vunpack.c.h.b16 %v3483
      %v3662 = vunpack.c.l.b16 %v3484
      %v3663 = vunpack.c.h.b16 %v3484
      %v3664 = vunpack.c.l.b16 %v3485
      %v3665 = vunpack.c.h.b16 %v3485
      %v3666 = vunpack.c.l.b16 %v3486
      %v3667 = vunpack.c.h.b16 %v3486
      %v3668 = vunpack.c.l.b16 %v3487
      %v3669 = vunpack.c.h.b16 %v3487
      %v3670 = vunpack.c.l.b16 %v3488
      %v3671 = vunpack.c.h.b16 %v3488
      %v3672 = vunpack.c.l.b16 %v3489
      %v3673 = vunpack.c.h.b16 %v3489
      %v3674 = vunpack.c.l.b16 %v3490
      %v3675 = vunpack.c.h.b16 %v3490
      %v3676 = vunpack.c.l.b16 %v3491
      %v3677 = vunpack.c.h.b16 %v3491
      %v3678 = vunpack.c.l.b16 %v3492
      %v3679 = vunpack.c.h.b16 %v3492
      %v3680 = vunpack.c.l.b16 %v3493
      %v3681 = vunpack.c.h.b16 %v3493
      %v3682 = vunpack.c.l.b16 %v3494
      %v3683 = vunpack.c.h.b16 %v3494
      %v3684 = vunpack.c.l.b16 %v3495
      %v3685 = vunpack.c.h.b16 %v3495
      %v3686 = vunpack.c.l.b16 %v3496
      %v3687 = vunpack.c.h.b16 %v3496
      %v3688 = vunpack.c.l.b16 %v3497
      %v3689 = vunpack.c.h.b16 %v3497
      %v3690 = vunpack.c.l.b16 %v3498
      %v3691 = vunpack.c.h.b16 %v3498
      %v3692 = vunpack.c.l.b16 %v3499
      %v3693 = vunpack.c.h.b16 %v3499
      %v3694 = vunpack.c.l.b16 %v3500
      %v3695 = vunpack.c.h.b16 %v3500
      %v3696 = vunpack.c.l.b16 %v3501
      %v3697 = vunpack.c.h.b16 %v3501
      %v3698 = vunpack.c.l.b16 %v3502
      %v3699 = vunpack.c.h.b16 %v3502
      %v3700 = vunpack.c.l.b16 %v3503
      %v3701 = vunpack.c.h.b16 %v3503
      %v3702 = vunpack.c.l.b16 %v3504
      %v3703 = vunpack.c.h.b16 %v3504
      %v3704 = vunpack.c.l.b16 %v3505
      %v3705 = vunpack.c.h.b16 %v3505
      %v3706 = vunpack.c.l.b16 %v3506
      %v3707 = vunpack.c.h.b16 %v3506
      %v3708 = vunpack.c.l.b16 %v3507
      %v3709 = vunpack.c.h.b16 %v3507
      %v3710 = vunpack.c.l.b16 %v3508
      %v3711 = vunpack.c.h.b16 %v3508
      %v3712 = vunpack.c.l.b16 %v3509
      %v3713 = vunpack.c.h.b16 %v3509
      %v3714 = vunpack.c.l.b16 %v3510
      %v3715 = vunpack.c.h.b16 %v3510
      %v3716 = vunpack.c.l.b16 %v3511
      %v3717 = vunpack.c.h.b16 %v3511
      %v3718 = vunpack.c.l.b16 %v3512
      %v3719 = vunpack.c.h.b16 %v3512
      %v3720 = vunpack.c.l.b16 %v3513
      %v3721 = vunpack.c.h.b16 %v3513
      %v3722 = vunpack.c.l.b16 %v3514
      %v3723 = vunpack.c.h.b16 %v3514
      %v3724 = vunpack.c.l.b16 %v3515
      %v3725 = vunpack.c.h.b16 %v3515
      %v3726 = vunpack.c.l.b16 %v3516
      %v3727 = vunpack.c.h.b16 %v3516
      %v3728 = vunpack.c.l.b16 %v3517
      %v3729 = vunpack.c.h.b16 %v3517
      %v3730 = vunpack.c.l.b16 %v3518
      %v3731 = vunpack.c.h.b16 %v3518
      %v3732 = vunpack.c.l.b16 %v3519
      %v3733 = vunpack.c.h.b16 %v3519
      %v3734 = vpack.c.b16 %v3610, %v3606
      %v3735 = vpack.c.b16 %v3611, %v3607
      %v3736 = vpack.c.b16 %v3612, %v3608
      %v3737 = vpack.c.b16 %v3613, %v3609
      %v3738 = vpack.c.b16 %v3618, %v3614
      %v3739 = vpack.c.b16 %v3619, %v3615
      %v3740 = vpack.c.b16 %v3620, %v3616
      %v3741 = vpack.c.b16 %v3621, %v3617
      %v3742 = vpack.c.b16 %v3626, %v3622
      %v3743 = vpack.c.b16 %v3627, %v3623
      %v3744 = vpack.c.b16 %v3628, %v3624
      %v3745 = vpack.c.b16 %v3629, %v3625
      %v3746 = vpack.c.b16 %v3634, %v3630
      %v3747 = vpack.c.b16 %v3635, %v3631
      %v3748 = vpack.c.b16 %v3636, %v3632
      %v3749 = vpack.c.b16 %v3637, %v3633
      %v3750 = vpack.c.b16 %v3642, %v3638
      %v3751 = vpack.c.b16 %v3643, %v3639
      %v3752 = vpack.c.b16 %v3644, %v3640
      %v3753 = vpack.c.b16 %v3645, %v3641
      %v3754 = vpack.c.b16 %v3650, %v3646
      %v3755 = vpack.c.b16 %v3651, %v3647
      %v3756 = vpack.c.b16 %v3652, %v3648
      %v3757 = vpack.c.b16 %v3653, %v3649
      %v3758 = vpack.c.b16 %v3658, %v3654
      %v3759 = vpack.c.b16 %v3659, %v3655
      %v3760 = vpack.c.b16 %v3660, %v3656
      %v3761 = vpack.c.b16 %v3661, %v3657
      %v3762 = vpack.c.b16 %v3666, %v3662
      %v3763 = vpack.c.b16 %v3667, %v3663
      %v3764 = vpack.c.b16 %v3668, %v3664
      %v3765 = vpack.c.b16 %v3669, %v3665
      %v3766 = vpack.c.b16 %v3674, %v3670
      %v3767 = vpack.c.b16 %v3675, %v3671
      %v3768 = vpack.c.b16 %v3676, %v3672
      %v3769 = vpack.c.b16 %v3677, %v3673
      %v3770 = vpack.c.b16 %v3682, %v3678
      %v3771 = vpack.c.b16 %v3683, %v3679
      %v3772 = vpack.c.b16 %v3684, %v3680
      %v3773 = vpack.c.b16 %v3685, %v3681
      %v3774 = vpack.c.b16 %v3690, %v3686
      %v3775 = vpack.c.b16 %v3691, %v3687
      %v3776 = vpack.c.b16 %v3692, %v3688
      %v3777 = vpack.c.b16 %v3693, %v3689
      %v3778 = vpack.c.b16 %v3698, %v3694
      %v3779 = vpack.c.b16 %v3699, %v3695
      %v3780 = vpack.c.b16 %v3700, %v3696
      %v3781 = vpack.c.b16 %v3701, %v3697
      %v3782 = vpack.c.b16 %v3706, %v3702
      %v3783 = vpack.c.b16 %v3707, %v3703
      %v3784 = vpack.c.b16 %v3708, %v3704
      %v3785 = vpack.c.b16 %v3709, %v3705
      %v3786 = vpack.c.b16 %v3714, %v3710
      %v3787 = vpack.c.b16 %v3715, %v3711
      %v3788 = vpack.c.b16 %v3716, %v3712
      %v3789 = vpack.c.b16 %v3717, %v3713
      %v3790 = vpack.c.b16 %v3722, %v3718
      %v3791 = vpack.c.b16 %v3723, %v3719
      %v3792 = vpack.c.b16 %v3724, %v3720
      %v3793 = vpack.c.b16 %v3725, %v3721
      %v3794 = vpack.c.b16 %v3730, %v3726
      %v3795 = vpack.c.b16 %v3731, %v3727
      %v3796 = vpack.c.b16 %v3732, %v3728
      %v3797 = vpack.c.b16 %v3733, %v3729
      %3862 = vmatprep.subr.bf16.mxu0 %v3735
      %3863 = vmatpush1.bf16.msra.mxu0 %v3734
      %3864 = vmatprep.subr.bf16.mxu0 %v3739
      %3865 = vmatpush1.bf16.msra.mxu0 %v3738
      %3866 = vmatprep.subr.bf16.mxu0 %v3743
      %3867 = vmatpush1.bf16.msra.mxu0 %v3742
      %3868 = vmatprep.subr.bf16.mxu0 %v3747
      %3869 = vmatpush1.bf16.msra.mxu0 %v3746
      %3870 = vmatprep.subr.bf16.mxu0 %v3751
      %3871 = vmatpush1.bf16.msra.mxu0 %v3750
      %3872 = vmatprep.subr.bf16.mxu0 %v3755
      %3873 = vmatpush1.bf16.msra.mxu0 %v3754
      %3874 = vmatprep.subr.bf16.mxu0 %v3759
      %3875 = vmatpush1.bf16.msra.mxu0 %v3758
      %3876 = vmatprep.subr.bf16.mxu0 %v3763
      %3877 = vmatpush1.bf16.msra.mxu0 %v3762
      %3878 = vmatprep.subr.bf16.mxu0 %v3767
      %3879 = vmatpush1.bf16.msra.mxu0 %v3766
      %3880 = vmatprep.subr.bf16.mxu0 %v3771
      %3881 = vmatpush1.bf16.msra.mxu0 %v3770
      %3882 = vmatprep.subr.bf16.mxu0 %v3775
      %3883 = vmatpush1.bf16.msra.mxu0 %v3774
      %3884 = vmatprep.subr.bf16.mxu0 %v3779
      %3885 = vmatpush1.bf16.msra.mxu0 %v3778
      %3886 = vmatprep.subr.bf16.mxu0 %v3783
      %3887 = vmatpush1.bf16.msra.mxu0 %v3782
      %3888 = vmatprep.subr.bf16.mxu0 %v3787
      %3889 = vmatpush1.bf16.msra.mxu0 %v3786
      %3890 = vmatprep.subr.bf16.mxu0 %v3791
      %3891 = vmatpush1.bf16.msra.mxu0 %v3790
      %3892 = vmatprep.subr.bf16.mxu0 %v3795
      %3893 = vmatpush1.bf16.msra.mxu0 %v3794
      %3894 = vmatprep.mubr.bf16.mxu0 %v3441
      %3895 = vmatmul.mubr.bf16.gmra.mrb[0].mxu0 %v3440
      %v3896 = vpop.f32.mrb[0].mxu0
      %v3897 = vadd.f32 %v3525, %v3896
      %v3898 = vpop.f32.mrb[0].mxu0
      %v3899 = vadd.f32 %v3529, %v3898
      %v3900 = vpop.f32.mrb[0].mxu0
      %v3901 = vadd.f32 %v3525, %v3900
      %v3902 = vpop.f32.mrb[0].mxu0
      %v3903 = vadd.f32 %v3529, %v3902
      %3904 = vmatprep.mubr.bf16.mxu0 %v3443
      %3905 = vmatmul.mubr.bf16.gmra.mrb[0].mxu0 %v3442
      %v3906 = vpop.f32.mrb[0].mxu0
      %v3907 = vadd.f32 %v3525, %v3906
      %v3908 = vpop.f32.mrb[0].mxu0
      %v3909 = vadd.f32 %v3529, %v3908
      %v3910 = vpop.f32.mrb[0].mxu0
      %v3911 = vadd.f32 %v3525, %v3910
      %v3912 = vpop.f32.mrb[0].mxu0
      %v3913 = vadd.f32 %v3529, %v3912
      %3914 = vmatprep.mubr.bf16.mxu0 %v3445
      %3915 = vmatmul.mubr.bf16.gmra.mrb[0].mxu0 %v3444
      %v3916 = vpop.f32.mrb[0].mxu0
      %v3917 = vadd.f32 %v3525, %v3916
      %v3918 = vpop.f32.mrb[0].mxu0
      %v3919 = vadd.f32 %v3529, %v3918
      %v3920 = vpop.f32.mrb[0].mxu0
      %v3921 = vadd.f32 %v3525, %v3920
      %v3922 = vpop.f32.mrb[0].mxu0
      %v3923 = vadd.f32 %v3529, %v3922
      %3924 = vmatprep.mubr.bf16.mxu0 %v3447
      %3925 = vmatmul.mubr.bf16.gmra.mrb[0].mxu0 %v3446
      %v3926 = vpop.f32.mrb[0].mxu0
      %v3927 = vadd.f32 %v3525, %v3926
      %v3928 = vpop.f32.mrb[0].mxu0
      %v3929 = vadd.f32 %v3529, %v3928
      %v3930 = vpop.f32.mrb[0].mxu0
      %v3931 = vadd.f32 %v3525, %v3930
      %v3932 = vpop.f32.mrb[0].mxu0
      %v3933 = vadd.f32 %v3529, %v3932
      %3934 = vmatprep.mubr.bf16.mxu0 %v3449
      %3935 = vmatmul.mubr.bf16.gmra.mrb[0].mxu0 %v3448
      %v3936 = vpop.f32.mrb[0].mxu0
      %v3937 = vadd.f32 %v3525, %v3936
      %v3938 = vpop.f32.mrb[0].mxu0
      %v3939 = vadd.f32 %v3529, %v3938
      %v3940 = vpop.f32.mrb[0].mxu0
      %v3941 = vadd.f32 %v3525, %v3940
      %v3942 = vpop.f32.mrb[0].mxu0
      %v3943 = vadd.f32 %v3529, %v3942
      %3944 = vmatprep.mubr.bf16.mxu0 %v3451
      %3945 = vmatmul.mubr.bf16.gmra.mrb[0].mxu0 %v3450
      %v3946 = vpop.f32.mrb[0].mxu0
      %v3947 = vadd.f32 %v3525, %v3946
      %v3948 = vpop.f32.mrb[0].mxu0
      %v3949 = vadd.f32 %v3529, %v3948
      %v3950 = vpop.f32.mrb[0].mxu0
      %v3951 = vadd.f32 %v3525, %v3950
      %v3952 = vpop.f32.mrb[0].mxu0
      %v3953 = vadd.f32 %v3529, %v3952
      %3954 = vmatprep.mubr.bf16.mxu0 %v3453
      %3955 = vmatmul.mubr.bf16.gmra.mrb[0].mxu0 %v3452
      %v3956 = vpop.f32.mrb[0].mxu0
      %v3957 = vadd.f32 %v3525, %v3956
      %v3958 = vpop.f32.mrb[0].mxu0
      %v3959 = vadd.f32 %v3529, %v3958
      %v3960 = vpop.f32.mrb[0].mxu0
      %v3961 = vadd.f32 %v3525, %v3960
      %v3962 = vpop.f32.mrb[0].mxu0
      %v3963 = vadd.f32 %v3529, %v3962
      %3964 = vmatprep.mubr.bf16.mxu0 %v3455
      %3965 = vmatmul.mubr.bf16.gmra.mrb[0].mxu0 %v3454
      %v3966 = vpop.f32.mrb[0].mxu0
      %v3967 = vadd.f32 %v3525, %v3966
      %v3968 = vpop.f32.mrb[0].mxu0
      %v3969 = vadd.f32 %v3529, %v3968
      %v3970 = vpop.f32.mrb[0].mxu0
      %v3971 = vadd.f32 %v3525, %v3970
      %v3972 = vpop.f32.mrb[0].mxu0
      %v3973 = vadd.f32 %v3529, %v3972
      %3974 = vdwg.mxu0
      %3975 = vmatprep.subr.bf16.mxu0 %v3737
      %3976 = vmatpush1.bf16.msra.mxu0 %v3736
      %3977 = vmatprep.subr.bf16.mxu0 %v3741
      %3978 = vmatpush1.bf16.msra.mxu0 %v3740
      %3979 = vmatprep.subr.bf16.mxu0 %v3745
      %3980 = vmatpush1.bf16.msra.mxu0 %v3744
      %3981 = vmatprep.subr.bf16.mxu0 %v3749
      %3982 = vmatpush1.bf16.msra.mxu0 %v3748
      %3983 = vmatprep.subr.bf16.mxu0 %v3753
      %3984 = vmatpush1.bf16.msra.mxu0 %v3752
      %3985 = vmatprep.subr.bf16.mxu0 %v3757
      %3986 = vmatpush1.bf16.msra.mxu0 %v3756
      %3987 = vmatprep.subr.bf16.mxu0 %v3761
      %3988 = vmatpush1.bf16.msra.mxu0 %v3760
      %3989 = vmatprep.subr.bf16.mxu0 %v3765
      %3990 = vmatpush1.bf16.msra.mxu0 %v3764
      %3991 = vmatprep.subr.bf16.mxu0 %v3769
      %3992 = vmatpush1.bf16.msra.mxu0 %v3768
      %3993 = vmatprep.subr.bf16.mxu0 %v3773
      %3994 = vmatpush1.bf16.msra.mxu0 %v3772
      %3995 = vmatprep.subr.bf16.mxu0 %v3777
      %3996 = vmatpush1.bf16.msra.mxu0 %v3776
      %3997 = vmatprep.subr.bf16.mxu0 %v3781
      %3998 = vmatpush1.bf16.msra.mxu0 %v3780
      %3999 = vmatprep.subr.bf16.mxu0 %v3785
      %4000 = vmatpush1.bf16.msra.mxu0 %v3784
      %4001 = vmatprep.subr.bf16.mxu0 %v3789
      %4002 = vmatpush1.bf16.msra.mxu0 %v3788
      %4003 = vmatprep.subr.bf16.mxu0 %v3793
      %4004 = vmatpush1.bf16.msra.mxu0 %v3792
      %4005 = vmatprep.subr.bf16.mxu0 %v3797
      %4006 = vmatpush1.bf16.msra.mxu0 %v3796
      %4007 = vmatprep.mubr.bf16.mxu0 %v3441
      %4008 = vmatmul.mubr.bf16.gmra.mrb[0].mxu0 %v3440
      %v4009 = vpop.f32.mrb[0].mxu0
      %v4010 = vadd.f32 %v3533, %v4009
      %v4011 = vpop.f32.mrb[0].mxu0
      %v4012 = vadd.f32 %v3537, %v4011
      %v4013 = vpop.f32.mrb[0].mxu0
      %v4014 = vadd.f32 %v3533, %v4013
      %v4015 = vpop.f32.mrb[0].mxu0
      %v4016 = vadd.f32 %v3537, %v4015
      %4017 = vmatprep.mubr.bf16.mxu0 %v3443
      %4018 = vmatmul.mubr.bf16.gmra.mrb[0].mxu0 %v3442
      %v4019 = vpop.f32.mrb[0].mxu0
      %v4020 = vadd.f32 %v3533, %v4019
      %v4021 = vpop.f32.mrb[0].mxu0
      %v4022 = vadd.f32 %v3537, %v4021
      %v4023 = vpop.f32.mrb[0].mxu0
      %v4024 = vadd.f32 %v3533, %v4023
      %v4025 = vpop.f32.mrb[0].mxu0
      %v4026 = vadd.f32 %v3537, %v4025
      %4027 = vmatprep.mubr.bf16.mxu0 %v3445
      %4028 = vmatmul.mubr.bf16.gmra.mrb[0].mxu0 %v3444
      %v4029 = vpop.f32.mrb[0].mxu0
      %v4030 = vadd.f32 %v3533, %v4029
      %v4031 = vpop.f32.mrb[0].mxu0
      %v4032 = vadd.f32 %v3537, %v4031
      %v4033 = vpop.f32.mrb[0].mxu0
      %v4034 = vadd.f32 %v3533, %v4033
      %v4035 = vpop.f32.mrb[0].mxu0
      %v4036 = vadd.f32 %v3537, %v4035
      %4037 = vmatprep.mubr.bf16.mxu0 %v3447
      %4038 = vmatmul.mubr.bf16.gmra.mrb[0].mxu0 %v3446
      %v4039 = vpop.f32.mrb[0].mxu0
      %v4040 = vadd.f32 %v3533, %v4039
      %v4041 = vpop.f32.mrb[0].mxu0
      %v4042 = vadd.f32 %v3537, %v4041
      %v4043 = vpop.f32.mrb[0].mxu0
      %v4044 = vadd.f32 %v3533, %v4043
      %v4045 = vpop.f32.mrb[0].mxu0
      %v4046 = vadd.f32 %v3537, %v4045
      %4047 = vmatprep.mubr.bf16.mxu0 %v3449
      %4048 = vmatmul.mubr.bf16.gmra.mrb[0].mxu0 %v3448
      %v4049 = vpop.f32.mrb[0].mxu0
      %v4050 = vadd.f32 %v3533, %v4049
      %v4051 = vpop.f32.mrb[0].mxu0
      %v4052 = vadd.f32 %v3537, %v4051
      %v4053 = vpop.f32.mrb[0].mxu0
      %v4054 = vadd.f32 %v3533, %v4053
      %v4055 = vpop.f32.mrb[0].mxu0
      %v4056 = vadd.f32 %v3537, %v4055
      %4057 = vmatprep.mubr.bf16.mxu0 %v3451
      %4058 = vmatmul.mubr.bf16.gmra.mrb[0].mxu0 %v3450
      %v4059 = vpop.f32.mrb[0].mxu0
      %v4060 = vadd.f32 %v3533, %v4059
      %v4061 = vpop.f32.mrb[0].mxu0
      %v4062 = vadd.f32 %v3537, %v4061
      %v4063 = vpop.f32.mrb[0].mxu0
      %v4064 = vadd.f32 %v3533, %v4063
      %v4065 = vpop.f32.mrb[0].mxu0
      %v4066 = vadd.f32 %v3537, %v4065
      %4067 = vmatprep.mubr.bf16.mxu0 %v3453
      %4068 = vmatmul.mubr.bf16.gmra.mrb[0].mxu0 %v3452
      %v4069 = vpop.f32.mrb[0].mxu0
      %v4070 = vadd.f32 %v3533, %v4069
      %v4071 = vpop.f32.mrb[0].mxu0
      %v4072 = vadd.f32 %v3537, %v4071
      %v4073 = vpop.f32.mrb[0].mxu0
      %v4074 = vadd.f32 %v3533, %v4073
      %v4075 = vpop.f32.mrb[0].mxu0
      %v4076 = vadd.f32 %v3537, %v4075
      %4077 = vmatprep.mubr.bf16.mxu0 %v3455
      %4078 = vmatmul.mubr.bf16.gmra.mrb[0].mxu0 %v3454
      %v4079 = vpop.f32.mrb[0].mxu0
      %v4080 = vadd.f32 %v3533, %v4079
      %v4081 = vpop.f32.mrb[0].mxu0
      %v4082 = vadd.f32 %v3537, %v4081
      %v4083 = vpop.f32.mrb[0].mxu0
      %v4084 = vadd.f32 %v3533, %v4083
      %v4085 = vpop.f32.mrb[0].mxu0
      %v4086 = vadd.f32 %v3537, %v4085
      %4087 = vdwg.mxu0
      %v4088 = vmul.f32 %v3897, %v3897
      %v4089 = vmul.f32 %v3899, %v3899
      %v4090 = vmul.f32 %v4010, %v4010
      %v4091 = vmul.f32 %v4012, %v4012
      %v4092 = vmul.f32 %v3901, %v3901
      %v4093 = vmul.f32 %v3903, %v3903
      %v4094 = vmul.f32 %v4014, %v4014
      %v4095 = vmul.f32 %v4016, %v4016
      %v4096 = vmul.f32 %v3907, %v3907
      %v4097 = vmul.f32 %v3909, %v3909
      %v4098 = vmul.f32 %v4020, %v4020
      %v4099 = vmul.f32 %v4022, %v4022
      %v4100 = vmul.f32 %v3911, %v3911
      %v4101 = vmul.f32 %v3913, %v3913
      %v4102 = vmul.f32 %v4024, %v4024
      %v4103 = vmul.f32 %v4026, %v4026
      %v4104 = vmul.f32 %v3917, %v3917
      %v4105 = vmul.f32 %v3919, %v3919
      %v4106 = vmul.f32 %v4030, %v4030
      %v4107 = vmul.f32 %v4032, %v4032
      %v4108 = vmul.f32 %v3921, %v3921
      %v4109 = vmul.f32 %v3923, %v3923
      %v4110 = vmul.f32 %v4034, %v4034
      %v4111 = vmul.f32 %v4036, %v4036
      %v4112 = vmul.f32 %v3927, %v3927
      %v4113 = vmul.f32 %v3929, %v3929
      %v4114 = vmul.f32 %v4040, %v4040
      %v4115 = vmul.f32 %v4042, %v4042
      %v4116 = vmul.f32 %v3931, %v3931
      %v4117 = vmul.f32 %v3933, %v3933
      %v4118 = vmul.f32 %v4044, %v4044
      %v4119 = vmul.f32 %v4046, %v4046
      %v4120 = vmul.f32 %v3937, %v3937
      %v4121 = vmul.f32 %v3939, %v3939
      %v4122 = vmul.f32 %v4050, %v4050
      %v4123 = vmul.f32 %v4052, %v4052
      %v4124 = vmul.f32 %v3941, %v3941
      %v4125 = vmul.f32 %v3943, %v3943
      %v4126 = vmul.f32 %v4054, %v4054
      %v4127 = vmul.f32 %v4056, %v4056
      %v4128 = vmul.f32 %v3947, %v3947
      %v4129 = vmul.f32 %v3949, %v3949
      %v4130 = vmul.f32 %v4060, %v4060
      %v4131 = vmul.f32 %v4062, %v4062
      %v4132 = vmul.f32 %v3951, %v3951
      %v4133 = vmul.f32 %v3953, %v3953
      %v4134 = vmul.f32 %v4064, %v4064
      %v4135 = vmul.f32 %v4066, %v4066
      %v4136 = vmul.f32 %v3957, %v3957
      %v4137 = vmul.f32 %v3959, %v3959
      %v4138 = vmul.f32 %v4070, %v4070
      %v4139 = vmul.f32 %v4072, %v4072
      %v4140 = vmul.f32 %v3961, %v3961
      %v4141 = vmul.f32 %v3963, %v3963
      %v4142 = vmul.f32 %v4074, %v4074
      %v4143 = vmul.f32 %v4076, %v4076
      %v4144 = vmul.f32 %v3967, %v3967
      %v4145 = vmul.f32 %v3969, %v3969
      %v4146 = vmul.f32 %v4080, %v4080
      %v4147 = vmul.f32 %v4082, %v4082
      %v4148 = vmul.f32 %v3971, %v3971
      %v4149 = vmul.f32 %v3973, %v3973
      %v4150 = vmul.f32 %v4084, %v4084
      %v4151 = vmul.f32 %v4086, %v4086
      %v4152 = vmul.f32 %v3897, %v4088
      %v4153 = vmul.f32 %v3899, %v4089
      %v4154 = vmul.f32 %v4010, %v4090
      %v4155 = vmul.f32 %v4012, %v4091
      %v4156 = vmul.f32 %v3901, %v4092
      %v4157 = vmul.f32 %v3903, %v4093
      %v4158 = vmul.f32 %v4014, %v4094
      %v4159 = vmul.f32 %v4016, %v4095
      %v4160 = vmul.f32 %v3907, %v4096
      %v4161 = vmul.f32 %v3909, %v4097
      %v4162 = vmul.f32 %v4020, %v4098
      %v4163 = vmul.f32 %v4022, %v4099
      %v4164 = vmul.f32 %v3911, %v4100
      %v4165 = vmul.f32 %v3913, %v4101
      %v4166 = vmul.f32 %v4024, %v4102
      %v4167 = vmul.f32 %v4026, %v4103
      %v4168 = vmul.f32 %v3917, %v4104
      %v4169 = vmul.f32 %v3919, %v4105
      %v4170 = vmul.f32 %v4030, %v4106
      %v4171 = vmul.f32 %v4032, %v4107
      %v4172 = vmul.f32 %v3921, %v4108
      %v4173 = vmul.f32 %v3923, %v4109
      %v4174 = vmul.f32 %v4034, %v4110
      %v4175 = vmul.f32 %v4036, %v4111
      %v4176 = vmul.f32 %v3927, %v4112
      %v4177 = vmul.f32 %v3929, %v4113
      %v4178 = vmul.f32 %v4040, %v4114
      %v4179 = vmul.f32 %v4042, %v4115
      %v4180 = vmul.f32 %v3931, %v4116
      %v4181 = vmul.f32 %v3933, %v4117
      %v4182 = vmul.f32 %v4044, %v4118
      %v4183 = vmul.f32 %v4046, %v4119
      %v4184 = vmul.f32 %v3937, %v4120
      %v4185 = vmul.f32 %v3939, %v4121
      %v4186 = vmul.f32 %v4050, %v4122
      %v4187 = vmul.f32 %v4052, %v4123
      %v4188 = vmul.f32 %v3941, %v4124
      %v4189 = vmul.f32 %v3943, %v4125
      %v4190 = vmul.f32 %v4054, %v4126
      %v4191 = vmul.f32 %v4056, %v4127
      %v4192 = vmul.f32 %v3947, %v4128
      %v4193 = vmul.f32 %v3949, %v4129
      %v4194 = vmul.f32 %v4060, %v4130
      %v4195 = vmul.f32 %v4062, %v4131
      %v4196 = vmul.f32 %v3951, %v4132
      %v4197 = vmul.f32 %v3953, %v4133
      %v4198 = vmul.f32 %v4064, %v4134
      %v4199 = vmul.f32 %v4066, %v4135
      %v4200 = vmul.f32 %v3957, %v4136
      %v4201 = vmul.f32 %v3959, %v4137
      %v4202 = vmul.f32 %v4070, %v4138
      %v4203 = vmul.f32 %v4072, %v4139
      %v4204 = vmul.f32 %v3961, %v4140
      %v4205 = vmul.f32 %v3963, %v4141
      %v4206 = vmul.f32 %v4074, %v4142
      %v4207 = vmul.f32 %v4076, %v4143
      %v4208 = vmul.f32 %v3967, %v4144
      %v4209 = vmul.f32 %v3969, %v4145
      %v4210 = vmul.f32 %v4080, %v4146
      %v4211 = vmul.f32 %v4082, %v4147
      %v4212 = vmul.f32 %v3971, %v4148
      %v4213 = vmul.f32 %v3973, %v4149
      %v4214 = vmul.f32 %v4084, %v4150
      %v4215 = vmul.f32 %v4086, %v4151
      %v4216 = vmul.f32 %v4152, 0.044715
      %v4217 = vmul.f32 %v4153, 0.044715
      %v4218 = vmul.f32 %v4154, 0.044715
      %v4219 = vmul.f32 %v4155, 0.044715
      %v4220 = vmul.f32 %v4156, 0.044715
      %v4221 = vmul.f32 %v4157, 0.044715
      %v4222 = vmul.f32 %v4158, 0.044715
      %v4223 = vmul.f32 %v4159, 0.044715
      %v4224 = vmul.f32 %v4160, 0.044715
      %v4225 = vmul.f32 %v4161, 0.044715
      %v4226 = vmul.f32 %v4162, 0.044715
      %v4227 = vmul.f32 %v4163, 0.044715
      %v4228 = vmul.f32 %v4164, 0.044715
      %v4229 = vmul.f32 %v4165, 0.044715
      %v4230 = vmul.f32 %v4166, 0.044715
      %v4231 = vmul.f32 %v4167, 0.044715
      %v4232 = vmul.f32 %v4168, 0.044715
      %v4233 = vmul.f32 %v4169, 0.044715
      %v4234 = vmul.f32 %v4170, 0.044715
      %v4235 = vmul.f32 %v4171, 0.044715
      %v4236 = vmul.f32 %v4172, 0.044715
      %v4237 = vmul.f32 %v4173, 0.044715
      %v4238 = vmul.f32 %v4174, 0.044715
      %v4239 = vmul.f32 %v4175, 0.044715
      %v4240 = vmul.f32 %v4176, 0.044715
      %v4241 = vmul.f32 %v4177, 0.044715
      %v4242 = vmul.f32 %v4178, 0.044715
      %v4243 = vmul.f32 %v4179, 0.044715
      %v4244 = vmul.f32 %v4180, 0.044715
      %v4245 = vmul.f32 %v4181, 0.044715
      %v4246 = vmul.f32 %v4182, 0.044715
      %v4247 = vmul.f32 %v4183, 0.044715
      %v4248 = vmul.f32 %v4184, 0.044715
      %v4249 = vmul.f32 %v4185, 0.044715
      %v4250 = vmul.f32 %v4186, 0.044715
      %v4251 = vmul.f32 %v4187, 0.044715
      %v4252 = vmul.f32 %v4188, 0.044715
      %v4253 = vmul.f32 %v4189, 0.044715
      %v4254 = vmul.f32 %v4190, 0.044715
      %v4255 = vmul.f32 %v4191, 0.044715
      %v4256 = vmul.f32 %v4192, 0.044715
      %v4257 = vmul.f32 %v4193, 0.044715
      %v4258 = vmul.f32 %v4194, 0.044715
      %v4259 = vmul.f32 %v4195, 0.044715
      %v4260 = vmul.f32 %v4196, 0.044715
      %v4261 = vmul.f32 %v4197, 0.044715
      %v4262 = vmul.f32 %v4198, 0.044715
      %v4263 = vmul.f32 %v4199, 0.044715
      %v4264 = vmul.f32 %v4200, 0.044715
      %v4265 = vmul.f32 %v4201, 0.044715
      %v4266 = vmul.f32 %v4202, 0.044715
      %v4267 = vmul.f32 %v4203, 0.044715
      %v4268 = vmul.f32 %v4204, 0.044715
      %v4269 = vmul.f32 %v4205, 0.044715
      %v4270 = vmul.f32 %v4206, 0.044715
      %v4271 = vmul.f32 %v4207, 0.044715
      %v4272 = vmul.f32 %v4208, 0.044715
      %v4273 = vmul.f32 %v4209, 0.044715
      %v4274 = vmul.f32 %v4210, 0.044715
      %v4275 = vmul.f32 %v4211, 0.044715
      %v4276 = vmul.f32 %v4212, 0.044715
      %v4277 = vmul.f32 %v4213, 0.044715
      %v4278 = vmul.f32 %v4214, 0.044715
      %v4279 = vmul.f32 %v4215, 0.044715
      %v4280 = vadd.f32 %v3897, %v4216
      %v4281 = vadd.f32 %v3899, %v4217
      %v4282 = vadd.f32 %v4010, %v4218
      %v4283 = vadd.f32 %v4012, %v4219
      %v4284 = vadd.f32 %v3901, %v4220
      %v4285 = vadd.f32 %v3903, %v4221
      %v4286 = vadd.f32 %v4014, %v4222
      %v4287 = vadd.f32 %v4016, %v4223
      %v4288 = vadd.f32 %v3907, %v4224
      %v4289 = vadd.f32 %v3909, %v4225
      %v4290 = vadd.f32 %v4020, %v4226
      %v4291 = vadd.f32 %v4022, %v4227
      %v4292 = vadd.f32 %v3911, %v4228
      %v4293 = vadd.f32 %v3913, %v4229
      %v4294 = vadd.f32 %v4024, %v4230
      %v4295 = vadd.f32 %v4026, %v4231
      %v4296 = vadd.f32 %v3917, %v4232
      %v4297 = vadd.f32 %v3919, %v4233
      %v4298 = vadd.f32 %v4030, %v4234
      %v4299 = vadd.f32 %v4032, %v4235
      %v4300 = vadd.f32 %v3921, %v4236
      %v4301 = vadd.f32 %v3923, %v4237
      %v4302 = vadd.f32 %v4034, %v4238
      %v4303 = vadd.f32 %v4036, %v4239
      %v4304 = vadd.f32 %v3927, %v4240
      %v4305 = vadd.f32 %v3929, %v4241
      %v4306 = vadd.f32 %v4040, %v4242
      %v4307 = vadd.f32 %v4042, %v4243
      %v4308 = vadd.f32 %v3931, %v4244
      %v4309 = vadd.f32 %v3933, %v4245
      %v4310 = vadd.f32 %v4044, %v4246
      %v4311 = vadd.f32 %v4046, %v4247
      %v4312 = vadd.f32 %v3937, %v4248
      %v4313 = vadd.f32 %v3939, %v4249
      %v4314 = vadd.f32 %v4050, %v4250
      %v4315 = vadd.f32 %v4052, %v4251
      %v4316 = vadd.f32 %v3941, %v4252
      %v4317 = vadd.f32 %v3943, %v4253
      %v4318 = vadd.f32 %v4054, %v4254
      %v4319 = vadd.f32 %v4056, %v4255
      %v4320 = vadd.f32 %v3947, %v4256
      %v4321 = vadd.f32 %v3949, %v4257
      %v4322 = vadd.f32 %v4060, %v4258
      %v4323 = vadd.f32 %v4062, %v4259
      %v4324 = vadd.f32 %v3951, %v4260
      %v4325 = vadd.f32 %v3953, %v4261
      %v4326 = vadd.f32 %v4064, %v4262
      %v4327 = vadd.f32 %v4066, %v4263
      %v4328 = vadd.f32 %v3957, %v4264
      %v4329 = vadd.f32 %v3959, %v4265
      %v4330 = vadd.f32 %v4070, %v4266
      %v4331 = vadd.f32 %v4072, %v4267
      %v4332 = vadd.f32 %v3961, %v4268
      %v4333 = vadd.f32 %v3963, %v4269
      %v4334 = vadd.f32 %v4074, %v4270
      %v4335 = vadd.f32 %v4076, %v4271
      %v4336 = vadd.f32 %v3967, %v4272
      %v4337 = vadd.f32 %v3969, %v4273
      %v4338 = vadd.f32 %v4080, %v4274
      %v4339 = vadd.f32 %v4082, %v4275
      %v4340 = vadd.f32 %v3971, %v4276
      %v4341 = vadd.f32 %v3973, %v4277
      %v4342 = vadd.f32 %v4084, %v4278
      %v4343 = vadd.f32 %v4086, %v4279
      %v4344 = vmul.f32 %v4280, 0.7978846
      %v4345 = vmul.f32 %v4281, 0.7978846
      %v4346 = vmul.f32 %v4282, 0.7978846
      %v4347 = vmul.f32 %v4283, 0.7978846
      %v4348 = vmul.f32 %v4284, 0.7978846
      %v4349 = vmul.f32 %v4285, 0.7978846
      %v4350 = vmul.f32 %v4286, 0.7978846
      %v4351 = vmul.f32 %v4287, 0.7978846
      %v4352 = vmul.f32 %v4288, 0.7978846
      %v4353 = vmul.f32 %v4289, 0.7978846
      %v4354 = vmul.f32 %v4290, 0.7978846
      %v4355 = vmul.f32 %v4291, 0.7978846
      %v4356 = vmul.f32 %v4292, 0.7978846
      %v4357 = vmul.f32 %v4293, 0.7978846
      %v4358 = vmul.f32 %v4294, 0.7978846
      %v4359 = vmul.f32 %v4295, 0.7978846
      %v4360 = vmul.f32 %v4296, 0.7978846
      %v4361 = vmul.f32 %v4297, 0.7978846
      %v4362 = vmul.f32 %v4298, 0.7978846
      %v4363 = vmul.f32 %v4299, 0.7978846
      %v4364 = vmul.f32 %v4300, 0.7978846
      %v4365 = vmul.f32 %v4301, 0.7978846
      %v4366 = vmul.f32 %v4302, 0.7978846
      %v4367 = vmul.f32 %v4303, 0.7978846
      %v4368 = vmul.f32 %v4304, 0.7978846
      %v4369 = vmul.f32 %v4305, 0.7978846
      %v4370 = vmul.f32 %v4306, 0.7978846
      %v4371 = vmul.f32 %v4307, 0.7978846
      %v4372 = vmul.f32 %v4308, 0.7978846
      %v4373 = vmul.f32 %v4309, 0.7978846
      %v4374 = vmul.f32 %v4310, 0.7978846
      %v4375 = vmul.f32 %v4311, 0.7978846
      %v4376 = vmul.f32 %v4312, 0.7978846
      %v4377 = vmul.f32 %v4313, 0.7978846
      %v4378 = vmul.f32 %v4314, 0.7978846
      %v4379 = vmul.f32 %v4315, 0.7978846
      %v4380 = vmul.f32 %v4316, 0.7978846
      %v4381 = vmul.f32 %v4317, 0.7978846
      %v4382 = vmul.f32 %v4318, 0.7978846
      %v4383 = vmul.f32 %v4319, 0.7978846
      %v4384 = vmul.f32 %v4320, 0.7978846
      %v4385 = vmul.f32 %v4321, 0.7978846
      %v4386 = vmul.f32 %v4322, 0.7978846
      %v4387 = vmul.f32 %v4323, 0.7978846
      %v4388 = vmul.f32 %v4324, 0.7978846
      %v4389 = vmul.f32 %v4325, 0.7978846
      %v4390 = vmul.f32 %v4326, 0.7978846
      %v4391 = vmul.f32 %v4327, 0.7978846
      %v4392 = vmul.f32 %v4328, 0.7978846
      %v4393 = vmul.f32 %v4329, 0.7978846
      %v4394 = vmul.f32 %v4330, 0.7978846
      %v4395 = vmul.f32 %v4331, 0.7978846
      %v4396 = vmul.f32 %v4332, 0.7978846
      %v4397 = vmul.f32 %v4333, 0.7978846
      %v4398 = vmul.f32 %v4334, 0.7978846
      %v4399 = vmul.f32 %v4335, 0.7978846
      %v4400 = vmul.f32 %v4336, 0.7978846
      %v4401 = vmul.f32 %v4337, 0.7978846
      %v4402 = vmul.f32 %v4338, 0.7978846
      %v4403 = vmul.f32 %v4339, 0.7978846
      %v4404 = vmul.f32 %v4340, 0.7978846
      %v4405 = vmul.f32 %v4341, 0.7978846
      %v4406 = vmul.f32 %v4342, 0.7978846
      %v4407 = vmul.f32 %v4343, 0.7978846
      %v4408 = vtanh.pop %v4344
      %v4409 = vtanh.pop %v4345
      %v4410 = vtanh.pop %v4346
      %v4411 = vtanh.pop %v4347
      %v4412 = vtanh.pop %v4348
      %v4413 = vtanh.pop %v4349
      %v4414 = vtanh.pop %v4350
      %v4415 = vtanh.pop %v4351
      %v4416 = vtanh.pop %v4352
      %v4417 = vtanh.pop %v4353
      %v4418 = vtanh.pop %v4354
      %v4419 = vtanh.pop %v4355
      %v4420 = vtanh.pop %v4356
      %v4421 = vtanh.pop %v4357
      %v4422 = vtanh.pop %v4358
      %v4423 = vtanh.pop %v4359
      %v4424 = vtanh.pop %v4360
      %v4425 = vtanh.pop %v4361
      %v4426 = vtanh.pop %v4362
      %v4427 = vtanh.pop %v4363
      %v4428 = vtanh.pop %v4364
      %v4429 = vtanh.pop %v4365
      %v4430 = vtanh.pop %v4366
      %v4431 = vtanh.pop %v4367
      %v4432 = vtanh.pop %v4368
      %v4433 = vtanh.pop %v4369
      %v4434 = vtanh.pop %v4370
      %v4435 = vtanh.pop %v4371
      %v4436 = vtanh.pop %v4372
      %v4437 = vtanh.pop %v4373
      %v4438 = vtanh.pop %v4374
      %v4439 = vtanh.pop %v4375
      %v4440 = vtanh.pop %v4376
      %v4441 = vtanh.pop %v4377
      %v4442 = vtanh.pop %v4378
      %v4443 = vtanh.pop %v4379
      %v4444 = vtanh.pop %v4380
      %v4445 = vtanh.pop %v4381
      %v4446 = vtanh.pop %v4382
      %v4447 = vtanh.pop %v4383
      %v4448 = vtanh.pop %v4384
      %v4449 = vtanh.pop %v4385
      %v4450 = vtanh.pop %v4386
      %v4451 = vtanh.pop %v4387
      %v4452 = vtanh.pop %v4388
      %v4453 = vtanh.pop %v4389
      %v4454 = vtanh.pop %v4390
      %v4455 = vtanh.pop %v4391
      %v4456 = vtanh.pop %v4392
      %v4457 = vtanh.pop %v4393
      %v4458 = vtanh.pop %v4394
      %v4459 = vtanh.pop %v4395
      %v4460 = vtanh.pop %v4396
      %v4461 = vtanh.pop %v4397
      %v4462 = vtanh.pop %v4398
      %v4463 = vtanh.pop %v4399
      %v4464 = vtanh.pop %v4400
      %v4465 = vtanh.pop %v4401
      %v4466 = vtanh.pop %v4402
      %v4467 = vtanh.pop %v4403
      %v4468 = vtanh.pop %v4404
      %v4469 = vtanh.pop %v4405
      %v4470 = vtanh.pop %v4406
      %v4471 = vtanh.pop %v4407
      %v4472 = vadd.f32 %v4408, 1.0
      %v4473 = vadd.f32 %v4409, 1.0
      %v4474 = vadd.f32 %v4410, 1.0
      %v4475 = vadd.f32 %v4411, 1.0
      %v4476 = vadd.f32 %v4412, 1.0
      %v4477 = vadd.f32 %v4413, 1.0
      %v4478 = vadd.f32 %v4414, 1.0
      %v4479 = vadd.f32 %v4415, 1.0
      %v4480 = vadd.f32 %v4416, 1.0
      %v4481 = vadd.f32 %v4417, 1.0
      %v4482 = vadd.f32 %v4418, 1.0
      %v4483 = vadd.f32 %v4419, 1.0
      %v4484 = vadd.f32 %v4420, 1.0
      %v4485 = vadd.f32 %v4421, 1.0
      %v4486 = vadd.f32 %v4422, 1.0
      %v4487 = vadd.f32 %v4423, 1.0
      %v4488 = vadd.f32 %v4424, 1.0
      %v4489 = vadd.f32 %v4425, 1.0
      %v4490 = vadd.f32 %v4426, 1.0
      %v4491 = vadd.f32 %v4427, 1.0
      %v4492 = vadd.f32 %v4428, 1.0
      %v4493 = vadd.f32 %v4429, 1.0
      %v4494 = vadd.f32 %v4430, 1.0
      %v4495 = vadd.f32 %v4431, 1.0
      %v4496 = vadd.f32 %v4432, 1.0
      %v4497 = vadd.f32 %v4433, 1.0
      %v4498 = vadd.f32 %v4434, 1.0
      %v4499 = vadd.f32 %v4435, 1.0
      %v4500 = vadd.f32 %v4436, 1.0
      %v4501 = vadd.f32 %v4437, 1.0
      %v4502 = vadd.f32 %v4438, 1.0
      %v4503 = vadd.f32 %v4439, 1.0
      %v4504 = vadd.f32 %v4440, 1.0
      %v4505 = vadd.f32 %v4441, 1.0
      %v4506 = vadd.f32 %v4442, 1.0
      %v4507 = vadd.f32 %v4443, 1.0
      %v4508 = vadd.f32 %v4444, 1.0
      %v4509 = vadd.f32 %v4445, 1.0
      %v4510 = vadd.f32 %v4446, 1.0
      %v4511 = vadd.f32 %v4447, 1.0
      %v4512 = vadd.f32 %v4448, 1.0
      %v4513 = vadd.f32 %v4449, 1.0
      %v4514 = vadd.f32 %v4450, 1.0
      %v4515 = vadd.f32 %v4451, 1.0
      %v4516 = vadd.f32 %v4452, 1.0
      %v4517 = vadd.f32 %v4453, 1.0
      %v4518 = vadd.f32 %v4454, 1.0
      %v4519 = vadd.f32 %v4455, 1.0
      %v4520 = vadd.f32 %v4456, 1.0
      %v4521 = vadd.f32 %v4457, 1.0
      %v4522 = vadd.f32 %v4458, 1.0
      %v4523 = vadd.f32 %v4459, 1.0
      %v4524 = vadd.f32 %v4460, 1.0
      %v4525 = vadd.f32 %v4461, 1.0
      %v4526 = vadd.f32 %v4462, 1.0
      %v4527 = vadd.f32 %v4463, 1.0
      %v4528 = vadd.f32 %v4464, 1.0
      %v4529 = vadd.f32 %v4465, 1.0
      %v4530 = vadd.f32 %v4466, 1.0
      %v4531 = vadd.f32 %v4467, 1.0
      %v4532 = vadd.f32 %v4468, 1.0
      %v4533 = vadd.f32 %v4469, 1.0
      %v4534 = vadd.f32 %v4470, 1.0
      %v4535 = vadd.f32 %v4471, 1.0
      %v4536 = vmul.f32 %v4472, 0.5
      %v4537 = vmul.f32 %v4473, 0.5
      %v4538 = vmul.f32 %v4474, 0.5
      %v4539 = vmul.f32 %v4475, 0.5
      %v4540 = vmul.f32 %v4476, 0.5
      %v4541 = vmul.f32 %v4477, 0.5
      %v4542 = vmul.f32 %v4478, 0.5
      %v4543 = vmul.f32 %v4479, 0.5
      %v4544 = vmul.f32 %v4480, 0.5
      %v4545 = vmul.f32 %v4481, 0.5
      %v4546 = vmul.f32 %v4482, 0.5
      %v4547 = vmul.f32 %v4483, 0.5
      %v4548 = vmul.f32 %v4484, 0.5
      %v4549 = vmul.f32 %v4485, 0.5
      %v4550 = vmul.f32 %v4486, 0.5
      %v4551 = vmul.f32 %v4487, 0.5
      %v4552 = vmul.f32 %v4488, 0.5
      %v4553 = vmul.f32 %v4489, 0.5
      %v4554 = vmul.f32 %v4490, 0.5
      %v4555 = vmul.f32 %v4491, 0.5
      %v4556 = vmul.f32 %v4492, 0.5
      %v4557 = vmul.f32 %v4493, 0.5
      %v4558 = vmul.f32 %v4494, 0.5
      %v4559 = vmul.f32 %v4495, 0.5
      %v4560 = vmul.f32 %v4496, 0.5
      %v4561 = vmul.f32 %v4497, 0.5
      %v4562 = vmul.f32 %v4498, 0.5
      %v4563 = vmul.f32 %v4499, 0.5
      %v4564 = vmul.f32 %v4500, 0.5
      %v4565 = vmul.f32 %v4501, 0.5
      %v4566 = vmul.f32 %v4502, 0.5
      %v4567 = vmul.f32 %v4503, 0.5
      %v4568 = vmul.f32 %v4504, 0.5
      %v4569 = vmul.f32 %v4505, 0.5
      %v4570 = vmul.f32 %v4506, 0.5
      %v4571 = vmul.f32 %v4507, 0.5
      %v4572 = vmul.f32 %v4508, 0.5
      %v4573 = vmul.f32 %v4509, 0.5
      %v4574 = vmul.f32 %v4510, 0.5
      %v4575 = vmul.f32 %v4511, 0.5
      %v4576 = vmul.f32 %v4512, 0.5
      %v4577 = vmul.f32 %v4513, 0.5
      %v4578 = vmul.f32 %v4514, 0.5
      %v4579 = vmul.f32 %v4515, 0.5
      %v4580 = vmul.f32 %v4516, 0.5
      %v4581 = vmul.f32 %v4517, 0.5
      %v4582 = vmul.f32 %v4518, 0.5
      %v4583 = vmul.f32 %v4519, 0.5
      %v4584 = vmul.f32 %v4520, 0.5
      %v4585 = vmul.f32 %v4521, 0.5
      %v4586 = vmul.f32 %v4522, 0.5
      %v4587 = vmul.f32 %v4523, 0.5
      %v4588 = vmul.f32 %v4524, 0.5
      %v4589 = vmul.f32 %v4525, 0.5
      %v4590 = vmul.f32 %v4526, 0.5
      %v4591 = vmul.f32 %v4527, 0.5
      %v4592 = vmul.f32 %v4528, 0.5
      %v4593 = vmul.f32 %v4529, 0.5
      %v4594 = vmul.f32 %v4530, 0.5
      %v4595 = vmul.f32 %v4531, 0.5
      %v4596 = vmul.f32 %v4532, 0.5
      %v4597 = vmul.f32 %v4533, 0.5
      %v4598 = vmul.f32 %v4534, 0.5
      %v4599 = vmul.f32 %v4535, 0.5
      %v4600 = vmul.f32 %v3897, %v4536
      %v4601 = vmul.f32 %v3899, %v4537
      %v4602 = vmul.f32 %v4010, %v4538
      %v4603 = vmul.f32 %v4012, %v4539
      %v4604 = vmul.f32 %v3901, %v4540
      %v4605 = vmul.f32 %v3903, %v4541
      %v4606 = vmul.f32 %v4014, %v4542
      %v4607 = vmul.f32 %v4016, %v4543
      %v4608 = vmul.f32 %v3907, %v4544
      %v4609 = vmul.f32 %v3909, %v4545
      %v4610 = vmul.f32 %v4020, %v4546
      %v4611 = vmul.f32 %v4022, %v4547
      %v4612 = vmul.f32 %v3911, %v4548
      %v4613 = vmul.f32 %v3913, %v4549
      %v4614 = vmul.f32 %v4024, %v4550
      %v4615 = vmul.f32 %v4026, %v4551
      %v4616 = vmul.f32 %v3917, %v4552
      %v4617 = vmul.f32 %v3919, %v4553
      %v4618 = vmul.f32 %v4030, %v4554
      %v4619 = vmul.f32 %v4032, %v4555
      %v4620 = vmul.f32 %v3921, %v4556
      %v4621 = vmul.f32 %v3923, %v4557
      %v4622 = vmul.f32 %v4034, %v4558
      %v4623 = vmul.f32 %v4036, %v4559
      %v4624 = vmul.f32 %v3927, %v4560
      %v4625 = vmul.f32 %v3929, %v4561
      %v4626 = vmul.f32 %v4040, %v4562
      %v4627 = vmul.f32 %v4042, %v4563
      %v4628 = vmul.f32 %v3931, %v4564
      %v4629 = vmul.f32 %v3933, %v4565
      %v4630 = vmul.f32 %v4044, %v4566
      %v4631 = vmul.f32 %v4046, %v4567
      %v4632 = vmul.f32 %v3937, %v4568
      %v4633 = vmul.f32 %v3939, %v4569
      %v4634 = vmul.f32 %v4050, %v4570
      %v4635 = vmul.f32 %v4052, %v4571
      %v4636 = vmul.f32 %v3941, %v4572
      %v4637 = vmul.f32 %v3943, %v4573
      %v4638 = vmul.f32 %v4054, %v4574
      %v4639 = vmul.f32 %v4056, %v4575
      %v4640 = vmul.f32 %v3947, %v4576
      %v4641 = vmul.f32 %v3949, %v4577
      %v4642 = vmul.f32 %v4060, %v4578
      %v4643 = vmul.f32 %v4062, %v4579
      %v4644 = vmul.f32 %v3951, %v4580
      %v4645 = vmul.f32 %v3953, %v4581
      %v4646 = vmul.f32 %v4064, %v4582
      %v4647 = vmul.f32 %v4066, %v4583
      %v4648 = vmul.f32 %v3957, %v4584
      %v4649 = vmul.f32 %v3959, %v4585
      %v4650 = vmul.f32 %v4070, %v4586
      %v4651 = vmul.f32 %v4072, %v4587
      %v4652 = vmul.f32 %v3961, %v4588
      %v4653 = vmul.f32 %v3963, %v4589
      %v4654 = vmul.f32 %v4074, %v4590
      %v4655 = vmul.f32 %v4076, %v4591
      %v4656 = vmul.f32 %v3967, %v4592
      %v4657 = vmul.f32 %v3969, %v4593
      %v4658 = vmul.f32 %v4080, %v4594
      %v4659 = vmul.f32 %v4082, %v4595
      %v4660 = vmul.f32 %v3971, %v4596
      %v4661 = vmul.f32 %v3973, %v4597
      %v4662 = vmul.f32 %v4084, %v4598
      %v4663 = vmul.f32 %v4086, %v4599
      %v4664 = vpack.c.bf16 %v4604, %v4600
      %v4665 = vpack.c.bf16 %v4605, %v4601
      %v4666 = vpack.c.bf16 %v4606, %v4602
      %v4667 = vpack.c.bf16 %v4607, %v4603
      %v4668 = vpack.c.bf16 %v4612, %v4608
      %v4669 = vpack.c.bf16 %v4613, %v4609
      %v4670 = vpack.c.bf16 %v4614, %v4610
      %v4671 = vpack.c.bf16 %v4615, %v4611
      %v4672 = vpack.c.bf16 %v4620, %v4616
      %v4673 = vpack.c.bf16 %v4621, %v4617
      %v4674 = vpack.c.bf16 %v4622, %v4618
      %v4675 = vpack.c.bf16 %v4623, %v4619
      %v4676 = vpack.c.bf16 %v4628, %v4624
      %v4677 = vpack.c.bf16 %v4629, %v4625
      %v4678 = vpack.c.bf16 %v4630, %v4626
      %v4679 = vpack.c.bf16 %v4631, %v4627
      %v4680 = vpack.c.bf16 %v4636, %v4632
      %v4681 = vpack.c.bf16 %v4637, %v4633
      %v4682 = vpack.c.bf16 %v4638, %v4634
      %v4683 = vpack.c.bf16 %v4639, %v4635
      %v4684 = vpack.c.bf16 %v4644, %v4640
      %v4685 = vpack.c.bf16 %v4645, %v4641
      %v4686 = vpack.c.bf16 %v4646, %v4642
      %v4687 = vpack.c.bf16 %v4647, %v4643
      %v4688 = vpack.c.bf16 %v4652, %v4648
      %v4689 = vpack.c.bf16 %v4653, %v4649
      %v4690 = vpack.c.bf16 %v4654, %v4650
      %v4691 = vpack.c.bf16 %v4655, %v4651
      %v4692 = vpack.c.bf16 %v4660, %v4656
      %v4693 = vpack.c.bf16 %v4661, %v4657
      %v4694 = vpack.c.bf16 %v4662, %v4658
      %v4695 = vpack.c.bf16 %v4663, %v4659
      %v4696 = vld [vmem:[%s692] sm:$0xff]
      %v4697 = vld [vmem:[%s692 + $0x8] sm:$0xff]
      %v4698 = vld [vmem:[%s692 + $0x10] sm:$0xff]
      %v4699 = vld [vmem:[%s692 + $0x18] sm:$0xff]
      %v4700 = vld [vmem:[%s692 + $0x20] sm:$0xff]
      %v4701 = vld [vmem:[%s692 + $0x28] sm:$0xff]
      %v4702 = vld [vmem:[%s692 + $0x30] sm:$0xff]
      %v4703 = vld [vmem:[%s692 + $0x38] sm:$0xff]
      %v4704 = vld [vmem:[%s692 + $0x40] sm:$0xff]
      %v4705 = vld [vmem:[%s692 + $0x48] sm:$0xff]
      %v4706 = vld [vmem:[%s692 + $0x50] sm:$0xff]
      %v4707 = vld [vmem:[%s692 + $0x58] sm:$0xff]
      %v4708 = vld [vmem:[%s692 + $0x60] sm:$0xff]
      %v4709 = vld [vmem:[%s692 + $0x68] sm:$0xff]
      %v4710 = vld [vmem:[%s692 + $0x70] sm:$0xff]
      %v4711 = vld [vmem:[%s692 + $0x78] sm:$0xff]
      %v4712 = vld [vmem:[%s692 + $0x80] sm:$0xff]
      %v4713 = vld [vmem:[%s692 + $0x88] sm:$0xff]
      %v4714 = vld [vmem:[%s692 + $0x90] sm:$0xff]
      %v4715 = vld [vmem:[%s692 + $0x98] sm:$0xff]
      %v4716 = vld [vmem:[%s692 + $0xa0] sm:$0xff]
      %v4717 = vld [vmem:[%s692 + $0xa8] sm:$0xff]
      %v4718 = vld [vmem:[%s692 + $0xb0] sm:$0xff]
      %v4719 = vld [vmem:[%s692 + $0xb8] sm:$0xff]
      %v4720 = vld [vmem:[%s692 + $0xc0] sm:$0xff]
      %v4721 = vld [vmem:[%s692 + $0xc8] sm:$0xff]
      %v4722 = vld [vmem:[%s692 + $0xd0] sm:$0xff]
      %v4723 = vld [vmem:[%s692 + $0xd8] sm:$0xff]
      %v4724 = vld [vmem:[%s692 + $0xe0] sm:$0xff]
      %v4725 = vld [vmem:[%s692 + $0xe8] sm:$0xff]
      %v4726 = vld [vmem:[%s692 + $0xf0] sm:$0xff]
      %v4727 = vld [vmem:[%s692 + $0xf8] sm:$0xff]
      %v4728 = vld [vmem:[%s692 + $0x100] sm:$0xff]
      %v4729 = vld [vmem:[%s692 + $0x108] sm:$0xff]
      %v4730 = vld [vmem:[%s692 + $0x110] sm:$0xff]
      %v4731 = vld [vmem:[%s692 + $0x118] sm:$0xff]
      %v4732 = vld [vmem:[%s692 + $0x120] sm:$0xff]
      %v4733 = vld [vmem:[%s692 + $0x128] sm:$0xff]
      %v4734 = vld [vmem:[%s692 + $0x130] sm:$0xff]
      %v4735 = vld [vmem:[%s692 + $0x138] sm:$0xff]
      %v4736 = vld [vmem:[%s692 + $0x140] sm:$0xff]
      %v4737 = vld [vmem:[%s692 + $0x148] sm:$0xff]
      %v4738 = vld [vmem:[%s692 + $0x150] sm:$0xff]
      %v4739 = vld [vmem:[%s692 + $0x158] sm:$0xff]
      %v4740 = vld [vmem:[%s692 + $0x160] sm:$0xff]
      %v4741 = vld [vmem:[%s692 + $0x168] sm:$0xff]
      %v4742 = vld [vmem:[%s692 + $0x170] sm:$0xff]
      %v4743 = vld [vmem:[%s692 + $0x178] sm:$0xff]
      %v4744 = vld [vmem:[%s692 + $0x180] sm:$0xff]
      %v4745 = vld [vmem:[%s692 + $0x188] sm:$0xff]
      %v4746 = vld [vmem:[%s692 + $0x190] sm:$0xff]
      %v4747 = vld [vmem:[%s692 + $0x198] sm:$0xff]
      %v4748 = vld [vmem:[%s692 + $0x1a0] sm:$0xff]
      %v4749 = vld [vmem:[%s692 + $0x1a8] sm:$0xff]
      %v4750 = vld [vmem:[%s692 + $0x1b0] sm:$0xff]
      %v4751 = vld [vmem:[%s692 + $0x1b8] sm:$0xff]
      %v4752 = vld [vmem:[%s692 + $0x1c0] sm:$0xff]
      %v4753 = vld [vmem:[%s692 + $0x1c8] sm:$0xff]
      %v4754 = vld [vmem:[%s692 + $0x1d0] sm:$0xff]
      %v4755 = vld [vmem:[%s692 + $0x1d8] sm:$0xff]
      %v4756 = vld [vmem:[%s692 + $0x1e0] sm:$0xff]
      %v4757 = vld [vmem:[%s692 + $0x1e8] sm:$0xff]
      %v4758 = vld [vmem:[%s692 + $0x1f0] sm:$0xff]
      %v4759 = vld [vmem:[%s692 + $0x1f8] sm:$0xff]
      %v4760 = vld [vmem:[%s696] sm:$0x3]
      %v4762 = vlaneseq
      %v4763 = vshrl.u32 %v4762, 7
      %v4764 = vsub.s32 0, %v4763
      %v4765 = vrot.slane %v4760, %v4764
      %v4766 = vlaneseq
      %v4767 = vshrl.u32 %v4766, 7
      %v4768 = vsub.s32 1, %v4767
      %v4769 = vrot.slane %v4760, %v4768
      %v4836 = vunpack.c.l.b16 %v4696
      %v4837 = vunpack.c.h.b16 %v4696
      %v4838 = vunpack.c.l.b16 %v4697
      %v4839 = vunpack.c.h.b16 %v4697
      %v4840 = vunpack.c.l.b16 %v4698
      %v4841 = vunpack.c.h.b16 %v4698
      %v4842 = vunpack.c.l.b16 %v4699
      %v4843 = vunpack.c.h.b16 %v4699
      %v4844 = vunpack.c.l.b16 %v4700
      %v4845 = vunpack.c.h.b16 %v4700
      %v4846 = vunpack.c.l.b16 %v4701
      %v4847 = vunpack.c.h.b16 %v4701
      %v4848 = vunpack.c.l.b16 %v4702
      %v4849 = vunpack.c.h.b16 %v4702
      %v4850 = vunpack.c.l.b16 %v4703
      %v4851 = vunpack.c.h.b16 %v4703
      %v4852 = vunpack.c.l.b16 %v4704
      %v4853 = vunpack.c.h.b16 %v4704
      %v4854 = vunpack.c.l.b16 %v4705
      %v4855 = vunpack.c.h.b16 %v4705
      %v4856 = vunpack.c.l.b16 %v4706
      %v4857 = vunpack.c.h.b16 %v4706
      %v4858 = vunpack.c.l.b16 %v4707
      %v4859 = vunpack.c.h.b16 %v4707
      %v4860 = vunpack.c.l.b16 %v4708
      %v4861 = vunpack.c.h.b16 %v4708
      %v4862 = vunpack.c.l.b16 %v4709
      %v4863 = vunpack.c.h.b16 %v4709
      %v4864 = vunpack.c.l.b16 %v4710
      %v4865 = vunpack.c.h.b16 %v4710
      %v4866 = vunpack.c.l.b16 %v4711
      %v4867 = vunpack.c.h.b16 %v4711
      %v4868 = vunpack.c.l.b16 %v4712
      %v4869 = vunpack.c.h.b16 %v4712
      %v4870 = vunpack.c.l.b16 %v4713
      %v4871 = vunpack.c.h.b16 %v4713
      %v4872 = vunpack.c.l.b16 %v4714
      %v4873 = vunpack.c.h.b16 %v4714
      %v4874 = vunpack.c.l.b16 %v4715
      %v4875 = vunpack.c.h.b16 %v4715
      %v4876 = vunpack.c.l.b16 %v4716
      %v4877 = vunpack.c.h.b16 %v4716
      %v4878 = vunpack.c.l.b16 %v4717
      %v4879 = vunpack.c.h.b16 %v4717
      %v4880 = vunpack.c.l.b16 %v4718
      %v4881 = vunpack.c.h.b16 %v4718
      %v4882 = vunpack.c.l.b16 %v4719
      %v4883 = vunpack.c.h.b16 %v4719
      %v4884 = vunpack.c.l.b16 %v4720
      %v4885 = vunpack.c.h.b16 %v4720
      %v4886 = vunpack.c.l.b16 %v4721
      %v4887 = vunpack.c.h.b16 %v4721
      %v4888 = vunpack.c.l.b16 %v4722
      %v4889 = vunpack.c.h.b16 %v4722
      %v4890 = vunpack.c.l.b16 %v4723
      %v4891 = vunpack.c.h.b16 %v4723
      %v4892 = vunpack.c.l.b16 %v4724
      %v4893 = vunpack.c.h.b16 %v4724
      %v4894 = vunpack.c.l.b16 %v4725
      %v4895 = vunpack.c.h.b16 %v4725
      %v4896 = vunpack.c.l.b16 %v4726
      %v4897 = vunpack.c.h.b16 %v4726
      %v4898 = vunpack.c.l.b16 %v4727
      %v4899 = vunpack.c.h.b16 %v4727
      %v4900 = vunpack.c.l.b16 %v4728
      %v4901 = vunpack.c.h.b16 %v4728
      %v4902 = vunpack.c.l.b16 %v4729
      %v4903 = vunpack.c.h.b16 %v4729
      %v4904 = vunpack.c.l.b16 %v4730
      %v4905 = vunpack.c.h.b16 %v4730
      %v4906 = vunpack.c.l.b16 %v4731
      %v4907 = vunpack.c.h.b16 %v4731
      %v4908 = vunpack.c.l.b16 %v4732
      %v4909 = vunpack.c.h.b16 %v4732
      %v4910 = vunpack.c.l.b16 %v4733
      %v4911 = vunpack.c.h.b16 %v4733
      %v4912 = vunpack.c.l.b16 %v4734
      %v4913 = vunpack.c.h.b16 %v4734
      %v4914 = vunpack.c.l.b16 %v4735
      %v4915 = vunpack.c.h.b16 %v4735
      %v4916 = vunpack.c.l.b16 %v4736
      %v4917 = vunpack.c.h.b16 %v4736
      %v4918 = vunpack.c.l.b16 %v4737
      %v4919 = vunpack.c.h.b16 %v4737
      %v4920 = vunpack.c.l.b16 %v4738
      %v4921 = vunpack.c.h.b16 %v4738
      %v4922 = vunpack.c.l.b16 %v4739
      %v4923 = vunpack.c.h.b16 %v4739
      %v4924 = vunpack.c.l.b16 %v4740
      %v4925 = vunpack.c.h.b16 %v4740
      %v4926 = vunpack.c.l.b16 %v4741
      %v4927 = vunpack.c.h.b16 %v4741
      %v4928 = vunpack.c.l.b16 %v4742
      %v4929 = vunpack.c.h.b16 %v4742
      %v4930 = vunpack.c.l.b16 %v4743
      %v4931 = vunpack.c.h.b16 %v4743
      %v4932 = vunpack.c.l.b16 %v4744
      %v4933 = vunpack.c.h.b16 %v4744
      %v4934 = vunpack.c.l.b16 %v4745
      %v4935 = vunpack.c.h.b16 %v4745
      %v4936 = vunpack.c.l.b16 %v4746
      %v4937 = vunpack.c.h.b16 %v4746
      %v4938 = vunpack.c.l.b16 %v4747
      %v4939 = vunpack.c.h.b16 %v4747
      %v4940 = vunpack.c.l.b16 %v4748
      %v4941 = vunpack.c.h.b16 %v4748
      %v4942 = vunpack.c.l.b16 %v4749
      %v4943 = vunpack.c.h.b16 %v4749
      %v4944 = vunpack.c.l.b16 %v4750
      %v4945 = vunpack.c.h.b16 %v4750
      %v4946 = vunpack.c.l.b16 %v4751
      %v4947 = vunpack.c.h.b16 %v4751
      %v4948 = vunpack.c.l.b16 %v4752
      %v4949 = vunpack.c.h.b16 %v4752
      %v4950 = vunpack.c.l.b16 %v4753
      %v4951 = vunpack.c.h.b16 %v4753
      %v4952 = vunpack.c.l.b16 %v4754
      %v4953 = vunpack.c.h.b16 %v4754
      %v4954 = vunpack.c.l.b16 %v4755
      %v4955 = vunpack.c.h.b16 %v4755
      %v4956 = vunpack.c.l.b16 %v4756
      %v4957 = vunpack.c.h.b16 %v4756
      %v4958 = vunpack.c.l.b16 %v4757
      %v4959 = vunpack.c.h.b16 %v4757
      %v4960 = vunpack.c.l.b16 %v4758
      %v4961 = vunpack.c.h.b16 %v4758
      %v4962 = vunpack.c.l.b16 %v4759
      %v4963 = vunpack.c.h.b16 %v4759
      %v4964 = vpack.c.b16 %v4838, %v4836
      %v4965 = vpack.c.b16 %v4839, %v4837
      %v4966 = vpack.c.b16 %v4842, %v4840
      %v4967 = vpack.c.b16 %v4843, %v4841
      %v4968 = vpack.c.b16 %v4846, %v4844
      %v4969 = vpack.c.b16 %v4847, %v4845
      %v4970 = vpack.c.b16 %v4850, %v4848
      %v4971 = vpack.c.b16 %v4851, %v4849
      %v4972 = vpack.c.b16 %v4854, %v4852
      %v4973 = vpack.c.b16 %v4855, %v4853
      %v4974 = vpack.c.b16 %v4858, %v4856
      %v4975 = vpack.c.b16 %v4859, %v4857
      %v4976 = vpack.c.b16 %v4862, %v4860
      %v4977 = vpack.c.b16 %v4863, %v4861
      %v4978 = vpack.c.b16 %v4866, %v4864
      %v4979 = vpack.c.b16 %v4867, %v4865
      %v4980 = vpack.c.b16 %v4870, %v4868
      %v4981 = vpack.c.b16 %v4871, %v4869
      %v4982 = vpack.c.b16 %v4874, %v4872
      %v4983 = vpack.c.b16 %v4875, %v4873
      %v4984 = vpack.c.b16 %v4878, %v4876
      %v4985 = vpack.c.b16 %v4879, %v4877
      %v4986 = vpack.c.b16 %v4882, %v4880
      %v4987 = vpack.c.b16 %v4883, %v4881
      %v4988 = vpack.c.b16 %v4886, %v4884
      %v4989 = vpack.c.b16 %v4887, %v4885
      %v4990 = vpack.c.b16 %v4890, %v4888
      %v4991 = vpack.c.b16 %v4891, %v4889
      %v4992 = vpack.c.b16 %v4894, %v4892
      %v4993 = vpack.c.b16 %v4895, %v4893
      %v4994 = vpack.c.b16 %v4898, %v4896
      %v4995 = vpack.c.b16 %v4899, %v4897
      %v4996 = vpack.c.b16 %v4902, %v4900
      %v4997 = vpack.c.b16 %v4903, %v4901
      %v4998 = vpack.c.b16 %v4906, %v4904
      %v4999 = vpack.c.b16 %v4907, %v4905
      %v5000 = vpack.c.b16 %v4910, %v4908
      %v5001 = vpack.c.b16 %v4911, %v4909
      %v5002 = vpack.c.b16 %v4914, %v4912
      %v5003 = vpack.c.b16 %v4915, %v4913
      %v5004 = vpack.c.b16 %v4918, %v4916
      %v5005 = vpack.c.b16 %v4919, %v4917
      %v5006 = vpack.c.b16 %v4922, %v4920
      %v5007 = vpack.c.b16 %v4923, %v4921
      %v5008 = vpack.c.b16 %v4926, %v4924
      %v5009 = vpack.c.b16 %v4927, %v4925
      %v5010 = vpack.c.b16 %v4930, %v4928
      %v5011 = vpack.c.b16 %v4931, %v4929
      %v5012 = vpack.c.b16 %v4934, %v4932
      %v5013 = vpack.c.b16 %v4935, %v4933
      %v5014 = vpack.c.b16 %v4938, %v4936
      %v5015 = vpack.c.b16 %v4939, %v4937
      %v5016 = vpack.c.b16 %v4942, %v4940
      %v5017 = vpack.c.b16 %v4943, %v4941
      %v5018 = vpack.c.b16 %v4946, %v4944
      %v5019 = vpack.c.b16 %v4947, %v4945
      %v5020 = vpack.c.b16 %v4950, %v4948
      %v5021 = vpack.c.b16 %v4951, %v4949
      %v5022 = vpack.c.b16 %v4954, %v4952
      %v5023 = vpack.c.b16 %v4955, %v4953
      %v5024 = vpack.c.b16 %v4958, %v4956
      %v5025 = vpack.c.b16 %v4959, %v4957
      %v5026 = vpack.c.b16 %v4962, %v4960
      %v5027 = vpack.c.b16 %v4963, %v4961
      %5092 = vmatprep.subr.bf16.mxu0 %v4965
      %5093 = vmatpush1.bf16.msra.mxu0 %v4964
      %5094 = vmatprep.subr.bf16.mxu0 %v4967
      %5095 = vmatpush1.bf16.msra.mxu0 %v4966
      %5096 = vmatprep.subr.bf16.mxu0 %v4969
      %5097 = vmatpush1.bf16.msra.mxu0 %v4968
      %5098 = vmatprep.subr.bf16.mxu0 %v4971
      %5099 = vmatpush1.bf16.msra.mxu0 %v4970
      %5100 = vmatprep.subr.bf16.mxu0 %v4973
      %5101 = vmatpush1.bf16.msra.mxu0 %v4972
      %5102 = vmatprep.subr.bf16.mxu0 %v4975
      %5103 = vmatpush1.bf16.msra.mxu0 %v4974
      %5104 = vmatprep.subr.bf16.mxu0 %v4977
      %5105 = vmatpush1.bf16.msra.mxu0 %v4976
      %5106 = vmatprep.subr.bf16.mxu0 %v4979
      %5107 = vmatpush1.bf16.msra.mxu0 %v4978
      %5108 = vmatprep.subr.bf16.mxu0 %v4981
      %5109 = vmatpush1.bf16.msra.mxu0 %v4980
      %5110 = vmatprep.subr.bf16.mxu0 %v4983
      %5111 = vmatpush1.bf16.msra.mxu0 %v4982
      %5112 = vmatprep.subr.bf16.mxu0 %v4985
      %5113 = vmatpush1.bf16.msra.mxu0 %v4984
      %5114 = vmatprep.subr.bf16.mxu0 %v4987
      %5115 = vmatpush1.bf16.msra.mxu0 %v4986
      %5116 = vmatprep.subr.bf16.mxu0 %v4989
      %5117 = vmatpush1.bf16.msra.mxu0 %v4988
      %5118 = vmatprep.subr.bf16.mxu0 %v4991
      %5119 = vmatpush1.bf16.msra.mxu0 %v4990
      %5120 = vmatprep.subr.bf16.mxu0 %v4993
      %5121 = vmatpush1.bf16.msra.mxu0 %v4992
      %5122 = vmatprep.subr.bf16.mxu0 %v4995
      %5123 = vmatpush1.bf16.msra.mxu0 %v4994
      %5124 = vmatprep.mubr.bf16.mxu0 %v4665
      %5125 = vmatmul.mubr.bf16.gmra.mrb[0].mxu0 %v4664
      %v5126 = vpop.f32.mrb[0].mxu0
      %v5127 = vadd.f32 %v4765, %v5126
      %v5128 = vpop.f32.mrb[0].mxu0
      %v5129 = vadd.f32 %v4769, %v5128
      %v5130 = vpop.f32.mrb[0].mxu0
      %v5131 = vadd.f32 %v4765, %v5130
      %v5132 = vpop.f32.mrb[0].mxu0
      %v5133 = vadd.f32 %v4769, %v5132
      %5134 = vmatprep.mubr.bf16.mxu0 %v4669
      %5135 = vmatmul.mubr.bf16.gmra.mrb[0].mxu0 %v4668
      %v5136 = vpop.f32.mrb[0].mxu0
      %v5137 = vadd.f32 %v4765, %v5136
      %v5138 = vpop.f32.mrb[0].mxu0
      %v5139 = vadd.f32 %v4769, %v5138
      %v5140 = vpop.f32.mrb[0].mxu0
      %v5141 = vadd.f32 %v4765, %v5140
      %v5142 = vpop.f32.mrb[0].mxu0
      %v5143 = vadd.f32 %v4769, %v5142
      %5144 = vmatprep.mubr.bf16.mxu0 %v4673
      %5145 = vmatmul.mubr.bf16.gmra.mrb[0].mxu0 %v4672
      %v5146 = vpop.f32.mrb[0].mxu0
      %v5147 = vadd.f32 %v4765, %v5146
      %v5148 = vpop.f32.mrb[0].mxu0
      %v5149 = vadd.f32 %v4769, %v5148
      %v5150 = vpop.f32.mrb[0].mxu0
      %v5151 = vadd.f32 %v4765, %v5150
      %v5152 = vpop.f32.mrb[0].mxu0
      %v5153 = vadd.f32 %v4769, %v5152
      %5154 = vmatprep.mubr.bf16.mxu0 %v4677
      %5155 = vmatmul.mubr.bf16.gmra.mrb[0].mxu0 %v4676
      %v5156 = vpop.f32.mrb[0].mxu0
      %v5157 = vadd.f32 %v4765, %v5156
      %v5158 = vpop.f32.mrb[0].mxu0
      %v5159 = vadd.f32 %v4769, %v5158
      %v5160 = vpop.f32.mrb[0].mxu0
      %v5161 = vadd.f32 %v4765, %v5160
      %v5162 = vpop.f32.mrb[0].mxu0
      %v5163 = vadd.f32 %v4769, %v5162
      %5164 = vmatprep.mubr.bf16.mxu0 %v4681
      %5165 = vmatmul.mubr.bf16.gmra.mrb[0].mxu0 %v4680
      %v5166 = vpop.f32.mrb[0].mxu0
      %v5167 = vadd.f32 %v4765, %v5166
      %v5168 = vpop.f32.mrb[0].mxu0
      %v5169 = vadd.f32 %v4769, %v5168
      %v5170 = vpop.f32.mrb[0].mxu0
      %v5171 = vadd.f32 %v4765, %v5170
      %v5172 = vpop.f32.mrb[0].mxu0
      %v5173 = vadd.f32 %v4769, %v5172
      %5174 = vmatprep.mubr.bf16.mxu0 %v4685
      %5175 = vmatmul.mubr.bf16.gmra.mrb[0].mxu0 %v4684
      %v5176 = vpop.f32.mrb[0].mxu0
      %v5177 = vadd.f32 %v4765, %v5176
      %v5178 = vpop.f32.mrb[0].mxu0
      %v5179 = vadd.f32 %v4769, %v5178
      %v5180 = vpop.f32.mrb[0].mxu0
      %v5181 = vadd.f32 %v4765, %v5180
      %v5182 = vpop.f32.mrb[0].mxu0
      %v5183 = vadd.f32 %v4769, %v5182
      %5184 = vmatprep.mubr.bf16.mxu0 %v4689
      %5185 = vmatmul.mubr.bf16.gmra.mrb[0].mxu0 %v4688
      %v5186 = vpop.f32.mrb[0].mxu0
      %v5187 = vadd.f32 %v4765, %v5186
      %v5188 = vpop.f32.mrb[0].mxu0
      %v5189 = vadd.f32 %v4769, %v5188
      %v5190 = vpop.f32.mrb[0].mxu0
      %v5191 = vadd.f32 %v4765, %v5190
      %v5192 = vpop.f32.mrb[0].mxu0
      %v5193 = vadd.f32 %v4769, %v5192
      %5194 = vmatprep.mubr.bf16.mxu0 %v4693
      %5195 = vmatmul.mubr.bf16.gmra.mrb[0].mxu0 %v4692
      %v5196 = vpop.f32.mrb[0].mxu0
      %v5197 = vadd.f32 %v4765, %v5196
      %v5198 = vpop.f32.mrb[0].mxu0
      %v5199 = vadd.f32 %v4769, %v5198
      %v5200 = vpop.f32.mrb[0].mxu0
      %v5201 = vadd.f32 %v4765, %v5200
      %v5202 = vpop.f32.mrb[0].mxu0
      %v5203 = vadd.f32 %v4769, %v5202
      %5204 = vdwg.mxu0
      %5205 = vmatprep.subr.bf16.mxu0 %v4997
      %5206 = vmatpush1.bf16.msra.mxu0 %v4996
      %5207 = vmatprep.subr.bf16.mxu0 %v4999
      %5208 = vmatpush1.bf16.msra.mxu0 %v4998
      %5209 = vmatprep.subr.bf16.mxu0 %v5001
      %5210 = vmatpush1.bf16.msra.mxu0 %v5000
      %5211 = vmatprep.subr.bf16.mxu0 %v5003
      %5212 = vmatpush1.bf16.msra.mxu0 %v5002
      %5213 = vmatprep.subr.bf16.mxu0 %v5005
      %5214 = vmatpush1.bf16.msra.mxu0 %v5004
      %5215 = vmatprep.subr.bf16.mxu0 %v5007
      %5216 = vmatpush1.bf16.msra.mxu0 %v5006
      %5217 = vmatprep.subr.bf16.mxu0 %v5009
      %5218 = vmatpush1.bf16.msra.mxu0 %v5008
      %5219 = vmatprep.subr.bf16.mxu0 %v5011
      %5220 = vmatpush1.bf16.msra.mxu0 %v5010
      %5221 = vmatprep.subr.bf16.mxu0 %v5013
      %5222 = vmatpush1.bf16.msra.mxu0 %v5012
      %5223 = vmatprep.subr.bf16.mxu0 %v5015
      %5224 = vmatpush1.bf16.msra.mxu0 %v5014
      %5225 = vmatprep.subr.bf16.mxu0 %v5017
      %5226 = vmatpush1.bf16.msra.mxu0 %v5016
      %5227 = vmatprep.subr.bf16.mxu0 %v5019
      %5228 = vmatpush1.bf16.msra.mxu0 %v5018
      %5229 = vmatprep.subr.bf16.mxu0 %v5021
      %5230 = vmatpush1.bf16.msra.mxu0 %v5020
      %5231 = vmatprep.subr.bf16.mxu0 %v5023
      %5232 = vmatpush1.bf16.msra.mxu0 %v5022
      %5233 = vmatprep.subr.bf16.mxu0 %v5025
      %5234 = vmatpush1.bf16.msra.mxu0 %v5024
      %5235 = vmatprep.subr.bf16.mxu0 %v5027
      %5236 = vmatpush1.bf16.msra.mxu0 %v5026
      %5237 = vmatprep.mubr.bf16.mxu0 %v4667
      %5238 = vmatmul.mubr.bf16.gmra.mrb[0].mxu0 %v4666
      %v5239 = vpop.f32.mrb[0].mxu0
      %v5240 = vadd.f32 %v5127, %v5239
      %v5241 = vpop.f32.mrb[0].mxu0
      %v5242 = vadd.f32 %v5129, %v5241
      %v5243 = vpop.f32.mrb[0].mxu0
      %v5244 = vadd.f32 %v5131, %v5243
      %v5245 = vpop.f32.mrb[0].mxu0
      %v5246 = vadd.f32 %v5133, %v5245
      %5247 = vmatprep.mubr.bf16.mxu0 %v4671
      %5248 = vmatmul.mubr.bf16.gmra.mrb[0].mxu0 %v4670
      %v5249 = vpop.f32.mrb[0].mxu0
      %v5250 = vadd.f32 %v5137, %v5249
      %v5251 = vpop.f32.mrb[0].mxu0
      %v5252 = vadd.f32 %v5139, %v5251
      %v5253 = vpop.f32.mrb[0].mxu0
      %v5254 = vadd.f32 %v5141, %v5253
      %v5255 = vpop.f32.mrb[0].mxu0
      %v5256 = vadd.f32 %v5143, %v5255
      %5257 = vmatprep.mubr.bf16.mxu0 %v4675
      %5258 = vmatmul.mubr.bf16.gmra.mrb[0].mxu0 %v4674
      %v5259 = vpop.f32.mrb[0].mxu0
      %v5260 = vadd.f32 %v5147, %v5259
      %v5261 = vpop.f32.mrb[0].mxu0
      %v5262 = vadd.f32 %v5149, %v5261
      %v5263 = vpop.f32.mrb[0].mxu0
      %v5264 = vadd.f32 %v5151, %v5263
      %v5265 = vpop.f32.mrb[0].mxu0
      %v5266 = vadd.f32 %v5153, %v5265
      %5267 = vmatprep.mubr.bf16.mxu0 %v4679
      %5268 = vmatmul.mubr.bf16.gmra.mrb[0].mxu0 %v4678
      %v5269 = vpop.f32.mrb[0].mxu0
      %v5270 = vadd.f32 %v5157, %v5269
      %v5271 = vpop.f32.mrb[0].mxu0
      %v5272 = vadd.f32 %v5159, %v5271
      %v5273 = vpop.f32.mrb[0].mxu0
      %v5274 = vadd.f32 %v5161, %v5273
      %v5275 = vpop.f32.mrb[0].mxu0
      %v5276 = vadd.f32 %v5163, %v5275
      %5277 = vmatprep.mubr.bf16.mxu0 %v4683
      %5278 = vmatmul.mubr.bf16.gmra.mrb[0].mxu0 %v4682
      %v5279 = vpop.f32.mrb[0].mxu0
      %v5280 = vadd.f32 %v5167, %v5279
      %v5281 = vpop.f32.mrb[0].mxu0
      %v5282 = vadd.f32 %v5169, %v5281
      %v5283 = vpop.f32.mrb[0].mxu0
      %v5284 = vadd.f32 %v5171, %v5283
      %v5285 = vpop.f32.mrb[0].mxu0
      %v5286 = vadd.f32 %v5173, %v5285
      %5287 = vmatprep.mubr.bf16.mxu0 %v4687
      %5288 = vmatmul.mubr.bf16.gmra.mrb[0].mxu0 %v4686
      %v5289 = vpop.f32.mrb[0].mxu0
      %v5290 = vadd.f32 %v5177, %v5289
      %v5291 = vpop.f32.mrb[0].mxu0
      %v5292 = vadd.f32 %v5179, %v5291
      %v5293 = vpop.f32.mrb[0].mxu0
      %v5294 = vadd.f32 %v5181, %v5293
      %v5295 = vpop.f32.mrb[0].mxu0
      %v5296 = vadd.f32 %v5183, %v5295
      %5297 = vmatprep.mubr.bf16.mxu0 %v4691
      %5298 = vmatmul.mubr.bf16.gmra.mrb[0].mxu0 %v4690
      %v5299 = vpop.f32.mrb[0].mxu0
      %v5300 = vadd.f32 %v5187, %v5299
      %v5301 = vpop.f32.mrb[0].mxu0
      %v5302 = vadd.f32 %v5189, %v5301
      %v5303 = vpop.f32.mrb[0].mxu0
      %v5304 = vadd.f32 %v5191, %v5303
      %v5305 = vpop.f32.mrb[0].mxu0
      %v5306 = vadd.f32 %v5193, %v5305
      %5307 = vmatprep.mubr.bf16.mxu0 %v4695
      %5308 = vmatmul.mubr.bf16.gmra.mrb[0].mxu0 %v4694
      %v5309 = vpop.f32.mrb[0].mxu0
      %v5310 = vadd.f32 %v5197, %v5309
      %v5311 = vpop.f32.mrb[0].mxu0
      %v5312 = vadd.f32 %v5199, %v5311
      %v5313 = vpop.f32.mrb[0].mxu0
      %v5314 = vadd.f32 %v5201, %v5313
      %v5315 = vpop.f32.mrb[0].mxu0
      %v5316 = vadd.f32 %v5203, %v5315
      %5317 = vdwg.mxu0
      %v5318 = vadd.f32 %v5240, %v3408
      %v5319 = vadd.f32 %v5242, %v3409
      %v5320 = vadd.f32 %v5244, %v3410
      %v5321 = vadd.f32 %v5246, %v3411
      %v5322 = vadd.f32 %v5250, %v3412
      %v5323 = vadd.f32 %v5252, %v3413
      %v5324 = vadd.f32 %v5254, %v3414
      %v5325 = vadd.f32 %v5256, %v3415
      %v5326 = vadd.f32 %v5260, %v3416
      %v5327 = vadd.f32 %v5262, %v3417
      %v5328 = vadd.f32 %v5264, %v3418
      %v5329 = vadd.f32 %v5266, %v3419
      %v5330 = vadd.f32 %v5270, %v3420
      %v5331 = vadd.f32 %v5272, %v3421
      %v5332 = vadd.f32 %v5274, %v3422
      %v5333 = vadd.f32 %v5276, %v3423
      %v5334 = vadd.f32 %v5280, %v3424
      %v5335 = vadd.f32 %v5282, %v3425
      %v5336 = vadd.f32 %v5284, %v3426
      %v5337 = vadd.f32 %v5286, %v3427
      %v5338 = vadd.f32 %v5290, %v3428
      %v5339 = vadd.f32 %v5292, %v3429
      %v5340 = vadd.f32 %v5294, %v3430
      %v5341 = vadd.f32 %v5296, %v3431
      %v5342 = vadd.f32 %v5300, %v3432
      %v5343 = vadd.f32 %v5302, %v3433
      %v5344 = vadd.f32 %v5304, %v3434
      %v5345 = vadd.f32 %v5306, %v3435
      %v5346 = vadd.f32 %v5310, %v3436
      %v5347 = vadd.f32 %v5312, %v3437
      %v5348 = vadd.f32 %v5314, %v3438
      %v5349 = vadd.f32 %v5316, %v3439
      %v5350 = vld [vmem:[%s700] sm:$0x3]
      %v5351 = vld [vmem:[%s704] sm:$0x3]
      %v5352 = vadd.f32 %v5318, %v5319
      %5353 = vadd.xlane.f32.xlu0 %v5352
      %v5354 = vpop.xlane.xlu0 %5353
      %v5355 = vadd.f32 %v5320, %v5321
      %5356 = vadd.xlane.f32.xlu0 %v5355
      %v5357 = vpop.xlane.xlu0 %5356
      %v5358 = vadd.f32 %v5322, %v5323
      %5359 = vadd.xlane.f32.xlu0 %v5358
      %v5360 = vpop.xlane.xlu0 %5359
      %v5361 = vadd.f32 %v5324, %v5325
      %5362 = vadd.xlane.f32.xlu0 %v5361
      %v5363 = vpop.xlane.xlu0 %5362
      %v5364 = vadd.f32 %v5326, %v5327
      %5365 = vadd.xlane.f32.xlu0 %v5364
      %v5366 = vpop.xlane.xlu0 %5365
      %v5367 = vadd.f32 %v5328, %v5329
      %5368 = vadd.xlane.f32.xlu0 %v5367
      %v5369 = vpop.xlane.xlu0 %5368
      %v5370 = vadd.f32 %v5330, %v5331
      %5371 = vadd.xlane.f32.xlu0 %v5370
      %v5372 = vpop.xlane.xlu0 %5371
      %v5373 = vadd.f32 %v5332, %v5333
      %5374 = vadd.xlane.f32.xlu0 %v5373
      %v5375 = vpop.xlane.xlu0 %5374
      %v5376 = vadd.f32 %v5334, %v5335
      %5377 = vadd.xlane.f32.xlu0 %v5376
      %v5378 = vpop.xlane.xlu0 %5377
      %v5379 = vadd.f32 %v5336, %v5337
      %5380 = vadd.xlane.f32.xlu0 %v5379
      %v5381 = vpop.xlane.xlu0 %5380
      %v5382 = vadd.f32 %v5338, %v5339
      %5383 = vadd.xlane.f32.xlu0 %v5382
      %v5384 = vpop.xlane.xlu0 %5383
      %v5385 = vadd.f32 %v5340, %v5341
      %5386 = vadd.xlane.f32.xlu0 %v5385
      %v5387 = vpop.xlane.xlu0 %5386
      %v5388 = vadd.f32 %v5342, %v5343
      %5389 = vadd.xlane.f32.xlu0 %v5388
      %v5390 = vpop.xlane.xlu0 %5389
      %v5391 = vadd.f32 %v5344, %v5345
      %5392 = vadd.xlane.f32.xlu0 %v5391
      %v5393 = vpop.xlane.xlu0 %5392
      %v5394 = vadd.f32 %v5346, %v5347
      %5395 = vadd.xlane.f32.xlu0 %v5394
      %v5396 = vpop.xlane.xlu0 %5395
      %v5397 = vadd.f32 %v5348, %v5349
      %5398 = vadd.xlane.f32.xlu0 %v5397
      %v5399 = vpop.xlane.xlu0 %5398
      %v5400 = vmul.f32 %v5354, %v3145
      %v5401 = vmul.f32 %v5357, %v3145
      %v5402 = vmul.f32 %v5360, %v3145
      %v5403 = vmul.f32 %v5363, %v3145
      %v5404 = vmul.f32 %v5366, %v3145
      %v5405 = vmul.f32 %v5369, %v3145
      %v5406 = vmul.f32 %v5372, %v3145
      %v5407 = vmul.f32 %v5375, %v3145
      %v5408 = vmul.f32 %v5378, %v3145
      %v5409 = vmul.f32 %v5381, %v3145
      %v5410 = vmul.f32 %v5384, %v3145
      %v5411 = vmul.f32 %v5387, %v3145
      %v5412 = vmul.f32 %v5390, %v3145
      %v5413 = vmul.f32 %v5393, %v3145
      %v5414 = vmul.f32 %v5396, %v3145
      %v5415 = vmul.f32 %v5399, %v3145
      %v5416 = vsub.f32 %v5318, %v5400
      %v5417 = vsub.f32 %v5319, %v5400
      %v5418 = vsub.f32 %v5320, %v5401
      %v5419 = vsub.f32 %v5321, %v5401
      %v5420 = vsub.f32 %v5322, %v5402
      %v5421 = vsub.f32 %v5323, %v5402
      %v5422 = vsub.f32 %v5324, %v5403
      %v5423 = vsub.f32 %v5325, %v5403
      %v5424 = vsub.f32 %v5326, %v5404
      %v5425 = vsub.f32 %v5327, %v5404
      %v5426 = vsub.f32 %v5328, %v5405
      %v5427 = vsub.f32 %v5329, %v5405
      %v5428 = vsub.f32 %v5330, %v5406
      %v5429 = vsub.f32 %v5331, %v5406
      %v5430 = vsub.f32 %v5332, %v5407
      %v5431 = vsub.f32 %v5333, %v5407
      %v5432 = vsub.f32 %v5334, %v5408
      %v5433 = vsub.f32 %v5335, %v5408
      %v5434 = vsub.f32 %v5336, %v5409
      %v5435 = vsub.f32 %v5337, %v5409
      %v5436 = vsub.f32 %v5338, %v5410
      %v5437 = vsub.f32 %v5339, %v5410
      %v5438 = vsub.f32 %v5340, %v5411
      %v5439 = vsub.f32 %v5341, %v5411
      %v5440 = vsub.f32 %v5342, %v5412
      %v5441 = vsub.f32 %v5343, %v5412
      %v5442 = vsub.f32 %v5344, %v5413
      %v5443 = vsub.f32 %v5345, %v5413
      %v5444 = vsub.f32 %v5346, %v5414
      %v5445 = vsub.f32 %v5347, %v5414
      %v5446 = vsub.f32 %v5348, %v5415
      %v5447 = vsub.f32 %v5349, %v5415
      %v5448 = vmul.f32 %v5416, %v5416
      %v5449 = vmul.f32 %v5417, %v5417
      %v5450 = vmul.f32 %v5418, %v5418
      %v5451 = vmul.f32 %v5419, %v5419
      %v5452 = vmul.f32 %v5420, %v5420
      %v5453 = vmul.f32 %v5421, %v5421
      %v5454 = vmul.f32 %v5422, %v5422
      %v5455 = vmul.f32 %v5423, %v5423
      %v5456 = vmul.f32 %v5424, %v5424
      %v5457 = vmul.f32 %v5425, %v5425
      %v5458 = vmul.f32 %v5426, %v5426
      %v5459 = vmul.f32 %v5427, %v5427
      %v5460 = vmul.f32 %v5428, %v5428
      %v5461 = vmul.f32 %v5429, %v5429
      %v5462 = vmul.f32 %v5430, %v5430
      %v5463 = vmul.f32 %v5431, %v5431
      %v5464 = vmul.f32 %v5432, %v5432
      %v5465 = vmul.f32 %v5433, %v5433
      %v5466 = vmul.f32 %v5434, %v5434
      %v5467 = vmul.f32 %v5435, %v5435
      %v5468 = vmul.f32 %v5436, %v5436
      %v5469 = vmul.f32 %v5437, %v5437
      %v5470 = vmul.f32 %v5438, %v5438
      %v5471 = vmul.f32 %v5439, %v5439
      %v5472 = vmul.f32 %v5440, %v5440
      %v5473 = vmul.f32 %v5441, %v5441
      %v5474 = vmul.f32 %v5442, %v5442
      %v5475 = vmul.f32 %v5443, %v5443
      %v5476 = vmul.f32 %v5444, %v5444
      %v5477 = vmul.f32 %v5445, %v5445
      %v5478 = vmul.f32 %v5446, %v5446
      %v5479 = vmul.f32 %v5447, %v5447
      %v5480 = vadd.f32 %v5448, %v5449
      %5481 = vadd.xlane.f32.xlu0 %v5480
      %v5482 = vpop.xlane.xlu0 %5481
      %v5483 = vadd.f32 %v5450, %v5451
      %5484 = vadd.xlane.f32.xlu0 %v5483
      %v5485 = vpop.xlane.xlu0 %5484
      %v5486 = vadd.f32 %v5452, %v5453
      %5487 = vadd.xlane.f32.xlu0 %v5486
      %v5488 = vpop.xlane.xlu0 %5487
      %v5489 = vadd.f32 %v5454, %v5455
      %5490 = vadd.xlane.f32.xlu0 %v5489
      %v5491 = vpop.xlane.xlu0 %5490
      %v5492 = vadd.f32 %v5456, %v5457
      %5493 = vadd.xlane.f32.xlu0 %v5492
      %v5494 = vpop.xlane.xlu0 %5493
      %v5495 = vadd.f32 %v5458, %v5459
      %5496 = vadd.xlane.f32.xlu0 %v5495
      %v5497 = vpop.xlane.xlu0 %5496
      %v5498 = vadd.f32 %v5460, %v5461
      %5499 = vadd.xlane.f32.xlu0 %v5498
      %v5500 = vpop.xlane.xlu0 %5499
      %v5501 = vadd.f32 %v5462, %v5463
      %5502 = vadd.xlane.f32.xlu0 %v5501
      %v5503 = vpop.xlane.xlu0 %5502
      %v5504 = vadd.f32 %v5464, %v5465
      %5505 = vadd.xlane.f32.xlu0 %v5504
      %v5506 = vpop.xlane.xlu0 %5505
      %v5507 = vadd.f32 %v5466, %v5467
      %5508 = vadd.xlane.f32.xlu0 %v5507
      %v5509 = vpop.xlane.xlu0 %5508
      %v5510 = vadd.f32 %v5468, %v5469
      %5511 = vadd.xlane.f32.xlu0 %v5510
      %v5512 = vpop.xlane.xlu0 %5511
      %v5513 = vadd.f32 %v5470, %v5471
      %5514 = vadd.xlane.f32.xlu0 %v5513
      %v5515 = vpop.xlane.xlu0 %5514
      %v5516 = vadd.f32 %v5472, %v5473
      %5517 = vadd.xlane.f32.xlu0 %v5516
      %v5518 = vpop.xlane.xlu0 %5517
      %v5519 = vadd.f32 %v5474, %v5475
      %5520 = vadd.xlane.f32.xlu0 %v5519
      %v5521 = vpop.xlane.xlu0 %5520
      %v5522 = vadd.f32 %v5476, %v5477
      %5523 = vadd.xlane.f32.xlu0 %v5522
      %v5524 = vpop.xlane.xlu0 %5523
      %v5525 = vadd.f32 %v5478, %v5479
      %5526 = vadd.xlane.f32.xlu0 %v5525
      %v5527 = vpop.xlane.xlu0 %5526
      %v5528 = vmul.f32 %v5482, %v3145
      %v5529 = vmul.f32 %v5485, %v3145
      %v5530 = vmul.f32 %v5488, %v3145
      %v5531 = vmul.f32 %v5491, %v3145
      %v5532 = vmul.f32 %v5494, %v3145
      %v5533 = vmul.f32 %v5497, %v3145
      %v5534 = vmul.f32 %v5500, %v3145
      %v5535 = vmul.f32 %v5503, %v3145
      %v5536 = vmul.f32 %v5506, %v3145
      %v5537 = vmul.f32 %v5509, %v3145
      %v5538 = vmul.f32 %v5512, %v3145
      %v5539 = vmul.f32 %v5515, %v3145
      %v5540 = vmul.f32 %v5518, %v3145
      %v5541 = vmul.f32 %v5521, %v3145
      %v5542 = vmul.f32 %v5524, %v3145
      %v5543 = vmul.f32 %v5527, %v3145
      %v5544 = vadd.f32 %v5528, 1e-12
      %v5545 = vadd.f32 %v5529, 1e-12
      %v5546 = vadd.f32 %v5530, 1e-12
      %v5547 = vadd.f32 %v5531, 1e-12
      %v5548 = vadd.f32 %v5532, 1e-12
      %v5549 = vadd.f32 %v5533, 1e-12
      %v5550 = vadd.f32 %v5534, 1e-12
      %v5551 = vadd.f32 %v5535, 1e-12
      %v5552 = vadd.f32 %v5536, 1e-12
      %v5553 = vadd.f32 %v5537, 1e-12
      %v5554 = vadd.f32 %v5538, 1e-12
      %v5555 = vadd.f32 %v5539, 1e-12
      %v5556 = vadd.f32 %v5540, 1e-12
      %v5557 = vadd.f32 %v5541, 1e-12
      %v5558 = vadd.f32 %v5542, 1e-12
      %v5559 = vadd.f32 %v5543, 1e-12
      %v5560 = vrsqrt.pop %v5544
      %v5561 = vrsqrt.pop %v5545
      %v5562 = vrsqrt.pop %v5546
      %v5563 = vrsqrt.pop %v5547
      %v5564 = vrsqrt.pop %v5548
      %v5565 = vrsqrt.pop %v5549
      %v5566 = vrsqrt.pop %v5550
      %v5567 = vrsqrt.pop %v5551
      %v5568 = vrsqrt.pop %v5552
      %v5569 = vrsqrt.pop %v5553
      %v5570 = vrsqrt.pop %v5554
      %v5571 = vrsqrt.pop %v5555
      %v5572 = vrsqrt.pop %v5556
      %v5573 = vrsqrt.pop %v5557
      %v5574 = vrsqrt.pop %v5558
      %v5575 = vrsqrt.pop %v5559
      %v5576 = vmul.f32 %v5416, %v5560
      %v5577 = vmul.f32 %v5417, %v5560
      %v5578 = vmul.f32 %v5418, %v5561
      %v5579 = vmul.f32 %v5419, %v5561
      %v5580 = vmul.f32 %v5420, %v5562
      %v5581 = vmul.f32 %v5421, %v5562
      %v5582 = vmul.f32 %v5422, %v5563
      %v5583 = vmul.f32 %v5423, %v5563
      %v5584 = vmul.f32 %v5424, %v5564
      %v5585 = vmul.f32 %v5425, %v5564
      %v5586 = vmul.f32 %v5426, %v5565
      %v5587 = vmul.f32 %v5427, %v5565
      %v5588 = vmul.f32 %v5428, %v5566
      %v5589 = vmul.f32 %v5429, %v5566
      %v5590 = vmul.f32 %v5430, %v5567
      %v5591 = vmul.f32 %v5431, %v5567
      %v5592 = vmul.f32 %v5432, %v5568
      %v5593 = vmul.f32 %v5433, %v5568
      %v5594 = vmul.f32 %v5434, %v5569
      %v5595 = vmul.f32 %v5435, %v5569
      %v5596 = vmul.f32 %v5436, %v5570
      %v5597 = vmul.f32 %v5437, %v5570
      %v5598 = vmul.f32 %v5438, %v5571
      %v5599 = vmul.f32 %v5439, %v5571
      %v5600 = vmul.f32 %v5440, %v5572
      %v5601 = vmul.f32 %v5441, %v5572
      %v5602 = vmul.f32 %v5442, %v5573
      %v5603 = vmul.f32 %v5443, %v5573
      %v5604 = vmul.f32 %v5444, %v5574
      %v5605 = vmul.f32 %v5445, %v5574
      %v5606 = vmul.f32 %v5446, %v5575
      %v5607 = vmul.f32 %v5447, %v5575
      %v5609 = vlaneseq
      %v5610 = vshrl.u32 %v5609, 7
      %v5611 = vsub.s32 0, %v5610
      %v5612 = vrot.slane %v5350, %v5611
      %v5613 = vlaneseq
      %v5614 = vshrl.u32 %v5613, 7
      %v5615 = vsub.s32 1, %v5614
      %v5616 = vrot.slane %v5350, %v5615
      %v5619 = vmul.f32 %v5576, %v5612
      %v5620 = vmul.f32 %v5577, %v5616
      %v5621 = vmul.f32 %v5578, %v5612
      %v5622 = vmul.f32 %v5579, %v5616
      %v5623 = vmul.f32 %v5580, %v5612
      %v5624 = vmul.f32 %v5581, %v5616
      %v5625 = vmul.f32 %v5582, %v5612
      %v5626 = vmul.f32 %v5583, %v5616
      %v5627 = vmul.f32 %v5584, %v5612
      %v5628 = vmul.f32 %v5585, %v5616
      %v5629 = vmul.f32 %v5586, %v5612
      %v5630 = vmul.f32 %v5587, %v5616
      %v5631 = vmul.f32 %v5588, %v5612
      %v5632 = vmul.f32 %v5589, %v5616
      %v5633 = vmul.f32 %v5590, %v5612
      %v5634 = vmul.f32 %v5591, %v5616
      %v5635 = vmul.f32 %v5592, %v5612
      %v5636 = vmul.f32 %v5593, %v5616
      %v5637 = vmul.f32 %v5594, %v5612
      %v5638 = vmul.f32 %v5595, %v5616
      %v5639 = vmul.f32 %v5596, %v5612
      %v5640 = vmul.f32 %v5597, %v5616
      %v5641 = vmul.f32 %v5598, %v5612
      %v5642 = vmul.f32 %v5599, %v5616
      %v5643 = vmul.f32 %v5600, %v5612
      %v5644 = vmul.f32 %v5601, %v5616
      %v5645 = vmul.f32 %v5602, %v5612
      %v5646 = vmul.f32 %v5603, %v5616
      %v5647 = vmul.f32 %v5604, %v5612
      %v5648 = vmul.f32 %v5605, %v5616
      %v5649 = vmul.f32 %v5606, %v5612
      %v5650 = vmul.f32 %v5607, %v5616
      %v5652 = vlaneseq
      %v5653 = vshrl.u32 %v5652, 7
      %v5654 = vsub.s32 0, %v5653
      %v5655 = vrot.slane %v5351, %v5654
      %v5656 = vlaneseq
      %v5657 = vshrl.u32 %v5656, 7
      %v5658 = vsub.s32 1, %v5657
      %v5659 = vrot.slane %v5351, %v5658
      %v5662 = vadd.f32 %v5619, %v5655
      %v5663 = vadd.f32 %v5620, %v5659
      %v5664 = vadd.f32 %v5621, %v5655
      %v5665 = vadd.f32 %v5622, %v5659
      %v5666 = vadd.f32 %v5623, %v5655
      %v5667 = vadd.f32 %v5624, %v5659
      %v5668 = vadd.f32 %v5625, %v5655
      %v5669 = vadd.f32 %v5626, %v5659
      %v5670 = vadd.f32 %v5627, %v5655
      %v5671 = vadd.f32 %v5628, %v5659
      %v5672 = vadd.f32 %v5629, %v5655
      %v5673 = vadd.f32 %v5630, %v5659
      %v5674 = vadd.f32 %v5631, %v5655
      %v5675 = vadd.f32 %v5632, %v5659
      %v5676 = vadd.f32 %v5633, %v5655
      %v5677 = vadd.f32 %v5634, %v5659
      %v5678 = vadd.f32 %v5635, %v5655
      %v5679 = vadd.f32 %v5636, %v5659
      %v5680 = vadd.f32 %v5637, %v5655
      %v5681 = vadd.f32 %v5638, %v5659
      %v5682 = vadd.f32 %v5639, %v5655
      %v5683 = vadd.f32 %v5640, %v5659
      %v5684 = vadd.f32 %v5641, %v5655
      %v5685 = vadd.f32 %v5642, %v5659
      %v5686 = vadd.f32 %v5643, %v5655
      %v5687 = vadd.f32 %v5644, %v5659
      %v5688 = vadd.f32 %v5645, %v5655
      %v5689 = vadd.f32 %v5646, %v5659
      %v5690 = vadd.f32 %v5647, %v5655
      %v5691 = vadd.f32 %v5648, %v5659
      %v5692 = vadd.f32 %v5649, %v5655
      %v5693 = vadd.f32 %v5650, %v5659
      %5694 = vst [vmem:[%s709] sm:$0xff] %v5662
      %5695 = vst [vmem:[%s709 + $0x8] sm:$0xff] %v5663
      %5696 = vst [vmem:[%s709 + $0x10] sm:$0xff] %v5664
      %5697 = vst [vmem:[%s709 + $0x18] sm:$0xff] %v5665
      %5698 = vst [vmem:[%s709 + $0x20] sm:$0xff] %v5666
      %5699 = vst [vmem:[%s709 + $0x28] sm:$0xff] %v5667
      %5700 = vst [vmem:[%s709 + $0x30] sm:$0xff] %v5668
      %5701 = vst [vmem:[%s709 + $0x38] sm:$0xff] %v5669
      %5702 = vst [vmem:[%s709 + $0x40] sm:$0xff] %v5670
      %5703 = vst [vmem:[%s709 + $0x48] sm:$0xff] %v5671
      %5704 = vst [vmem:[%s709 + $0x50] sm:$0xff] %v5672
      %5705 = vst [vmem:[%s709 + $0x58] sm:$0xff] %v5673
      %5706 = vst [vmem:[%s709 + $0x60] sm:$0xff] %v5674
      %5707 = vst [vmem:[%s709 + $0x68] sm:$0xff] %v5675
      %5708 = vst [vmem:[%s709 + $0x70] sm:$0xff] %v5676
      %5709 = vst [vmem:[%s709 + $0x78] sm:$0xff] %v5677
      %5710 = vst [vmem:[%s709 + $0x80] sm:$0xff] %v5678
      %5711 = vst [vmem:[%s709 + $0x88] sm:$0xff] %v5679
      %5712 = vst [vmem:[%s709 + $0x90] sm:$0xff] %v5680
      %5713 = vst [vmem:[%s709 + $0x98] sm:$0xff] %v5681
      %5714 = vst [vmem:[%s709 + $0xa0] sm:$0xff] %v5682
      %5715 = vst [vmem:[%s709 + $0xa8] sm:$0xff] %v5683
      %5716 = vst [vmem:[%s709 + $0xb0] sm:$0xff] %v5684
      %5717 = vst [vmem:[%s709 + $0xb8] sm:$0xff] %v5685
      %5718 = vst [vmem:[%s709 + $0xc0] sm:$0xff] %v5686
      %5719 = vst [vmem:[%s709 + $0xc8] sm:$0xff] %v5687
      %5720 = vst [vmem:[%s709 + $0xd0] sm:$0xff] %v5688
      %5721 = vst [vmem:[%s709 + $0xd8] sm:$0xff] %v5689
      %5722 = vst [vmem:[%s709 + $0xe0] sm:$0xff] %v5690
      %5723 = vst [vmem:[%s709 + $0xe8] sm:$0xff] %v5691
      %5724 = vst [vmem:[%s709 + $0xf0] sm:$0xff] %v5692
      %5725 = vst [vmem:[%s709 + $0xf8] sm:$0xff] %v5693
      %p5726 = scmp.lt.s32.totalorder %s29, 1
      %s5727 = scalar_select %p5726, %s29, 1
      %s5728 = smul.addr %s5727, 32
      %s5729 = smul.addr %s5728, 8
      %s5730 = scalar_lea.vmem %s14, %s5729
      // Predicated region
      $region81: #{bert_classifier_forward.4} parent=75 // pred_check
        %p5731 = pneg %p419
      $region82: #{bert_classifier_forward.4} parent=75 // pred_check_branch
        %5733 = sbr.rel (%p5731) target = $region84
      $region83: #{bert_classifier_forward.4} parent=75 // pred_region
        _
      $region84: #{bert_classifier_forward.4} parent=75 // pred_fallthru
        _
    $region76: #{bert_classifier_forward.4} parent=5 // pred_fallthru
      _
    %p5734 = scmp.le.s32.totalorder 2, %s20
    // Predicated region
    $region85: #{bert_classifier_forward.4} parent=5 // pred_check
      %p5735 = pneg %p5734
    $region86: #{bert_classifier_forward.4} parent=5 // pred_check_branch
      %5737 = sbr.rel (%p5735) target = $region88
    $region87: #{bert_classifier_forward.4} parent=5 // pred_region
      %s5738 = ssub.s32 %s20, 2
      // Predicated region
      $region89: #{bert_classifier_forward.4} parent=87 // pred_check
        %p5739 = pneg %p425
      $region90: #{bert_classifier_forward.4} parent=87 // pred_check_branch
        %5741 = sbr.rel (%p5739) target = $region92
      $region91: #{bert_classifier_forward.4} parent=87 // pred_region
        %p5742 = scmp.lt.s32.totalorder %s31, 1
        %s5743 = scalar_select %p5742, %s31, 1
        %s5744 = smul.addr %s5743, 32
        %s5745 = smul.addr %s5744, 8
        %s5746 = scalar_lea.vmem %s14, %s5745
      $region92: #{bert_classifier_forward.4} parent=87 // pred_fallthru
        _
    $region88: #{bert_classifier_forward.4} parent=5 // pred_fallthru
      _
  $region6: #{bert_classifier_forward.4} parent=0 // loop_footer
    %s24 = sadd.s32 1, %s20
  $region7: #{bert_classifier_forward.4} parent=0 // loop_footer_branch
    %19 = sbr.rel target = $region3
  $region8: #{bert_classifier_forward.4} parent=0 // loop_exit
    _

</llo_original>
